<compile_context>
chip_gen: v5e
topology: v5e:2x2
jax: 0.10.0
libtpu: 0.0.40
codegen_flags: <defaults>
</compile_context>

<pallas_src>
from functools import partial

import jax
import jax.numpy as jnp
from jax import lax
from jax.experimental import pallas as pl
from jax.experimental.pallas import tpu as pltpu

OP_NAMES = ("none", "skip_connect", "nor_conv_1x1", "nor_conv_3x3", "avg_pool_3x3")
NUM_OPS = len(OP_NAMES)
BN_EPS = 1e-5

# Matmul operand dtype: set to jnp.bfloat16 on v6e/v7x for the native bf16 MXU
# path (and half the weight DMA bytes).  Kept at f32 here so the numerics match
# the pure-f32 reference within tight tolerances.
CONV_DTYPE = jnp.float32

# >= the scoped default on every generation, <= physical VMEM on v7x (64 MiB).
VMEM_LIMIT_BYTES = 32 * 1024 * 1024


# ----------------------------- Pallas kernels ---------------------------------
def _conv_stats_kernel(xs_ref, w_ref, sum_ref, sq_ref, pm_ref):
    """Pass 1: per-edge channel sum / sum-of-squares of the fused conv output.

    grid = (num_edges, num_batch_tiles); the stats blocks (indexed by edge only)
    stay resident in VMEM while the batch axis (fastest) accumulates into them.

    xs_ref:  (bt, H+2, W+2, C)  padded source features for this (edge, batch tile)
    w_ref:   (1, 9C, 2C)        fused conv weight  [cols 0:C -> 3x3, C:2C -> 1x1]
    sum_ref: (1, 1, 2C)         running channel sum
    sq_ref:  (1, 1, 2C)         running channel sum of squares
    pm_ref:  (bt*H*W, 9C)       VMEM scratch: in-kernel im2col tile
    """
    bt, Hp, Wp, C = xs_ref.shape
    H, W = Hp - 2, Wp - 2
    M2 = bt * H * W

    @pl.when(pl.program_id(1) == 0)
    def _():
        sum_ref[...] = jnp.zeros_like(sum_ref)
        sq_ref[...] = jnp.zeros_like(sq_ref)

    xp = xs_ref[...]
    k = 0
    for ky in range(3):                       # static unroll over the 3x3 taps
        for kx in range(3):
            t = xp[:, ky:ky + H, kx:kx + W, :]
            pm_ref[:, k * C:(k + 1) * C] = jnp.maximum(t, 0.0).reshape(M2, C)
            k += 1

    # One fused MXU matmul for both convs (K = 9C, Nout = 2C).
    y = jnp.dot(pm_ref[...].astype(CONV_DTYPE), w_ref[0].astype(CONV_DTYPE),
                preferred_element_type=jnp.float32)            # (M2, 2C)
    sum_ref[...] += jnp.sum(y, axis=0, keepdims=True)[None]
    sq_ref[...] += jnp.sum(y * y, axis=0, keepdims=True)[None]


def _edge_mix_kernel(xs_ref, w_ref, ss_ref, out_ref, pm_ref):
    """Pass 2: fused conv + BN (+arch-weight pre-folded) + skip + avg-pool mix,
    accumulated into the node output across the edge axis.

    grid = (num_batch_tiles, num_edges); the node-output block (indexed by the
    batch tile only) stays resident in VMEM across the edge axis (fastest).

    xs_ref:  (bt, H+2, W+2, C)
    w_ref:   (1, 9C, 2C)
    ss_ref:  (1, 4, 2C)   rows: [bn_scale*aw_conv, bn_shift*aw_conv, aw_skip, aw_pool]
    out_ref: (bt, H, W, C)
    pm_ref:  (bt*H*W, 9C) VMEM scratch: in-kernel im2col tile
    """
    bt, Hp, Wp, C = xs_ref.shape
    H, W = Hp - 2, Wp - 2
    M2 = bt * H * W

    xp = xs_ref[...]
    x_c = xp[:, 1:H + 1, 1:W + 1, :]                  # identity / skip input
    pool_sum = jnp.zeros((bt, H, W, C), jnp.float32)
    k = 0
    for ky in range(3):
        for kx in range(3):
            t = xp[:, ky:ky + H, kx:kx + W, :]
            pool_sum = pool_sum + t                   # un-ReLU'd taps for avg-pool
            pm_ref[:, k * C:(k + 1) * C] = jnp.maximum(t, 0.0).reshape(M2, C)
            k += 1

    y = jnp.dot(pm_ref[...].astype(CONV_DTYPE), w_ref[0].astype(CONV_DTYPE),
                preferred_element_type=jnp.float32)   # (M2, 2C)

    ss = ss_ref[0]                                    # (4, 2C)
    yn = y * ss[0:1, :] + ss[1:2, :]                  # BN + arch weight (pre-folded)
    conv_mix = (yn[:, :C] + yn[:, C:]).reshape(bt, H, W, C)

    # avg_pool_3x3, stride 1, pad 1, count_include_pad=False: divisor from iota.
    hi = lax.broadcasted_iota(jnp.int32, (bt, H, W, C), 1)
    wi = lax.broadcasted_iota(jnp.int32, (bt, H, W, C), 2)
    ch = 3 - (hi == 0).astype(jnp.int32) - (hi == H - 1).astype(jnp.int32)
    cw = 3 - (wi == 0).astype(jnp.int32) - (wi == W - 1).astype(jnp.int32)
    inv_cnt = 1.0 / (ch * cw).astype(jnp.float32)

    skip = x_c * ss[2:3, :C].reshape(1, 1, 1, C)
    pool = pool_sum * inv_cnt * ss[3:4, :C].reshape(1, 1, 1, C)

    @pl.when(pl.program_id(1) == 0)                   # first edge of this node
    def _():
        out_ref[...] = jnp.zeros_like(out_ref)
    out_ref[...] += conv_mix + skip + pool


# --------------------------- pallas_call wrappers ------------------------------
def _conv_stats_call(xs_flat, wstack, *, E, Nb, bt, Hp, Wp, C):
    H, W = Hp - 2, Wp - 2
    return pl.pallas_call(
        _conv_stats_kernel,
        out_shape=(jax.ShapeDtypeStruct((E, 1, 2 * C), jnp.float32),
                   jax.ShapeDtypeStruct((E, 1, 2 * C), jnp.float32)),
        grid=(E, Nb),
        in_specs=[
            pl.BlockSpec((bt, Hp, Wp, C), lambda e, b: (e * Nb + b, 0, 0, 0)),
            pl.BlockSpec((1, 9 * C, 2 * C), lambda e, b: (e, 0, 0)),
        ],
        out_specs=(pl.BlockSpec((1, 1, 2 * C), lambda e, b: (e, 0, 0)),
                   pl.BlockSpec((1, 1, 2 * C), lambda e, b: (e, 0, 0))),
        scratch_shapes=[pltpu.VMEM((bt * H * W, 9 * C), jnp.float32)],
        compiler_params=pltpu.CompilerParams(
            dimension_semantics=("parallel", "arbitrary"),
            vmem_limit_bytes=VMEM_LIMIT_BYTES),
    )(xs_flat, wstack)


def _edge_mix_call(xs_flat, wstack, ss, *, E, Nb, bt, Hp, Wp, C, N):
    H, W = Hp - 2, Wp - 2
    return pl.pallas_call(
        _edge_mix_kernel,
        out_shape=jax.ShapeDtypeStruct((N, H, W, C), jnp.float32),
        grid=(Nb, E),
        in_specs=[
            pl.BlockSpec((bt, Hp, Wp, C), lambda b, e: (e * Nb + b, 0, 0, 0)),
            pl.BlockSpec((1, 9 * C, 2 * C), lambda b, e: (e, 0, 0)),
            pl.BlockSpec((1, 4, 2 * C), lambda b, e: (e, 0, 0)),
        ],
        out_specs=pl.BlockSpec((bt, H, W, C), lambda b, e: (b, 0, 0, 0)),
        scratch_shapes=[pltpu.VMEM((bt * H * W, 9 * C), jnp.float32)],
        compiler_params=pltpu.CompilerParams(
            dimension_semantics=("parallel", "arbitrary"),
            vmem_limit_bytes=VMEM_LIMIT_BYTES),
    )(xs_flat, wstack, ss)


# ------------------------------ glue (layout) ----------------------------------
def _edge_topology(max_nodes):
    edge_keys = sorted('{:}<-{:}'.format(i, j)
                       for i in range(1, max_nodes) for j in range(i))
    edge2index = {k: idx for idx, k in enumerate(edge_keys)}
    return edge_keys, edge2index


def _choose_batch_tile(N, Hp, Wp, C):
    """Largest divisor of N whose padded-input block stays <= 256 KiB (keeps the
    in-kernel im2col scratch and temporaries comfortably inside v7x VMEM)."""
    budget = 256 * 1024
    bt = 1
    for d in range(1, N + 1):
        if N % d == 0 and d * Hp * Wp * C * 4 <= budget:
            bt = d
    return bt


@partial(jax.jit, static_argnums=(3,))
def search_cell_forward(x_nchw, weightss, edge_params, max_nodes):
    """Mirrors SearchCell.forward(inputs, weightss) (stride-1 cell, batch-stat BN)."""
    x = jnp.transpose(x_nchw, (0, 2, 3, 1)).astype(jnp.float32)      # NCHW -> NHWC
    N, H, W, C = x.shape
    Hp, Wp = H + 2, W + 2
    M = N * H * W
    bt = _choose_batch_tile(N, Hp, Wp, C)
    Nb = N // bt
    _, edge2index = _edge_topology(max_nodes)

    def pad_hw(z):                                                   # spatial pad=1
        return jnp.pad(z, ((0, 0), (1, 1), (1, 1), (0, 0)))

    def fused_weight(p):
        # (9C, 2C): rows are tap-major (tap k -> rows k*C:(k+1)*C);
        # cols 0:C -> nor_conv_3x3, cols C:2C -> nor_conv_1x1 (centre tap only).
        w = jnp.zeros((9 * C, 2 * C), jnp.float32)
        w = w.at[:, :C].set(p['w3'].reshape(9 * C, C))
        w = w.at[4 * C:5 * C, C:].set(p['w1'])
        return w

    padded_nodes = [pad_hw(x)]
    node_out = None
    for i in range(1, max_nodes):
        eids = [edge2index['{:}<-{:}'.format(i, j)] for j in range(i)]
        E = len(eids)
        xs_flat = jnp.stack(padded_nodes[:i], axis=0).reshape(E * N, Hp, Wp, C)
        wstack = jnp.stack([fused_weight(edge_params[e]) for e in eids], axis=0)
        gstack = jnp.stack([jnp.concatenate([edge_params[e]['g3'][0],
                                             edge_params[e]['g1'][0]]) for e in eids])
        bstack = jnp.stack([jnp.concatenate([edge_params[e]['b3'][0],
                                             edge_params[e]['b1'][0]]) for e in eids])
        aw = weightss[jnp.asarray(eids)]                             # (E, NUM_OPS)

        # --- pass 1: batch statistics of the fused conv outputs (per edge) ---
        s_sum, s_sq = _conv_stats_call(xs_flat, wstack, E=E, Nb=Nb,
                                       bt=bt, Hp=Hp, Wp=Wp, C=C)
        mean = s_sum[:, 0, :] / M                                    # (E, 2C)
        var = s_sq[:, 0, :] / M - mean * mean
        scale = gstack * lax.rsqrt(var + BN_EPS)
        shift = bstack - mean * scale
        awvec = jnp.concatenate([jnp.repeat(aw[:, 3:4], C, axis=1),  # nor_conv_3x3
                                 jnp.repeat(aw[:, 2:3], C, axis=1)], # nor_conv_1x1
                                axis=1)                              # (E, 2C)
        ss = jnp.stack([scale * awvec, shift * awvec,
                        jnp.repeat(aw[:, 1:2], 2 * C, axis=1),       # skip_connect
                        jnp.repeat(aw[:, 4:5], 2 * C, axis=1)],      # avg_pool_3x3
                       axis=1)                                       # (E, 4, 2C)

        # --- pass 2: normalize + mix ops + accumulate all edges of node i ---
        node_out = _edge_mix_call(xs_flat, wstack, ss, E=E, Nb=Nb,
                                  bt=bt, Hp=Hp, Wp=Wp, C=C, N=N)     # (N, H, W, C)
        if i < max_nodes - 1:
            padded_nodes.append(pad_hw(node_out))

    return jnp.transpose(node_out, (0, 3, 1, 2))                     # NHWC -> NCHW


# --------------------------- pure-JAX reference --------------------------------
def _make_inv_count(H, W):
    ones = jnp.pad(jnp.ones((H, W), jnp.float32), ((1, 1), (1, 1)))
    cnt = sum(ones[ky:ky + H, kx:kx + W] for ky in range(3) for kx in range(3))
    return 1.0 / cnt


def _ref_edge(x_nhwc, inv_hw, p, aw):
    N, H, W, C = x_nhwc.shape
    xp = jnp.pad(x_nhwc, ((0, 0), (1, 1), (1, 1), (0, 0)))
    r = jnp.maximum(xp, 0.0)
    y1 = jnp.einsum('nhwc,cd->nhwd', r[:, 1:H + 1, 1:W + 1, :], p['w1'])
    y3 = sum(jnp.einsum('nhwc,cd->nhwd', r[:, ky:ky + H, kx:kx + W, :],
                        p['w3'][ky * 3 + kx])
             for ky in range(3) for kx in range(3))

    def bn(y, g, b):
        m = jnp.mean(y, axis=(0, 1, 2), keepdims=True)
        v = jnp.mean((y - m) ** 2, axis=(0, 1, 2), keepdims=True)
        return (y - m) * lax.rsqrt(v + BN_EPS) * g.reshape(1, 1, 1, C) \
            + b.reshape(1, 1, 1, C)

    y1n, y3n = bn(y1, p['g1'], p['b1']), bn(y3, p['g3'], p['b3'])
    psum = sum(xp[:, ky:ky + H, kx:kx + W, :] for ky in range(3) for kx in range(3))
    pool = psum * inv_hw[None, :, :, None]
    return aw[1] * x_nhwc + aw[2] * y1n + aw[3] * y3n + aw[4] * pool


def ref_forward(x_nchw, weightss, edge_params, max_nodes):
    x = jnp.transpose(x_nchw, (0, 2, 3, 1)).astype(jnp.float32)
    H, W = x.shape[1], x.shape[2]
    inv_hw = _make_inv_count(H, W)
    _, edge2index = _edge_topology(max_nodes)
    nodes = [x]
    for i in range(1, max_nodes):
        acc = None
        for j in range(i):
            e = edge2index['{:}<-{:}'.format(i, j)]
            y = _ref_edge(nodes[j], inv_hw, edge_params[e], weightss[e])
            acc = y if acc is None else acc + y
        nodes.append(acc)
    return jnp.transpose(nodes[-1], (0, 3, 1, 2))


# ----------------------------- parameter init ----------------------------------
def init_edge_params(key, C, num_edges):
    params = []
    for _ in range(num_edges):
        key, k1, k3 = jax.random.split(key, 3)
        params.append(dict(
            w1=jax.random.normal(k1, (C, C), jnp.float32) * 0.1,
            w3=jax.random.normal(k3, (9, C, C), jnp.float32) * 0.05,
            g1=jnp.ones((1, C), jnp.float32), b1=jnp.zeros((1, C), jnp.float32),
            g3=jnp.ones((1, C), jnp.float32), b3=jnp.zeros((1, C), jnp.float32)))
    return params


if __name__ == "__main__":
    N, C, H, W = 2, 16, 8, 8
    MAX_NODES = 4
    NUM_EDGES = sum(range(MAX_NODES))          # 6 edges

    key = jax.random.PRNGKey(0)
    kx, ka, kp = jax.random.split(key, 3)
    x = jax.random.normal(kx, (N, C, H, W), jnp.float32)             # NCHW input
    alphas = jax.random.normal(ka, (NUM_EDGES, NUM_OPS), jnp.float32)
    weightss = jax.nn.softmax(alphas, axis=1)                        # edge x op weights
    edge_params = init_edge_params(kp, C, NUM_EDGES)

    out = jax.block_until_ready(search_cell_forward(x, weightss, edge_params, MAX_NODES))
    ref = jax.block_until_ready(ref_forward(x, weightss, edge_params, MAX_NODES))

    assert out.shape == (N, C, H, W)
    assert jnp.allclose(out, ref, rtol=1e-3, atol=1e-3), \
        f"max abs diff {jnp.max(jnp.abs(out - ref))}"

    print("KERNEL_OK")
</pallas_src>

<mosaic_0001>
module attributes {stable_mosaic.version = 11 : i64} {
  func.func @_conv_stats_kernel(%arg0: i32, %arg1: i32, %arg2: memref<2x10x10x16xf32, #tpu.memory_space<vmem>>, %arg3: memref<1x144x32xf32, #tpu.memory_space<vmem>>, %arg4: memref<1x1x32xf32, #tpu.memory_space<vmem>>, %arg5: memref<1x1x32xf32, #tpu.memory_space<vmem>>, %arg6: memref<128x144xf32, #tpu.memory_space<vmem>>) attributes {dimension_semantics = [#tpu.dimension_semantics<parallel>, #tpu.dimension_semantics<arbitrary>], iteration_bounds = array<i64: 1, 1>, scalar_prefetch = 0 : i64, scratch_operands = 1 : i64, tpu.core_type = #tpu.core_type<tc>, window_params = [{transform_indices = @transform_0, window_bounds = array<i64: 2, 10, 10, 16>}, {transform_indices = @transform_1, window_bounds = array<i64: 1, 144, 32>}, {transform_indices = @transform_2, window_bounds = array<i64: 1, 1, 32>}, {transform_indices = @transform_3, window_bounds = array<i64: 1, 1, 32>}]} {
    %c0_i32 = arith.constant 0 : i32
    %0 = arith.cmpi eq, %arg1, %c0_i32 : i32
    %1 = arith.extui %0 : i1 to i32
    %c0_i32_0 = arith.constant 0 : i32
    %2 = arith.cmpi ne, %1, %c0_i32_0 : i32
    scf.if %2 {
      %cst_42 = arith.constant 0.000000e+00 : f32
      %66 = vector.broadcast %cst_42 : f32 to vector<1x1x32xf32>
      %c0_43 = arith.constant 0 : index
      %c0_44 = arith.constant 0 : index
      %c0_45 = arith.constant 0 : index
      %67 = vector.load %arg4[%c0_43, %c0_44, %c0_45] : memref<1x1x32xf32, #tpu.memory_space<vmem>>, vector<1x1x32xf32>
      tpu.vector_store %arg4[%c0_43, %c0_44, %c0_45], %66 {strides = array<i32>} : memref<1x1x32xf32, #tpu.memory_space<vmem>>, vector<1x1x32xf32>,
      %cst_46 = arith.constant 0.000000e+00 : f32
      %68 = vector.broadcast %cst_46 : f32 to vector<1x1x32xf32>
      %c0_47 = arith.constant 0 : index
      %c0_48 = arith.constant 0 : index
      %c0_49 = arith.constant 0 : index
      %69 = vector.load %arg5[%c0_47, %c0_48, %c0_49] : memref<1x1x32xf32, #tpu.memory_space<vmem>>, vector<1x1x32xf32>
      tpu.vector_store %arg5[%c0_47, %c0_48, %c0_49], %68 {strides = array<i32>} : memref<1x1x32xf32, #tpu.memory_space<vmem>>, vector<1x1x32xf32>,
    } else {
    }
    %c0 = arith.constant 0 : index
    %c0_1 = arith.constant 0 : index
    %c0_2 = arith.constant 0 : index
    %c0_3 = arith.constant 0 : index
    %3 = vector.load %arg2[%c0, %c0_1, %c0_2, %c0_3] : memref<2x10x10x16xf32, #tpu.memory_space<vmem>>, vector<2x10x10x16xf32>
    %4 = vector.extract_strided_slice %3 {offsets = [0, 0, 0, 0], sizes = [2, 8, 8, 16], strides = [1, 1, 1, 1]} : vector<2x10x10x16xf32> to vector<2x8x8x16xf32>
    %cst = arith.constant 0.000000e+00 : f32
    %5 = vector.broadcast %cst : f32 to vector<2x8x8x16xf32>
    %6 = arith.maximumf %4, %5 : vector<2x8x8x16xf32>
    %7 = vector.shape_cast %6 : vector<2x8x8x16xf32> to vector<128x16xf32>
    %c0_4 = arith.constant 0 : index
    %c0_5 = arith.constant 0 : index
    %8 = vector.load %arg6[%c0_4, %c0_5] : memref<128x144xf32, #tpu.memory_space<vmem>>, vector<128x16xf32>
    tpu.vector_store %arg6[%c0_4, %c0_5], %7 {strides = array<i32>} : memref<128x144xf32, #tpu.memory_space<vmem>>, vector<128x16xf32>,
    %9 = vector.extract_strided_slice %3 {offsets = [0, 0, 1, 0], sizes = [2, 8, 8, 16], strides = [1, 1, 1, 1]} : vector<2x10x10x16xf32> to vector<2x8x8x16xf32>
    %cst_6 = arith.constant 0.000000e+00 : f32
    %10 = vector.broadcast %cst_6 : f32 to vector<2x8x8x16xf32>
    %11 = arith.maximumf %9, %10 : vector<2x8x8x16xf32>
    %12 = vector.shape_cast %11 : vector<2x8x8x16xf32> to vector<128x16xf32>
    %c0_7 = arith.constant 0 : index
    %c16 = arith.constant 16 : index
    %13 = vector.load %arg6[%c0_7, %c16] : memref<128x144xf32, #tpu.memory_space<vmem>>, vector<128x16xf32>
    tpu.vector_store %arg6[%c0_7, %c16], %12 {strides = array<i32>} : memref<128x144xf32, #tpu.memory_space<vmem>>, vector<128x16xf32>,
    %14 = vector.extract_strided_slice %3 {offsets = [0, 0, 2, 0], sizes = [2, 8, 8, 16], strides = [1, 1, 1, 1]} : vector<2x10x10x16xf32> to vector<2x8x8x16xf32>
    %cst_8 = arith.constant 0.000000e+00 : f32
    %15 = vector.broadcast %cst_8 : f32 to vector<2x8x8x16xf32>
    %16 = arith.maximumf %14, %15 : vector<2x8x8x16xf32>
    %17 = vector.shape_cast %16 : vector<2x8x8x16xf32> to vector<128x16xf32>
    %c0_9 = arith.constant 0 : index
    %c32 = arith.constant 32 : index
    %18 = vector.load %arg6[%c0_9, %c32] : memref<128x144xf32, #tpu.memory_space<vmem>>, vector<128x16xf32>
    tpu.vector_store %arg6[%c0_9, %c32], %17 {strides = array<i32>} : memref<128x144xf32, #tpu.memory_space<vmem>>, vector<128x16xf32>,
    %19 = vector.extract_strided_slice %3 {offsets = [0, 1, 0, 0], sizes = [2, 8, 8, 16], strides = [1, 1, 1, 1]} : vector<2x10x10x16xf32> to vector<2x8x8x16xf32>
    %cst_10 = arith.constant 0.000000e+00 : f32
    %20 = vector.broadcast %cst_10 : f32 to vector<2x8x8x16xf32>
    %21 = arith.maximumf %19, %20 : vector<2x8x8x16xf32>
    %22 = vector.shape_cast %21 : vector<2x8x8x16xf32> to vector<128x16xf32>
    %c0_11 = arith.constant 0 : index
    %c48 = arith.constant 48 : index
    %23 = vector.load %arg6[%c0_11, %c48] : memref<128x144xf32, #tpu.memory_space<vmem>>, vector<128x16xf32>
    tpu.vector_store %arg6[%c0_11, %c48], %22 {strides = array<i32>} : memref<128x144xf32, #tpu.memory_space<vmem>>, vector<128x16xf32>,
    %24 = vector.extract_strided_slice %3 {offsets = [0, 1, 1, 0], sizes = [2, 8, 8, 16], strides = [1, 1, 1, 1]} : vector<2x10x10x16xf32> to vector<2x8x8x16xf32>
    %cst_12 = arith.constant 0.000000e+00 : f32
    %25 = vector.broadcast %cst_12 : f32 to vector<2x8x8x16xf32>
    %26 = arith.maximumf %24, %25 : vector<2x8x8x16xf32>
    %27 = vector.shape_cast %26 : vector<2x8x8x16xf32> to vector<128x16xf32>
    %c0_13 = arith.constant 0 : index
    %c64 = arith.constant 64 : index
    %28 = vector.load %arg6[%c0_13, %c64] : memref<128x144xf32, #tpu.memory_space<vmem>>, vector<128x16xf32>
    tpu.vector_store %arg6[%c0_13, %c64], %27 {strides = array<i32>} : memref<128x144xf32, #tpu.memory_space<vmem>>, vector<128x16xf32>,
    %29 = vector.extract_strided_slice %3 {offsets = [0, 1, 2, 0], sizes = [2, 8, 8, 16], strides = [1, 1, 1, 1]} : vector<2x10x10x16xf32> to vector<2x8x8x16xf32>
    %cst_14 = arith.constant 0.000000e+00 : f32
    %30 = vector.broadcast %cst_14 : f32 to vector<2x8x8x16xf32>
    %31 = arith.maximumf %29, %30 : vector<2x8x8x16xf32>
    %32 = vector.shape_cast %31 : vector<2x8x8x16xf32> to vector<128x16xf32>
    %c0_15 = arith.constant 0 : index
    %c80 = arith.constant 80 : index
    %33 = vector.load %arg6[%c0_15, %c80] : memref<128x144xf32, #tpu.memory_space<vmem>>, vector<128x16xf32>
    tpu.vector_store %arg6[%c0_15, %c80], %32 {strides = array<i32>} : memref<128x144xf32, #tpu.memory_space<vmem>>, vector<128x16xf32>,
    %34 = vector.extract_strided_slice %3 {offsets = [0, 2, 0, 0], sizes = [2, 8, 8, 16], strides = [1, 1, 1, 1]} : vector<2x10x10x16xf32> to vector<2x8x8x16xf32>
    %cst_16 = arith.constant 0.000000e+00 : f32
    %35 = vector.broadcast %cst_16 : f32 to vector<2x8x8x16xf32>
    %36 = arith.maximumf %34, %35 : vector<2x8x8x16xf32>
    %37 = vector.shape_cast %36 : vector<2x8x8x16xf32> to vector<128x16xf32>
    %c0_17 = arith.constant 0 : index
    %c96 = arith.constant 96 : index
    %38 = vector.load %arg6[%c0_17, %c96] : memref<128x144xf32, #tpu.memory_space<vmem>>, vector<128x16xf32>
    tpu.vector_store %arg6[%c0_17, %c96], %37 {strides = array<i32>} : memref<128x144xf32, #tpu.memory_space<vmem>>, vector<128x16xf32>,
    %39 = vector.extract_strided_slice %3 {offsets = [0, 2, 1, 0], sizes = [2, 8, 8, 16], strides = [1, 1, 1, 1]} : vector<2x10x10x16xf32> to vector<2x8x8x16xf32>
    %cst_18 = arith.constant 0.000000e+00 : f32
    %40 = vector.broadcast %cst_18 : f32 to vector<2x8x8x16xf32>
    %41 = arith.maximumf %39, %40 : vector<2x8x8x16xf32>
    %42 = vector.shape_cast %41 : vector<2x8x8x16xf32> to vector<128x16xf32>
    %c0_19 = arith.constant 0 : index
    %c112 = arith.constant 112 : index
    %43 = vector.load %arg6[%c0_19, %c112] : memref<128x144xf32, #tpu.memory_space<vmem>>, vector<128x16xf32>
    tpu.vector_store %arg6[%c0_19, %c112], %42 {strides = array<i32>} : memref<128x144xf32, #tpu.memory_space<vmem>>, vector<128x16xf32>,
    %44 = vector.extract_strided_slice %3 {offsets = [0, 2, 2, 0], sizes = [2, 8, 8, 16], strides = [1, 1, 1, 1]} : vector<2x10x10x16xf32> to vector<2x8x8x16xf32>
    %cst_20 = arith.constant 0.000000e+00 : f32
    %45 = vector.broadcast %cst_20 : f32 to vector<2x8x8x16xf32>
    %46 = arith.maximumf %44, %45 : vector<2x8x8x16xf32>
    %47 = vector.shape_cast %46 : vector<2x8x8x16xf32> to vector<128x16xf32>
    %c0_21 = arith.constant 0 : index
    %c128 = arith.constant 128 : index
    %48 = vector.load %arg6[%c0_21, %c128] : memref<128x144xf32, #tpu.memory_space<vmem>>, vector<128x16xf32>
    tpu.vector_store %arg6[%c0_21, %c128], %47 {strides = array<i32>} : memref<128x144xf32, #tpu.memory_space<vmem>>, vector<128x16xf32>,
    %c0_22 = arith.constant 0 : index
    %c0_23 = arith.constant 0 : index
    %49 = vector.load %arg6[%c0_22, %c0_23] : memref<128x144xf32, #tpu.memory_space<vmem>>, vector<128x144xf32>
    %c0_24 = arith.constant 0 : index
    %c0_25 = arith.constant 0 : index
    %c0_26 = arith.constant 0 : index
    %50 = vector.load %arg3[%c0_24, %c0_25, %c0_26] : memref<1x144x32xf32, #tpu.memory_space<vmem>>, vector<1x144x32xf32>
    %51 = vector.shape_cast %50 : vector<1x144x32xf32> to vector<144x32xf32>
    %cst_27 = arith.constant dense<0.000000e+00> : vector<128x32xf32>
    %52 = tpu.matmul %49, %51, %cst_27 {dimension_numbers = #tpu.dot_dimension_numbers<[1], [0], [0], [1], [0, 0, 1, 1], [], []>} : vector<128x144xf32>, vector<144x32xf32>, vector<128x32xf32> -> vector<128x32xf32>
    %c0_28 = arith.constant 0 : index
    %c0_29 = arith.constant 0 : index
    %c0_30 = arith.constant 0 : index
    %53 = vector.load %arg4[%c0_28, %c0_29, %c0_30] : memref<1x1x32xf32, #tpu.memory_space<vmem>>, vector<1x1x32xf32>
    %cst_31 = arith.constant dense<0.000000e+00> : vector<32xf32>
    %54 = vector.multi_reduction <add>, %52, %cst_31 [0] : vector<128x32xf32> to vector<32xf32>
    %55 = vector.shape_cast %54 : vector<32xf32> to vector<1x32xf32>
    %56 = vector.shape_cast %55 : vector<1x32xf32> to vector<1x1x32xf32>
    %57 = arith.addf %53, %56 : vector<1x1x32xf32>
    %c0_32 = arith.constant 0 : index
    %c0_33 = arith.constant 0 : index
    %c0_34 = arith.constant 0 : index
    %58 = vector.load %arg4[%c0_32, %c0_33, %c0_34] : memref<1x1x32xf32, #tpu.memory_space<vmem>>, vector<1x1x32xf32>
    tpu.vector_store %arg4[%c0_32, %c0_33, %c0_34], %57 {strides = array<i32>} : memref<1x1x32xf32, #tpu.memory_space<vmem>>, vector<1x1x32xf32>,
    %c0_35 = arith.constant 0 : index
    %c0_36 = arith.constant 0 : index
    %c0_37 = arith.constant 0 : index
    %59 = vector.load %arg5[%c0_35, %c0_36, %c0_37] : memref<1x1x32xf32, #tpu.memory_space<vmem>>, vector<1x1x32xf32>
    %60 = arith.mulf %52, %52 : vector<128x32xf32>
    %cst_38 = arith.constant dense<0.000000e+00> : vector<32xf32>
    %61 = vector.multi_reduction <add>, %60, %cst_38 [0] : vector<128x32xf32> to vector<32xf32>
    %62 = vector.shape_cast %61 : vector<32xf32> to vector<1x32xf32>
    %63 = vector.shape_cast %62 : vector<1x32xf32> to vector<1x1x32xf32>
    %64 = arith.addf %59, %63 : vector<1x1x32xf32>
    %c0_39 = arith.constant 0 : index
    %c0_40 = arith.constant 0 : index
    %c0_41 = arith.constant 0 : index
    %65 = vector.load %arg5[%c0_39, %c0_40, %c0_41] : memref<1x1x32xf32, #tpu.memory_space<vmem>>, vector<1x1x32xf32>
    tpu.vector_store %arg5[%c0_39, %c0_40, %c0_41], %64 {strides = array<i32>} : memref<1x1x32xf32, #tpu.memory_space<vmem>>, vector<1x1x32xf32>,
    return
  }
  func.func @transform_0(%arg0: i32, %arg1: i32) -> (i32, i32, i32, i32) {
    %c1_i32 = arith.constant 1 : i32
    %0 = arith.muli %arg0, %c1_i32 : i32
    %1 = arith.addi %0, %arg1 : i32
    %c0_i32 = arith.constant 0 : i32
    %c0_i32_0 = arith.constant 0 : i32
    %c0_i32_1 = arith.constant 0 : i32
    %c0_i32_2 = arith.constant 0 : i32
    return %1, %c0_i32, %c0_i32_0, %c0_i32_1 : i32, i32, i32, i32
  }
  func.func @transform_1(%arg0: i32, %arg1: i32) -> (i32, i32, i32) {
    %c0_i32 = arith.constant 0 : i32
    %c0_i32_0 = arith.constant 0 : i32
    %c0_i32_1 = arith.constant 0 : i32
    return %arg0, %c0_i32, %c0_i32_0 : i32, i32, i32
  }
  func.func @transform_2(%arg0: i32, %arg1: i32) -> (i32, i32, i32) {
    %c0_i32 = arith.constant 0 : i32
    %c0_i32_0 = arith.constant 0 : i32
    %c0_i32_1 = arith.constant 0 : i32
    return %arg0, %c0_i32, %c0_i32_0 : i32, i32, i32
  }
  func.func @transform_3(%arg0: i32, %arg1: i32) -> (i32, i32, i32) {
    %c0_i32 = arith.constant 0 : i32
    %c0_i32_0 = arith.constant 0 : i32
    %c0_i32_1 = arith.constant 0 : i32
    return %arg0, %c0_i32, %c0_i32_0 : i32, i32, i32
  }
}

module attributes {stable_mosaic.version = 11 : i64} {
  func.func @_edge_mix_kernel(%arg0: i32, %arg1: i32, %arg2: memref<2x10x10x16xf32, #tpu.memory_space<vmem>>, %arg3: memref<1x144x32xf32, #tpu.memory_space<vmem>>, %arg4: memref<1x4x32xf32, #tpu.memory_space<vmem>>, %arg5: memref<2x8x8x16xf32, #tpu.memory_space<vmem>>, %arg6: memref<128x144xf32, #tpu.memory_space<vmem>>) attributes {dimension_semantics = [#tpu.dimension_semantics<parallel>, #tpu.dimension_semantics<arbitrary>], iteration_bounds = array<i64: 1, 1>, scalar_prefetch = 0 : i64, scratch_operands = 1 : i64, tpu.core_type = #tpu.core_type<tc>, window_params = [{transform_indices = @transform_0, window_bounds = array<i64: 2, 10, 10, 16>}, {transform_indices = @transform_1, window_bounds = array<i64: 1, 144, 32>}, {transform_indices = @transform_2, window_bounds = array<i64: 1, 4, 32>}, {transform_indices = @transform_3, window_bounds = array<i64: 2, 8, 8, 16>}]} {
    %c0 = arith.constant 0 : index
    %c0_0 = arith.constant 0 : index
    %c0_1 = arith.constant 0 : index
    %c0_2 = arith.constant 0 : index
    %0 = vector.load %arg2[%c0, %c0_0, %c0_1, %c0_2] : memref<2x10x10x16xf32, #tpu.memory_space<vmem>>, vector<2x10x10x16xf32>
    %1 = vector.extract_strided_slice %0 {offsets = [0, 1, 1, 0], sizes = [2, 8, 8, 16], strides = [1, 1, 1, 1]} : vector<2x10x10x16xf32> to vector<2x8x8x16xf32>
    %cst = arith.constant 0.000000e+00 : f32
    %2 = vector.broadcast %cst : f32 to vector<2x8x8x16xf32>
    %3 = vector.extract_strided_slice %0 {offsets = [0, 0, 0, 0], sizes = [2, 8, 8, 16], strides = [1, 1, 1, 1]} : vector<2x10x10x16xf32> to vector<2x8x8x16xf32>
    %4 = arith.addf %2, %3 : vector<2x8x8x16xf32>
    %cst_3 = arith.constant 0.000000e+00 : f32
    %5 = vector.broadcast %cst_3 : f32 to vector<2x8x8x16xf32>
    %6 = arith.maximumf %3, %5 : vector<2x8x8x16xf32>
    %7 = vector.shape_cast %6 : vector<2x8x8x16xf32> to vector<128x16xf32>
    %c0_4 = arith.constant 0 : index
    %c0_5 = arith.constant 0 : index
    %8 = vector.load %arg6[%c0_4, %c0_5] : memref<128x144xf32, #tpu.memory_space<vmem>>, vector<128x16xf32>
    tpu.vector_store %arg6[%c0_4, %c0_5], %7 {strides = array<i32>} : memref<128x144xf32, #tpu.memory_space<vmem>>, vector<128x16xf32>,
    %9 = vector.extract_strided_slice %0 {offsets = [0, 0, 1, 0], sizes = [2, 8, 8, 16], strides = [1, 1, 1, 1]} : vector<2x10x10x16xf32> to vector<2x8x8x16xf32>
    %10 = arith.addf %4, %9 : vector<2x8x8x16xf32>
    %cst_6 = arith.constant 0.000000e+00 : f32
    %11 = vector.broadcast %cst_6 : f32 to vector<2x8x8x16xf32>
    %12 = arith.maximumf %9, %11 : vector<2x8x8x16xf32>
    %13 = vector.shape_cast %12 : vector<2x8x8x16xf32> to vector<128x16xf32>
    %c0_7 = arith.constant 0 : index
    %c16 = arith.constant 16 : index
    %14 = vector.load %arg6[%c0_7, %c16] : memref<128x144xf32, #tpu.memory_space<vmem>>, vector<128x16xf32>
    tpu.vector_store %arg6[%c0_7, %c16], %13 {strides = array<i32>} : memref<128x144xf32, #tpu.memory_space<vmem>>, vector<128x16xf32>,
    %15 = vector.extract_strided_slice %0 {offsets = [0, 0, 2, 0], sizes = [2, 8, 8, 16], strides = [1, 1, 1, 1]} : vector<2x10x10x16xf32> to vector<2x8x8x16xf32>
    %16 = arith.addf %10, %15 : vector<2x8x8x16xf32>
    %cst_8 = arith.constant 0.000000e+00 : f32
    %17 = vector.broadcast %cst_8 : f32 to vector<2x8x8x16xf32>
    %18 = arith.maximumf %15, %17 : vector<2x8x8x16xf32>
    %19 = vector.shape_cast %18 : vector<2x8x8x16xf32> to vector<128x16xf32>
    %c0_9 = arith.constant 0 : index
    %c32 = arith.constant 32 : index
    %20 = vector.load %arg6[%c0_9, %c32] : memref<128x144xf32, #tpu.memory_space<vmem>>, vector<128x16xf32>
    tpu.vector_store %arg6[%c0_9, %c32], %19 {strides = array<i32>} : memref<128x144xf32, #tpu.memory_space<vmem>>, vector<128x16xf32>,
    %21 = vector.extract_strided_slice %0 {offsets = [0, 1, 0, 0], sizes = [2, 8, 8, 16], strides = [1, 1, 1, 1]} : vector<2x10x10x16xf32> to vector<2x8x8x16xf32>
    %22 = arith.addf %16, %21 : vector<2x8x8x16xf32>
    %cst_10 = arith.constant 0.000000e+00 : f32
    %23 = vector.broadcast %cst_10 : f32 to vector<2x8x8x16xf32>
    %24 = arith.maximumf %21, %23 : vector<2x8x8x16xf32>
    %25 = vector.shape_cast %24 : vector<2x8x8x16xf32> to vector<128x16xf32>
    %c0_11 = arith.constant 0 : index
    %c48 = arith.constant 48 : index
    %26 = vector.load %arg6[%c0_11, %c48] : memref<128x144xf32, #tpu.memory_space<vmem>>, vector<128x16xf32>
    tpu.vector_store %arg6[%c0_11, %c48], %25 {strides = array<i32>} : memref<128x144xf32, #tpu.memory_space<vmem>>, vector<128x16xf32>,
    %27 = vector.extract_strided_slice %0 {offsets = [0, 1, 1, 0], sizes = [2, 8, 8, 16], strides = [1, 1, 1, 1]} : vector<2x10x10x16xf32> to vector<2x8x8x16xf32>
    %28 = arith.addf %22, %27 : vector<2x8x8x16xf32>
    %cst_12 = arith.constant 0.000000e+00 : f32
    %29 = vector.broadcast %cst_12 : f32 to vector<2x8x8x16xf32>
    %30 = arith.maximumf %27, %29 : vector<2x8x8x16xf32>
    %31 = vector.shape_cast %30 : vector<2x8x8x16xf32> to vector<128x16xf32>
    %c0_13 = arith.constant 0 : index
    %c64 = arith.constant 64 : index
    %32 = vector.load %arg6[%c0_13, %c64] : memref<128x144xf32, #tpu.memory_space<vmem>>, vector<128x16xf32>
    tpu.vector_store %arg6[%c0_13, %c64], %31 {strides = array<i32>} : memref<128x144xf32, #tpu.memory_space<vmem>>, vector<128x16xf32>,
    %33 = vector.extract_strided_slice %0 {offsets = [0, 1, 2, 0], sizes = [2, 8, 8, 16], strides = [1, 1, 1, 1]} : vector<2x10x10x16xf32> to vector<2x8x8x16xf32>
    %34 = arith.addf %28, %33 : vector<2x8x8x16xf32>
    %cst_14 = arith.constant 0.000000e+00 : f32
    %35 = vector.broadcast %cst_14 : f32 to vector<2x8x8x16xf32>
    %36 = arith.maximumf %33, %35 : vector<2x8x8x16xf32>
    %37 = vector.shape_cast %36 : vector<2x8x8x16xf32> to vector<128x16xf32>
    %c0_15 = arith.constant 0 : index
    %c80 = arith.constant 80 : index
    %38 = vector.load %arg6[%c0_15, %c80] : memref<128x144xf32, #tpu.memory_space<vmem>>, vector<128x16xf32>
    tpu.vector_store %arg6[%c0_15, %c80], %37 {strides = array<i32>} : memref<128x144xf32, #tpu.memory_space<vmem>>, vector<128x16xf32>,
    %39 = vector.extract_strided_slice %0 {offsets = [0, 2, 0, 0], sizes = [2, 8, 8, 16], strides = [1, 1, 1, 1]} : vector<2x10x10x16xf32> to vector<2x8x8x16xf32>
    %40 = arith.addf %34, %39 : vector<2x8x8x16xf32>
    %cst_16 = arith.constant 0.000000e+00 : f32
    %41 = vector.broadcast %cst_16 : f32 to vector<2x8x8x16xf32>
    %42 = arith.maximumf %39, %41 : vector<2x8x8x16xf32>
    %43 = vector.shape_cast %42 : vector<2x8x8x16xf32> to vector<128x16xf32>
    %c0_17 = arith.constant 0 : index
    %c96 = arith.constant 96 : index
    %44 = vector.load %arg6[%c0_17, %c96] : memref<128x144xf32, #tpu.memory_space<vmem>>, vector<128x16xf32>
    tpu.vector_store %arg6[%c0_17, %c96], %43 {strides = array<i32>} : memref<128x144xf32, #tpu.memory_space<vmem>>, vector<128x16xf32>,
    %45 = vector.extract_strided_slice %0 {offsets = [0, 2, 1, 0], sizes = [2, 8, 8, 16], strides = [1, 1, 1, 1]} : vector<2x10x10x16xf32> to vector<2x8x8x16xf32>
    %46 = arith.addf %40, %45 : vector<2x8x8x16xf32>
    %cst_18 = arith.constant 0.000000e+00 : f32
    %47 = vector.broadcast %cst_18 : f32 to vector<2x8x8x16xf32>
    %48 = arith.maximumf %45, %47 : vector<2x8x8x16xf32>
    %49 = vector.shape_cast %48 : vector<2x8x8x16xf32> to vector<128x16xf32>
    %c0_19 = arith.constant 0 : index
    %c112 = arith.constant 112 : index
    %50 = vector.load %arg6[%c0_19, %c112] : memref<128x144xf32, #tpu.memory_space<vmem>>, vector<128x16xf32>
    tpu.vector_store %arg6[%c0_19, %c112], %49 {strides = array<i32>} : memref<128x144xf32, #tpu.memory_space<vmem>>, vector<128x16xf32>,
    %51 = vector.extract_strided_slice %0 {offsets = [0, 2, 2, 0], sizes = [2, 8, 8, 16], strides = [1, 1, 1, 1]} : vector<2x10x10x16xf32> to vector<2x8x8x16xf32>
    %52 = arith.addf %46, %51 : vector<2x8x8x16xf32>
    %cst_20 = arith.constant 0.000000e+00 : f32
    %53 = vector.broadcast %cst_20 : f32 to vector<2x8x8x16xf32>
    %54 = arith.maximumf %51, %53 : vector<2x8x8x16xf32>
    %55 = vector.shape_cast %54 : vector<2x8x8x16xf32> to vector<128x16xf32>
    %c0_21 = arith.constant 0 : index
    %c128 = arith.constant 128 : index
    %56 = vector.load %arg6[%c0_21, %c128] : memref<128x144xf32, #tpu.memory_space<vmem>>, vector<128x16xf32>
    tpu.vector_store %arg6[%c0_21, %c128], %55 {strides = array<i32>} : memref<128x144xf32, #tpu.memory_space<vmem>>, vector<128x16xf32>,
    %c0_22 = arith.constant 0 : index
    %c0_23 = arith.constant 0 : index
    %57 = vector.load %arg6[%c0_22, %c0_23] : memref<128x144xf32, #tpu.memory_space<vmem>>, vector<128x144xf32>
    %c0_24 = arith.constant 0 : index
    %c0_25 = arith.constant 0 : index
    %c0_26 = arith.constant 0 : index
    %58 = vector.load %arg3[%c0_24, %c0_25, %c0_26] : memref<1x144x32xf32, #tpu.memory_space<vmem>>, vector<1x144x32xf32>
    %59 = vector.shape_cast %58 : vector<1x144x32xf32> to vector<144x32xf32>
    %cst_27 = arith.constant dense<0.000000e+00> : vector<128x32xf32>
    %60 = tpu.matmul %57, %59, %cst_27 {dimension_numbers = #tpu.dot_dimension_numbers<[1], [0], [0], [1], [0, 0, 1, 1], [], []>} : vector<128x144xf32>, vector<144x32xf32>, vector<128x32xf32> -> vector<128x32xf32>
    %c0_28 = arith.constant 0 : index
    %c0_29 = arith.constant 0 : index
    %c0_30 = arith.constant 0 : index
    %61 = vector.load %arg4[%c0_28, %c0_29, %c0_30] : memref<1x4x32xf32, #tpu.memory_space<vmem>>, vector<1x4x32xf32>
    %62 = vector.shape_cast %61 : vector<1x4x32xf32> to vector<4x32xf32>
    %63 = vector.extract_strided_slice %62 {offsets = [0, 0], sizes = [1, 32], strides = [1, 1]} : vector<4x32xf32> to vector<1x32xf32>
    %64 = vector.broadcast %63 : vector<1x32xf32> to vector<128x32xf32>
    %65 = arith.mulf %60, %64 : vector<128x32xf32>
    %66 = vector.extract_strided_slice %62 {offsets = [1, 0], sizes = [1, 32], strides = [1, 1]} : vector<4x32xf32> to vector<1x32xf32>
    %67 = vector.broadcast %66 : vector<1x32xf32> to vector<128x32xf32>
    %68 = arith.addf %65, %67 : vector<128x32xf32>
    %69 = vector.extract_strided_slice %68 {offsets = [0, 0], sizes = [128, 16], strides = [1, 1]} : vector<128x32xf32> to vector<128x16xf32>
    %70 = vector.extract_strided_slice %68 {offsets = [0, 16], sizes = [128, 16], strides = [1, 1]} : vector<128x32xf32> to vector<128x16xf32>
    %71 = arith.addf %69, %70 : vector<128x16xf32>
    %72 = vector.shape_cast %71 : vector<128x16xf32> to vector<2x8x8x16xf32>
    %73 = tpu.iota {dimensions = array<i32: 1>} : vector<2x8x8x16xi32>
    %74 = tpu.iota {dimensions = array<i32: 2>} : vector<2x8x8x16xi32>
    %c0_i32 = arith.constant 0 : i32
    %75 = vector.broadcast %c0_i32 : i32 to vector<2x8x8x16xi32>
    %76 = arith.cmpi eq, %73, %75 : vector<2x8x8x16xi32>
    %77 = arith.extui %76 : vector<2x8x8x16xi1> to vector<2x8x8x16xi32>
    %c3_i32 = arith.constant 3 : i32
    %78 = vector.broadcast %c3_i32 : i32 to vector<2x8x8x16xi32>
    %79 = arith.subi %78, %77 : vector<2x8x8x16xi32>
    %c7_i32 = arith.constant 7 : i32
    %80 = vector.broadcast %c7_i32 : i32 to vector<2x8x8x16xi32>
    %81 = arith.cmpi eq, %73, %80 : vector<2x8x8x16xi32>
    %82 = arith.extui %81 : vector<2x8x8x16xi1> to vector<2x8x8x16xi32>
    %83 = arith.subi %79, %82 : vector<2x8x8x16xi32>
    %c0_i32_31 = arith.constant 0 : i32
    %84 = vector.broadcast %c0_i32_31 : i32 to vector<2x8x8x16xi32>
    %85 = arith.cmpi eq, %74, %84 : vector<2x8x8x16xi32>
    %86 = arith.extui %85 : vector<2x8x8x16xi1> to vector<2x8x8x16xi32>
    %c3_i32_32 = arith.constant 3 : i32
    %87 = vector.broadcast %c3_i32_32 : i32 to vector<2x8x8x16xi32>
    %88 = arith.subi %87, %86 : vector<2x8x8x16xi32>
    %c7_i32_33 = arith.constant 7 : i32
    %89 = vector.broadcast %c7_i32_33 : i32 to vector<2x8x8x16xi32>
    %90 = arith.cmpi eq, %74, %89 : vector<2x8x8x16xi32>
    %91 = arith.extui %90 : vector<2x8x8x16xi1> to vector<2x8x8x16xi32>
    %92 = arith.subi %88, %91 : vector<2x8x8x16xi32>
    %93 = arith.muli %83, %92 : vector<2x8x8x16xi32>
    %94 = arith.sitofp %93 : vector<2x8x8x16xi32> to vector<2x8x8x16xf32>
    %cst_34 = arith.constant 1.000000e+00 : f32
    %95 = vector.broadcast %cst_34 : f32 to vector<2x8x8x16xf32>
    %96 = arith.divf %95, %94 : vector<2x8x8x16xf32>
    %97 = vector.extract_strided_slice %62 {offsets = [2, 0], sizes = [1, 16], strides = [1, 1]} : vector<4x32xf32> to vector<1x16xf32>
    %98 = vector.shape_cast %97 : vector<1x16xf32> to vector<1x1x1x16xf32>
    %99 = vector.broadcast %98 : vector<1x1x1x16xf32> to vector<2x8x8x16xf32>
    %100 = arith.mulf %1, %99 : vector<2x8x8x16xf32>
    %101 = arith.mulf %52, %96 : vector<2x8x8x16xf32>
    %102 = vector.extract_strided_slice %62 {offsets = [3, 0], sizes = [1, 16], strides = [1, 1]} : vector<4x32xf32> to vector<1x16xf32>
    %103 = vector.shape_cast %102 : vector<1x16xf32> to vector<1x1x1x16xf32>
    %104 = vector.broadcast %103 : vector<1x1x1x16xf32> to vector<2x8x8x16xf32>
    %105 = arith.mulf %101, %104 : vector<2x8x8x16xf32>
    %c0_i32_35 = arith.constant 0 : i32
    %106 = arith.cmpi eq, %arg1, %c0_i32_35 : i32
    %107 = arith.extui %106 : i1 to i32
    %c0_i32_36 = arith.constant 0 : i32
    %108 = arith.cmpi ne, %107, %c0_i32_36 : i32
    scf.if %108 {
      %cst_45 = arith.constant 0.000000e+00 : f32
      %114 = vector.broadcast %cst_45 : f32 to vector<2x8x8x16xf32>
      %c0_46 = arith.constant 0 : index
      %c0_47 = arith.constant 0 : index
      %c0_48 = arith.constant 0 : index
      %c0_49 = arith.constant 0 : index
      %115 = vector.load %arg5[%c0_46, %c0_47, %c0_48, %c0_49] : memref<2x8x8x16xf32, #tpu.memory_space<vmem>>, vector<2x8x8x16xf32>
      tpu.vector_store %arg5[%c0_46, %c0_47, %c0_48, %c0_49], %114 {strides = array<i32>} : memref<2x8x8x16xf32, #tpu.memory_space<vmem>>, vector<2x8x8x16xf32>,
    } else {
    }
    %c0_37 = arith.constant 0 : index
    %c0_38 = arith.constant 0 : index
    %c0_39 = arith.constant 0 : index
    %c0_40 = arith.constant 0 : index
    %109 = vector.load %arg5[%c0_37, %c0_38, %c0_39, %c0_40] : memref<2x8x8x16xf32, #tpu.memory_space<vmem>>, vector<2x8x8x16xf32>
    %110 = arith.addf %72, %100 : vector<2x8x8x16xf32>
    %111 = arith.addf %110, %105 : vector<2x8x8x16xf32>
    %112 = arith.addf %109, %111 : vector<2x8x8x16xf32>
    %c0_41 = arith.constant 0 : index
    %c0_42 = arith.constant 0 : index
    %c0_43 = arith.constant 0 : index
    %c0_44 = arith.constant 0 : index
    %113 = vector.load %arg5[%c0_41, %c0_42, %c0_43, %c0_44] : memref<2x8x8x16xf32, #tpu.memory_space<vmem>>, vector<2x8x8x16xf32>
    tpu.vector_store %arg5[%c0_41, %c0_42, %c0_43, %c0_44], %112 {strides = array<i32>} : memref<2x8x8x16xf32, #tpu.memory_space<vmem>>, vector<2x8x8x16xf32>,
    return
  }
  func.func @transform_0(%arg0: i32, %arg1: i32) -> (i32, i32, i32, i32) {
    %c1_i32 = arith.constant 1 : i32
    %0 = arith.muli %arg1, %c1_i32 : i32
    %1 = arith.addi %0, %arg0 : i32
    %c0_i32 = arith.constant 0 : i32
    %c0_i32_0 = arith.constant 0 : i32
    %c0_i32_1 = arith.constant 0 : i32
    %c0_i32_2 = arith.constant 0 : i32
    return %1, %c0_i32, %c0_i32_0, %c0_i32_1 : i32, i32, i32, i32
  }
  func.func @transform_1(%arg0: i32, %arg1: i32) -> (i32, i32, i32) {
    %c0_i32 = arith.constant 0 : i32
    %c0_i32_0 = arith.constant 0 : i32
    %c0_i32_1 = arith.constant 0 : i32
    return %arg1, %c0_i32, %c0_i32_0 : i32, i32, i32
  }
  func.func @transform_2(%arg0: i32, %arg1: i32) -> (i32, i32, i32) {
    %c0_i32 = arith.constant 0 : i32
    %c0_i32_0 = arith.constant 0 : i32
    %c0_i32_1 = arith.constant 0 : i32
    return %arg1, %c0_i32, %c0_i32_0 : i32, i32, i32
  }
  func.func @transform_3(%arg0: i32, %arg1: i32) -> (i32, i32, i32, i32) {
    %c0_i32 = arith.constant 0 : i32
    %c0_i32_0 = arith.constant 0 : i32
    %c0_i32_1 = arith.constant 0 : i32
    %c0_i32_2 = arith.constant 0 : i32
    return %arg0, %c0_i32, %c0_i32_0, %c0_i32_1 : i32, i32, i32, i32
  }
}

module attributes {stable_mosaic.version = 11 : i64} {
  func.func @_conv_stats_kernel(%arg0: i32, %arg1: i32, %arg2: memref<2x10x10x16xf32, #tpu.memory_space<vmem>>, %arg3: memref<1x144x32xf32, #tpu.memory_space<vmem>>, %arg4: memref<1x1x32xf32, #tpu.memory_space<vmem>>, %arg5: memref<1x1x32xf32, #tpu.memory_space<vmem>>, %arg6: memref<128x144xf32, #tpu.memory_space<vmem>>) attributes {dimension_semantics = [#tpu.dimension_semantics<parallel>, #tpu.dimension_semantics<arbitrary>], iteration_bounds = array<i64: 2, 1>, scalar_prefetch = 0 : i64, scratch_operands = 1 : i64, tpu.core_type = #tpu.core_type<tc>, window_params = [{transform_indices = @transform_0, window_bounds = array<i64: 2, 10, 10, 16>}, {transform_indices = @transform_1, window_bounds = array<i64: 1, 144, 32>}, {transform_indices = @transform_2, window_bounds = array<i64: 1, 1, 32>}, {transform_indices = @transform_3, window_bounds = array<i64: 1, 1, 32>}]} {
    %c0_i32 = arith.constant 0 : i32
    %0 = arith.cmpi eq, %arg1, %c0_i32 : i32
    %1 = arith.extui %0 : i1 to i32
    %c0_i32_0 = arith.constant 0 : i32
    %2 = arith.cmpi ne, %1, %c0_i32_0 : i32
    scf.if %2 {
      %cst_42 = arith.constant 0.000000e+00 : f32
      %66 = vector.broadcast %cst_42 : f32 to vector<1x1x32xf32>
      %c0_43 = arith.constant 0 : index
      %c0_44 = arith.constant 0 : index
      %c0_45 = arith.constant 0 : index
      %67 = vector.load %arg4[%c0_43, %c0_44, %c0_45] : memref<1x1x32xf32, #tpu.memory_space<vmem>>, vector<1x1x32xf32>
      tpu.vector_store %arg4[%c0_43, %c0_44, %c0_45], %66 {strides = array<i32>} : memref<1x1x32xf32, #tpu.memory_space<vmem>>, vector<1x1x32xf32>,
      %cst_46 = arith.constant 0.000000e+00 : f32
      %68 = vector.broadcast %cst_46 : f32 to vector<1x1x32xf32>
      %c0_47 = arith.constant 0 : index
      %c0_48 = arith.constant 0 : index
      %c0_49 = arith.constant 0 : index
      %69 = vector.load %arg5[%c0_47, %c0_48, %c0_49] : memref<1x1x32xf32, #tpu.memory_space<vmem>>, vector<1x1x32xf32>
      tpu.vector_store %arg5[%c0_47, %c0_48, %c0_49], %68 {strides = array<i32>} : memref<1x1x32xf32, #tpu.memory_space<vmem>>, vector<1x1x32xf32>,
    } else {
    }
    %c0 = arith.constant 0 : index
    %c0_1 = arith.constant 0 : index
    %c0_2 = arith.constant 0 : index
    %c0_3 = arith.constant 0 : index
    %3 = vector.load %arg2[%c0, %c0_1, %c0_2, %c0_3] : memref<2x10x10x16xf32, #tpu.memory_space<vmem>>, vector<2x10x10x16xf32>
    %4 = vector.extract_strided_slice %3 {offsets = [0, 0, 0, 0], sizes = [2, 8, 8, 16], strides = [1, 1, 1, 1]} : vector<2x10x10x16xf32> to vector<2x8x8x16xf32>
    %cst = arith.constant 0.000000e+00 : f32
    %5 = vector.broadcast %cst : f32 to vector<2x8x8x16xf32>
    %6 = arith.maximumf %4, %5 : vector<2x8x8x16xf32>
    %7 = vector.shape_cast %6 : vector<2x8x8x16xf32> to vector<128x16xf32>
    %c0_4 = arith.constant 0 : index
    %c0_5 = arith.constant 0 : index
    %8 = vector.load %arg6[%c0_4, %c0_5] : memref<128x144xf32, #tpu.memory_space<vmem>>, vector<128x16xf32>
    tpu.vector_store %arg6[%c0_4, %c0_5], %7 {strides = array<i32>} : memref<128x144xf32, #tpu.memory_space<vmem>>, vector<128x16xf32>,
    %9 = vector.extract_strided_slice %3 {offsets = [0, 0, 1, 0], sizes = [2, 8, 8, 16], strides = [1, 1, 1, 1]} : vector<2x10x10x16xf32> to vector<2x8x8x16xf32>
    %cst_6 = arith.constant 0.000000e+00 : f32
    %10 = vector.broadcast %cst_6 : f32 to vector<2x8x8x16xf32>
    %11 = arith.maximumf %9, %10 : vector<2x8x8x16xf32>
    %12 = vector.shape_cast %11 : vector<2x8x8x16xf32> to vector<128x16xf32>
    %c0_7 = arith.constant 0 : index
    %c16 = arith.constant 16 : index
    %13 = vector.load %arg6[%c0_7, %c16] : memref<128x144xf32, #tpu.memory_space<vmem>>, vector<128x16xf32>
    tpu.vector_store %arg6[%c0_7, %c16], %12 {strides = array<i32>} : memref<128x144xf32, #tpu.memory_space<vmem>>, vector<128x16xf32>,
    %14 = vector.extract_strided_slice %3 {offsets = [0, 0, 2, 0], sizes = [2, 8, 8, 16], strides = [1, 1, 1, 1]} : vector<2x10x10x16xf32> to vector<2x8x8x16xf32>
    %cst_8 = arith.constant 0.000000e+00 : f32
    %15 = vector.broadcast %cst_8 : f32 to vector<2x8x8x16xf32>
    %16 = arith.maximumf %14, %15 : vector<2x8x8x16xf32>
    %17 = vector.shape_cast %16 : vector<2x8x8x16xf32> to vector<128x16xf32>
    %c0_9 = arith.constant 0 : index
    %c32 = arith.constant 32 : index
    %18 = vector.load %arg6[%c0_9, %c32] : memref<128x144xf32, #tpu.memory_space<vmem>>, vector<128x16xf32>
    tpu.vector_store %arg6[%c0_9, %c32], %17 {strides = array<i32>} : memref<128x144xf32, #tpu.memory_space<vmem>>, vector<128x16xf32>,
    %19 = vector.extract_strided_slice %3 {offsets = [0, 1, 0, 0], sizes = [2, 8, 8, 16], strides = [1, 1, 1, 1]} : vector<2x10x10x16xf32> to vector<2x8x8x16xf32>
    %cst_10 = arith.constant 0.000000e+00 : f32
    %20 = vector.broadcast %cst_10 : f32 to vector<2x8x8x16xf32>
    %21 = arith.maximumf %19, %20 : vector<2x8x8x16xf32>
    %22 = vector.shape_cast %21 : vector<2x8x8x16xf32> to vector<128x16xf32>
    %c0_11 = arith.constant 0 : index
    %c48 = arith.constant 48 : index
    %23 = vector.load %arg6[%c0_11, %c48] : memref<128x144xf32, #tpu.memory_space<vmem>>, vector<128x16xf32>
    tpu.vector_store %arg6[%c0_11, %c48], %22 {strides = array<i32>} : memref<128x144xf32, #tpu.memory_space<vmem>>, vector<128x16xf32>,
    %24 = vector.extract_strided_slice %3 {offsets = [0, 1, 1, 0], sizes = [2, 8, 8, 16], strides = [1, 1, 1, 1]} : vector<2x10x10x16xf32> to vector<2x8x8x16xf32>
    %cst_12 = arith.constant 0.000000e+00 : f32
    %25 = vector.broadcast %cst_12 : f32 to vector<2x8x8x16xf32>
    %26 = arith.maximumf %24, %25 : vector<2x8x8x16xf32>
    %27 = vector.shape_cast %26 : vector<2x8x8x16xf32> to vector<128x16xf32>
    %c0_13 = arith.constant 0 : index
    %c64 = arith.constant 64 : index
    %28 = vector.load %arg6[%c0_13, %c64] : memref<128x144xf32, #tpu.memory_space<vmem>>, vector<128x16xf32>
    tpu.vector_store %arg6[%c0_13, %c64], %27 {strides = array<i32>} : memref<128x144xf32, #tpu.memory_space<vmem>>, vector<128x16xf32>,
    %29 = vector.extract_strided_slice %3 {offsets = [0, 1, 2, 0], sizes = [2, 8, 8, 16], strides = [1, 1, 1, 1]} : vector<2x10x10x16xf32> to vector<2x8x8x16xf32>
    %cst_14 = arith.constant 0.000000e+00 : f32
    %30 = vector.broadcast %cst_14 : f32 to vector<2x8x8x16xf32>
    %31 = arith.maximumf %29, %30 : vector<2x8x8x16xf32>
    %32 = vector.shape_cast %31 : vector<2x8x8x16xf32> to vector<128x16xf32>
    %c0_15 = arith.constant 0 : index
    %c80 = arith.constant 80 : index
    %33 = vector.load %arg6[%c0_15, %c80] : memref<128x144xf32, #tpu.memory_space<vmem>>, vector<128x16xf32>
    tpu.vector_store %arg6[%c0_15, %c80], %32 {strides = array<i32>} : memref<128x144xf32, #tpu.memory_space<vmem>>, vector<128x16xf32>,
    %34 = vector.extract_strided_slice %3 {offsets = [0, 2, 0, 0], sizes = [2, 8, 8, 16], strides = [1, 1, 1, 1]} : vector<2x10x10x16xf32> to vector<2x8x8x16xf32>
    %cst_16 = arith.constant 0.000000e+00 : f32
    %35 = vector.broadcast %cst_16 : f32 to vector<2x8x8x16xf32>
    %36 = arith.maximumf %34, %35 : vector<2x8x8x16xf32>
    %37 = vector.shape_cast %36 : vector<2x8x8x16xf32> to vector<128x16xf32>
    %c0_17 = arith.constant 0 : index
    %c96 = arith.constant 96 : index
    %38 = vector.load %arg6[%c0_17, %c96] : memref<128x144xf32, #tpu.memory_space<vmem>>, vector<128x16xf32>
    tpu.vector_store %arg6[%c0_17, %c96], %37 {strides = array<i32>} : memref<128x144xf32, #tpu.memory_space<vmem>>, vector<128x16xf32>,
    %39 = vector.extract_strided_slice %3 {offsets = [0, 2, 1, 0], sizes = [2, 8, 8, 16], strides = [1, 1, 1, 1]} : vector<2x10x10x16xf32> to vector<2x8x8x16xf32>
    %cst_18 = arith.constant 0.000000e+00 : f32
    %40 = vector.broadcast %cst_18 : f32 to vector<2x8x8x16xf32>
    %41 = arith.maximumf %39, %40 : vector<2x8x8x16xf32>
    %42 = vector.shape_cast %41 : vector<2x8x8x16xf32> to vector<128x16xf32>
    %c0_19 = arith.constant 0 : index
    %c112 = arith.constant 112 : index
    %43 = vector.load %arg6[%c0_19, %c112] : memref<128x144xf32, #tpu.memory_space<vmem>>, vector<128x16xf32>
    tpu.vector_store %arg6[%c0_19, %c112], %42 {strides = array<i32>} : memref<128x144xf32, #tpu.memory_space<vmem>>, vector<128x16xf32>,
    %44 = vector.extract_strided_slice %3 {offsets = [0, 2, 2, 0], sizes = [2, 8, 8, 16], strides = [1, 1, 1, 1]} : vector<2x10x10x16xf32> to vector<2x8x8x16xf32>
    %cst_20 = arith.constant 0.000000e+00 : f32
    %45 = vector.broadcast %cst_20 : f32 to vector<2x8x8x16xf32>
    %46 = arith.maximumf %44, %45 : vector<2x8x8x16xf32>
    %47 = vector.shape_cast %46 : vector<2x8x8x16xf32> to vector<128x16xf32>
    %c0_21 = arith.constant 0 : index
    %c128 = arith.constant 128 : index
    %48 = vector.load %arg6[%c0_21, %c128] : memref<128x144xf32, #tpu.memory_space<vmem>>, vector<128x16xf32>
    tpu.vector_store %arg6[%c0_21, %c128], %47 {strides = array<i32>} : memref<128x144xf32, #tpu.memory_space<vmem>>, vector<128x16xf32>,
    %c0_22 = arith.constant 0 : index
    %c0_23 = arith.constant 0 : index
    %49 = vector.load %arg6[%c0_22, %c0_23] : memref<128x144xf32, #tpu.memory_space<vmem>>, vector<128x144xf32>
    %c0_24 = arith.constant 0 : index
    %c0_25 = arith.constant 0 : index
    %c0_26 = arith.constant 0 : index
    %50 = vector.load %arg3[%c0_24, %c0_25, %c0_26] : memref<1x144x32xf32, #tpu.memory_space<vmem>>, vector<1x144x32xf32>
    %51 = vector.shape_cast %50 : vector<1x144x32xf32> to vector<144x32xf32>
    %cst_27 = arith.constant dense<0.000000e+00> : vector<128x32xf32>
    %52 = tpu.matmul %49, %51, %cst_27 {dimension_numbers = #tpu.dot_dimension_numbers<[1], [0], [0], [1], [0, 0, 1, 1], [], []>} : vector<128x144xf32>, vector<144x32xf32>, vector<128x32xf32> -> vector<128x32xf32>
    %c0_28 = arith.constant 0 : index
    %c0_29 = arith.constant 0 : index
    %c0_30 = arith.constant 0 : index
    %53 = vector.load %arg4[%c0_28, %c0_29, %c0_30] : memref<1x1x32xf32, #tpu.memory_space<vmem>>, vector<1x1x32xf32>
    %cst_31 = arith.constant dense<0.000000e+00> : vector<32xf32>
    %54 = vector.multi_reduction <add>, %52, %cst_31 [0] : vector<128x32xf32> to vector<32xf32>
    %55 = vector.shape_cast %54 : vector<32xf32> to vector<1x32xf32>
    %56 = vector.shape_cast %55 : vector<1x32xf32> to vector<1x1x32xf32>
    %57 = arith.addf %53, %56 : vector<1x1x32xf32>
    %c0_32 = arith.constant 0 : index
    %c0_33 = arith.constant 0 : index
    %c0_34 = arith.constant 0 : index
    %58 = vector.load %arg4[%c0_32, %c0_33, %c0_34] : memref<1x1x32xf32, #tpu.memory_space<vmem>>, vector<1x1x32xf32>
    tpu.vector_store %arg4[%c0_32, %c0_33, %c0_34], %57 {strides = array<i32>} : memref<1x1x32xf32, #tpu.memory_space<vmem>>, vector<1x1x32xf32>,
    %c0_35 = arith.constant 0 : index
    %c0_36 = arith.constant 0 : index
    %c0_37 = arith.constant 0 : index
    %59 = vector.load %arg5[%c0_35, %c0_36, %c0_37] : memref<1x1x32xf32, #tpu.memory_space<vmem>>, vector<1x1x32xf32>
    %60 = arith.mulf %52, %52 : vector<128x32xf32>
    %cst_38 = arith.constant dense<0.000000e+00> : vector<32xf32>
    %61 = vector.multi_reduction <add>, %60, %cst_38 [0] : vector<128x32xf32> to vector<32xf32>
    %62 = vector.shape_cast %61 : vector<32xf32> to vector<1x32xf32>
    %63 = vector.shape_cast %62 : vector<1x32xf32> to vector<1x1x32xf32>
    %64 = arith.addf %59, %63 : vector<1x1x32xf32>
    %c0_39 = arith.constant 0 : index
    %c0_40 = arith.constant 0 : index
    %c0_41 = arith.constant 0 : index
    %65 = vector.load %arg5[%c0_39, %c0_40, %c0_41] : memref<1x1x32xf32, #tpu.memory_space<vmem>>, vector<1x1x32xf32>
    tpu.vector_store %arg5[%c0_39, %c0_40, %c0_41], %64 {strides = array<i32>} : memref<1x1x32xf32, #tpu.memory_space<vmem>>, vector<1x1x32xf32>,
    return
  }
  func.func @transform_0(%arg0: i32, %arg1: i32) -> (i32, i32, i32, i32) {
    %c1_i32 = arith.constant 1 : i32
    %0 = arith.muli %arg0, %c1_i32 : i32
    %1 = arith.addi %0, %arg1 : i32
    %c0_i32 = arith.constant 0 : i32
    %c0_i32_0 = arith.constant 0 : i32
    %c0_i32_1 = arith.constant 0 : i32
    %c0_i32_2 = arith.constant 0 : i32
    return %1, %c0_i32, %c0_i32_0, %c0_i32_1 : i32, i32, i32, i32
  }
  func.func @transform_1(%arg0: i32, %arg1: i32) -> (i32, i32, i32) {
    %c0_i32 = arith.constant 0 : i32
    %c0_i32_0 = arith.constant 0 : i32
    %c0_i32_1 = arith.constant 0 : i32
    return %arg0, %c0_i32, %c0_i32_0 : i32, i32, i32
  }
  func.func @transform_2(%arg0: i32, %arg1: i32) -> (i32, i32, i32) {
    %c0_i32 = arith.constant 0 : i32
    %c0_i32_0 = arith.constant 0 : i32
    %c0_i32_1 = arith.constant 0 : i32
    return %arg0, %c0_i32, %c0_i32_0 : i32, i32, i32
  }
  func.func @transform_3(%arg0: i32, %arg1: i32) -> (i32, i32, i32) {
    %c0_i32 = arith.constant 0 : i32
    %c0_i32_0 = arith.constant 0 : i32
    %c0_i32_1 = arith.constant 0 : i32
    return %arg0, %c0_i32, %c0_i32_0 : i32, i32, i32
  }
}

module attributes {stable_mosaic.version = 11 : i64} {
  func.func @_edge_mix_kernel(%arg0: i32, %arg1: i32, %arg2: memref<2x10x10x16xf32, #tpu.memory_space<vmem>>, %arg3: memref<1x144x32xf32, #tpu.memory_space<vmem>>, %arg4: memref<1x4x32xf32, #tpu.memory_space<vmem>>, %arg5: memref<2x8x8x16xf32, #tpu.memory_space<vmem>>, %arg6: memref<128x144xf32, #tpu.memory_space<vmem>>) attributes {dimension_semantics = [#tpu.dimension_semantics<parallel>, #tpu.dimension_semantics<arbitrary>], iteration_bounds = array<i64: 1, 2>, scalar_prefetch = 0 : i64, scratch_operands = 1 : i64, tpu.core_type = #tpu.core_type<tc>, window_params = [{transform_indices = @transform_0, window_bounds = array<i64: 2, 10, 10, 16>}, {transform_indices = @transform_1, window_bounds = array<i64: 1, 144, 32>}, {transform_indices = @transform_2, window_bounds = array<i64: 1, 4, 32>}, {transform_indices = @transform_3, window_bounds = array<i64: 2, 8, 8, 16>}]} {
    %c0 = arith.constant 0 : index
    %c0_0 = arith.constant 0 : index
    %c0_1 = arith.constant 0 : index
    %c0_2 = arith.constant 0 : index
    %0 = vector.load %arg2[%c0, %c0_0, %c0_1, %c0_2] : memref<2x10x10x16xf32, #tpu.memory_space<vmem>>, vector<2x10x10x16xf32>
    %1 = vector.extract_strided_slice %0 {offsets = [0, 1, 1, 0], sizes = [2, 8, 8, 16], strides = [1, 1, 1, 1]} : vector<2x10x10x16xf32> to vector<2x8x8x16xf32>
    %cst = arith.constant 0.000000e+00 : f32
    %2 = vector.broadcast %cst : f32 to vector<2x8x8x16xf32>
    %3 = vector.extract_strided_slice %0 {offsets = [0, 0, 0, 0], sizes = [2, 8, 8, 16], strides = [1, 1, 1, 1]} : vector<2x10x10x16xf32> to vector<2x8x8x16xf32>
    %4 = arith.addf %2, %3 : vector<2x8x8x16xf32>
    %cst_3 = arith.constant 0.000000e+00 : f32
    %5 = vector.broadcast %cst_3 : f32 to vector<2x8x8x16xf32>
    %6 = arith.maximumf %3, %5 : vector<2x8x8x16xf32>
    %7 = vector.shape_cast %6 : vector<2x8x8x16xf32> to vector<128x16xf32>
    %c0_4 = arith.constant 0 : index
    %c0_5 = arith.constant 0 : index
    %8 = vector.load %arg6[%c0_4, %c0_5] : memref<128x144xf32, #tpu.memory_space<vmem>>, vector<128x16xf32>
    tpu.vector_store %arg6[%c0_4, %c0_5], %7 {strides = array<i32>} : memref<128x144xf32, #tpu.memory_space<vmem>>, vector<128x16xf32>,
    %9 = vector.extract_strided_slice %0 {offsets = [0, 0, 1, 0], sizes = [2, 8, 8, 16], strides = [1, 1, 1, 1]} : vector<2x10x10x16xf32> to vector<2x8x8x16xf32>
    %10 = arith.addf %4, %9 : vector<2x8x8x16xf32>
    %cst_6 = arith.constant 0.000000e+00 : f32
    %11 = vector.broadcast %cst_6 : f32 to vector<2x8x8x16xf32>
    %12 = arith.maximumf %9, %11 : vector<2x8x8x16xf32>
    %13 = vector.shape_cast %12 : vector<2x8x8x16xf32> to vector<128x16xf32>
    %c0_7 = arith.constant 0 : index
    %c16 = arith.constant 16 : index
    %14 = vector.load %arg6[%c0_7, %c16] : memref<128x144xf32, #tpu.memory_space<vmem>>, vector<128x16xf32>
    tpu.vector_store %arg6[%c0_7, %c16], %13 {strides = array<i32>} : memref<128x144xf32, #tpu.memory_space<vmem>>, vector<128x16xf32>,
    %15 = vector.extract_strided_slice %0 {offsets = [0, 0, 2, 0], sizes = [2, 8, 8, 16], strides = [1, 1, 1, 1]} : vector<2x10x10x16xf32> to vector<2x8x8x16xf32>
    %16 = arith.addf %10, %15 : vector<2x8x8x16xf32>
    %cst_8 = arith.constant 0.000000e+00 : f32
    %17 = vector.broadcast %cst_8 : f32 to vector<2x8x8x16xf32>
    %18 = arith.maximumf %15, %17 : vector<2x8x8x16xf32>
    %19 = vector.shape_cast %18 : vector<2x8x8x16xf32> to vector<128x16xf32>
    %c0_9 = arith.constant 0 : index
    %c32 = arith.constant 32 : index
    %20 = vector.load %arg6[%c0_9, %c32] : memref<128x144xf32, #tpu.memory_space<vmem>>, vector<128x16xf32>
    tpu.vector_store %arg6[%c0_9, %c32], %19 {strides = array<i32>} : memref<128x144xf32, #tpu.memory_space<vmem>>, vector<128x16xf32>,
    %21 = vector.extract_strided_slice %0 {offsets = [0, 1, 0, 0], sizes = [2, 8, 8, 16], strides = [1, 1, 1, 1]} : vector<2x10x10x16xf32> to vector<2x8x8x16xf32>
    %22 = arith.addf %16, %21 : vector<2x8x8x16xf32>
    %cst_10 = arith.constant 0.000000e+00 : f32
    %23 = vector.broadcast %cst_10 : f32 to vector<2x8x8x16xf32>
    %24 = arith.maximumf %21, %23 : vector<2x8x8x16xf32>
    %25 = vector.shape_cast %24 : vector<2x8x8x16xf32> to vector<128x16xf32>
    %c0_11 = arith.constant 0 : index
    %c48 = arith.constant 48 : index
    %26 = vector.load %arg6[%c0_11, %c48] : memref<128x144xf32, #tpu.memory_space<vmem>>, vector<128x16xf32>
    tpu.vector_store %arg6[%c0_11, %c48], %25 {strides = array<i32>} : memref<128x144xf32, #tpu.memory_space<vmem>>, vector<128x16xf32>,
    %27 = vector.extract_strided_slice %0 {offsets = [0, 1, 1, 0], sizes = [2, 8, 8, 16], strides = [1, 1, 1, 1]} : vector<2x10x10x16xf32> to vector<2x8x8x16xf32>
    %28 = arith.addf %22, %27 : vector<2x8x8x16xf32>
    %cst_12 = arith.constant 0.000000e+00 : f32
    %29 = vector.broadcast %cst_12 : f32 to vector<2x8x8x16xf32>
    %30 = arith.maximumf %27, %29 : vector<2x8x8x16xf32>
    %31 = vector.shape_cast %30 : vector<2x8x8x16xf32> to vector<128x16xf32>
    %c0_13 = arith.constant 0 : index
    %c64 = arith.constant 64 : index
    %32 = vector.load %arg6[%c0_13, %c64] : memref<128x144xf32, #tpu.memory_space<vmem>>, vector<128x16xf32>
    tpu.vector_store %arg6[%c0_13, %c64], %31 {strides = array<i32>} : memref<128x144xf32, #tpu.memory_space<vmem>>, vector<128x16xf32>,
    %33 = vector.extract_strided_slice %0 {offsets = [0, 1, 2, 0], sizes = [2, 8, 8, 16], strides = [1, 1, 1, 1]} : vector<2x10x10x16xf32> to vector<2x8x8x16xf32>
    %34 = arith.addf %28, %33 : vector<2x8x8x16xf32>
    %cst_14 = arith.constant 0.000000e+00 : f32
    %35 = vector.broadcast %cst_14 : f32 to vector<2x8x8x16xf32>
    %36 = arith.maximumf %33, %35 : vector<2x8x8x16xf32>
    %37 = vector.shape_cast %36 : vector<2x8x8x16xf32> to vector<128x16xf32>
    %c0_15 = arith.constant 0 : index
    %c80 = arith.constant 80 : index
    %38 = vector.load %arg6[%c0_15, %c80] : memref<128x144xf32, #tpu.memory_space<vmem>>, vector<128x16xf32>
    tpu.vector_store %arg6[%c0_15, %c80], %37 {strides = array<i32>} : memref<128x144xf32, #tpu.memory_space<vmem>>, vector<128x16xf32>,
    %39 = vector.extract_strided_slice %0 {offsets = [0, 2, 0, 0], sizes = [2, 8, 8, 16], strides = [1, 1, 1, 1]} : vector<2x10x10x16xf32> to vector<2x8x8x16xf32>
    %40 = arith.addf %34, %39 : vector<2x8x8x16xf32>
    %cst_16 = arith.constant 0.000000e+00 : f32
    %41 = vector.broadcast %cst_16 : f32 to vector<2x8x8x16xf32>
    %42 = arith.maximumf %39, %41 : vector<2x8x8x16xf32>
    %43 = vector.shape_cast %42 : vector<2x8x8x16xf32> to vector<128x16xf32>
    %c0_17 = arith.constant 0 : index
    %c96 = arith.constant 96 : index
    %44 = vector.load %arg6[%c0_17, %c96] : memref<128x144xf32, #tpu.memory_space<vmem>>, vector<128x16xf32>
    tpu.vector_store %arg6[%c0_17, %c96], %43 {strides = array<i32>} : memref<128x144xf32, #tpu.memory_space<vmem>>, vector<128x16xf32>,
    %45 = vector.extract_strided_slice %0 {offsets = [0, 2, 1, 0], sizes = [2, 8, 8, 16], strides = [1, 1, 1, 1]} : vector<2x10x10x16xf32> to vector<2x8x8x16xf32>
    %46 = arith.addf %40, %45 : vector<2x8x8x16xf32>
    %cst_18 = arith.constant 0.000000e+00 : f32
    %47 = vector.broadcast %cst_18 : f32 to vector<2x8x8x16xf32>
    %48 = arith.maximumf %45, %47 : vector<2x8x8x16xf32>
    %49 = vector.shape_cast %48 : vector<2x8x8x16xf32> to vector<128x16xf32>
    %c0_19 = arith.constant 0 : index
    %c112 = arith.constant 112 : index
    %50 = vector.load %arg6[%c0_19, %c112] : memref<128x144xf32, #tpu.memory_space<vmem>>, vector<128x16xf32>
    tpu.vector_store %arg6[%c0_19, %c112], %49 {strides = array<i32>} : memref<128x144xf32, #tpu.memory_space<vmem>>, vector<128x16xf32>,
    %51 = vector.extract_strided_slice %0 {offsets = [0, 2, 2, 0], sizes = [2, 8, 8, 16], strides = [1, 1, 1, 1]} : vector<2x10x10x16xf32> to vector<2x8x8x16xf32>
    %52 = arith.addf %46, %51 : vector<2x8x8x16xf32>
    %cst_20 = arith.constant 0.000000e+00 : f32
    %53 = vector.broadcast %cst_20 : f32 to vector<2x8x8x16xf32>
    %54 = arith.maximumf %51, %53 : vector<2x8x8x16xf32>
    %55 = vector.shape_cast %54 : vector<2x8x8x16xf32> to vector<128x16xf32>
    %c0_21 = arith.constant 0 : index
    %c128 = arith.constant 128 : index
    %56 = vector.load %arg6[%c0_21, %c128] : memref<128x144xf32, #tpu.memory_space<vmem>>, vector<128x16xf32>
    tpu.vector_store %arg6[%c0_21, %c128], %55 {strides = array<i32>} : memref<128x144xf32, #tpu.memory_space<vmem>>, vector<128x16xf32>,
    %c0_22 = arith.constant 0 : index
    %c0_23 = arith.constant 0 : index
    %57 = vector.load %arg6[%c0_22, %c0_23] : memref<128x144xf32, #tpu.memory_space<vmem>>, vector<128x144xf32>
    %c0_24 = arith.constant 0 : index
    %c0_25 = arith.constant 0 : index
    %c0_26 = arith.constant 0 : index
    %58 = vector.load %arg3[%c0_24, %c0_25, %c0_26] : memref<1x144x32xf32, #tpu.memory_space<vmem>>, vector<1x144x32xf32>
    %59 = vector.shape_cast %58 : vector<1x144x32xf32> to vector<144x32xf32>
    %cst_27 = arith.constant dense<0.000000e+00> : vector<128x32xf32>
    %60 = tpu.matmul %57, %59, %cst_27 {dimension_numbers = #tpu.dot_dimension_numbers<[1], [0], [0], [1], [0, 0, 1, 1], [], []>} : vector<128x144xf32>, vector<144x32xf32>, vector<128x32xf32> -> vector<128x32xf32>
    %c0_28 = arith.constant 0 : index
    %c0_29 = arith.constant 0 : index
    %c0_30 = arith.constant 0 : index
    %61 = vector.load %arg4[%c0_28, %c0_29, %c0_30] : memref<1x4x32xf32, #tpu.memory_space<vmem>>, vector<1x4x32xf32>
    %62 = vector.shape_cast %61 : vector<1x4x32xf32> to vector<4x32xf32>
    %63 = vector.extract_strided_slice %62 {offsets = [0, 0], sizes = [1, 32], strides = [1, 1]} : vector<4x32xf32> to vector<1x32xf32>
    %64 = vector.broadcast %63 : vector<1x32xf32> to vector<128x32xf32>
    %65 = arith.mulf %60, %64 : vector<128x32xf32>
    %66 = vector.extract_strided_slice %62 {offsets = [1, 0], sizes = [1, 32], strides = [1, 1]} : vector<4x32xf32> to vector<1x32xf32>
    %67 = vector.broadcast %66 : vector<1x32xf32> to vector<128x32xf32>
    %68 = arith.addf %65, %67 : vector<128x32xf32>
    %69 = vector.extract_strided_slice %68 {offsets = [0, 0], sizes = [128, 16], strides = [1, 1]} : vector<128x32xf32> to vector<128x16xf32>
    %70 = vector.extract_strided_slice %68 {offsets = [0, 16], sizes = [128, 16], strides = [1, 1]} : vector<128x32xf32> to vector<128x16xf32>
    %71 = arith.addf %69, %70 : vector<128x16xf32>
    %72 = vector.shape_cast %71 : vector<128x16xf32> to vector<2x8x8x16xf32>
    %73 = tpu.iota {dimensions = array<i32: 1>} : vector<2x8x8x16xi32>
    %74 = tpu.iota {dimensions = array<i32: 2>} : vector<2x8x8x16xi32>
    %c0_i32 = arith.constant 0 : i32
    %75 = vector.broadcast %c0_i32 : i32 to vector<2x8x8x16xi32>
    %76 = arith.cmpi eq, %73, %75 : vector<2x8x8x16xi32>
    %77 = arith.extui %76 : vector<2x8x8x16xi1> to vector<2x8x8x16xi32>
    %c3_i32 = arith.constant 3 : i32
    %78 = vector.broadcast %c3_i32 : i32 to vector<2x8x8x16xi32>
    %79 = arith.subi %78, %77 : vector<2x8x8x16xi32>
    %c7_i32 = arith.constant 7 : i32
    %80 = vector.broadcast %c7_i32 : i32 to vector<2x8x8x16xi32>
    %81 = arith.cmpi eq, %73, %80 : vector<2x8x8x16xi32>
    %82 = arith.extui %81 : vector<2x8x8x16xi1> to vector<2x8x8x16xi32>
    %83 = arith.subi %79, %82 : vector<2x8x8x16xi32>
    %c0_i32_31 = arith.constant 0 : i32
    %84 = vector.broadcast %c0_i32_31 : i32 to vector<2x8x8x16xi32>
    %85 = arith.cmpi eq, %74, %84 : vector<2x8x8x16xi32>
    %86 = arith.extui %85 : vector<2x8x8x16xi1> to vector<2x8x8x16xi32>
    %c3_i32_32 = arith.constant 3 : i32
    %87 = vector.broadcast %c3_i32_32 : i32 to vector<2x8x8x16xi32>
    %88 = arith.subi %87, %86 : vector<2x8x8x16xi32>
    %c7_i32_33 = arith.constant 7 : i32
    %89 = vector.broadcast %c7_i32_33 : i32 to vector<2x8x8x16xi32>
    %90 = arith.cmpi eq, %74, %89 : vector<2x8x8x16xi32>
    %91 = arith.extui %90 : vector<2x8x8x16xi1> to vector<2x8x8x16xi32>
    %92 = arith.subi %88, %91 : vector<2x8x8x16xi32>
    %93 = arith.muli %83, %92 : vector<2x8x8x16xi32>
    %94 = arith.sitofp %93 : vector<2x8x8x16xi32> to vector<2x8x8x16xf32>
    %cst_34 = arith.constant 1.000000e+00 : f32
    %95 = vector.broadcast %cst_34 : f32 to vector<2x8x8x16xf32>
    %96 = arith.divf %95, %94 : vector<2x8x8x16xf32>
    %97 = vector.extract_strided_slice %62 {offsets = [2, 0], sizes = [1, 16], strides = [1, 1]} : vector<4x32xf32> to vector<1x16xf32>
    %98 = vector.shape_cast %97 : vector<1x16xf32> to vector<1x1x1x16xf32>
    %99 = vector.broadcast %98 : vector<1x1x1x16xf32> to vector<2x8x8x16xf32>
    %100 = arith.mulf %1, %99 : vector<2x8x8x16xf32>
    %101 = arith.mulf %52, %96 : vector<2x8x8x16xf32>
    %102 = vector.extract_strided_slice %62 {offsets = [3, 0], sizes = [1, 16], strides = [1, 1]} : vector<4x32xf32> to vector<1x16xf32>
    %103 = vector.shape_cast %102 : vector<1x16xf32> to vector<1x1x1x16xf32>
    %104 = vector.broadcast %103 : vector<1x1x1x16xf32> to vector<2x8x8x16xf32>
    %105 = arith.mulf %101, %104 : vector<2x8x8x16xf32>
    %c0_i32_35 = arith.constant 0 : i32
    %106 = arith.cmpi eq, %arg1, %c0_i32_35 : i32
    %107 = arith.extui %106 : i1 to i32
    %c0_i32_36 = arith.constant 0 : i32
    %108 = arith.cmpi ne, %107, %c0_i32_36 : i32
    scf.if %108 {
      %cst_45 = arith.constant 0.000000e+00 : f32
      %114 = vector.broadcast %cst_45 : f32 to vector<2x8x8x16xf32>
      %c0_46 = arith.constant 0 : index
      %c0_47 = arith.constant 0 : index
      %c0_48 = arith.constant 0 : index
      %c0_49 = arith.constant 0 : index
      %115 = vector.load %arg5[%c0_46, %c0_47, %c0_48, %c0_49] : memref<2x8x8x16xf32, #tpu.memory_space<vmem>>, vector<2x8x8x16xf32>
      tpu.vector_store %arg5[%c0_46, %c0_47, %c0_48, %c0_49], %114 {strides = array<i32>} : memref<2x8x8x16xf32, #tpu.memory_space<vmem>>, vector<2x8x8x16xf32>,
    } else {
    }
    %c0_37 = arith.constant 0 : index
    %c0_38 = arith.constant 0 : index
    %c0_39 = arith.constant 0 : index
    %c0_40 = arith.constant 0 : index
    %109 = vector.load %arg5[%c0_37, %c0_38, %c0_39, %c0_40] : memref<2x8x8x16xf32, #tpu.memory_space<vmem>>, vector<2x8x8x16xf32>
    %110 = arith.addf %72, %100 : vector<2x8x8x16xf32>
    %111 = arith.addf %110, %105 : vector<2x8x8x16xf32>
    %112 = arith.addf %109, %111 : vector<2x8x8x16xf32>
    %c0_41 = arith.constant 0 : index
    %c0_42 = arith.constant 0 : index
    %c0_43 = arith.constant 0 : index
    %c0_44 = arith.constant 0 : index
    %113 = vector.load %arg5[%c0_41, %c0_42, %c0_43, %c0_44] : memref<2x8x8x16xf32, #tpu.memory_space<vmem>>, vector<2x8x8x16xf32>
    tpu.vector_store %arg5[%c0_41, %c0_42, %c0_43, %c0_44], %112 {strides = array<i32>} : memref<2x8x8x16xf32, #tpu.memory_space<vmem>>, vector<2x8x8x16xf32>,
    return
  }
  func.func @transform_0(%arg0: i32, %arg1: i32) -> (i32, i32, i32, i32) {
    %c1_i32 = arith.constant 1 : i32
    %0 = arith.muli %arg1, %c1_i32 : i32
    %1 = arith.addi %0, %arg0 : i32
    %c0_i32 = arith.constant 0 : i32
    %c0_i32_0 = arith.constant 0 : i32
    %c0_i32_1 = arith.constant 0 : i32
    %c0_i32_2 = arith.constant 0 : i32
    return %1, %c0_i32, %c0_i32_0, %c0_i32_1 : i32, i32, i32, i32
  }
  func.func @transform_1(%arg0: i32, %arg1: i32) -> (i32, i32, i32) {
    %c0_i32 = arith.constant 0 : i32
    %c0_i32_0 = arith.constant 0 : i32
    %c0_i32_1 = arith.constant 0 : i32
    return %arg1, %c0_i32, %c0_i32_0 : i32, i32, i32
  }
  func.func @transform_2(%arg0: i32, %arg1: i32) -> (i32, i32, i32) {
    %c0_i32 = arith.constant 0 : i32
    %c0_i32_0 = arith.constant 0 : i32
    %c0_i32_1 = arith.constant 0 : i32
    return %arg1, %c0_i32, %c0_i32_0 : i32, i32, i32
  }
  func.func @transform_3(%arg0: i32, %arg1: i32) -> (i32, i32, i32, i32) {
    %c0_i32 = arith.constant 0 : i32
    %c0_i32_0 = arith.constant 0 : i32
    %c0_i32_1 = arith.constant 0 : i32
    %c0_i32_2 = arith.constant 0 : i32
    return %arg0, %c0_i32, %c0_i32_0, %c0_i32_1 : i32, i32, i32, i32
  }
}

module attributes {stable_mosaic.version = 11 : i64} {
  func.func @_conv_stats_kernel(%arg0: i32, %arg1: i32, %arg2: memref<2x10x10x16xf32, #tpu.memory_space<vmem>>, %arg3: memref<1x144x32xf32, #tpu.memory_space<vmem>>, %arg4: memref<1x1x32xf32, #tpu.memory_space<vmem>>, %arg5: memref<1x1x32xf32, #tpu.memory_space<vmem>>, %arg6: memref<128x144xf32, #tpu.memory_space<vmem>>) attributes {dimension_semantics = [#tpu.dimension_semantics<parallel>, #tpu.dimension_semantics<arbitrary>], iteration_bounds = array<i64: 3, 1>, scalar_prefetch = 0 : i64, scratch_operands = 1 : i64, tpu.core_type = #tpu.core_type<tc>, window_params = [{transform_indices = @transform_0, window_bounds = array<i64: 2, 10, 10, 16>}, {transform_indices = @transform_1, window_bounds = array<i64: 1, 144, 32>}, {transform_indices = @transform_2, window_bounds = array<i64: 1, 1, 32>}, {transform_indices = @transform_3, window_bounds = array<i64: 1, 1, 32>}]} {
    %c0_i32 = arith.constant 0 : i32
    %0 = arith.cmpi eq, %arg1, %c0_i32 : i32
    %1 = arith.extui %0 : i1 to i32
    %c0_i32_0 = arith.constant 0 : i32
    %2 = arith.cmpi ne, %1, %c0_i32_0 : i32
    scf.if %2 {
      %cst_42 = arith.constant 0.000000e+00 : f32
      %66 = vector.broadcast %cst_42 : f32 to vector<1x1x32xf32>
      %c0_43 = arith.constant 0 : index
      %c0_44 = arith.constant 0 : index
      %c0_45 = arith.constant 0 : index
      %67 = vector.load %arg4[%c0_43, %c0_44, %c0_45] : memref<1x1x32xf32, #tpu.memory_space<vmem>>, vector<1x1x32xf32>
      tpu.vector_store %arg4[%c0_43, %c0_44, %c0_45], %66 {strides = array<i32>} : memref<1x1x32xf32, #tpu.memory_space<vmem>>, vector<1x1x32xf32>,
      %cst_46 = arith.constant 0.000000e+00 : f32
      %68 = vector.broadcast %cst_46 : f32 to vector<1x1x32xf32>
      %c0_47 = arith.constant 0 : index
      %c0_48 = arith.constant 0 : index
      %c0_49 = arith.constant 0 : index
      %69 = vector.load %arg5[%c0_47, %c0_48, %c0_49] : memref<1x1x32xf32, #tpu.memory_space<vmem>>, vector<1x1x32xf32>
      tpu.vector_store %arg5[%c0_47, %c0_48, %c0_49], %68 {strides = array<i32>} : memref<1x1x32xf32, #tpu.memory_space<vmem>>, vector<1x1x32xf32>,
    } else {
    }
    %c0 = arith.constant 0 : index
    %c0_1 = arith.constant 0 : index
    %c0_2 = arith.constant 0 : index
    %c0_3 = arith.constant 0 : index
    %3 = vector.load %arg2[%c0, %c0_1, %c0_2, %c0_3] : memref<2x10x10x16xf32, #tpu.memory_space<vmem>>, vector<2x10x10x16xf32>
    %4 = vector.extract_strided_slice %3 {offsets = [0, 0, 0, 0], sizes = [2, 8, 8, 16], strides = [1, 1, 1, 1]} : vector<2x10x10x16xf32> to vector<2x8x8x16xf32>
    %cst = arith.constant 0.000000e+00 : f32
    %5 = vector.broadcast %cst : f32 to vector<2x8x8x16xf32>
    %6 = arith.maximumf %4, %5 : vector<2x8x8x16xf32>
    %7 = vector.shape_cast %6 : vector<2x8x8x16xf32> to vector<128x16xf32>
    %c0_4 = arith.constant 0 : index
    %c0_5 = arith.constant 0 : index
    %8 = vector.load %arg6[%c0_4, %c0_5] : memref<128x144xf32, #tpu.memory_space<vmem>>, vector<128x16xf32>
    tpu.vector_store %arg6[%c0_4, %c0_5], %7 {strides = array<i32>} : memref<128x144xf32, #tpu.memory_space<vmem>>, vector<128x16xf32>,
    %9 = vector.extract_strided_slice %3 {offsets = [0, 0, 1, 0], sizes = [2, 8, 8, 16], strides = [1, 1, 1, 1]} : vector<2x10x10x16xf32> to vector<2x8x8x16xf32>
    %cst_6 = arith.constant 0.000000e+00 : f32
    %10 = vector.broadcast %cst_6 : f32 to vector<2x8x8x16xf32>
    %11 = arith.maximumf %9, %10 : vector<2x8x8x16xf32>
    %12 = vector.shape_cast %11 : vector<2x8x8x16xf32> to vector<128x16xf32>
    %c0_7 = arith.constant 0 : index
    %c16 = arith.constant 16 : index
    %13 = vector.load %arg6[%c0_7, %c16] : memref<128x144xf32, #tpu.memory_space<vmem>>, vector<128x16xf32>
    tpu.vector_store %arg6[%c0_7, %c16], %12 {strides = array<i32>} : memref<128x144xf32, #tpu.memory_space<vmem>>, vector<128x16xf32>,
    %14 = vector.extract_strided_slice %3 {offsets = [0, 0, 2, 0], sizes = [2, 8, 8, 16], strides = [1, 1, 1, 1]} : vector<2x10x10x16xf32> to vector<2x8x8x16xf32>
    %cst_8 = arith.constant 0.000000e+00 : f32
    %15 = vector.broadcast %cst_8 : f32 to vector<2x8x8x16xf32>
    %16 = arith.maximumf %14, %15 : vector<2x8x8x16xf32>
    %17 = vector.shape_cast %16 : vector<2x8x8x16xf32> to vector<128x16xf32>
    %c0_9 = arith.constant 0 : index
    %c32 = arith.constant 32 : index
    %18 = vector.load %arg6[%c0_9, %c32] : memref<128x144xf32, #tpu.memory_space<vmem>>, vector<128x16xf32>
    tpu.vector_store %arg6[%c0_9, %c32], %17 {strides = array<i32>} : memref<128x144xf32, #tpu.memory_space<vmem>>, vector<128x16xf32>,
    %19 = vector.extract_strided_slice %3 {offsets = [0, 1, 0, 0], sizes = [2, 8, 8, 16], strides = [1, 1, 1, 1]} : vector<2x10x10x16xf32> to vector<2x8x8x16xf32>
    %cst_10 = arith.constant 0.000000e+00 : f32
    %20 = vector.broadcast %cst_10 : f32 to vector<2x8x8x16xf32>
    %21 = arith.maximumf %19, %20 : vector<2x8x8x16xf32>
    %22 = vector.shape_cast %21 : vector<2x8x8x16xf32> to vector<128x16xf32>
    %c0_11 = arith.constant 0 : index
    %c48 = arith.constant 48 : index
    %23 = vector.load %arg6[%c0_11, %c48] : memref<128x144xf32, #tpu.memory_space<vmem>>, vector<128x16xf32>
    tpu.vector_store %arg6[%c0_11, %c48], %22 {strides = array<i32>} : memref<128x144xf32, #tpu.memory_space<vmem>>, vector<128x16xf32>,
    %24 = vector.extract_strided_slice %3 {offsets = [0, 1, 1, 0], sizes = [2, 8, 8, 16], strides = [1, 1, 1, 1]} : vector<2x10x10x16xf32> to vector<2x8x8x16xf32>
    %cst_12 = arith.constant 0.000000e+00 : f32
    %25 = vector.broadcast %cst_12 : f32 to vector<2x8x8x16xf32>
    %26 = arith.maximumf %24, %25 : vector<2x8x8x16xf32>
    %27 = vector.shape_cast %26 : vector<2x8x8x16xf32> to vector<128x16xf32>
    %c0_13 = arith.constant 0 : index
    %c64 = arith.constant 64 : index
    %28 = vector.load %arg6[%c0_13, %c64] : memref<128x144xf32, #tpu.memory_space<vmem>>, vector<128x16xf32>
    tpu.vector_store %arg6[%c0_13, %c64], %27 {strides = array<i32>} : memref<128x144xf32, #tpu.memory_space<vmem>>, vector<128x16xf32>,
    %29 = vector.extract_strided_slice %3 {offsets = [0, 1, 2, 0], sizes = [2, 8, 8, 16], strides = [1, 1, 1, 1]} : vector<2x10x10x16xf32> to vector<2x8x8x16xf32>
    %cst_14 = arith.constant 0.000000e+00 : f32
    %30 = vector.broadcast %cst_14 : f32 to vector<2x8x8x16xf32>
    %31 = arith.maximumf %29, %30 : vector<2x8x8x16xf32>
    %32 = vector.shape_cast %31 : vector<2x8x8x16xf32> to vector<128x16xf32>
    %c0_15 = arith.constant 0 : index
    %c80 = arith.constant 80 : index
    %33 = vector.load %arg6[%c0_15, %c80] : memref<128x144xf32, #tpu.memory_space<vmem>>, vector<128x16xf32>
    tpu.vector_store %arg6[%c0_15, %c80], %32 {strides = array<i32>} : memref<128x144xf32, #tpu.memory_space<vmem>>, vector<128x16xf32>,
    %34 = vector.extract_strided_slice %3 {offsets = [0, 2, 0, 0], sizes = [2, 8, 8, 16], strides = [1, 1, 1, 1]} : vector<2x10x10x16xf32> to vector<2x8x8x16xf32>
    %cst_16 = arith.constant 0.000000e+00 : f32
    %35 = vector.broadcast %cst_16 : f32 to vector<2x8x8x16xf32>
    %36 = arith.maximumf %34, %35 : vector<2x8x8x16xf32>
    %37 = vector.shape_cast %36 : vector<2x8x8x16xf32> to vector<128x16xf32>
    %c0_17 = arith.constant 0 : index
    %c96 = arith.constant 96 : index
    %38 = vector.load %arg6[%c0_17, %c96] : memref<128x144xf32, #tpu.memory_space<vmem>>, vector<128x16xf32>
    tpu.vector_store %arg6[%c0_17, %c96], %37 {strides = array<i32>} : memref<128x144xf32, #tpu.memory_space<vmem>>, vector<128x16xf32>,
    %39 = vector.extract_strided_slice %3 {offsets = [0, 2, 1, 0], sizes = [2, 8, 8, 16], strides = [1, 1, 1, 1]} : vector<2x10x10x16xf32> to vector<2x8x8x16xf32>
    %cst_18 = arith.constant 0.000000e+00 : f32
    %40 = vector.broadcast %cst_18 : f32 to vector<2x8x8x16xf32>
    %41 = arith.maximumf %39, %40 : vector<2x8x8x16xf32>
    %42 = vector.shape_cast %41 : vector<2x8x8x16xf32> to vector<128x16xf32>
    %c0_19 = arith.constant 0 : index
    %c112 = arith.constant 112 : index
    %43 = vector.load %arg6[%c0_19, %c112] : memref<128x144xf32, #tpu.memory_space<vmem>>, vector<128x16xf32>
    tpu.vector_store %arg6[%c0_19, %c112], %42 {strides = array<i32>} : memref<128x144xf32, #tpu.memory_space<vmem>>, vector<128x16xf32>,
    %44 = vector.extract_strided_slice %3 {offsets = [0, 2, 2, 0], sizes = [2, 8, 8, 16], strides = [1, 1, 1, 1]} : vector<2x10x10x16xf32> to vector<2x8x8x16xf32>
    %cst_20 = arith.constant 0.000000e+00 : f32
    %45 = vector.broadcast %cst_20 : f32 to vector<2x8x8x16xf32>
    %46 = arith.maximumf %44, %45 : vector<2x8x8x16xf32>
    %47 = vector.shape_cast %46 : vector<2x8x8x16xf32> to vector<128x16xf32>
    %c0_21 = arith.constant 0 : index
    %c128 = arith.constant 128 : index
    %48 = vector.load %arg6[%c0_21, %c128] : memref<128x144xf32, #tpu.memory_space<vmem>>, vector<128x16xf32>
    tpu.vector_store %arg6[%c0_21, %c128], %47 {strides = array<i32>} : memref<128x144xf32, #tpu.memory_space<vmem>>, vector<128x16xf32>,
    %c0_22 = arith.constant 0 : index
    %c0_23 = arith.constant 0 : index
    %49 = vector.load %arg6[%c0_22, %c0_23] : memref<128x144xf32, #tpu.memory_space<vmem>>, vector<128x144xf32>
    %c0_24 = arith.constant 0 : index
    %c0_25 = arith.constant 0 : index
    %c0_26 = arith.constant 0 : index
    %50 = vector.load %arg3[%c0_24, %c0_25, %c0_26] : memref<1x144x32xf32, #tpu.memory_space<vmem>>, vector<1x144x32xf32>
    %51 = vector.shape_cast %50 : vector<1x144x32xf32> to vector<144x32xf32>
    %cst_27 = arith.constant dense<0.000000e+00> : vector<128x32xf32>
    %52 = tpu.matmul %49, %51, %cst_27 {dimension_numbers = #tpu.dot_dimension_numbers<[1], [0], [0], [1], [0, 0, 1, 1], [], []>} : vector<128x144xf32>, vector<144x32xf32>, vector<128x32xf32> -> vector<128x32xf32>
    %c0_28 = arith.constant 0 : index
    %c0_29 = arith.constant 0 : index
    %c0_30 = arith.constant 0 : index
    %53 = vector.load %arg4[%c0_28, %c0_29, %c0_30] : memref<1x1x32xf32, #tpu.memory_space<vmem>>, vector<1x1x32xf32>
    %cst_31 = arith.constant dense<0.000000e+00> : vector<32xf32>
    %54 = vector.multi_reduction <add>, %52, %cst_31 [0] : vector<128x32xf32> to vector<32xf32>
    %55 = vector.shape_cast %54 : vector<32xf32> to vector<1x32xf32>
    %56 = vector.shape_cast %55 : vector<1x32xf32> to vector<1x1x32xf32>
    %57 = arith.addf %53, %56 : vector<1x1x32xf32>
    %c0_32 = arith.constant 0 : index
    %c0_33 = arith.constant 0 : index
    %c0_34 = arith.constant 0 : index
    %58 = vector.load %arg4[%c0_32, %c0_33, %c0_34] : memref<1x1x32xf32, #tpu.memory_space<vmem>>, vector<1x1x32xf32>
    tpu.vector_store %arg4[%c0_32, %c0_33, %c0_34], %57 {strides = array<i32>} : memref<1x1x32xf32, #tpu.memory_space<vmem>>, vector<1x1x32xf32>,
    %c0_35 = arith.constant 0 : index
    %c0_36 = arith.constant 0 : index
    %c0_37 = arith.constant 0 : index
    %59 = vector.load %arg5[%c0_35, %c0_36, %c0_37] : memref<1x1x32xf32, #tpu.memory_space<vmem>>, vector<1x1x32xf32>
    %60 = arith.mulf %52, %52 : vector<128x32xf32>
    %cst_38 = arith.constant dense<0.000000e+00> : vector<32xf32>
    %61 = vector.multi_reduction <add>, %60, %cst_38 [0] : vector<128x32xf32> to vector<32xf32>
    %62 = vector.shape_cast %61 : vector<32xf32> to vector<1x32xf32>
    %63 = vector.shape_cast %62 : vector<1x32xf32> to vector<1x1x32xf32>
    %64 = arith.addf %59, %63 : vector<1x1x32xf32>
    %c0_39 = arith.constant 0 : index
    %c0_40 = arith.constant 0 : index
    %c0_41 = arith.constant 0 : index
    %65 = vector.load %arg5[%c0_39, %c0_40, %c0_41] : memref<1x1x32xf32, #tpu.memory_space<vmem>>, vector<1x1x32xf32>
    tpu.vector_store %arg5[%c0_39, %c0_40, %c0_41], %64 {strides = array<i32>} : memref<1x1x32xf32, #tpu.memory_space<vmem>>, vector<1x1x32xf32>,
    return
  }
  func.func @transform_0(%arg0: i32, %arg1: i32) -> (i32, i32, i32, i32) {
    %c1_i32 = arith.constant 1 : i32
    %0 = arith.muli %arg0, %c1_i32 : i32
    %1 = arith.addi %0, %arg1 : i32
    %c0_i32 = arith.constant 0 : i32
    %c0_i32_0 = arith.constant 0 : i32
    %c0_i32_1 = arith.constant 0 : i32
    %c0_i32_2 = arith.constant 0 : i32
    return %1, %c0_i32, %c0_i32_0, %c0_i32_1 : i32, i32, i32, i32
  }
  func.func @transform_1(%arg0: i32, %arg1: i32) -> (i32, i32, i32) {
    %c0_i32 = arith.constant 0 : i32
    %c0_i32_0 = arith.constant 0 : i32
    %c0_i32_1 = arith.constant 0 : i32
    return %arg0, %c0_i32, %c0_i32_0 : i32, i32, i32
  }
  func.func @transform_2(%arg0: i32, %arg1: i32) -> (i32, i32, i32) {
    %c0_i32 = arith.constant 0 : i32
    %c0_i32_0 = arith.constant 0 : i32
    %c0_i32_1 = arith.constant 0 : i32
    return %arg0, %c0_i32, %c0_i32_0 : i32, i32, i32
  }
  func.func @transform_3(%arg0: i32, %arg1: i32) -> (i32, i32, i32) {
    %c0_i32 = arith.constant 0 : i32
    %c0_i32_0 = arith.constant 0 : i32
    %c0_i32_1 = arith.constant 0 : i32
    return %arg0, %c0_i32, %c0_i32_0 : i32, i32, i32
  }
}

module attributes {stable_mosaic.version = 11 : i64} {
  func.func @_edge_mix_kernel(%arg0: i32, %arg1: i32, %arg2: memref<2x10x10x16xf32, #tpu.memory_space<vmem>>, %arg3: memref<1x144x32xf32, #tpu.memory_space<vmem>>, %arg4: memref<1x4x32xf32, #tpu.memory_space<vmem>>, %arg5: memref<2x8x8x16xf32, #tpu.memory_space<vmem>>, %arg6: memref<128x144xf32, #tpu.memory_space<vmem>>) attributes {dimension_semantics = [#tpu.dimension_semantics<parallel>, #tpu.dimension_semantics<arbitrary>], iteration_bounds = array<i64: 1, 3>, scalar_prefetch = 0 : i64, scratch_operands = 1 : i64, tpu.core_type = #tpu.core_type<tc>, window_params = [{transform_indices = @transform_0, window_bounds = array<i64: 2, 10, 10, 16>}, {transform_indices = @transform_1, window_bounds = array<i64: 1, 144, 32>}, {transform_indices = @transform_2, window_bounds = array<i64: 1, 4, 32>}, {transform_indices = @transform_3, window_bounds = array<i64: 2, 8, 8, 16>}]} {
    %c0 = arith.constant 0 : index
    %c0_0 = arith.constant 0 : index
    %c0_1 = arith.constant 0 : index
    %c0_2 = arith.constant 0 : index
    %0 = vector.load %arg2[%c0, %c0_0, %c0_1, %c0_2] : memref<2x10x10x16xf32, #tpu.memory_space<vmem>>, vector<2x10x10x16xf32>
    %1 = vector.extract_strided_slice %0 {offsets = [0, 1, 1, 0], sizes = [2, 8, 8, 16], strides = [1, 1, 1, 1]} : vector<2x10x10x16xf32> to vector<2x8x8x16xf32>
    %cst = arith.constant 0.000000e+00 : f32
    %2 = vector.broadcast %cst : f32 to vector<2x8x8x16xf32>
    %3 = vector.extract_strided_slice %0 {offsets = [0, 0, 0, 0], sizes = [2, 8, 8, 16], strides = [1, 1, 1, 1]} : vector<2x10x10x16xf32> to vector<2x8x8x16xf32>
    %4 = arith.addf %2, %3 : vector<2x8x8x16xf32>
    %cst_3 = arith.constant 0.000000e+00 : f32
    %5 = vector.broadcast %cst_3 : f32 to vector<2x8x8x16xf32>
    %6 = arith.maximumf %3, %5 : vector<2x8x8x16xf32>
    %7 = vector.shape_cast %6 : vector<2x8x8x16xf32> to vector<128x16xf32>
    %c0_4 = arith.constant 0 : index
    %c0_5 = arith.constant 0 : index
    %8 = vector.load %arg6[%c0_4, %c0_5] : memref<128x144xf32, #tpu.memory_space<vmem>>, vector<128x16xf32>
    tpu.vector_store %arg6[%c0_4, %c0_5], %7 {strides = array<i32>} : memref<128x144xf32, #tpu.memory_space<vmem>>, vector<128x16xf32>,
    %9 = vector.extract_strided_slice %0 {offsets = [0, 0, 1, 0], sizes = [2, 8, 8, 16], strides = [1, 1, 1, 1]} : vector<2x10x10x16xf32> to vector<2x8x8x16xf32>
    %10 = arith.addf %4, %9 : vector<2x8x8x16xf32>
    %cst_6 = arith.constant 0.000000e+00 : f32
    %11 = vector.broadcast %cst_6 : f32 to vector<2x8x8x16xf32>
    %12 = arith.maximumf %9, %11 : vector<2x8x8x16xf32>
    %13 = vector.shape_cast %12 : vector<2x8x8x16xf32> to vector<128x16xf32>
    %c0_7 = arith.constant 0 : index
    %c16 = arith.constant 16 : index
    %14 = vector.load %arg6[%c0_7, %c16] : memref<128x144xf32, #tpu.memory_space<vmem>>, vector<128x16xf32>
    tpu.vector_store %arg6[%c0_7, %c16], %13 {strides = array<i32>} : memref<128x144xf32, #tpu.memory_space<vmem>>, vector<128x16xf32>,
    %15 = vector.extract_strided_slice %0 {offsets = [0, 0, 2, 0], sizes = [2, 8, 8, 16], strides = [1, 1, 1, 1]} : vector<2x10x10x16xf32> to vector<2x8x8x16xf32>
    %16 = arith.addf %10, %15 : vector<2x8x8x16xf32>
    %cst_8 = arith.constant 0.000000e+00 : f32
    %17 = vector.broadcast %cst_8 : f32 to vector<2x8x8x16xf32>
    %18 = arith.maximumf %15, %17 : vector<2x8x8x16xf32>
    %19 = vector.shape_cast %18 : vector<2x8x8x16xf32> to vector<128x16xf32>
    %c0_9 = arith.constant 0 : index
    %c32 = arith.constant 32 : index
    %20 = vector.load %arg6[%c0_9, %c32] : memref<128x144xf32, #tpu.memory_space<vmem>>, vector<128x16xf32>
    tpu.vector_store %arg6[%c0_9, %c32], %19 {strides = array<i32>} : memref<128x144xf32, #tpu.memory_space<vmem>>, vector<128x16xf32>,
    %21 = vector.extract_strided_slice %0 {offsets = [0, 1, 0, 0], sizes = [2, 8, 8, 16], strides = [1, 1, 1, 1]} : vector<2x10x10x16xf32> to vector<2x8x8x16xf32>
    %22 = arith.addf %16, %21 : vector<2x8x8x16xf32>
    %cst_10 = arith.constant 0.000000e+00 : f32
    %23 = vector.broadcast %cst_10 : f32 to vector<2x8x8x16xf32>
    %24 = arith.maximumf %21, %23 : vector<2x8x8x16xf32>
    %25 = vector.shape_cast %24 : vector<2x8x8x16xf32> to vector<128x16xf32>
    %c0_11 = arith.constant 0 : index
    %c48 = arith.constant 48 : index
    %26 = vector.load %arg6[%c0_11, %c48] : memref<128x144xf32, #tpu.memory_space<vmem>>, vector<128x16xf32>
    tpu.vector_store %arg6[%c0_11, %c48], %25 {strides = array<i32>} : memref<128x144xf32, #tpu.memory_space<vmem>>, vector<128x16xf32>,
    %27 = vector.extract_strided_slice %0 {offsets = [0, 1, 1, 0], sizes = [2, 8, 8, 16], strides = [1, 1, 1, 1]} : vector<2x10x10x16xf32> to vector<2x8x8x16xf32>
    %28 = arith.addf %22, %27 : vector<2x8x8x16xf32>
    %cst_12 = arith.constant 0.000000e+00 : f32
    %29 = vector.broadcast %cst_12 : f32 to vector<2x8x8x16xf32>
    %30 = arith.maximumf %27, %29 : vector<2x8x8x16xf32>
    %31 = vector.shape_cast %30 : vector<2x8x8x16xf32> to vector<128x16xf32>
    %c0_13 = arith.constant 0 : index
    %c64 = arith.constant 64 : index
    %32 = vector.load %arg6[%c0_13, %c64] : memref<128x144xf32, #tpu.memory_space<vmem>>, vector<128x16xf32>
    tpu.vector_store %arg6[%c0_13, %c64], %31 {strides = array<i32>} : memref<128x144xf32, #tpu.memory_space<vmem>>, vector<128x16xf32>,
    %33 = vector.extract_strided_slice %0 {offsets = [0, 1, 2, 0], sizes = [2, 8, 8, 16], strides = [1, 1, 1, 1]} : vector<2x10x10x16xf32> to vector<2x8x8x16xf32>
    %34 = arith.addf %28, %33 : vector<2x8x8x16xf32>
    %cst_14 = arith.constant 0.000000e+00 : f32
    %35 = vector.broadcast %cst_14 : f32 to vector<2x8x8x16xf32>
    %36 = arith.maximumf %33, %35 : vector<2x8x8x16xf32>
    %37 = vector.shape_cast %36 : vector<2x8x8x16xf32> to vector<128x16xf32>
    %c0_15 = arith.constant 0 : index
    %c80 = arith.constant 80 : index
    %38 = vector.load %arg6[%c0_15, %c80] : memref<128x144xf32, #tpu.memory_space<vmem>>, vector<128x16xf32>
    tpu.vector_store %arg6[%c0_15, %c80], %37 {strides = array<i32>} : memref<128x144xf32, #tpu.memory_space<vmem>>, vector<128x16xf32>,
    %39 = vector.extract_strided_slice %0 {offsets = [0, 2, 0, 0], sizes = [2, 8, 8, 16], strides = [1, 1, 1, 1]} : vector<2x10x10x16xf32> to vector<2x8x8x16xf32>
    %40 = arith.addf %34, %39 : vector<2x8x8x16xf32>
    %cst_16 = arith.constant 0.000000e+00 : f32
    %41 = vector.broadcast %cst_16 : f32 to vector<2x8x8x16xf32>
    %42 = arith.maximumf %39, %41 : vector<2x8x8x16xf32>
    %43 = vector.shape_cast %42 : vector<2x8x8x16xf32> to vector<128x16xf32>
    %c0_17 = arith.constant 0 : index
    %c96 = arith.constant 96 : index
    %44 = vector.load %arg6[%c0_17, %c96] : memref<128x144xf32, #tpu.memory_space<vmem>>, vector<128x16xf32>
    tpu.vector_store %arg6[%c0_17, %c96], %43 {strides = array<i32>} : memref<128x144xf32, #tpu.memory_space<vmem>>, vector<128x16xf32>,
    %45 = vector.extract_strided_slice %0 {offsets = [0, 2, 1, 0], sizes = [2, 8, 8, 16], strides = [1, 1, 1, 1]} : vector<2x10x10x16xf32> to vector<2x8x8x16xf32>
    %46 = arith.addf %40, %45 : vector<2x8x8x16xf32>
    %cst_18 = arith.constant 0.000000e+00 : f32
    %47 = vector.broadcast %cst_18 : f32 to vector<2x8x8x16xf32>
    %48 = arith.maximumf %45, %47 : vector<2x8x8x16xf32>
    %49 = vector.shape_cast %48 : vector<2x8x8x16xf32> to vector<128x16xf32>
    %c0_19 = arith.constant 0 : index
    %c112 = arith.constant 112 : index
    %50 = vector.load %arg6[%c0_19, %c112] : memref<128x144xf32, #tpu.memory_space<vmem>>, vector<128x16xf32>
    tpu.vector_store %arg6[%c0_19, %c112], %49 {strides = array<i32>} : memref<128x144xf32, #tpu.memory_space<vmem>>, vector<128x16xf32>,
    %51 = vector.extract_strided_slice %0 {offsets = [0, 2, 2, 0], sizes = [2, 8, 8, 16], strides = [1, 1, 1, 1]} : vector<2x10x10x16xf32> to vector<2x8x8x16xf32>
    %52 = arith.addf %46, %51 : vector<2x8x8x16xf32>
    %cst_20 = arith.constant 0.000000e+00 : f32
    %53 = vector.broadcast %cst_20 : f32 to vector<2x8x8x16xf32>
    %54 = arith.maximumf %51, %53 : vector<2x8x8x16xf32>
    %55 = vector.shape_cast %54 : vector<2x8x8x16xf32> to vector<128x16xf32>
    %c0_21 = arith.constant 0 : index
    %c128 = arith.constant 128 : index
    %56 = vector.load %arg6[%c0_21, %c128] : memref<128x144xf32, #tpu.memory_space<vmem>>, vector<128x16xf32>
    tpu.vector_store %arg6[%c0_21, %c128], %55 {strides = array<i32>} : memref<128x144xf32, #tpu.memory_space<vmem>>, vector<128x16xf32>,
    %c0_22 = arith.constant 0 : index
    %c0_23 = arith.constant 0 : index
    %57 = vector.load %arg6[%c0_22, %c0_23] : memref<128x144xf32, #tpu.memory_space<vmem>>, vector<128x144xf32>
    %c0_24 = arith.constant 0 : index
    %c0_25 = arith.constant 0 : index
    %c0_26 = arith.constant 0 : index
    %58 = vector.load %arg3[%c0_24, %c0_25, %c0_26] : memref<1x144x32xf32, #tpu.memory_space<vmem>>, vector<1x144x32xf32>
    %59 = vector.shape_cast %58 : vector<1x144x32xf32> to vector<144x32xf32>
    %cst_27 = arith.constant dense<0.000000e+00> : vector<128x32xf32>
    %60 = tpu.matmul %57, %59, %cst_27 {dimension_numbers = #tpu.dot_dimension_numbers<[1], [0], [0], [1], [0, 0, 1, 1], [], []>} : vector<128x144xf32>, vector<144x32xf32>, vector<128x32xf32> -> vector<128x32xf32>
    %c0_28 = arith.constant 0 : index
    %c0_29 = arith.constant 0 : index
    %c0_30 = arith.constant 0 : index
    %61 = vector.load %arg4[%c0_28, %c0_29, %c0_30] : memref<1x4x32xf32, #tpu.memory_space<vmem>>, vector<1x4x32xf32>
    %62 = vector.shape_cast %61 : vector<1x4x32xf32> to vector<4x32xf32>
    %63 = vector.extract_strided_slice %62 {offsets = [0, 0], sizes = [1, 32], strides = [1, 1]} : vector<4x32xf32> to vector<1x32xf32>
    %64 = vector.broadcast %63 : vector<1x32xf32> to vector<128x32xf32>
    %65 = arith.mulf %60, %64 : vector<128x32xf32>
    %66 = vector.extract_strided_slice %62 {offsets = [1, 0], sizes = [1, 32], strides = [1, 1]} : vector<4x32xf32> to vector<1x32xf32>
    %67 = vector.broadcast %66 : vector<1x32xf32> to vector<128x32xf32>
    %68 = arith.addf %65, %67 : vector<128x32xf32>
    %69 = vector.extract_strided_slice %68 {offsets = [0, 0], sizes = [128, 16], strides = [1, 1]} : vector<128x32xf32> to vector<128x16xf32>
    %70 = vector.extract_strided_slice %68 {offsets = [0, 16], sizes = [128, 16], strides = [1, 1]} : vector<128x32xf32> to vector<128x16xf32>
    %71 = arith.addf %69, %70 : vector<128x16xf32>
    %72 = vector.shape_cast %71 : vector<128x16xf32> to vector<2x8x8x16xf32>
    %73 = tpu.iota {dimensions = array<i32: 1>} : vector<2x8x8x16xi32>
    %74 = tpu.iota {dimensions = array<i32: 2>} : vector<2x8x8x16xi32>
    %c0_i32 = arith.constant 0 : i32
    %75 = vector.broadcast %c0_i32 : i32 to vector<2x8x8x16xi32>
    %76 = arith.cmpi eq, %73, %75 : vector<2x8x8x16xi32>
    %77 = arith.extui %76 : vector<2x8x8x16xi1> to vector<2x8x8x16xi32>
    %c3_i32 = arith.constant 3 : i32
    %78 = vector.broadcast %c3_i32 : i32 to vector<2x8x8x16xi32>
    %79 = arith.subi %78, %77 : vector<2x8x8x16xi32>
    %c7_i32 = arith.constant 7 : i32
    %80 = vector.broadcast %c7_i32 : i32 to vector<2x8x8x16xi32>
    %81 = arith.cmpi eq, %73, %80 : vector<2x8x8x16xi32>
    %82 = arith.extui %81 : vector<2x8x8x16xi1> to vector<2x8x8x16xi32>
    %83 = arith.subi %79, %82 : vector<2x8x8x16xi32>
    %c0_i32_31 = arith.constant 0 : i32
    %84 = vector.broadcast %c0_i32_31 : i32 to vector<2x8x8x16xi32>
    %85 = arith.cmpi eq, %74, %84 : vector<2x8x8x16xi32>
    %86 = arith.extui %85 : vector<2x8x8x16xi1> to vector<2x8x8x16xi32>
    %c3_i32_32 = arith.constant 3 : i32
    %87 = vector.broadcast %c3_i32_32 : i32 to vector<2x8x8x16xi32>
    %88 = arith.subi %87, %86 : vector<2x8x8x16xi32>
    %c7_i32_33 = arith.constant 7 : i32
    %89 = vector.broadcast %c7_i32_33 : i32 to vector<2x8x8x16xi32>
    %90 = arith.cmpi eq, %74, %89 : vector<2x8x8x16xi32>
    %91 = arith.extui %90 : vector<2x8x8x16xi1> to vector<2x8x8x16xi32>
    %92 = arith.subi %88, %91 : vector<2x8x8x16xi32>
    %93 = arith.muli %83, %92 : vector<2x8x8x16xi32>
    %94 = arith.sitofp %93 : vector<2x8x8x16xi32> to vector<2x8x8x16xf32>
    %cst_34 = arith.constant 1.000000e+00 : f32
    %95 = vector.broadcast %cst_34 : f32 to vector<2x8x8x16xf32>
    %96 = arith.divf %95, %94 : vector<2x8x8x16xf32>
    %97 = vector.extract_strided_slice %62 {offsets = [2, 0], sizes = [1, 16], strides = [1, 1]} : vector<4x32xf32> to vector<1x16xf32>
    %98 = vector.shape_cast %97 : vector<1x16xf32> to vector<1x1x1x16xf32>
    %99 = vector.broadcast %98 : vector<1x1x1x16xf32> to vector<2x8x8x16xf32>
    %100 = arith.mulf %1, %99 : vector<2x8x8x16xf32>
    %101 = arith.mulf %52, %96 : vector<2x8x8x16xf32>
    %102 = vector.extract_strided_slice %62 {offsets = [3, 0], sizes = [1, 16], strides = [1, 1]} : vector<4x32xf32> to vector<1x16xf32>
    %103 = vector.shape_cast %102 : vector<1x16xf32> to vector<1x1x1x16xf32>
    %104 = vector.broadcast %103 : vector<1x1x1x16xf32> to vector<2x8x8x16xf32>
    %105 = arith.mulf %101, %104 : vector<2x8x8x16xf32>
    %c0_i32_35 = arith.constant 0 : i32
    %106 = arith.cmpi eq, %arg1, %c0_i32_35 : i32
    %107 = arith.extui %106 : i1 to i32
    %c0_i32_36 = arith.constant 0 : i32
    %108 = arith.cmpi ne, %107, %c0_i32_36 : i32
    scf.if %108 {
      %cst_45 = arith.constant 0.000000e+00 : f32
      %114 = vector.broadcast %cst_45 : f32 to vector<2x8x8x16xf32>
      %c0_46 = arith.constant 0 : index
      %c0_47 = arith.constant 0 : index
      %c0_48 = arith.constant 0 : index
      %c0_49 = arith.constant 0 : index
      %115 = vector.load %arg5[%c0_46, %c0_47, %c0_48, %c0_49] : memref<2x8x8x16xf32, #tpu.memory_space<vmem>>, vector<2x8x8x16xf32>
      tpu.vector_store %arg5[%c0_46, %c0_47, %c0_48, %c0_49], %114 {strides = array<i32>} : memref<2x8x8x16xf32, #tpu.memory_space<vmem>>, vector<2x8x8x16xf32>,
    } else {
    }
    %c0_37 = arith.constant 0 : index
    %c0_38 = arith.constant 0 : index
    %c0_39 = arith.constant 0 : index
    %c0_40 = arith.constant 0 : index
    %109 = vector.load %arg5[%c0_37, %c0_38, %c0_39, %c0_40] : memref<2x8x8x16xf32, #tpu.memory_space<vmem>>, vector<2x8x8x16xf32>
    %110 = arith.addf %72, %100 : vector<2x8x8x16xf32>
    %111 = arith.addf %110, %105 : vector<2x8x8x16xf32>
    %112 = arith.addf %109, %111 : vector<2x8x8x16xf32>
    %c0_41 = arith.constant 0 : index
    %c0_42 = arith.constant 0 : index
    %c0_43 = arith.constant 0 : index
    %c0_44 = arith.constant 0 : index
    %113 = vector.load %arg5[%c0_41, %c0_42, %c0_43, %c0_44] : memref<2x8x8x16xf32, #tpu.memory_space<vmem>>, vector<2x8x8x16xf32>
    tpu.vector_store %arg5[%c0_41, %c0_42, %c0_43, %c0_44], %112 {strides = array<i32>} : memref<2x8x8x16xf32, #tpu.memory_space<vmem>>, vector<2x8x8x16xf32>,
    return
  }
  func.func @transform_0(%arg0: i32, %arg1: i32) -> (i32, i32, i32, i32) {
    %c1_i32 = arith.constant 1 : i32
    %0 = arith.muli %arg1, %c1_i32 : i32
    %1 = arith.addi %0, %arg0 : i32
    %c0_i32 = arith.constant 0 : i32
    %c0_i32_0 = arith.constant 0 : i32
    %c0_i32_1 = arith.constant 0 : i32
    %c0_i32_2 = arith.constant 0 : i32
    return %1, %c0_i32, %c0_i32_0, %c0_i32_1 : i32, i32, i32, i32
  }
  func.func @transform_1(%arg0: i32, %arg1: i32) -> (i32, i32, i32) {
    %c0_i32 = arith.constant 0 : i32
    %c0_i32_0 = arith.constant 0 : i32
    %c0_i32_1 = arith.constant 0 : i32
    return %arg1, %c0_i32, %c0_i32_0 : i32, i32, i32
  }
  func.func @transform_2(%arg0: i32, %arg1: i32) -> (i32, i32, i32) {
    %c0_i32 = arith.constant 0 : i32
    %c0_i32_0 = arith.constant 0 : i32
    %c0_i32_1 = arith.constant 0 : i32
    return %arg1, %c0_i32, %c0_i32_0 : i32, i32, i32
  }
  func.func @transform_3(%arg0: i32, %arg1: i32) -> (i32, i32, i32, i32) {
    %c0_i32 = arith.constant 0 : i32
    %c0_i32_0 = arith.constant 0 : i32
    %c0_i32_1 = arith.constant 0 : i32
    %c0_i32_2 = arith.constant 0 : i32
    return %arg0, %c0_i32, %c0_i32_0, %c0_i32_1 : i32, i32, i32, i32
  }
}

</mosaic_0001>

<llo_original>
// kernel: search_cell_forward.6
$region0: #{search_cell_forward.6}
  #allocation0 [shape = 'u32[]', space=smem, size = 0x4, offset = 0x4, fixed_abs, tag = 'smem constant byte address 0x4 - core index']
  #allocation1 [shape = 'u32[72,128]{1,0:T(1,128)}', space=vmem, size = 0x9000, scoped, tag = 'internal scratch']
  #allocation2 [shape = 'f32[128,144]{1,0:T(8,128)}', space=vmem, size = 0x20000, scoped, tag = 'scratch operand']
  %s0 = inlined_call_operand.vmem [shape: f32[2,10,10,16], index: 0, kind: input, shape index: {}]
  %s1 = inlined_call_operand.vmem [shape: f32[1,144,32], index: 1, kind: input, shape index: {}]
  %s2 = inlined_call_operand.vmem [shape: f32[1,1,32], index: 2, kind: output, shape index: {0}]
  %s3 = inlined_call_operand.vmem [shape: f32[1,1,32], index: 3, kind: output, shape index: {1}]
  %4 = xla_tuple %s2, %s3
  %s5 = sld [smem:[#allocation0]]
  $region30: #{search_cell_forward.6} parent=0
    _
  %s7 = ssub.s32 1, %s5
  %s8 = scalar_select 0, %s7, %s5
  // Predicated region
  $region2: #{search_cell_forward.6} parent=0 // pred_check
    _
  $region3: #{search_cell_forward.6} parent=0 // pred_check_branch
    %10 = sbr.rel (0) target = $region5
  $region4: #{search_cell_forward.6} parent=0 // pred_region
    %s11 = sadd.s32 0, 0
    %s12 = smul.u32 2, %s11
    %p13 = scmp.lt.s32.totalorder %s12, 1
    %s14 = scalar_select %p13, %s12, 1
    %s15 = smul.addr %s14, 20
    %s16 = smul.addr %s15, 8
    %s17 = scalar_lea.vmem %s0, %s16
    %s18 = sadd.s32 0, 0
    %s19 = smul.u32 2, %s18
  $region5: #{search_cell_forward.6} parent=0 // pred_fallthru
    _
  // Predicated region
  $region6: #{search_cell_forward.6} parent=0 // pred_check
    _
  $region7: #{search_cell_forward.6} parent=0 // pred_check_branch
    %21 = sbr.rel (0) target = $region9
  $region8: #{search_cell_forward.6} parent=0 // pred_region
    _
  $region9: #{search_cell_forward.6} parent=0 // pred_fallthru
    _
  %s22 = sadd.s32 0, 0
  %s23 = smul.u32 2, %s22
  %p24 = scmp.lt.s32.totalorder %s23, 1
  %s25 = scalar_select %p24, %s23, 1
  %s26 = smul.addr %s25, 20
  %s27 = smul.addr %s26, 8
  %s28 = scalar_lea.vmem %s0, %s27
  %s29 = sadd.s32 0, 0
  %s30 = smul.u32 2, %s29
  %p31 = scmp.lt.s32.totalorder %s30, 1
  %s32 = scalar_select %p31, %s30, 1
  %s33 = smul.addr %s32, 20
  %s34 = smul.addr %s33, 8
  %s35 = scalar_lea.vmem %s0, %s34
  %s36 = sadd.s32 0, 0
  %s37 = smul.u32 2, %s36
  %p38 = scmp.eq.s32.totalorder 0, 0
  // Predicated region
  $region10: #{search_cell_forward.6} parent=0 // pred_check
    %p39 = pneg %p38
  $region11: #{search_cell_forward.6} parent=0 // pred_check_branch
    %41 = sbr.rel (%p39) target = $region13
  $region12: #{search_cell_forward.6} parent=0 // pred_region
    %vm42 = vcmask 253952
    %43 = vst.msk [vmem:[%s2] sm:$0x1] %vm42, 0.0
    %44 = vst.msk [vmem:[%s3] sm:$0x1] %vm42, 0.0
  $region13: #{search_cell_forward.6} parent=0 // pred_fallthru
    _
  %v45 = vld [vmem:[%s35] sm:$0xff]
  %v46 = vld [vmem:[%s35 + $0x8] sm:$0x3]
  %v47 = vld [vmem:[%s35 + $0x10] sm:$0xff]
  %v48 = vld [vmem:[%s35 + $0x18] sm:$0x3]
  %v49 = vld [vmem:[%s35 + $0x20] sm:$0xff]
  %v50 = vld [vmem:[%s35 + $0x28] sm:$0x3]
  %v51 = vld [vmem:[%s35 + $0x30] sm:$0xff]
  %v52 = vld [vmem:[%s35 + $0x38] sm:$0x3]
  %v53 = vld [vmem:[%s35 + $0x40] sm:$0xff]
  %v54 = vld [vmem:[%s35 + $0x48] sm:$0x3]
  %v55 = vld [vmem:[%s35 + $0x50] sm:$0xff]
  %v56 = vld [vmem:[%s35 + $0x58] sm:$0x3]
  %v57 = vld [vmem:[%s35 + $0x60] sm:$0xff]
  %v58 = vld [vmem:[%s35 + $0x68] sm:$0x3]
  %v59 = vld [vmem:[%s35 + $0x70] sm:$0xff]
  %v60 = vld [vmem:[%s35 + $0x78] sm:$0x3]
  %v61 = vld [vmem:[%s35 + $0x80] sm:$0xff]
  %v62 = vld [vmem:[%s35 + $0x88] sm:$0x3]
  %v63 = vld [vmem:[%s35 + $0x90] sm:$0xff]
  %v64 = vld [vmem:[%s35 + $0x98] sm:$0x3]
  %v65 = vld [vmem:[%s35 + $0xa0] sm:$0xff]
  %v66 = vld [vmem:[%s35 + $0xa8] sm:$0x3]
  %v67 = vld [vmem:[%s35 + $0xb0] sm:$0xff]
  %v68 = vld [vmem:[%s35 + $0xb8] sm:$0x3]
  %v69 = vld [vmem:[%s35 + $0xc0] sm:$0xff]
  %v70 = vld [vmem:[%s35 + $0xc8] sm:$0x3]
  %v71 = vld [vmem:[%s35 + $0xd0] sm:$0xff]
  %v72 = vld [vmem:[%s35 + $0xd8] sm:$0x3]
  %v73 = vld [vmem:[%s35 + $0xe0] sm:$0xff]
  %v74 = vld [vmem:[%s35 + $0xe8] sm:$0x3]
  %v75 = vld [vmem:[%s35 + $0xf0] sm:$0xff]
  %v76 = vld [vmem:[%s35 + $0xf8] sm:$0x3]
  %v77 = vld [vmem:[%s35 + $0x100] sm:$0xff]
  %v78 = vld [vmem:[%s35 + $0x108] sm:$0x3]
  %v79 = vld [vmem:[%s35 + $0x110] sm:$0xff]
  %v80 = vld [vmem:[%s35 + $0x118] sm:$0x3]
  %v81 = vld [vmem:[%s35 + $0x120] sm:$0xff]
  %v82 = vld [vmem:[%s35 + $0x128] sm:$0x3]
  %v83 = vld [vmem:[%s35 + $0x130] sm:$0xff]
  %v84 = vld [vmem:[%s35 + $0x138] sm:$0x3]
  %v85 = vmax.f32 %v45, 0.0
  %v86 = vmax.f32 %v47, 0.0
  %v87 = vmax.f32 %v49, 0.0
  %v88 = vmax.f32 %v51, 0.0
  %v89 = vmax.f32 %v53, 0.0
  %v90 = vmax.f32 %v55, 0.0
  %v91 = vmax.f32 %v57, 0.0
  %v92 = vmax.f32 %v59, 0.0
  %v93 = vmax.f32 %v65, 0.0
  %v94 = vmax.f32 %v67, 0.0
  %v95 = vmax.f32 %v69, 0.0
  %v96 = vmax.f32 %v71, 0.0
  %v97 = vmax.f32 %v73, 0.0
  %v98 = vmax.f32 %v75, 0.0
  %v99 = vmax.f32 %v77, 0.0
  %v100 = vmax.f32 %v79, 0.0
  %vm101 = vcmask 130048
  %102 = vst.msk [vmem:[#allocation2] sm:$0xff] %vm101, %v85
  %103 = vst.msk [vmem:[#allocation2 + $0x10] sm:$0xff] %vm101, %v86
  %104 = vst.msk [vmem:[#allocation2 + $0x20] sm:$0xff] %vm101, %v87
  %105 = vst.msk [vmem:[#allocation2 + $0x30] sm:$0xff] %vm101, %v88
  %106 = vst.msk [vmem:[#allocation2 + $0x40] sm:$0xff] %vm101, %v89
  %107 = vst.msk [vmem:[#allocation2 + $0x50] sm:$0xff] %vm101, %v90
  %108 = vst.msk [vmem:[#allocation2 + $0x60] sm:$0xff] %vm101, %v91
  %109 = vst.msk [vmem:[#allocation2 + $0x70] sm:$0xff] %vm101, %v92
  %110 = vst.msk [vmem:[#allocation2 + $0x80] sm:$0xff] %vm101, %v93
  %111 = vst.msk [vmem:[#allocation2 + $0x90] sm:$0xff] %vm101, %v94
  %112 = vst.msk [vmem:[#allocation2 + $0xa0] sm:$0xff] %vm101, %v95
  %113 = vst.msk [vmem:[#allocation2 + $0xb0] sm:$0xff] %vm101, %v96
  %114 = vst.msk [vmem:[#allocation2 + $0xc0] sm:$0xff] %vm101, %v97
  %115 = vst.msk [vmem:[#allocation2 + $0xd0] sm:$0xff] %vm101, %v98
  %116 = vst.msk [vmem:[#allocation2 + $0xe0] sm:$0xff] %vm101, %v99
  %117 = vst.msk [vmem:[#allocation2 + $0xf0] sm:$0xff] %vm101, %v100
  %v118 = vmax.f32 %v46, 0.0
  %v119 = vmax.f32 %v48, 0.0
  %v120 = vmax.f32 %v50, 0.0
  %v121 = vmax.f32 %v52, 0.0
  %v122 = vmax.f32 %v54, 0.0
  %v123 = vmax.f32 %v56, 0.0
  %v124 = vmax.f32 %v58, 0.0
  %v125 = vmax.f32 %v60, 0.0
  %v126 = vmax.f32 %v66, 0.0
  %v127 = vmax.f32 %v68, 0.0
  %v128 = vmax.f32 %v70, 0.0
  %v129 = vmax.f32 %v72, 0.0
  %v130 = vmax.f32 %v74, 0.0
  %v131 = vmax.f32 %v76, 0.0
  %v132 = vmax.f32 %v78, 0.0
  %v133 = vmax.f32 %v80, 0.0
  %vm166 = vcmask 1046528
  %v167 = vrot.slane %v85, 1
  %v168 = vrot.slane %v118, 1
  %v169 = vsel %vm166, %v167, %v168
  %v170 = vrot.slane %v86, 1
  %v171 = vrot.slane %v119, 1
  %v172 = vsel %vm166, %v170, %v171
  %v173 = vrot.slane %v87, 1
  %v174 = vrot.slane %v120, 1
  %v175 = vsel %vm166, %v173, %v174
  %v176 = vrot.slane %v88, 1
  %v177 = vrot.slane %v121, 1
  %v178 = vsel %vm166, %v176, %v177
  %v179 = vrot.slane %v89, 1
  %v180 = vrot.slane %v122, 1
  %v181 = vsel %vm166, %v179, %v180
  %v182 = vrot.slane %v90, 1
  %v183 = vrot.slane %v123, 1
  %v184 = vsel %vm166, %v182, %v183
  %v185 = vrot.slane %v91, 1
  %v186 = vrot.slane %v124, 1
  %v187 = vsel %vm166, %v185, %v186
  %v188 = vrot.slane %v92, 1
  %v189 = vrot.slane %v125, 1
  %v190 = vsel %vm166, %v188, %v189
  %v191 = vrot.slane %v93, 1
  %v192 = vrot.slane %v126, 1
  %v193 = vsel %vm166, %v191, %v192
  %v194 = vrot.slane %v94, 1
  %v195 = vrot.slane %v127, 1
  %v196 = vsel %vm166, %v194, %v195
  %v197 = vrot.slane %v95, 1
  %v198 = vrot.slane %v128, 1
  %v199 = vsel %vm166, %v197, %v198
  %v200 = vrot.slane %v96, 1
  %v201 = vrot.slane %v129, 1
  %v202 = vsel %vm166, %v200, %v201
  %v203 = vrot.slane %v97, 1
  %v204 = vrot.slane %v130, 1
  %v205 = vsel %vm166, %v203, %v204
  %v206 = vrot.slane %v98, 1
  %v207 = vrot.slane %v131, 1
  %v208 = vsel %vm166, %v206, %v207
  %v209 = vrot.slane %v99, 1
  %v210 = vrot.slane %v132, 1
  %v211 = vsel %vm166, %v209, %v210
  %v212 = vrot.slane %v100, 1
  %v213 = vrot.slane %v133, 1
  %v214 = vsel %vm166, %v212, %v213
  %215 = vrot.lane.b32.xlu0 %v169, 16
  %v216 = vpop.permute.xlu0 %215
  %217 = vrot.lane.b32.xlu0 %v172, 16
  %v218 = vpop.permute.xlu0 %217
  %219 = vrot.lane.b32.xlu0 %v175, 16
  %v220 = vpop.permute.xlu0 %219
  %221 = vrot.lane.b32.xlu0 %v178, 16
  %v222 = vpop.permute.xlu0 %221
  %223 = vrot.lane.b32.xlu0 %v181, 16
  %v224 = vpop.permute.xlu0 %223
  %225 = vrot.lane.b32.xlu0 %v184, 16
  %v226 = vpop.permute.xlu0 %225
  %227 = vrot.lane.b32.xlu0 %v187, 16
  %v228 = vpop.permute.xlu0 %227
  %229 = vrot.lane.b32.xlu0 %v190, 16
  %v230 = vpop.permute.xlu0 %229
  %231 = vrot.lane.b32.xlu0 %v193, 16
  %v232 = vpop.permute.xlu0 %231
  %233 = vrot.lane.b32.xlu0 %v196, 16
  %v234 = vpop.permute.xlu0 %233
  %235 = vrot.lane.b32.xlu0 %v199, 16
  %v236 = vpop.permute.xlu0 %235
  %237 = vrot.lane.b32.xlu0 %v202, 16
  %v238 = vpop.permute.xlu0 %237
  %239 = vrot.lane.b32.xlu0 %v205, 16
  %v240 = vpop.permute.xlu0 %239
  %241 = vrot.lane.b32.xlu0 %v208, 16
  %v242 = vpop.permute.xlu0 %241
  %243 = vrot.lane.b32.xlu0 %v211, 16
  %v244 = vpop.permute.xlu0 %243
  %245 = vrot.lane.b32.xlu0 %v214, 16
  %v246 = vpop.permute.xlu0 %245
  %vm263 = vcmask 261248
  %264 = vst.msk [vmem:[#allocation2] sm:$0xff] %vm263, %v216
  %265 = vst.msk [vmem:[#allocation2 + $0x10] sm:$0xff] %vm263, %v218
  %266 = vst.msk [vmem:[#allocation2 + $0x20] sm:$0xff] %vm263, %v220
  %267 = vst.msk [vmem:[#allocation2 + $0x30] sm:$0xff] %vm263, %v222
  %268 = vst.msk [vmem:[#allocation2 + $0x40] sm:$0xff] %vm263, %v224
  %269 = vst.msk [vmem:[#allocation2 + $0x50] sm:$0xff] %vm263, %v226
  %270 = vst.msk [vmem:[#allocation2 + $0x60] sm:$0xff] %vm263, %v228
  %271 = vst.msk [vmem:[#allocation2 + $0x70] sm:$0xff] %vm263, %v230
  %272 = vst.msk [vmem:[#allocation2 + $0x80] sm:$0xff] %vm263, %v232
  %273 = vst.msk [vmem:[#allocation2 + $0x90] sm:$0xff] %vm263, %v234
  %274 = vst.msk [vmem:[#allocation2 + $0xa0] sm:$0xff] %vm263, %v236
  %275 = vst.msk [vmem:[#allocation2 + $0xb0] sm:$0xff] %vm263, %v238
  %276 = vst.msk [vmem:[#allocation2 + $0xc0] sm:$0xff] %vm263, %v240
  %277 = vst.msk [vmem:[#allocation2 + $0xd0] sm:$0xff] %vm263, %v242
  %278 = vst.msk [vmem:[#allocation2 + $0xe0] sm:$0xff] %vm263, %v244
  %279 = vst.msk [vmem:[#allocation2 + $0xf0] sm:$0xff] %vm263, %v246
  %vm280 = vcmask 1045504
  %v281 = vrot.slane %v85, 2
  %v282 = vrot.slane %v118, 2
  %v283 = vsel %vm280, %v281, %v282
  %v284 = vrot.slane %v86, 2
  %v285 = vrot.slane %v119, 2
  %v286 = vsel %vm280, %v284, %v285
  %v287 = vrot.slane %v87, 2
  %v288 = vrot.slane %v120, 2
  %v289 = vsel %vm280, %v287, %v288
  %v290 = vrot.slane %v88, 2
  %v291 = vrot.slane %v121, 2
  %v292 = vsel %vm280, %v290, %v291
  %v293 = vrot.slane %v89, 2
  %v294 = vrot.slane %v122, 2
  %v295 = vsel %vm280, %v293, %v294
  %v296 = vrot.slane %v90, 2
  %v297 = vrot.slane %v123, 2
  %v298 = vsel %vm280, %v296, %v297
  %v299 = vrot.slane %v91, 2
  %v300 = vrot.slane %v124, 2
  %v301 = vsel %vm280, %v299, %v300
  %v302 = vrot.slane %v92, 2
  %v303 = vrot.slane %v125, 2
  %v304 = vsel %vm280, %v302, %v303
  %v305 = vrot.slane %v93, 2
  %v306 = vrot.slane %v126, 2
  %v307 = vsel %vm280, %v305, %v306
  %v308 = vrot.slane %v94, 2
  %v309 = vrot.slane %v127, 2
  %v310 = vsel %vm280, %v308, %v309
  %v311 = vrot.slane %v95, 2
  %v312 = vrot.slane %v128, 2
  %v313 = vsel %vm280, %v311, %v312
  %v314 = vrot.slane %v96, 2
  %v315 = vrot.slane %v129, 2
  %v316 = vsel %vm280, %v314, %v315
  %v317 = vrot.slane %v97, 2
  %v318 = vrot.slane %v130, 2
  %v319 = vsel %vm280, %v317, %v318
  %v320 = vrot.slane %v98, 2
  %v321 = vrot.slane %v131, 2
  %v322 = vsel %vm280, %v320, %v321
  %v323 = vrot.slane %v99, 2
  %v324 = vrot.slane %v132, 2
  %v325 = vsel %vm280, %v323, %v324
  %v326 = vrot.slane %v100, 2
  %v327 = vrot.slane %v133, 2
  %v328 = vsel %vm280, %v326, %v327
  %329 = vrot.lane.b32.xlu0 %v283, 32
  %v330 = vpop.permute.xlu0 %329
  %331 = vrot.lane.b32.xlu0 %v286, 32
  %v332 = vpop.permute.xlu0 %331
  %333 = vrot.lane.b32.xlu0 %v289, 32
  %v334 = vpop.permute.xlu0 %333
  %335 = vrot.lane.b32.xlu0 %v292, 32
  %v336 = vpop.permute.xlu0 %335
  %337 = vrot.lane.b32.xlu0 %v295, 32
  %v338 = vpop.permute.xlu0 %337
  %339 = vrot.lane.b32.xlu0 %v298, 32
  %v340 = vpop.permute.xlu0 %339
  %341 = vrot.lane.b32.xlu0 %v301, 32
  %v342 = vpop.permute.xlu0 %341
  %343 = vrot.lane.b32.xlu0 %v304, 32
  %v344 = vpop.permute.xlu0 %343
  %345 = vrot.lane.b32.xlu0 %v307, 32
  %v346 = vpop.permute.xlu0 %345
  %347 = vrot.lane.b32.xlu0 %v310, 32
  %v348 = vpop.permute.xlu0 %347
  %349 = vrot.lane.b32.xlu0 %v313, 32
  %v350 = vpop.permute.xlu0 %349
  %351 = vrot.lane.b32.xlu0 %v316, 32
  %v352 = vpop.permute.xlu0 %351
  %353 = vrot.lane.b32.xlu0 %v319, 32
  %v354 = vpop.permute.xlu0 %353
  %355 = vrot.lane.b32.xlu0 %v322, 32
  %v356 = vpop.permute.xlu0 %355
  %357 = vrot.lane.b32.xlu0 %v325, 32
  %v358 = vpop.permute.xlu0 %357
  %359 = vrot.lane.b32.xlu0 %v328, 32
  %v360 = vpop.permute.xlu0 %359
  %vm377 = vcmask 392448
  %378 = vst.msk [vmem:[#allocation2] sm:$0xff] %vm377, %v330
  %379 = vst.msk [vmem:[#allocation2 + $0x10] sm:$0xff] %vm377, %v332
  %380 = vst.msk [vmem:[#allocation2 + $0x20] sm:$0xff] %vm377, %v334
  %381 = vst.msk [vmem:[#allocation2 + $0x30] sm:$0xff] %vm377, %v336
  %382 = vst.msk [vmem:[#allocation2 + $0x40] sm:$0xff] %vm377, %v338
  %383 = vst.msk [vmem:[#allocation2 + $0x50] sm:$0xff] %vm377, %v340
  %384 = vst.msk [vmem:[#allocation2 + $0x60] sm:$0xff] %vm377, %v342
  %385 = vst.msk [vmem:[#allocation2 + $0x70] sm:$0xff] %vm377, %v344
  %386 = vst.msk [vmem:[#allocation2 + $0x80] sm:$0xff] %vm377, %v346
  %387 = vst.msk [vmem:[#allocation2 + $0x90] sm:$0xff] %vm377, %v348
  %388 = vst.msk [vmem:[#allocation2 + $0xa0] sm:$0xff] %vm377, %v350
  %389 = vst.msk [vmem:[#allocation2 + $0xb0] sm:$0xff] %vm377, %v352
  %390 = vst.msk [vmem:[#allocation2 + $0xc0] sm:$0xff] %vm377, %v354
  %391 = vst.msk [vmem:[#allocation2 + $0xd0] sm:$0xff] %vm377, %v356
  %392 = vst.msk [vmem:[#allocation2 + $0xe0] sm:$0xff] %vm377, %v358
  %393 = vst.msk [vmem:[#allocation2 + $0xf0] sm:$0xff] %vm377, %v360
  %v394 = vmax.f32 %v61, 0.0
  %v395 = vmax.f32 %v81, 0.0
  %398 = vrot.lane.b32.xlu0 %v86, 48
  %v399 = vpop.permute.xlu0 %398
  %400 = vrot.lane.b32.xlu0 %v87, 48
  %v401 = vpop.permute.xlu0 %400
  %402 = vrot.lane.b32.xlu0 %v88, 48
  %v403 = vpop.permute.xlu0 %402
  %404 = vrot.lane.b32.xlu0 %v89, 48
  %v405 = vpop.permute.xlu0 %404
  %406 = vrot.lane.b32.xlu0 %v90, 48
  %v407 = vpop.permute.xlu0 %406
  %408 = vrot.lane.b32.xlu0 %v91, 48
  %v409 = vpop.permute.xlu0 %408
  %410 = vrot.lane.b32.xlu0 %v92, 48
  %v411 = vpop.permute.xlu0 %410
  %412 = vrot.lane.b32.xlu0 %v394, 48
  %v413 = vpop.permute.xlu0 %412
  %414 = vrot.lane.b32.xlu0 %v94, 48
  %v415 = vpop.permute.xlu0 %414
  %416 = vrot.lane.b32.xlu0 %v95, 48
  %v417 = vpop.permute.xlu0 %416
  %418 = vrot.lane.b32.xlu0 %v96, 48
  %v419 = vpop.permute.xlu0 %418
  %420 = vrot.lane.b32.xlu0 %v97, 48
  %v421 = vpop.permute.xlu0 %420
  %422 = vrot.lane.b32.xlu0 %v98, 48
  %v423 = vpop.permute.xlu0 %422
  %424 = vrot.lane.b32.xlu0 %v99, 48
  %v425 = vpop.permute.xlu0 %424
  %426 = vrot.lane.b32.xlu0 %v100, 48
  %v427 = vpop.permute.xlu0 %426
  %428 = vrot.lane.b32.xlu0 %v395, 48
  %v429 = vpop.permute.xlu0 %428
  %vm446 = vcmask 523648
  %447 = vst.msk [vmem:[#allocation2] sm:$0xff] %vm446, %v399
  %448 = vst.msk [vmem:[#allocation2 + $0x10] sm:$0xff] %vm446, %v401
  %449 = vst.msk [vmem:[#allocation2 + $0x20] sm:$0xff] %vm446, %v403
  %450 = vst.msk [vmem:[#allocation2 + $0x30] sm:$0xff] %vm446, %v405
  %451 = vst.msk [vmem:[#allocation2 + $0x40] sm:$0xff] %vm446, %v407
  %452 = vst.msk [vmem:[#allocation2 + $0x50] sm:$0xff] %vm446, %v409
  %453 = vst.msk [vmem:[#allocation2 + $0x60] sm:$0xff] %vm446, %v411
  %454 = vst.msk [vmem:[#allocation2 + $0x70] sm:$0xff] %vm446, %v413
  %455 = vst.msk [vmem:[#allocation2 + $0x80] sm:$0xff] %vm446, %v415
  %456 = vst.msk [vmem:[#allocation2 + $0x90] sm:$0xff] %vm446, %v417
  %457 = vst.msk [vmem:[#allocation2 + $0xa0] sm:$0xff] %vm446, %v419
  %458 = vst.msk [vmem:[#allocation2 + $0xb0] sm:$0xff] %vm446, %v421
  %459 = vst.msk [vmem:[#allocation2 + $0xc0] sm:$0xff] %vm446, %v423
  %460 = vst.msk [vmem:[#allocation2 + $0xd0] sm:$0xff] %vm446, %v425
  %461 = vst.msk [vmem:[#allocation2 + $0xe0] sm:$0xff] %vm446, %v427
  %462 = vst.msk [vmem:[#allocation2 + $0xf0] sm:$0xff] %vm446, %v429
  %v463 = vmax.f32 %v62, 0.0
  %v464 = vmax.f32 %v82, 0.0
  %v467 = vrot.slane %v394, 1
  %v468 = vrot.slane %v463, 1
  %v469 = vsel %vm166, %v467, %v468
  %v470 = vrot.slane %v395, 1
  %v471 = vrot.slane %v464, 1
  %v472 = vsel %vm166, %v470, %v471
  %473 = vrot.lane.b32.xlu0 %v172, 64
  %v474 = vpop.permute.xlu0 %473
  %475 = vrot.lane.b32.xlu0 %v175, 64
  %v476 = vpop.permute.xlu0 %475
  %477 = vrot.lane.b32.xlu0 %v178, 64
  %v478 = vpop.permute.xlu0 %477
  %479 = vrot.lane.b32.xlu0 %v181, 64
  %v480 = vpop.permute.xlu0 %479
  %481 = vrot.lane.b32.xlu0 %v184, 64
  %v482 = vpop.permute.xlu0 %481
  %483 = vrot.lane.b32.xlu0 %v187, 64
  %v484 = vpop.permute.xlu0 %483
  %485 = vrot.lane.b32.xlu0 %v190, 64
  %v486 = vpop.permute.xlu0 %485
  %487 = vrot.lane.b32.xlu0 %v469, 64
  %v488 = vpop.permute.xlu0 %487
  %489 = vrot.lane.b32.xlu0 %v196, 64
  %v490 = vpop.permute.xlu0 %489
  %491 = vrot.lane.b32.xlu0 %v199, 64
  %v492 = vpop.permute.xlu0 %491
  %493 = vrot.lane.b32.xlu0 %v202, 64
  %v494 = vpop.permute.xlu0 %493
  %495 = vrot.lane.b32.xlu0 %v205, 64
  %v496 = vpop.permute.xlu0 %495
  %497 = vrot.lane.b32.xlu0 %v208, 64
  %v498 = vpop.permute.xlu0 %497
  %499 = vrot.lane.b32.xlu0 %v211, 64
  %v500 = vpop.permute.xlu0 %499
  %501 = vrot.lane.b32.xlu0 %v214, 64
  %v502 = vpop.permute.xlu0 %501
  %503 = vrot.lane.b32.xlu0 %v472, 64
  %v504 = vpop.permute.xlu0 %503
  %vm521 = vcmask 654848
  %522 = vst.msk [vmem:[#allocation2] sm:$0xff] %vm521, %v474
  %523 = vst.msk [vmem:[#allocation2 + $0x10] sm:$0xff] %vm521, %v476
  %524 = vst.msk [vmem:[#allocation2 + $0x20] sm:$0xff] %vm521, %v478
  %525 = vst.msk [vmem:[#allocation2 + $0x30] sm:$0xff] %vm521, %v480
  %526 = vst.msk [vmem:[#allocation2 + $0x40] sm:$0xff] %vm521, %v482
  %527 = vst.msk [vmem:[#allocation2 + $0x50] sm:$0xff] %vm521, %v484
  %528 = vst.msk [vmem:[#allocation2 + $0x60] sm:$0xff] %vm521, %v486
  %529 = vst.msk [vmem:[#allocation2 + $0x70] sm:$0xff] %vm521, %v488
  %530 = vst.msk [vmem:[#allocation2 + $0x80] sm:$0xff] %vm521, %v490
  %531 = vst.msk [vmem:[#allocation2 + $0x90] sm:$0xff] %vm521, %v492
  %532 = vst.msk [vmem:[#allocation2 + $0xa0] sm:$0xff] %vm521, %v494
  %533 = vst.msk [vmem:[#allocation2 + $0xb0] sm:$0xff] %vm521, %v496
  %534 = vst.msk [vmem:[#allocation2 + $0xc0] sm:$0xff] %vm521, %v498
  %535 = vst.msk [vmem:[#allocation2 + $0xd0] sm:$0xff] %vm521, %v500
  %536 = vst.msk [vmem:[#allocation2 + $0xe0] sm:$0xff] %vm521, %v502
  %537 = vst.msk [vmem:[#allocation2 + $0xf0] sm:$0xff] %vm521, %v504
  %v538 = vrot.slane %v394, 2
  %v539 = vrot.slane %v463, 2
  %v540 = vsel %vm280, %v538, %v539
  %v541 = vrot.slane %v395, 2
  %v542 = vrot.slane %v464, 2
  %v543 = vsel %vm280, %v541, %v542
  %544 = vrot.lane.b32.xlu0 %v286, 80
  %v545 = vpop.permute.xlu0 %544
  %546 = vrot.lane.b32.xlu0 %v289, 80
  %v547 = vpop.permute.xlu0 %546
  %548 = vrot.lane.b32.xlu0 %v292, 80
  %v549 = vpop.permute.xlu0 %548
  %550 = vrot.lane.b32.xlu0 %v295, 80
  %v551 = vpop.permute.xlu0 %550
  %552 = vrot.lane.b32.xlu0 %v298, 80
  %v553 = vpop.permute.xlu0 %552
  %554 = vrot.lane.b32.xlu0 %v301, 80
  %v555 = vpop.permute.xlu0 %554
  %556 = vrot.lane.b32.xlu0 %v304, 80
  %v557 = vpop.permute.xlu0 %556
  %558 = vrot.lane.b32.xlu0 %v540, 80
  %v559 = vpop.permute.xlu0 %558
  %560 = vrot.lane.b32.xlu0 %v310, 80
  %v561 = vpop.permute.xlu0 %560
  %562 = vrot.lane.b32.xlu0 %v313, 80
  %v563 = vpop.permute.xlu0 %562
  %564 = vrot.lane.b32.xlu0 %v316, 80
  %v565 = vpop.permute.xlu0 %564
  %566 = vrot.lane.b32.xlu0 %v319, 80
  %v567 = vpop.permute.xlu0 %566
  %568 = vrot.lane.b32.xlu0 %v322, 80
  %v569 = vpop.permute.xlu0 %568
  %570 = vrot.lane.b32.xlu0 %v325, 80
  %v571 = vpop.permute.xlu0 %570
  %572 = vrot.lane.b32.xlu0 %v328, 80
  %v573 = vpop.permute.xlu0 %572
  %574 = vrot.lane.b32.xlu0 %v543, 80
  %v575 = vpop.permute.xlu0 %574
  %vm592 = vcmask 786048
  %593 = vst.msk [vmem:[#allocation2] sm:$0xff] %vm592, %v545
  %594 = vst.msk [vmem:[#allocation2 + $0x10] sm:$0xff] %vm592, %v547
  %595 = vst.msk [vmem:[#allocation2 + $0x20] sm:$0xff] %vm592, %v549
  %596 = vst.msk [vmem:[#allocation2 + $0x30] sm:$0xff] %vm592, %v551
  %597 = vst.msk [vmem:[#allocation2 + $0x40] sm:$0xff] %vm592, %v553
  %598 = vst.msk [vmem:[#allocation2 + $0x50] sm:$0xff] %vm592, %v555
  %599 = vst.msk [vmem:[#allocation2 + $0x60] sm:$0xff] %vm592, %v557
  %600 = vst.msk [vmem:[#allocation2 + $0x70] sm:$0xff] %vm592, %v559
  %601 = vst.msk [vmem:[#allocation2 + $0x80] sm:$0xff] %vm592, %v561
  %602 = vst.msk [vmem:[#allocation2 + $0x90] sm:$0xff] %vm592, %v563
  %603 = vst.msk [vmem:[#allocation2 + $0xa0] sm:$0xff] %vm592, %v565
  %604 = vst.msk [vmem:[#allocation2 + $0xb0] sm:$0xff] %vm592, %v567
  %605 = vst.msk [vmem:[#allocation2 + $0xc0] sm:$0xff] %vm592, %v569
  %606 = vst.msk [vmem:[#allocation2 + $0xd0] sm:$0xff] %vm592, %v571
  %607 = vst.msk [vmem:[#allocation2 + $0xe0] sm:$0xff] %vm592, %v573
  %608 = vst.msk [vmem:[#allocation2 + $0xf0] sm:$0xff] %vm592, %v575
  %v609 = vmax.f32 %v63, 0.0
  %v610 = vmax.f32 %v83, 0.0
  %613 = vrot.lane.b32.xlu0 %v87, 96
  %v614 = vpop.permute.xlu0 %613
  %615 = vrot.lane.b32.xlu0 %v88, 96
  %v616 = vpop.permute.xlu0 %615
  %617 = vrot.lane.b32.xlu0 %v89, 96
  %v618 = vpop.permute.xlu0 %617
  %619 = vrot.lane.b32.xlu0 %v90, 96
  %v620 = vpop.permute.xlu0 %619
  %621 = vrot.lane.b32.xlu0 %v91, 96
  %v622 = vpop.permute.xlu0 %621
  %623 = vrot.lane.b32.xlu0 %v92, 96
  %v624 = vpop.permute.xlu0 %623
  %625 = vrot.lane.b32.xlu0 %v394, 96
  %v626 = vpop.permute.xlu0 %625
  %627 = vrot.lane.b32.xlu0 %v609, 96
  %v628 = vpop.permute.xlu0 %627
  %629 = vrot.lane.b32.xlu0 %v95, 96
  %v630 = vpop.permute.xlu0 %629
  %631 = vrot.lane.b32.xlu0 %v96, 96
  %v632 = vpop.permute.xlu0 %631
  %633 = vrot.lane.b32.xlu0 %v97, 96
  %v634 = vpop.permute.xlu0 %633
  %635 = vrot.lane.b32.xlu0 %v98, 96
  %v636 = vpop.permute.xlu0 %635
  %637 = vrot.lane.b32.xlu0 %v99, 96
  %v638 = vpop.permute.xlu0 %637
  %639 = vrot.lane.b32.xlu0 %v100, 96
  %v640 = vpop.permute.xlu0 %639
  %641 = vrot.lane.b32.xlu0 %v395, 96
  %v642 = vpop.permute.xlu0 %641
  %643 = vrot.lane.b32.xlu0 %v610, 96
  %v644 = vpop.permute.xlu0 %643
  %vm661 = vcmask 917248
  %662 = vst.msk [vmem:[#allocation2] sm:$0xff] %vm661, %v614
  %663 = vst.msk [vmem:[#allocation2 + $0x10] sm:$0xff] %vm661, %v616
  %664 = vst.msk [vmem:[#allocation2 + $0x20] sm:$0xff] %vm661, %v618
  %665 = vst.msk [vmem:[#allocation2 + $0x30] sm:$0xff] %vm661, %v620
  %666 = vst.msk [vmem:[#allocation2 + $0x40] sm:$0xff] %vm661, %v622
  %667 = vst.msk [vmem:[#allocation2 + $0x50] sm:$0xff] %vm661, %v624
  %668 = vst.msk [vmem:[#allocation2 + $0x60] sm:$0xff] %vm661, %v626
  %669 = vst.msk [vmem:[#allocation2 + $0x70] sm:$0xff] %vm661, %v628
  %670 = vst.msk [vmem:[#allocation2 + $0x80] sm:$0xff] %vm661, %v630
  %671 = vst.msk [vmem:[#allocation2 + $0x90] sm:$0xff] %vm661, %v632
  %672 = vst.msk [vmem:[#allocation2 + $0xa0] sm:$0xff] %vm661, %v634
  %673 = vst.msk [vmem:[#allocation2 + $0xb0] sm:$0xff] %vm661, %v636
  %674 = vst.msk [vmem:[#allocation2 + $0xc0] sm:$0xff] %vm661, %v638
  %675 = vst.msk [vmem:[#allocation2 + $0xd0] sm:$0xff] %vm661, %v640
  %676 = vst.msk [vmem:[#allocation2 + $0xe0] sm:$0xff] %vm661, %v642
  %677 = vst.msk [vmem:[#allocation2 + $0xf0] sm:$0xff] %vm661, %v644
  %v678 = vmax.f32 %v64, 0.0
  %v679 = vmax.f32 %v84, 0.0
  %v682 = vrot.slane %v609, 1
  %v683 = vrot.slane %v678, 1
  %v684 = vsel %vm166, %v682, %v683
  %v685 = vrot.slane %v610, 1
  %v686 = vrot.slane %v679, 1
  %v687 = vsel %vm166, %v685, %v686
  %688 = vrot.lane.b32.xlu0 %v175, 112
  %v689 = vpop.permute.xlu0 %688
  %690 = vrot.lane.b32.xlu0 %v178, 112
  %v691 = vpop.permute.xlu0 %690
  %692 = vrot.lane.b32.xlu0 %v181, 112
  %v693 = vpop.permute.xlu0 %692
  %694 = vrot.lane.b32.xlu0 %v184, 112
  %v695 = vpop.permute.xlu0 %694
  %696 = vrot.lane.b32.xlu0 %v187, 112
  %v697 = vpop.permute.xlu0 %696
  %698 = vrot.lane.b32.xlu0 %v190, 112
  %v699 = vpop.permute.xlu0 %698
  %700 = vrot.lane.b32.xlu0 %v469, 112
  %v701 = vpop.permute.xlu0 %700
  %702 = vrot.lane.b32.xlu0 %v684, 112
  %v703 = vpop.permute.xlu0 %702
  %704 = vrot.lane.b32.xlu0 %v199, 112
  %v705 = vpop.permute.xlu0 %704
  %706 = vrot.lane.b32.xlu0 %v202, 112
  %v707 = vpop.permute.xlu0 %706
  %708 = vrot.lane.b32.xlu0 %v205, 112
  %v709 = vpop.permute.xlu0 %708
  %710 = vrot.lane.b32.xlu0 %v208, 112
  %v711 = vpop.permute.xlu0 %710
  %712 = vrot.lane.b32.xlu0 %v211, 112
  %v713 = vpop.permute.xlu0 %712
  %714 = vrot.lane.b32.xlu0 %v214, 112
  %v715 = vpop.permute.xlu0 %714
  %716 = vrot.lane.b32.xlu0 %v472, 112
  %v717 = vpop.permute.xlu0 %716
  %718 = vrot.lane.b32.xlu0 %v687, 112
  %v719 = vpop.permute.xlu0 %718
  %vm736 = vcmask 1048448
  %737 = vst.msk [vmem:[#allocation2] sm:$0xff] %vm736, %v689
  %738 = vst.msk [vmem:[#allocation2 + $0x10] sm:$0xff] %vm736, %v691
  %739 = vst.msk [vmem:[#allocation2 + $0x20] sm:$0xff] %vm736, %v693
  %740 = vst.msk [vmem:[#allocation2 + $0x30] sm:$0xff] %vm736, %v695
  %741 = vst.msk [vmem:[#allocation2 + $0x40] sm:$0xff] %vm736, %v697
  %742 = vst.msk [vmem:[#allocation2 + $0x50] sm:$0xff] %vm736, %v699
  %743 = vst.msk [vmem:[#allocation2 + $0x60] sm:$0xff] %vm736, %v701
  %744 = vst.msk [vmem:[#allocation2 + $0x70] sm:$0xff] %vm736, %v703
  %745 = vst.msk [vmem:[#allocation2 + $0x80] sm:$0xff] %vm736, %v705
  %746 = vst.msk [vmem:[#allocation2 + $0x90] sm:$0xff] %vm736, %v707
  %747 = vst.msk [vmem:[#allocation2 + $0xa0] sm:$0xff] %vm736, %v709
  %748 = vst.msk [vmem:[#allocation2 + $0xb0] sm:$0xff] %vm736, %v711
  %749 = vst.msk [vmem:[#allocation2 + $0xc0] sm:$0xff] %vm736, %v713
  %750 = vst.msk [vmem:[#allocation2 + $0xd0] sm:$0xff] %vm736, %v715
  %751 = vst.msk [vmem:[#allocation2 + $0xe0] sm:$0xff] %vm736, %v717
  %752 = vst.msk [vmem:[#allocation2 + $0xf0] sm:$0xff] %vm736, %v719
  %v753 = vrot.slane %v609, 2
  %v754 = vrot.slane %v678, 2
  %v755 = vsel %vm280, %v753, %v754
  %v756 = vrot.slane %v610, 2
  %v757 = vrot.slane %v679, 2
  %v758 = vsel %vm280, %v756, %v757
  %775 = vst.msk [vmem:[#allocation2 + $0x8] sm:$0xff] %vm101, %v289
  %776 = vst.msk [vmem:[#allocation2 + $0x18] sm:$0xff] %vm101, %v292
  %777 = vst.msk [vmem:[#allocation2 + $0x28] sm:$0xff] %vm101, %v295
  %778 = vst.msk [vmem:[#allocation2 + $0x38] sm:$0xff] %vm101, %v298
  %779 = vst.msk [vmem:[#allocation2 + $0x48] sm:$0xff] %vm101, %v301
  %780 = vst.msk [vmem:[#allocation2 + $0x58] sm:$0xff] %vm101, %v304
  %781 = vst.msk [vmem:[#allocation2 + $0x68] sm:$0xff] %vm101, %v540
  %782 = vst.msk [vmem:[#allocation2 + $0x78] sm:$0xff] %vm101, %v755
  %783 = vst.msk [vmem:[#allocation2 + $0x88] sm:$0xff] %vm101, %v313
  %784 = vst.msk [vmem:[#allocation2 + $0x98] sm:$0xff] %vm101, %v316
  %785 = vst.msk [vmem:[#allocation2 + $0xa8] sm:$0xff] %vm101, %v319
  %786 = vst.msk [vmem:[#allocation2 + $0xb8] sm:$0xff] %vm101, %v322
  %787 = vst.msk [vmem:[#allocation2 + $0xc8] sm:$0xff] %vm101, %v325
  %788 = vst.msk [vmem:[#allocation2 + $0xd8] sm:$0xff] %vm101, %v328
  %789 = vst.msk [vmem:[#allocation2 + $0xe8] sm:$0xff] %vm101, %v543
  %790 = vst.msk [vmem:[#allocation2 + $0xf8] sm:$0xff] %vm101, %v758
  %v791 = vld [vmem:[#allocation2] sm:$0xff]
  %v792 = vld [vmem:[#allocation2 + $0x8] sm:$0xff]
  %v793 = vld [vmem:[#allocation2 + $0x10] sm:$0xff]
  %v794 = vld [vmem:[#allocation2 + $0x18] sm:$0xff]
  %v795 = vld [vmem:[#allocation2 + $0x20] sm:$0xff]
  %v796 = vld [vmem:[#allocation2 + $0x28] sm:$0xff]
  %v797 = vld [vmem:[#allocation2 + $0x30] sm:$0xff]
  %v798 = vld [vmem:[#allocation2 + $0x38] sm:$0xff]
  %v799 = vld [vmem:[#allocation2 + $0x40] sm:$0xff]
  %v800 = vld [vmem:[#allocation2 + $0x48] sm:$0xff]
  %v801 = vld [vmem:[#allocation2 + $0x50] sm:$0xff]
  %v802 = vld [vmem:[#allocation2 + $0x58] sm:$0xff]
  %v803 = vld [vmem:[#allocation2 + $0x60] sm:$0xff]
  %v804 = vld [vmem:[#allocation2 + $0x68] sm:$0xff]
  %v805 = vld [vmem:[#allocation2 + $0x70] sm:$0xff]
  %v806 = vld [vmem:[#allocation2 + $0x78] sm:$0xff]
  %v807 = vld [vmem:[#allocation2 + $0x80] sm:$0xff]
  %v808 = vld [vmem:[#allocation2 + $0x88] sm:$0xff]
  %v809 = vld [vmem:[#allocation2 + $0x90] sm:$0xff]
  %v810 = vld [vmem:[#allocation2 + $0x98] sm:$0xff]
  %v811 = vld [vmem:[#allocation2 + $0xa0] sm:$0xff]
  %v812 = vld [vmem:[#allocation2 + $0xa8] sm:$0xff]
  %v813 = vld [vmem:[#allocation2 + $0xb0] sm:$0xff]
  %v814 = vld [vmem:[#allocation2 + $0xb8] sm:$0xff]
  %v815 = vld [vmem:[#allocation2 + $0xc0] sm:$0xff]
  %v816 = vld [vmem:[#allocation2 + $0xc8] sm:$0xff]
  %v817 = vld [vmem:[#allocation2 + $0xd0] sm:$0xff]
  %v818 = vld [vmem:[#allocation2 + $0xd8] sm:$0xff]
  %v819 = vld [vmem:[#allocation2 + $0xe0] sm:$0xff]
  %v820 = vld [vmem:[#allocation2 + $0xe8] sm:$0xff]
  %v821 = vld [vmem:[#allocation2 + $0xf0] sm:$0xff]
  %v822 = vld [vmem:[#allocation2 + $0xf8] sm:$0xff]
  %v823 = vld [vmem:[%s1] sm:$0xff]
  %v824 = vld [vmem:[%s1 + $0x8] sm:$0xff]
  %v825 = vld [vmem:[%s1 + $0x10] sm:$0xff]
  %v826 = vld [vmem:[%s1 + $0x18] sm:$0xff]
  %v827 = vld [vmem:[%s1 + $0x20] sm:$0xff]
  %v828 = vld [vmem:[%s1 + $0x28] sm:$0xff]
  %v829 = vld [vmem:[%s1 + $0x30] sm:$0xff]
  %v830 = vld [vmem:[%s1 + $0x38] sm:$0xff]
  %v831 = vld [vmem:[%s1 + $0x40] sm:$0xff]
  %v832 = vld [vmem:[%s1 + $0x48] sm:$0xff]
  %v833 = vld [vmem:[%s1 + $0x50] sm:$0xff]
  %v834 = vld [vmem:[%s1 + $0x58] sm:$0xff]
  %v835 = vld [vmem:[%s1 + $0x60] sm:$0xff]
  %v836 = vld [vmem:[%s1 + $0x68] sm:$0xff]
  %v837 = vld [vmem:[%s1 + $0x70] sm:$0xff]
  %v838 = vld [vmem:[%s1 + $0x78] sm:$0xff]
  %v839 = vld [vmem:[%s1 + $0x80] sm:$0xff]
  %v840 = vld [vmem:[%s1 + $0x88] sm:$0xff]
  %v842 = vsel %vm101, %v792, 0
  %v845 = vsel %vm101, %v794, 0
  %v848 = vsel %vm101, %v796, 0
  %v851 = vsel %vm101, %v798, 0
  %v854 = vsel %vm101, %v800, 0
  %v857 = vsel %vm101, %v802, 0
  %v860 = vsel %vm101, %v804, 0
  %v863 = vsel %vm101, %v806, 0
  %v866 = vsel %vm101, %v808, 0
  %v869 = vsel %vm101, %v810, 0
  %v872 = vsel %vm101, %v812, 0
  %v875 = vsel %vm101, %v814, 0
  %v878 = vsel %vm101, %v816, 0
  %v881 = vsel %vm101, %v818, 0
  %v884 = vsel %vm101, %v820, 0
  %v887 = vsel %vm101, %v822, 0
  %889 = vmatpush.msra.mxu0 %v838
  %890 = vmatpush.msra.mxu0 %v837
  %891 = vmatpush.msra.mxu0 %v836
  %892 = vmatpush.msra.mxu0 %v835
  %893 = vmatpush.msra.mxu0 %v834
  %894 = vmatpush.msra.mxu0 %v833
  %895 = vmatpush.msra.mxu0 %v832
  %896 = vmatpush.msra.mxu0 %v831
  %897 = vmatpush.msra.mxu0 %v830
  %898 = vmatpush.msra.mxu0 %v829
  %899 = vmatpush.msra.mxu0 %v828
  %900 = vmatpush.msra.mxu0 %v827
  %901 = vmatpush.msra.mxu0 %v826
  %902 = vmatpush.msra.mxu0 %v825
  %903 = vmatpush.msra.mxu0 %v824
  %904 = vmatpush.msra.mxu0 %v823
  %905 = vmatmul.f32.gmra.mxu0 %v791
  %v906 = vpop.f32.mrf.mxu0
  %v907 = vadd.f32 0.0, %v906
  %908 = vmatmul.f32.gmra.mxu0 %v793
  %v909 = vpop.f32.mrf.mxu0
  %v910 = vadd.f32 0.0, %v909
  %911 = vmatmul.f32.gmra.mxu0 %v795
  %v912 = vpop.f32.mrf.mxu0
  %v913 = vadd.f32 0.0, %v912
  %914 = vmatmul.f32.gmra.mxu0 %v797
  %v915 = vpop.f32.mrf.mxu0
  %v916 = vadd.f32 0.0, %v915
  %917 = vmatmul.f32.gmra.mxu0 %v799
  %v918 = vpop.f32.mrf.mxu0
  %v919 = vadd.f32 0.0, %v918
  %920 = vmatmul.f32.gmra.mxu0 %v801
  %v921 = vpop.f32.mrf.mxu0
  %v922 = vadd.f32 0.0, %v921
  %923 = vmatmul.f32.gmra.mxu0 %v803
  %v924 = vpop.f32.mrf.mxu0
  %v925 = vadd.f32 0.0, %v924
  %926 = vmatmul.f32.gmra.mxu0 %v805
  %v927 = vpop.f32.mrf.mxu0
  %v928 = vadd.f32 0.0, %v927
  %929 = vmatmul.f32.gmra.mxu0 %v807
  %v930 = vpop.f32.mrf.mxu0
  %v931 = vadd.f32 0.0, %v930
  %932 = vmatmul.f32.gmra.mxu0 %v809
  %v933 = vpop.f32.mrf.mxu0
  %v934 = vadd.f32 0.0, %v933
  %935 = vmatmul.f32.gmra.mxu0 %v811
  %v936 = vpop.f32.mrf.mxu0
  %v937 = vadd.f32 0.0, %v936
  %938 = vmatmul.f32.gmra.mxu0 %v813
  %v939 = vpop.f32.mrf.mxu0
  %v940 = vadd.f32 0.0, %v939
  %941 = vmatmul.f32.gmra.mxu0 %v815
  %v942 = vpop.f32.mrf.mxu0
  %v943 = vadd.f32 0.0, %v942
  %944 = vmatmul.f32.gmra.mxu0 %v817
  %v945 = vpop.f32.mrf.mxu0
  %v946 = vadd.f32 0.0, %v945
  %947 = vmatmul.f32.gmra.mxu0 %v819
  %v948 = vpop.f32.mrf.mxu0
  %v949 = vadd.f32 0.0, %v948
  %950 = vmatmul.f32.gmra.mxu0 %v821
  %v951 = vpop.f32.mrf.mxu0
  %v952 = vadd.f32 0.0, %v951
  %953 = vdwg.mxu0
  %954 = vmatpush.msra.mxu0 0.0
  %955 = vmatpush.msra.mxu0 0.0
  %956 = vmatpush.msra.mxu0 0.0
  %957 = vmatpush.msra.mxu0 0.0
  %958 = vmatpush.msra.mxu0 0.0
  %959 = vmatpush.msra.mxu0 0.0
  %960 = vmatpush.msra.mxu0 0.0
  %961 = vmatpush.msra.mxu0 0.0
  %962 = vmatpush.msra.mxu0 0.0
  %963 = vmatpush.msra.mxu0 0.0
  %964 = vmatpush.msra.mxu0 0.0
  %965 = vmatpush.msra.mxu0 0.0
  %966 = vmatpush.msra.mxu0 0.0
  %967 = vmatpush.msra.mxu0 0.0
  %968 = vmatpush.msra.mxu0 %v840
  %969 = vmatpush.msra.mxu0 %v839
  %970 = vmatmul.f32.gmra.mxu0 %v842
  %v971 = vpop.f32.mrf.mxu0
  %v972 = vadd.f32 %v907, %v971
  %973 = vmatmul.f32.gmra.mxu0 %v845
  %v974 = vpop.f32.mrf.mxu0
  %v975 = vadd.f32 %v910, %v974
  %976 = vmatmul.f32.gmra.mxu0 %v848
  %v977 = vpop.f32.mrf.mxu0
  %v978 = vadd.f32 %v913, %v977
  %979 = vmatmul.f32.gmra.mxu0 %v851
  %v980 = vpop.f32.mrf.mxu0
  %v981 = vadd.f32 %v916, %v980
  %982 = vmatmul.f32.gmra.mxu0 %v854
  %v983 = vpop.f32.mrf.mxu0
  %v984 = vadd.f32 %v919, %v983
  %985 = vmatmul.f32.gmra.mxu0 %v857
  %v986 = vpop.f32.mrf.mxu0
  %v987 = vadd.f32 %v922, %v986
  %988 = vmatmul.f32.gmra.mxu0 %v860
  %v989 = vpop.f32.mrf.mxu0
  %v990 = vadd.f32 %v925, %v989
  %991 = vmatmul.f32.gmra.mxu0 %v863
  %v992 = vpop.f32.mrf.mxu0
  %v993 = vadd.f32 %v928, %v992
  %994 = vmatmul.f32.gmra.mxu0 %v866
  %v995 = vpop.f32.mrf.mxu0
  %v996 = vadd.f32 %v931, %v995
  %997 = vmatmul.f32.gmra.mxu0 %v869
  %v998 = vpop.f32.mrf.mxu0
  %v999 = vadd.f32 %v934, %v998
  %1000 = vmatmul.f32.gmra.mxu0 %v872
  %v1001 = vpop.f32.mrf.mxu0
  %v1002 = vadd.f32 %v937, %v1001
  %1003 = vmatmul.f32.gmra.mxu0 %v875
  %v1004 = vpop.f32.mrf.mxu0
  %v1005 = vadd.f32 %v940, %v1004
  %1006 = vmatmul.f32.gmra.mxu0 %v878
  %v1007 = vpop.f32.mrf.mxu0
  %v1008 = vadd.f32 %v943, %v1007
  %1009 = vmatmul.f32.gmra.mxu0 %v881
  %v1010 = vpop.f32.mrf.mxu0
  %v1011 = vadd.f32 %v946, %v1010
  %1012 = vmatmul.f32.gmra.mxu0 %v884
  %v1013 = vpop.f32.mrf.mxu0
  %v1014 = vadd.f32 %v949, %v1013
  %1015 = vmatmul.f32.gmra.mxu0 %v887
  %v1016 = vpop.f32.mrf.mxu0
  %v1017 = vadd.f32 %v952, %v1016
  %1018 = vdwg.mxu0
  %v1019 = vld [vmem:[%s2] sm:$0x1]
  %vm1020 = vcmask 261120
  %v1021 = vsel %vm1020, %v972, 0.0
  %v1022 = vsel %vm1020, %v975, 0.0
  %v1023 = vadd.f32 %v1021, %v1022
  %v1024 = vsel %vm1020, %v978, 0.0
  %v1025 = vadd.f32 %v1023, %v1024
  %v1026 = vsel %vm1020, %v981, 0.0
  %v1027 = vadd.f32 %v1025, %v1026
  %v1028 = vsel %vm1020, %v984, 0.0
  %v1029 = vadd.f32 %v1027, %v1028
  %v1030 = vsel %vm1020, %v987, 0.0
  %v1031 = vadd.f32 %v1029, %v1030
  %v1032 = vsel %vm1020, %v990, 0.0
  %v1033 = vadd.f32 %v1031, %v1032
  %v1034 = vsel %vm1020, %v993, 0.0
  %v1035 = vadd.f32 %v1033, %v1034
  %v1036 = vsel %vm1020, %v996, 0.0
  %v1037 = vadd.f32 %v1035, %v1036
  %v1038 = vsel %vm1020, %v999, 0.0
  %v1039 = vadd.f32 %v1037, %v1038
  %v1040 = vsel %vm1020, %v1002, 0.0
  %v1041 = vadd.f32 %v1039, %v1040
  %v1042 = vsel %vm1020, %v1005, 0.0
  %v1043 = vadd.f32 %v1041, %v1042
  %v1044 = vsel %vm1020, %v1008, 0.0
  %v1045 = vadd.f32 %v1043, %v1044
  %v1046 = vsel %vm1020, %v1011, 0.0
  %v1047 = vadd.f32 %v1045, %v1046
  %v1048 = vsel %vm1020, %v1014, 0.0
  %v1049 = vadd.f32 %v1047, %v1048
  %v1050 = vsel %vm1020, %v1017, 0.0
  %v1051 = vadd.f32 %v1049, %v1050
  %v1052 = vrot.slane %v1051, 4
  %v1053 = vadd.f32 %v1051, %v1052
  %v1054 = vrot.slane %v1053, 2
  %v1055 = vadd.f32 %v1053, %v1054
  %v1056 = vrot.slane %v1055, 1
  %v1057 = vadd.f32 %v1055, %v1056
  %v1058 = vadd.f32 %v1019, %v1057
  %vm1059 = vcmask 253952
  %1060 = vst.msk [vmem:[%s2] sm:$0x1] %vm1059, %v1058
  %v1061 = vld [vmem:[%s3] sm:$0x1]
  %v1062 = vmul.f32 %v972, %v972
  %v1063 = vmul.f32 %v975, %v975
  %v1064 = vmul.f32 %v978, %v978
  %v1065 = vmul.f32 %v981, %v981
  %v1066 = vmul.f32 %v984, %v984
  %v1067 = vmul.f32 %v987, %v987
  %v1068 = vmul.f32 %v990, %v990
  %v1069 = vmul.f32 %v993, %v993
  %v1070 = vmul.f32 %v996, %v996
  %v1071 = vmul.f32 %v999, %v999
  %v1072 = vmul.f32 %v1002, %v1002
  %v1073 = vmul.f32 %v1005, %v1005
  %v1074 = vmul.f32 %v1008, %v1008
  %v1075 = vmul.f32 %v1011, %v1011
  %v1076 = vmul.f32 %v1014, %v1014
  %v1077 = vmul.f32 %v1017, %v1017
  %v1078 = vsel %vm1020, %v1062, 0.0
  %v1079 = vsel %vm1020, %v1063, 0.0
  %v1080 = vadd.f32 %v1078, %v1079
  %v1081 = vsel %vm1020, %v1064, 0.0
  %v1082 = vadd.f32 %v1080, %v1081
  %v1083 = vsel %vm1020, %v1065, 0.0
  %v1084 = vadd.f32 %v1082, %v1083
  %v1085 = vsel %vm1020, %v1066, 0.0
  %v1086 = vadd.f32 %v1084, %v1085
  %v1087 = vsel %vm1020, %v1067, 0.0
  %v1088 = vadd.f32 %v1086, %v1087
  %v1089 = vsel %vm1020, %v1068, 0.0
  %v1090 = vadd.f32 %v1088, %v1089
  %v1091 = vsel %vm1020, %v1069, 0.0
  %v1092 = vadd.f32 %v1090, %v1091
  %v1093 = vsel %vm1020, %v1070, 0.0
  %v1094 = vadd.f32 %v1092, %v1093
  %v1095 = vsel %vm1020, %v1071, 0.0
  %v1096 = vadd.f32 %v1094, %v1095
  %v1097 = vsel %vm1020, %v1072, 0.0
  %v1098 = vadd.f32 %v1096, %v1097
  %v1099 = vsel %vm1020, %v1073, 0.0
  %v1100 = vadd.f32 %v1098, %v1099
  %v1101 = vsel %vm1020, %v1074, 0.0
  %v1102 = vadd.f32 %v1100, %v1101
  %v1103 = vsel %vm1020, %v1075, 0.0
  %v1104 = vadd.f32 %v1102, %v1103
  %v1105 = vsel %vm1020, %v1076, 0.0
  %v1106 = vadd.f32 %v1104, %v1105
  %v1107 = vsel %vm1020, %v1077, 0.0
  %v1108 = vadd.f32 %v1106, %v1107
  %v1109 = vrot.slane %v1108, 4
  %v1110 = vadd.f32 %v1108, %v1109
  %v1111 = vrot.slane %v1110, 2
  %v1112 = vadd.f32 %v1110, %v1111
  %v1113 = vrot.slane %v1112, 1
  %v1114 = vadd.f32 %v1112, %v1113
  %v1115 = vadd.f32 %v1061, %v1114
  %1116 = vst.msk [vmem:[%s3] sm:$0x1] %vm1059, %v1115
  // Predicated region
  $region14: #{search_cell_forward.6} parent=0 // pred_check
    _
  $region15: #{search_cell_forward.6} parent=0 // pred_check_branch
    %1118 = sbr.rel (0) target = $region17
  $region16: #{search_cell_forward.6} parent=0 // pred_region
    _
  $region17: #{search_cell_forward.6} parent=0 // pred_fallthru
    _
  // Predicated region
  $region18: #{search_cell_forward.6} parent=0 // pred_check
    _
  $region19: #{search_cell_forward.6} parent=0 // pred_check_branch
    %1120 = sbr.rel (0) target = $region21
  $region20: #{search_cell_forward.6} parent=0 // pred_region
    _
  $region21: #{search_cell_forward.6} parent=0 // pred_fallthru
    _
  // Predicated region
  $region22: #{search_cell_forward.6} parent=0 // pred_check
    _
  $region23: #{search_cell_forward.6} parent=0 // pred_check_branch
    %1122 = sbr.rel (0) target = $region25
  $region24: #{search_cell_forward.6} parent=0 // pred_region
    _
  $region25: #{search_cell_forward.6} parent=0 // pred_fallthru
    _
  // Predicated region
  $region26: #{search_cell_forward.6} parent=0 // pred_check
    _
  $region27: #{search_cell_forward.6} parent=0 // pred_check_branch
    %1124 = sbr.rel (0) target = $region29
  $region28: #{search_cell_forward.6} parent=0 // pred_region
    _
  $region29: #{search_cell_forward.6} parent=0 // pred_fallthru
    _

// kernel: search_cell_forward.8
$region0: #{search_cell_forward.8}
  #allocation0 [shape = 'u32[]', space=smem, size = 0x4, offset = 0x4, fixed_abs, tag = 'smem constant byte address 0x4 - core index']
  #allocation1 [shape = 'u32[72,128]{1,0:T(1,128)}', space=vmem, size = 0x9000, scoped, tag = 'internal scratch']
  #allocation2 [shape = 'f32[128,144]{1,0:T(8,128)}', space=vmem, size = 0x20000, scoped, tag = 'scratch operand']
  %s0 = inlined_call_operand.vmem [shape: f32[4,10,10,16], index: 0, kind: input, shape index: {}]
  %s1 = inlined_call_operand.vmem [shape: f32[2,144,32], index: 1, kind: input, shape index: {}]
  %s2 = inlined_call_operand.vmem [shape: f32[2,1,32], index: 2, kind: output, shape index: {0}]
  %s3 = inlined_call_operand.vmem [shape: f32[2,1,32], index: 3, kind: output, shape index: {1}]
  %4 = xla_tuple %s2, %s3
  %s5 = sld [smem:[#allocation0]]
  $region53: #{search_cell_forward.8} parent=0
    _
  %s7 = ssub.s32 1, %s5
  %s8 = scalar_select 0, %s7, %s5
  loop: start=0, step=1, limit=4
  $region2: #{search_cell_forward.8} parent=0 // loop_pre_header
    _
  $region3: #{search_cell_forward.8} parent=0 // loop_header
    %s10 = sphi 0, %s14
    %p11 = scmp.ge.s32.totalorder %s10, 4
    %s17 = sphi 0, %s29
    %s18 = sphi 0, %s25
    %s19 = sphi 0, %s17
    %s20 = sphi 0, %s18
    %s21 = sphi 0, %s19
    %s22 = sphi 0, %s20
    %s34 = sphi 0, %s36
    %s37 = sphi 0, %s34
    %s38 = sphi 0, %s37
    %s54 = sphi 0, %s38
    %s60 = sphi 0, %s62
    %s63 = sphi 0, %s60
    %s64 = sphi 0, %s63
    %s80 = sphi 0, %s64
    %s86 = sphi 0, %s88
    %s89 = sphi 0, %s86
    %s90 = sphi 0, %s89
    %s106 = sphi 0, %s90
    %s112 = sphi 0, %s114
    %s115 = sphi 0, %s112
    %s116 = sphi 0, %s115
    %s132 = sphi 0, %s116
  $region4: #{search_cell_forward.8} parent=0 // loop_header_branch
    %13 = sbr.rel (%p11) target = $region8
  $region5: #{search_cell_forward.8} parent=0 // loop_body
    %s15 = ssub.s32 %s10, 1
    %s16 = ssub.s32 %s10, 2
    %s23 = sadd.s32 1, %s18
    %p24 = scmp.ge.s32.totalorder %s23, 1
    %s25 = scalar_select %p24, 0, %s23
    %s26 = sadd.s32 1, %s17
    %s27 = scalar_select %p24, %s26, %s17
    %p28 = scmp.ge.s32.totalorder %s27, 2
    %s29 = scalar_select %p28, 0, %s27
    %s30 = sadd.s32 %s17, %s18
    %s31 = sadd.s32 %s29, %s25
    %s32 = ssub.s32 %s30, %s31
    %p33 = scmp.eq.s32.totalorder %s32, 0
    %s35 = sadd.s32 %s34, 1
    %s36 = scalar_select %p33, %s34, %s35
    %p39 = pneg %p33
    %p40 = scmp.eq.s32.totalorder %s10, 1
    %p41 = por %p39, %p40
    %p42 = scmp.ne.s32.totalorder %s34, %s37
    %p43 = scmp.eq.s32.totalorder %s10, 0
    %p44 = por %p42, %p43
    %p45 = scmp.ne.s32.totalorder %s34, %s37
    %p46 = scmp.eq.s32.totalorder %s15, 1
    %p47 = por %p45, %p46
    %p48 = scmp.ne.s32.totalorder %s37, %s38
    %p49 = scmp.eq.s32.totalorder %s15, 0
    %p50 = por %p48, %p49
    %p51 = scmp.ne.s32.totalorder %s37, %s38
    %p52 = scmp.eq.s32.totalorder %s16, 1
    %p53 = por %p51, %p52
    %p55 = scmp.ne.s32.totalorder %s38, %s54
    %p56 = scmp.eq.s32.totalorder %s16, 0
    %p57 = por %p55, %p56
    %s58 = ssub.s32 %s17, %s29
    %p59 = scmp.eq.s32.totalorder %s58, 0
    %s61 = sadd.s32 %s60, 1
    %s62 = scalar_select %p59, %s60, %s61
    %p65 = pneg %p59
    %p66 = scmp.eq.s32.totalorder %s10, 1
    %p67 = por %p65, %p66
    %p68 = scmp.ne.s32.totalorder %s60, %s63
    %p69 = scmp.eq.s32.totalorder %s10, 0
    %p70 = por %p68, %p69
    %p71 = scmp.ne.s32.totalorder %s60, %s63
    %p72 = scmp.eq.s32.totalorder %s15, 1
    %p73 = por %p71, %p72
    %p74 = scmp.ne.s32.totalorder %s63, %s64
    %p75 = scmp.eq.s32.totalorder %s15, 0
    %p76 = por %p74, %p75
    %p77 = scmp.ne.s32.totalorder %s63, %s64
    %p78 = scmp.eq.s32.totalorder %s16, 1
    %p79 = por %p77, %p78
    %p81 = scmp.ne.s32.totalorder %s64, %s80
    %p82 = scmp.eq.s32.totalorder %s16, 0
    %p83 = por %p81, %p82
    %s84 = ssub.s32 %s17, %s29
    %p85 = scmp.eq.s32.totalorder %s84, 0
    %s87 = sadd.s32 %s86, 1
    %s88 = scalar_select %p85, %s86, %s87
    %p91 = pneg %p85
    %p92 = scmp.eq.s32.totalorder %s10, 1
    %p93 = por %p91, %p92
    %p94 = scmp.ne.s32.totalorder %s86, %s89
    %p95 = scmp.eq.s32.totalorder %s10, 0
    %p96 = por %p94, %p95
    %p97 = scmp.ne.s32.totalorder %s86, %s89
    %p98 = scmp.eq.s32.totalorder %s15, 1
    %p99 = por %p97, %p98
    %p100 = scmp.ne.s32.totalorder %s89, %s90
    %p101 = scmp.eq.s32.totalorder %s15, 0
    %p102 = por %p100, %p101
    %p103 = scmp.ne.s32.totalorder %s89, %s90
    %p104 = scmp.eq.s32.totalorder %s16, 1
    %p105 = por %p103, %p104
    %p107 = scmp.ne.s32.totalorder %s90, %s106
    %p108 = scmp.eq.s32.totalorder %s16, 0
    %p109 = por %p107, %p108
    %s110 = ssub.s32 %s17, %s29
    %p111 = scmp.eq.s32.totalorder %s110, 0
    %s113 = sadd.s32 %s112, 1
    %s114 = scalar_select %p111, %s112, %s113
    %p117 = pneg %p111
    %p118 = scmp.eq.s32.totalorder %s10, 1
    %p119 = por %p117, %p118
    %p120 = scmp.ne.s32.totalorder %s112, %s115
    %p121 = scmp.eq.s32.totalorder %s10, 0
    %p122 = por %p120, %p121
    %p123 = scmp.ne.s32.totalorder %s112, %s115
    %p124 = scmp.eq.s32.totalorder %s15, 1
    %p125 = por %p123, %p124
    %p126 = scmp.ne.s32.totalorder %s115, %s116
    %p127 = scmp.eq.s32.totalorder %s15, 0
    %p128 = por %p126, %p127
    %p129 = scmp.ne.s32.totalorder %s115, %s116
    %p130 = scmp.eq.s32.totalorder %s16, 1
    %p131 = por %p129, %p130
    %p133 = scmp.ne.s32.totalorder %s116, %s132
    %p134 = scmp.eq.s32.totalorder %s16, 0
    %p135 = por %p133, %p134
    %p136 = scmp.le.s32.totalorder 1, %s10
    %p137 = scmp.lt.s32.totalorder %s10, 3
    %p138 = pnand %p136, %p137
    %p139 = pneg %p138
    // Predicated region
    $region9: #{search_cell_forward.8} parent=5 // pred_check
      _
    $region10: #{search_cell_forward.8} parent=5 // pred_check_branch
      %141 = sbr.rel (%p138) target = $region12
    $region11: #{search_cell_forward.8} parent=5 // pred_region
      %s142 = ssub.s32 %s10, 1
    $region12: #{search_cell_forward.8} parent=5 // pred_fallthru
      _
    %p143 = scmp.lt.s32.totalorder %s10, 2
    // Predicated region
    $region13: #{search_cell_forward.8} parent=5 // pred_check
      %p144 = pneg %p143
    $region14: #{search_cell_forward.8} parent=5 // pred_check_branch
      %146 = sbr.rel (%p144) target = $region16
    $region15: #{search_cell_forward.8} parent=5 // pred_region
      // Predicated region
      $region17: #{search_cell_forward.8} parent=15 // pred_check
        %p147 = pneg %p44
      $region18: #{search_cell_forward.8} parent=15 // pred_check_branch
        %149 = sbr.rel (%p147) target = $region20
      $region19: #{search_cell_forward.8} parent=15 // pred_region
        %s150 = sadd.s32 %s17, %s18
        %s151 = smul.u32 2, %s150
        %p152 = scmp.lt.s32.totalorder %s151, 3
        %s153 = scalar_select %p152, %s151, 3
        %s154 = smul.addr %s153, 20
        %s155 = smul.addr %s154, 8
        %s156 = scalar_lea.vmem %s0, %s155
        %s157 = sadd.s32 %s17, %s18
        %s158 = smul.u32 2, %s157
      $region20: #{search_cell_forward.8} parent=15 // pred_fallthru
        _
      // Predicated region
      $region21: #{search_cell_forward.8} parent=15 // pred_check
        %p159 = pneg %p70
      $region22: #{search_cell_forward.8} parent=15 // pred_check_branch
        %161 = sbr.rel (%p159) target = $region24
      $region23: #{search_cell_forward.8} parent=15 // pred_region
        %p162 = scmp.lt.s32.totalorder %s17, 1
        %s163 = scalar_select %p162, %s17, 1
        %s164 = smul.addr %s163, 18
        %s165 = smul.addr %s164, 8
        %s166 = scalar_lea.vmem %s1, %s165
      $region24: #{search_cell_forward.8} parent=15 // pred_fallthru
        _
    $region16: #{search_cell_forward.8} parent=5 // pred_fallthru
      _
    %p167 = scmp.le.s32.totalorder 1, %s10
    %p168 = scmp.lt.s32.totalorder %s10, 3
    %p169 = pnand %p167, %p168
    %p170 = pneg %p169
    // Predicated region
    $region25: #{search_cell_forward.8} parent=5 // pred_check
      _
    $region26: #{search_cell_forward.8} parent=5 // pred_check_branch
      %172 = sbr.rel (%p169) target = $region28
    $region27: #{search_cell_forward.8} parent=5 // pred_region
      %s173 = ssub.s32 %s10, 1
      %s174 = sadd.s32 %s19, %s20
      %s175 = smul.u32 2, %s174
      %p176 = scmp.lt.s32.totalorder %s175, 3
      %s177 = scalar_select %p176, %s175, 3
      %s178 = smul.addr %s177, 20
      %s179 = smul.addr %s178, 8
      %s180 = scalar_lea.vmem %s0, %s179
      %p181 = pneg %p50
      %p182 = pneg %p47
      %p183 = scmp.lt.s32.totalorder %s19, 1
      %s184 = scalar_select %p183, %s19, 1
      %s185 = smul.addr %s184, 18
      %s186 = smul.addr %s185, 8
      %s187 = scalar_lea.vmem %s1, %s186
      %p188 = pneg %p76
      %p189 = pneg %p73
      %p190 = pneg %p102
      %p191 = pneg %p99
      %p192 = scmp.lt.s32.totalorder %s19, 1
      %s193 = scalar_select %p192, %s19, 1
      %s194 = scalar_lea.vmem %s2, %s193
      %p195 = pneg %p128
      %p196 = pneg %p125
      %p197 = scmp.lt.s32.totalorder %s19, 1
      %s198 = scalar_select %p197, %s19, 1
      %s199 = scalar_lea.vmem %s3, %s198
      %s200 = sadd.s32 %s19, %s20
      %s201 = smul.u32 2, %s200
      %p202 = scmp.lt.s32.totalorder %s201, 3
      %s203 = scalar_select %p202, %s201, 3
      %s204 = smul.addr %s203, 20
      %s205 = smul.addr %s204, 8
      %s206 = scalar_lea.vmem %s0, %s205
      %s207 = sadd.s32 %s19, %s20
      %s208 = smul.u32 2, %s207
      %p209 = scmp.lt.s32.totalorder %s19, 1
      %s210 = scalar_select %p209, %s19, 1
      %s211 = smul.addr %s210, 18
      %s212 = smul.addr %s211, 8
      %s213 = scalar_lea.vmem %s1, %s212
      %p214 = scmp.lt.s32.totalorder %s19, 1
      %s215 = scalar_select %p214, %s19, 1
      %s216 = scalar_lea.vmem %s2, %s215
      %p217 = scmp.lt.s32.totalorder %s19, 1
      %s218 = scalar_select %p217, %s19, 1
      %s219 = scalar_lea.vmem %s3, %s218
      %p220 = scmp.eq.s32.totalorder %s20, 0
      // Predicated region
      $region29: #{search_cell_forward.8} parent=27 // pred_check
        %p221 = pneg %p220
      $region30: #{search_cell_forward.8} parent=27 // pred_check_branch
        %223 = sbr.rel (%p221) target = $region32
      $region31: #{search_cell_forward.8} parent=27 // pred_region
        %vm224 = vcmask 253952
        %225 = vst.msk [vmem:[%s216] sm:$0x1] %vm224, 0.0
        %226 = vst.msk [vmem:[%s219] sm:$0x1] %vm224, 0.0
      $region32: #{search_cell_forward.8} parent=27 // pred_fallthru
        _
      %v227 = vld [vmem:[%s206] sm:$0xff]
      %v228 = vld [vmem:[%s206 + $0x8] sm:$0x3]
      %v229 = vld [vmem:[%s206 + $0x10] sm:$0xff]
      %v230 = vld [vmem:[%s206 + $0x18] sm:$0x3]
      %v231 = vld [vmem:[%s206 + $0x20] sm:$0xff]
      %v232 = vld [vmem:[%s206 + $0x28] sm:$0x3]
      %v233 = vld [vmem:[%s206 + $0x30] sm:$0xff]
      %v234 = vld [vmem:[%s206 + $0x38] sm:$0x3]
      %v235 = vld [vmem:[%s206 + $0x40] sm:$0xff]
      %v236 = vld [vmem:[%s206 + $0x48] sm:$0x3]
      %v237 = vld [vmem:[%s206 + $0x50] sm:$0xff]
      %v238 = vld [vmem:[%s206 + $0x58] sm:$0x3]
      %v239 = vld [vmem:[%s206 + $0x60] sm:$0xff]
      %v240 = vld [vmem:[%s206 + $0x68] sm:$0x3]
      %v241 = vld [vmem:[%s206 + $0x70] sm:$0xff]
      %v242 = vld [vmem:[%s206 + $0x78] sm:$0x3]
      %v243 = vld [vmem:[%s206 + $0x80] sm:$0xff]
      %v244 = vld [vmem:[%s206 + $0x88] sm:$0x3]
      %v245 = vld [vmem:[%s206 + $0x90] sm:$0xff]
      %v246 = vld [vmem:[%s206 + $0x98] sm:$0x3]
      %v247 = vld [vmem:[%s206 + $0xa0] sm:$0xff]
      %v248 = vld [vmem:[%s206 + $0xa8] sm:$0x3]
      %v249 = vld [vmem:[%s206 + $0xb0] sm:$0xff]
      %v250 = vld [vmem:[%s206 + $0xb8] sm:$0x3]
      %v251 = vld [vmem:[%s206 + $0xc0] sm:$0xff]
      %v252 = vld [vmem:[%s206 + $0xc8] sm:$0x3]
      %v253 = vld [vmem:[%s206 + $0xd0] sm:$0xff]
      %v254 = vld [vmem:[%s206 + $0xd8] sm:$0x3]
      %v255 = vld [vmem:[%s206 + $0xe0] sm:$0xff]
      %v256 = vld [vmem:[%s206 + $0xe8] sm:$0x3]
      %v257 = vld [vmem:[%s206 + $0xf0] sm:$0xff]
      %v258 = vld [vmem:[%s206 + $0xf8] sm:$0x3]
      %v259 = vld [vmem:[%s206 + $0x100] sm:$0xff]
      %v260 = vld [vmem:[%s206 + $0x108] sm:$0x3]
      %v261 = vld [vmem:[%s206 + $0x110] sm:$0xff]
      %v262 = vld [vmem:[%s206 + $0x118] sm:$0x3]
      %v263 = vld [vmem:[%s206 + $0x120] sm:$0xff]
      %v264 = vld [vmem:[%s206 + $0x128] sm:$0x3]
      %v265 = vld [vmem:[%s206 + $0x130] sm:$0xff]
      %v266 = vld [vmem:[%s206 + $0x138] sm:$0x3]
      %v267 = vmax.f32 %v227, 0.0
      %v268 = vmax.f32 %v229, 0.0
      %v269 = vmax.f32 %v231, 0.0
      %v270 = vmax.f32 %v233, 0.0
      %v271 = vmax.f32 %v235, 0.0
      %v272 = vmax.f32 %v237, 0.0
      %v273 = vmax.f32 %v239, 0.0
      %v274 = vmax.f32 %v241, 0.0
      %v275 = vmax.f32 %v247, 0.0
      %v276 = vmax.f32 %v249, 0.0
      %v277 = vmax.f32 %v251, 0.0
      %v278 = vmax.f32 %v253, 0.0
      %v279 = vmax.f32 %v255, 0.0
      %v280 = vmax.f32 %v257, 0.0
      %v281 = vmax.f32 %v259, 0.0
      %v282 = vmax.f32 %v261, 0.0
      %vm283 = vcmask 130048
      %284 = vst.msk [vmem:[#allocation2] sm:$0xff] %vm283, %v267
      %285 = vst.msk [vmem:[#allocation2 + $0x10] sm:$0xff] %vm283, %v268
      %286 = vst.msk [vmem:[#allocation2 + $0x20] sm:$0xff] %vm283, %v269
      %287 = vst.msk [vmem:[#allocation2 + $0x30] sm:$0xff] %vm283, %v270
      %288 = vst.msk [vmem:[#allocation2 + $0x40] sm:$0xff] %vm283, %v271
      %289 = vst.msk [vmem:[#allocation2 + $0x50] sm:$0xff] %vm283, %v272
      %290 = vst.msk [vmem:[#allocation2 + $0x60] sm:$0xff] %vm283, %v273
      %291 = vst.msk [vmem:[#allocation2 + $0x70] sm:$0xff] %vm283, %v274
      %292 = vst.msk [vmem:[#allocation2 + $0x80] sm:$0xff] %vm283, %v275
      %293 = vst.msk [vmem:[#allocation2 + $0x90] sm:$0xff] %vm283, %v276
      %294 = vst.msk [vmem:[#allocation2 + $0xa0] sm:$0xff] %vm283, %v277
      %295 = vst.msk [vmem:[#allocation2 + $0xb0] sm:$0xff] %vm283, %v278
      %296 = vst.msk [vmem:[#allocation2 + $0xc0] sm:$0xff] %vm283, %v279
      %297 = vst.msk [vmem:[#allocation2 + $0xd0] sm:$0xff] %vm283, %v280
      %298 = vst.msk [vmem:[#allocation2 + $0xe0] sm:$0xff] %vm283, %v281
      %299 = vst.msk [vmem:[#allocation2 + $0xf0] sm:$0xff] %vm283, %v282
      %v300 = vmax.f32 %v228, 0.0
      %v301 = vmax.f32 %v230, 0.0
      %v302 = vmax.f32 %v232, 0.0
      %v303 = vmax.f32 %v234, 0.0
      %v304 = vmax.f32 %v236, 0.0
      %v305 = vmax.f32 %v238, 0.0
      %v306 = vmax.f32 %v240, 0.0
      %v307 = vmax.f32 %v242, 0.0
      %v308 = vmax.f32 %v248, 0.0
      %v309 = vmax.f32 %v250, 0.0
      %v310 = vmax.f32 %v252, 0.0
      %v311 = vmax.f32 %v254, 0.0
      %v312 = vmax.f32 %v256, 0.0
      %v313 = vmax.f32 %v258, 0.0
      %v314 = vmax.f32 %v260, 0.0
      %v315 = vmax.f32 %v262, 0.0
      %vm348 = vcmask 1046528
      %v349 = vrot.slane %v267, 1
      %v350 = vrot.slane %v300, 1
      %v351 = vsel %vm348, %v349, %v350
      %v352 = vrot.slane %v268, 1
      %v353 = vrot.slane %v301, 1
      %v354 = vsel %vm348, %v352, %v353
      %v355 = vrot.slane %v269, 1
      %v356 = vrot.slane %v302, 1
      %v357 = vsel %vm348, %v355, %v356
      %v358 = vrot.slane %v270, 1
      %v359 = vrot.slane %v303, 1
      %v360 = vsel %vm348, %v358, %v359
      %v361 = vrot.slane %v271, 1
      %v362 = vrot.slane %v304, 1
      %v363 = vsel %vm348, %v361, %v362
      %v364 = vrot.slane %v272, 1
      %v365 = vrot.slane %v305, 1
      %v366 = vsel %vm348, %v364, %v365
      %v367 = vrot.slane %v273, 1
      %v368 = vrot.slane %v306, 1
      %v369 = vsel %vm348, %v367, %v368
      %v370 = vrot.slane %v274, 1
      %v371 = vrot.slane %v307, 1
      %v372 = vsel %vm348, %v370, %v371
      %v373 = vrot.slane %v275, 1
      %v374 = vrot.slane %v308, 1
      %v375 = vsel %vm348, %v373, %v374
      %v376 = vrot.slane %v276, 1
      %v377 = vrot.slane %v309, 1
      %v378 = vsel %vm348, %v376, %v377
      %v379 = vrot.slane %v277, 1
      %v380 = vrot.slane %v310, 1
      %v381 = vsel %vm348, %v379, %v380
      %v382 = vrot.slane %v278, 1
      %v383 = vrot.slane %v311, 1
      %v384 = vsel %vm348, %v382, %v383
      %v385 = vrot.slane %v279, 1
      %v386 = vrot.slane %v312, 1
      %v387 = vsel %vm348, %v385, %v386
      %v388 = vrot.slane %v280, 1
      %v389 = vrot.slane %v313, 1
      %v390 = vsel %vm348, %v388, %v389
      %v391 = vrot.slane %v281, 1
      %v392 = vrot.slane %v314, 1
      %v393 = vsel %vm348, %v391, %v392
      %v394 = vrot.slane %v282, 1
      %v395 = vrot.slane %v315, 1
      %v396 = vsel %vm348, %v394, %v395
      %397 = vrot.lane.b32.xlu0 %v351, 16
      %v398 = vpop.permute.xlu0 %397
      %399 = vrot.lane.b32.xlu0 %v354, 16
      %v400 = vpop.permute.xlu0 %399
      %401 = vrot.lane.b32.xlu0 %v357, 16
      %v402 = vpop.permute.xlu0 %401
      %403 = vrot.lane.b32.xlu0 %v360, 16
      %v404 = vpop.permute.xlu0 %403
      %405 = vrot.lane.b32.xlu0 %v363, 16
      %v406 = vpop.permute.xlu0 %405
      %407 = vrot.lane.b32.xlu0 %v366, 16
      %v408 = vpop.permute.xlu0 %407
      %409 = vrot.lane.b32.xlu0 %v369, 16
      %v410 = vpop.permute.xlu0 %409
      %411 = vrot.lane.b32.xlu0 %v372, 16
      %v412 = vpop.permute.xlu0 %411
      %413 = vrot.lane.b32.xlu0 %v375, 16
      %v414 = vpop.permute.xlu0 %413
      %415 = vrot.lane.b32.xlu0 %v378, 16
      %v416 = vpop.permute.xlu0 %415
      %417 = vrot.lane.b32.xlu0 %v381, 16
      %v418 = vpop.permute.xlu0 %417
      %419 = vrot.lane.b32.xlu0 %v384, 16
      %v420 = vpop.permute.xlu0 %419
      %421 = vrot.lane.b32.xlu0 %v387, 16
      %v422 = vpop.permute.xlu0 %421
      %423 = vrot.lane.b32.xlu0 %v390, 16
      %v424 = vpop.permute.xlu0 %423
      %425 = vrot.lane.b32.xlu0 %v393, 16
      %v426 = vpop.permute.xlu0 %425
      %427 = vrot.lane.b32.xlu0 %v396, 16
      %v428 = vpop.permute.xlu0 %427
      %vm445 = vcmask 261248
      %446 = vst.msk [vmem:[#allocation2] sm:$0xff] %vm445, %v398
      %447 = vst.msk [vmem:[#allocation2 + $0x10] sm:$0xff] %vm445, %v400
      %448 = vst.msk [vmem:[#allocation2 + $0x20] sm:$0xff] %vm445, %v402
      %449 = vst.msk [vmem:[#allocation2 + $0x30] sm:$0xff] %vm445, %v404
      %450 = vst.msk [vmem:[#allocation2 + $0x40] sm:$0xff] %vm445, %v406
      %451 = vst.msk [vmem:[#allocation2 + $0x50] sm:$0xff] %vm445, %v408
      %452 = vst.msk [vmem:[#allocation2 + $0x60] sm:$0xff] %vm445, %v410
      %453 = vst.msk [vmem:[#allocation2 + $0x70] sm:$0xff] %vm445, %v412
      %454 = vst.msk [vmem:[#allocation2 + $0x80] sm:$0xff] %vm445, %v414
      %455 = vst.msk [vmem:[#allocation2 + $0x90] sm:$0xff] %vm445, %v416
      %456 = vst.msk [vmem:[#allocation2 + $0xa0] sm:$0xff] %vm445, %v418
      %457 = vst.msk [vmem:[#allocation2 + $0xb0] sm:$0xff] %vm445, %v420
      %458 = vst.msk [vmem:[#allocation2 + $0xc0] sm:$0xff] %vm445, %v422
      %459 = vst.msk [vmem:[#allocation2 + $0xd0] sm:$0xff] %vm445, %v424
      %460 = vst.msk [vmem:[#allocation2 + $0xe0] sm:$0xff] %vm445, %v426
      %461 = vst.msk [vmem:[#allocation2 + $0xf0] sm:$0xff] %vm445, %v428
      %vm462 = vcmask 1045504
      %v463 = vrot.slane %v267, 2
      %v464 = vrot.slane %v300, 2
      %v465 = vsel %vm462, %v463, %v464
      %v466 = vrot.slane %v268, 2
      %v467 = vrot.slane %v301, 2
      %v468 = vsel %vm462, %v466, %v467
      %v469 = vrot.slane %v269, 2
      %v470 = vrot.slane %v302, 2
      %v471 = vsel %vm462, %v469, %v470
      %v472 = vrot.slane %v270, 2
      %v473 = vrot.slane %v303, 2
      %v474 = vsel %vm462, %v472, %v473
      %v475 = vrot.slane %v271, 2
      %v476 = vrot.slane %v304, 2
      %v477 = vsel %vm462, %v475, %v476
      %v478 = vrot.slane %v272, 2
      %v479 = vrot.slane %v305, 2
      %v480 = vsel %vm462, %v478, %v479
      %v481 = vrot.slane %v273, 2
      %v482 = vrot.slane %v306, 2
      %v483 = vsel %vm462, %v481, %v482
      %v484 = vrot.slane %v274, 2
      %v485 = vrot.slane %v307, 2
      %v486 = vsel %vm462, %v484, %v485
      %v487 = vrot.slane %v275, 2
      %v488 = vrot.slane %v308, 2
      %v489 = vsel %vm462, %v487, %v488
      %v490 = vrot.slane %v276, 2
      %v491 = vrot.slane %v309, 2
      %v492 = vsel %vm462, %v490, %v491
      %v493 = vrot.slane %v277, 2
      %v494 = vrot.slane %v310, 2
      %v495 = vsel %vm462, %v493, %v494
      %v496 = vrot.slane %v278, 2
      %v497 = vrot.slane %v311, 2
      %v498 = vsel %vm462, %v496, %v497
      %v499 = vrot.slane %v279, 2
      %v500 = vrot.slane %v312, 2
      %v501 = vsel %vm462, %v499, %v500
      %v502 = vrot.slane %v280, 2
      %v503 = vrot.slane %v313, 2
      %v504 = vsel %vm462, %v502, %v503
      %v505 = vrot.slane %v281, 2
      %v506 = vrot.slane %v314, 2
      %v507 = vsel %vm462, %v505, %v506
      %v508 = vrot.slane %v282, 2
      %v509 = vrot.slane %v315, 2
      %v510 = vsel %vm462, %v508, %v509
      %511 = vrot.lane.b32.xlu0 %v465, 32
      %v512 = vpop.permute.xlu0 %511
      %513 = vrot.lane.b32.xlu0 %v468, 32
      %v514 = vpop.permute.xlu0 %513
      %515 = vrot.lane.b32.xlu0 %v471, 32
      %v516 = vpop.permute.xlu0 %515
      %517 = vrot.lane.b32.xlu0 %v474, 32
      %v518 = vpop.permute.xlu0 %517
      %519 = vrot.lane.b32.xlu0 %v477, 32
      %v520 = vpop.permute.xlu0 %519
      %521 = vrot.lane.b32.xlu0 %v480, 32
      %v522 = vpop.permute.xlu0 %521
      %523 = vrot.lane.b32.xlu0 %v483, 32
      %v524 = vpop.permute.xlu0 %523
      %525 = vrot.lane.b32.xlu0 %v486, 32
      %v526 = vpop.permute.xlu0 %525
      %527 = vrot.lane.b32.xlu0 %v489, 32
      %v528 = vpop.permute.xlu0 %527
      %529 = vrot.lane.b32.xlu0 %v492, 32
      %v530 = vpop.permute.xlu0 %529
      %531 = vrot.lane.b32.xlu0 %v495, 32
      %v532 = vpop.permute.xlu0 %531
      %533 = vrot.lane.b32.xlu0 %v498, 32
      %v534 = vpop.permute.xlu0 %533
      %535 = vrot.lane.b32.xlu0 %v501, 32
      %v536 = vpop.permute.xlu0 %535
      %537 = vrot.lane.b32.xlu0 %v504, 32
      %v538 = vpop.permute.xlu0 %537
      %539 = vrot.lane.b32.xlu0 %v507, 32
      %v540 = vpop.permute.xlu0 %539
      %541 = vrot.lane.b32.xlu0 %v510, 32
      %v542 = vpop.permute.xlu0 %541
      %vm559 = vcmask 392448
      %560 = vst.msk [vmem:[#allocation2] sm:$0xff] %vm559, %v512
      %561 = vst.msk [vmem:[#allocation2 + $0x10] sm:$0xff] %vm559, %v514
      %562 = vst.msk [vmem:[#allocation2 + $0x20] sm:$0xff] %vm559, %v516
      %563 = vst.msk [vmem:[#allocation2 + $0x30] sm:$0xff] %vm559, %v518
      %564 = vst.msk [vmem:[#allocation2 + $0x40] sm:$0xff] %vm559, %v520
      %565 = vst.msk [vmem:[#allocation2 + $0x50] sm:$0xff] %vm559, %v522
      %566 = vst.msk [vmem:[#allocation2 + $0x60] sm:$0xff] %vm559, %v524
      %567 = vst.msk [vmem:[#allocation2 + $0x70] sm:$0xff] %vm559, %v526
      %568 = vst.msk [vmem:[#allocation2 + $0x80] sm:$0xff] %vm559, %v528
      %569 = vst.msk [vmem:[#allocation2 + $0x90] sm:$0xff] %vm559, %v530
      %570 = vst.msk [vmem:[#allocation2 + $0xa0] sm:$0xff] %vm559, %v532
      %571 = vst.msk [vmem:[#allocation2 + $0xb0] sm:$0xff] %vm559, %v534
      %572 = vst.msk [vmem:[#allocation2 + $0xc0] sm:$0xff] %vm559, %v536
      %573 = vst.msk [vmem:[#allocation2 + $0xd0] sm:$0xff] %vm559, %v538
      %574 = vst.msk [vmem:[#allocation2 + $0xe0] sm:$0xff] %vm559, %v540
      %575 = vst.msk [vmem:[#allocation2 + $0xf0] sm:$0xff] %vm559, %v542
      %v576 = vmax.f32 %v243, 0.0
      %v577 = vmax.f32 %v263, 0.0
      %580 = vrot.lane.b32.xlu0 %v268, 48
      %v581 = vpop.permute.xlu0 %580
      %582 = vrot.lane.b32.xlu0 %v269, 48
      %v583 = vpop.permute.xlu0 %582
      %584 = vrot.lane.b32.xlu0 %v270, 48
      %v585 = vpop.permute.xlu0 %584
      %586 = vrot.lane.b32.xlu0 %v271, 48
      %v587 = vpop.permute.xlu0 %586
      %588 = vrot.lane.b32.xlu0 %v272, 48
      %v589 = vpop.permute.xlu0 %588
      %590 = vrot.lane.b32.xlu0 %v273, 48
      %v591 = vpop.permute.xlu0 %590
      %592 = vrot.lane.b32.xlu0 %v274, 48
      %v593 = vpop.permute.xlu0 %592
      %594 = vrot.lane.b32.xlu0 %v576, 48
      %v595 = vpop.permute.xlu0 %594
      %596 = vrot.lane.b32.xlu0 %v276, 48
      %v597 = vpop.permute.xlu0 %596
      %598 = vrot.lane.b32.xlu0 %v277, 48
      %v599 = vpop.permute.xlu0 %598
      %600 = vrot.lane.b32.xlu0 %v278, 48
      %v601 = vpop.permute.xlu0 %600
      %602 = vrot.lane.b32.xlu0 %v279, 48
      %v603 = vpop.permute.xlu0 %602
      %604 = vrot.lane.b32.xlu0 %v280, 48
      %v605 = vpop.permute.xlu0 %604
      %606 = vrot.lane.b32.xlu0 %v281, 48
      %v607 = vpop.permute.xlu0 %606
      %608 = vrot.lane.b32.xlu0 %v282, 48
      %v609 = vpop.permute.xlu0 %608
      %610 = vrot.lane.b32.xlu0 %v577, 48
      %v611 = vpop.permute.xlu0 %610
      %vm628 = vcmask 523648
      %629 = vst.msk [vmem:[#allocation2] sm:$0xff] %vm628, %v581
      %630 = vst.msk [vmem:[#allocation2 + $0x10] sm:$0xff] %vm628, %v583
      %631 = vst.msk [vmem:[#allocation2 + $0x20] sm:$0xff] %vm628, %v585
      %632 = vst.msk [vmem:[#allocation2 + $0x30] sm:$0xff] %vm628, %v587
      %633 = vst.msk [vmem:[#allocation2 + $0x40] sm:$0xff] %vm628, %v589
      %634 = vst.msk [vmem:[#allocation2 + $0x50] sm:$0xff] %vm628, %v591
      %635 = vst.msk [vmem:[#allocation2 + $0x60] sm:$0xff] %vm628, %v593
      %636 = vst.msk [vmem:[#allocation2 + $0x70] sm:$0xff] %vm628, %v595
      %637 = vst.msk [vmem:[#allocation2 + $0x80] sm:$0xff] %vm628, %v597
      %638 = vst.msk [vmem:[#allocation2 + $0x90] sm:$0xff] %vm628, %v599
      %639 = vst.msk [vmem:[#allocation2 + $0xa0] sm:$0xff] %vm628, %v601
      %640 = vst.msk [vmem:[#allocation2 + $0xb0] sm:$0xff] %vm628, %v603
      %641 = vst.msk [vmem:[#allocation2 + $0xc0] sm:$0xff] %vm628, %v605
      %642 = vst.msk [vmem:[#allocation2 + $0xd0] sm:$0xff] %vm628, %v607
      %643 = vst.msk [vmem:[#allocation2 + $0xe0] sm:$0xff] %vm628, %v609
      %644 = vst.msk [vmem:[#allocation2 + $0xf0] sm:$0xff] %vm628, %v611
      %v645 = vmax.f32 %v244, 0.0
      %v646 = vmax.f32 %v264, 0.0
      %v649 = vrot.slane %v576, 1
      %v650 = vrot.slane %v645, 1
      %v651 = vsel %vm348, %v649, %v650
      %v652 = vrot.slane %v577, 1
      %v653 = vrot.slane %v646, 1
      %v654 = vsel %vm348, %v652, %v653
      %655 = vrot.lane.b32.xlu0 %v354, 64
      %v656 = vpop.permute.xlu0 %655
      %657 = vrot.lane.b32.xlu0 %v357, 64
      %v658 = vpop.permute.xlu0 %657
      %659 = vrot.lane.b32.xlu0 %v360, 64
      %v660 = vpop.permute.xlu0 %659
      %661 = vrot.lane.b32.xlu0 %v363, 64
      %v662 = vpop.permute.xlu0 %661
      %663 = vrot.lane.b32.xlu0 %v366, 64
      %v664 = vpop.permute.xlu0 %663
      %665 = vrot.lane.b32.xlu0 %v369, 64
      %v666 = vpop.permute.xlu0 %665
      %667 = vrot.lane.b32.xlu0 %v372, 64
      %v668 = vpop.permute.xlu0 %667
      %669 = vrot.lane.b32.xlu0 %v651, 64
      %v670 = vpop.permute.xlu0 %669
      %671 = vrot.lane.b32.xlu0 %v378, 64
      %v672 = vpop.permute.xlu0 %671
      %673 = vrot.lane.b32.xlu0 %v381, 64
      %v674 = vpop.permute.xlu0 %673
      %675 = vrot.lane.b32.xlu0 %v384, 64
      %v676 = vpop.permute.xlu0 %675
      %677 = vrot.lane.b32.xlu0 %v387, 64
      %v678 = vpop.permute.xlu0 %677
      %679 = vrot.lane.b32.xlu0 %v390, 64
      %v680 = vpop.permute.xlu0 %679
      %681 = vrot.lane.b32.xlu0 %v393, 64
      %v682 = vpop.permute.xlu0 %681
      %683 = vrot.lane.b32.xlu0 %v396, 64
      %v684 = vpop.permute.xlu0 %683
      %685 = vrot.lane.b32.xlu0 %v654, 64
      %v686 = vpop.permute.xlu0 %685
      %vm703 = vcmask 654848
      %704 = vst.msk [vmem:[#allocation2] sm:$0xff] %vm703, %v656
      %705 = vst.msk [vmem:[#allocation2 + $0x10] sm:$0xff] %vm703, %v658
      %706 = vst.msk [vmem:[#allocation2 + $0x20] sm:$0xff] %vm703, %v660
      %707 = vst.msk [vmem:[#allocation2 + $0x30] sm:$0xff] %vm703, %v662
      %708 = vst.msk [vmem:[#allocation2 + $0x40] sm:$0xff] %vm703, %v664
      %709 = vst.msk [vmem:[#allocation2 + $0x50] sm:$0xff] %vm703, %v666
      %710 = vst.msk [vmem:[#allocation2 + $0x60] sm:$0xff] %vm703, %v668
      %711 = vst.msk [vmem:[#allocation2 + $0x70] sm:$0xff] %vm703, %v670
      %712 = vst.msk [vmem:[#allocation2 + $0x80] sm:$0xff] %vm703, %v672
      %713 = vst.msk [vmem:[#allocation2 + $0x90] sm:$0xff] %vm703, %v674
      %714 = vst.msk [vmem:[#allocation2 + $0xa0] sm:$0xff] %vm703, %v676
      %715 = vst.msk [vmem:[#allocation2 + $0xb0] sm:$0xff] %vm703, %v678
      %716 = vst.msk [vmem:[#allocation2 + $0xc0] sm:$0xff] %vm703, %v680
      %717 = vst.msk [vmem:[#allocation2 + $0xd0] sm:$0xff] %vm703, %v682
      %718 = vst.msk [vmem:[#allocation2 + $0xe0] sm:$0xff] %vm703, %v684
      %719 = vst.msk [vmem:[#allocation2 + $0xf0] sm:$0xff] %vm703, %v686
      %v720 = vrot.slane %v576, 2
      %v721 = vrot.slane %v645, 2
      %v722 = vsel %vm462, %v720, %v721
      %v723 = vrot.slane %v577, 2
      %v724 = vrot.slane %v646, 2
      %v725 = vsel %vm462, %v723, %v724
      %726 = vrot.lane.b32.xlu0 %v468, 80
      %v727 = vpop.permute.xlu0 %726
      %728 = vrot.lane.b32.xlu0 %v471, 80
      %v729 = vpop.permute.xlu0 %728
      %730 = vrot.lane.b32.xlu0 %v474, 80
      %v731 = vpop.permute.xlu0 %730
      %732 = vrot.lane.b32.xlu0 %v477, 80
      %v733 = vpop.permute.xlu0 %732
      %734 = vrot.lane.b32.xlu0 %v480, 80
      %v735 = vpop.permute.xlu0 %734
      %736 = vrot.lane.b32.xlu0 %v483, 80
      %v737 = vpop.permute.xlu0 %736
      %738 = vrot.lane.b32.xlu0 %v486, 80
      %v739 = vpop.permute.xlu0 %738
      %740 = vrot.lane.b32.xlu0 %v722, 80
      %v741 = vpop.permute.xlu0 %740
      %742 = vrot.lane.b32.xlu0 %v492, 80
      %v743 = vpop.permute.xlu0 %742
      %744 = vrot.lane.b32.xlu0 %v495, 80
      %v745 = vpop.permute.xlu0 %744
      %746 = vrot.lane.b32.xlu0 %v498, 80
      %v747 = vpop.permute.xlu0 %746
      %748 = vrot.lane.b32.xlu0 %v501, 80
      %v749 = vpop.permute.xlu0 %748
      %750 = vrot.lane.b32.xlu0 %v504, 80
      %v751 = vpop.permute.xlu0 %750
      %752 = vrot.lane.b32.xlu0 %v507, 80
      %v753 = vpop.permute.xlu0 %752
      %754 = vrot.lane.b32.xlu0 %v510, 80
      %v755 = vpop.permute.xlu0 %754
      %756 = vrot.lane.b32.xlu0 %v725, 80
      %v757 = vpop.permute.xlu0 %756
      %vm774 = vcmask 786048
      %775 = vst.msk [vmem:[#allocation2] sm:$0xff] %vm774, %v727
      %776 = vst.msk [vmem:[#allocation2 + $0x10] sm:$0xff] %vm774, %v729
      %777 = vst.msk [vmem:[#allocation2 + $0x20] sm:$0xff] %vm774, %v731
      %778 = vst.msk [vmem:[#allocation2 + $0x30] sm:$0xff] %vm774, %v733
      %779 = vst.msk [vmem:[#allocation2 + $0x40] sm:$0xff] %vm774, %v735
      %780 = vst.msk [vmem:[#allocation2 + $0x50] sm:$0xff] %vm774, %v737
      %781 = vst.msk [vmem:[#allocation2 + $0x60] sm:$0xff] %vm774, %v739
      %782 = vst.msk [vmem:[#allocation2 + $0x70] sm:$0xff] %vm774, %v741
      %783 = vst.msk [vmem:[#allocation2 + $0x80] sm:$0xff] %vm774, %v743
      %784 = vst.msk [vmem:[#allocation2 + $0x90] sm:$0xff] %vm774, %v745
      %785 = vst.msk [vmem:[#allocation2 + $0xa0] sm:$0xff] %vm774, %v747
      %786 = vst.msk [vmem:[#allocation2 + $0xb0] sm:$0xff] %vm774, %v749
      %787 = vst.msk [vmem:[#allocation2 + $0xc0] sm:$0xff] %vm774, %v751
      %788 = vst.msk [vmem:[#allocation2 + $0xd0] sm:$0xff] %vm774, %v753
      %789 = vst.msk [vmem:[#allocation2 + $0xe0] sm:$0xff] %vm774, %v755
      %790 = vst.msk [vmem:[#allocation2 + $0xf0] sm:$0xff] %vm774, %v757
      %v791 = vmax.f32 %v245, 0.0
      %v792 = vmax.f32 %v265, 0.0
      %795 = vrot.lane.b32.xlu0 %v269, 96
      %v796 = vpop.permute.xlu0 %795
      %797 = vrot.lane.b32.xlu0 %v270, 96
      %v798 = vpop.permute.xlu0 %797
      %799 = vrot.lane.b32.xlu0 %v271, 96
      %v800 = vpop.permute.xlu0 %799
      %801 = vrot.lane.b32.xlu0 %v272, 96
      %v802 = vpop.permute.xlu0 %801
      %803 = vrot.lane.b32.xlu0 %v273, 96
      %v804 = vpop.permute.xlu0 %803
      %805 = vrot.lane.b32.xlu0 %v274, 96
      %v806 = vpop.permute.xlu0 %805
      %807 = vrot.lane.b32.xlu0 %v576, 96
      %v808 = vpop.permute.xlu0 %807
      %809 = vrot.lane.b32.xlu0 %v791, 96
      %v810 = vpop.permute.xlu0 %809
      %811 = vrot.lane.b32.xlu0 %v277, 96
      %v812 = vpop.permute.xlu0 %811
      %813 = vrot.lane.b32.xlu0 %v278, 96
      %v814 = vpop.permute.xlu0 %813
      %815 = vrot.lane.b32.xlu0 %v279, 96
      %v816 = vpop.permute.xlu0 %815
      %817 = vrot.lane.b32.xlu0 %v280, 96
      %v818 = vpop.permute.xlu0 %817
      %819 = vrot.lane.b32.xlu0 %v281, 96
      %v820 = vpop.permute.xlu0 %819
      %821 = vrot.lane.b32.xlu0 %v282, 96
      %v822 = vpop.permute.xlu0 %821
      %823 = vrot.lane.b32.xlu0 %v577, 96
      %v824 = vpop.permute.xlu0 %823
      %825 = vrot.lane.b32.xlu0 %v792, 96
      %v826 = vpop.permute.xlu0 %825
      %vm843 = vcmask 917248
      %844 = vst.msk [vmem:[#allocation2] sm:$0xff] %vm843, %v796
      %845 = vst.msk [vmem:[#allocation2 + $0x10] sm:$0xff] %vm843, %v798
      %846 = vst.msk [vmem:[#allocation2 + $0x20] sm:$0xff] %vm843, %v800
      %847 = vst.msk [vmem:[#allocation2 + $0x30] sm:$0xff] %vm843, %v802
      %848 = vst.msk [vmem:[#allocation2 + $0x40] sm:$0xff] %vm843, %v804
      %849 = vst.msk [vmem:[#allocation2 + $0x50] sm:$0xff] %vm843, %v806
      %850 = vst.msk [vmem:[#allocation2 + $0x60] sm:$0xff] %vm843, %v808
      %851 = vst.msk [vmem:[#allocation2 + $0x70] sm:$0xff] %vm843, %v810
      %852 = vst.msk [vmem:[#allocation2 + $0x80] sm:$0xff] %vm843, %v812
      %853 = vst.msk [vmem:[#allocation2 + $0x90] sm:$0xff] %vm843, %v814
      %854 = vst.msk [vmem:[#allocation2 + $0xa0] sm:$0xff] %vm843, %v816
      %855 = vst.msk [vmem:[#allocation2 + $0xb0] sm:$0xff] %vm843, %v818
      %856 = vst.msk [vmem:[#allocation2 + $0xc0] sm:$0xff] %vm843, %v820
      %857 = vst.msk [vmem:[#allocation2 + $0xd0] sm:$0xff] %vm843, %v822
      %858 = vst.msk [vmem:[#allocation2 + $0xe0] sm:$0xff] %vm843, %v824
      %859 = vst.msk [vmem:[#allocation2 + $0xf0] sm:$0xff] %vm843, %v826
      %v860 = vmax.f32 %v246, 0.0
      %v861 = vmax.f32 %v266, 0.0
      %v864 = vrot.slane %v791, 1
      %v865 = vrot.slane %v860, 1
      %v866 = vsel %vm348, %v864, %v865
      %v867 = vrot.slane %v792, 1
      %v868 = vrot.slane %v861, 1
      %v869 = vsel %vm348, %v867, %v868
      %870 = vrot.lane.b32.xlu0 %v357, 112
      %v871 = vpop.permute.xlu0 %870
      %872 = vrot.lane.b32.xlu0 %v360, 112
      %v873 = vpop.permute.xlu0 %872
      %874 = vrot.lane.b32.xlu0 %v363, 112
      %v875 = vpop.permute.xlu0 %874
      %876 = vrot.lane.b32.xlu0 %v366, 112
      %v877 = vpop.permute.xlu0 %876
      %878 = vrot.lane.b32.xlu0 %v369, 112
      %v879 = vpop.permute.xlu0 %878
      %880 = vrot.lane.b32.xlu0 %v372, 112
      %v881 = vpop.permute.xlu0 %880
      %882 = vrot.lane.b32.xlu0 %v651, 112
      %v883 = vpop.permute.xlu0 %882
      %884 = vrot.lane.b32.xlu0 %v866, 112
      %v885 = vpop.permute.xlu0 %884
      %886 = vrot.lane.b32.xlu0 %v381, 112
      %v887 = vpop.permute.xlu0 %886
      %888 = vrot.lane.b32.xlu0 %v384, 112
      %v889 = vpop.permute.xlu0 %888
      %890 = vrot.lane.b32.xlu0 %v387, 112
      %v891 = vpop.permute.xlu0 %890
      %892 = vrot.lane.b32.xlu0 %v390, 112
      %v893 = vpop.permute.xlu0 %892
      %894 = vrot.lane.b32.xlu0 %v393, 112
      %v895 = vpop.permute.xlu0 %894
      %896 = vrot.lane.b32.xlu0 %v396, 112
      %v897 = vpop.permute.xlu0 %896
      %898 = vrot.lane.b32.xlu0 %v654, 112
      %v899 = vpop.permute.xlu0 %898
      %900 = vrot.lane.b32.xlu0 %v869, 112
      %v901 = vpop.permute.xlu0 %900
      %vm918 = vcmask 1048448
      %919 = vst.msk [vmem:[#allocation2] sm:$0xff] %vm918, %v871
      %920 = vst.msk [vmem:[#allocation2 + $0x10] sm:$0xff] %vm918, %v873
      %921 = vst.msk [vmem:[#allocation2 + $0x20] sm:$0xff] %vm918, %v875
      %922 = vst.msk [vmem:[#allocation2 + $0x30] sm:$0xff] %vm918, %v877
      %923 = vst.msk [vmem:[#allocation2 + $0x40] sm:$0xff] %vm918, %v879
      %924 = vst.msk [vmem:[#allocation2 + $0x50] sm:$0xff] %vm918, %v881
      %925 = vst.msk [vmem:[#allocation2 + $0x60] sm:$0xff] %vm918, %v883
      %926 = vst.msk [vmem:[#allocation2 + $0x70] sm:$0xff] %vm918, %v885
      %927 = vst.msk [vmem:[#allocation2 + $0x80] sm:$0xff] %vm918, %v887
      %928 = vst.msk [vmem:[#allocation2 + $0x90] sm:$0xff] %vm918, %v889
      %929 = vst.msk [vmem:[#allocation2 + $0xa0] sm:$0xff] %vm918, %v891
      %930 = vst.msk [vmem:[#allocation2 + $0xb0] sm:$0xff] %vm918, %v893
      %931 = vst.msk [vmem:[#allocation2 + $0xc0] sm:$0xff] %vm918, %v895
      %932 = vst.msk [vmem:[#allocation2 + $0xd0] sm:$0xff] %vm918, %v897
      %933 = vst.msk [vmem:[#allocation2 + $0xe0] sm:$0xff] %vm918, %v899
      %934 = vst.msk [vmem:[#allocation2 + $0xf0] sm:$0xff] %vm918, %v901
      %v935 = vrot.slane %v791, 2
      %v936 = vrot.slane %v860, 2
      %v937 = vsel %vm462, %v935, %v936
      %v938 = vrot.slane %v792, 2
      %v939 = vrot.slane %v861, 2
      %v940 = vsel %vm462, %v938, %v939
      %957 = vst.msk [vmem:[#allocation2 + $0x8] sm:$0xff] %vm283, %v471
      %958 = vst.msk [vmem:[#allocation2 + $0x18] sm:$0xff] %vm283, %v474
      %959 = vst.msk [vmem:[#allocation2 + $0x28] sm:$0xff] %vm283, %v477
      %960 = vst.msk [vmem:[#allocation2 + $0x38] sm:$0xff] %vm283, %v480
      %961 = vst.msk [vmem:[#allocation2 + $0x48] sm:$0xff] %vm283, %v483
      %962 = vst.msk [vmem:[#allocation2 + $0x58] sm:$0xff] %vm283, %v486
      %963 = vst.msk [vmem:[#allocation2 + $0x68] sm:$0xff] %vm283, %v722
      %964 = vst.msk [vmem:[#allocation2 + $0x78] sm:$0xff] %vm283, %v937
      %965 = vst.msk [vmem:[#allocation2 + $0x88] sm:$0xff] %vm283, %v495
      %966 = vst.msk [vmem:[#allocation2 + $0x98] sm:$0xff] %vm283, %v498
      %967 = vst.msk [vmem:[#allocation2 + $0xa8] sm:$0xff] %vm283, %v501
      %968 = vst.msk [vmem:[#allocation2 + $0xb8] sm:$0xff] %vm283, %v504
      %969 = vst.msk [vmem:[#allocation2 + $0xc8] sm:$0xff] %vm283, %v507
      %970 = vst.msk [vmem:[#allocation2 + $0xd8] sm:$0xff] %vm283, %v510
      %971 = vst.msk [vmem:[#allocation2 + $0xe8] sm:$0xff] %vm283, %v725
      %972 = vst.msk [vmem:[#allocation2 + $0xf8] sm:$0xff] %vm283, %v940
      %v973 = vld [vmem:[#allocation2] sm:$0xff]
      %v974 = vld [vmem:[#allocation2 + $0x8] sm:$0xff]
      %v975 = vld [vmem:[#allocation2 + $0x10] sm:$0xff]
      %v976 = vld [vmem:[#allocation2 + $0x18] sm:$0xff]
      %v977 = vld [vmem:[#allocation2 + $0x20] sm:$0xff]
      %v978 = vld [vmem:[#allocation2 + $0x28] sm:$0xff]
      %v979 = vld [vmem:[#allocation2 + $0x30] sm:$0xff]
      %v980 = vld [vmem:[#allocation2 + $0x38] sm:$0xff]
      %v981 = vld [vmem:[#allocation2 + $0x40] sm:$0xff]
      %v982 = vld [vmem:[#allocation2 + $0x48] sm:$0xff]
      %v983 = vld [vmem:[#allocation2 + $0x50] sm:$0xff]
      %v984 = vld [vmem:[#allocation2 + $0x58] sm:$0xff]
      %v985 = vld [vmem:[#allocation2 + $0x60] sm:$0xff]
      %v986 = vld [vmem:[#allocation2 + $0x68] sm:$0xff]
      %v987 = vld [vmem:[#allocation2 + $0x70] sm:$0xff]
      %v988 = vld [vmem:[#allocation2 + $0x78] sm:$0xff]
      %v989 = vld [vmem:[#allocation2 + $0x80] sm:$0xff]
      %v990 = vld [vmem:[#allocation2 + $0x88] sm:$0xff]
      %v991 = vld [vmem:[#allocation2 + $0x90] sm:$0xff]
      %v992 = vld [vmem:[#allocation2 + $0x98] sm:$0xff]
      %v993 = vld [vmem:[#allocation2 + $0xa0] sm:$0xff]
      %v994 = vld [vmem:[#allocation2 + $0xa8] sm:$0xff]
      %v995 = vld [vmem:[#allocation2 + $0xb0] sm:$0xff]
      %v996 = vld [vmem:[#allocation2 + $0xb8] sm:$0xff]
      %v997 = vld [vmem:[#allocation2 + $0xc0] sm:$0xff]
      %v998 = vld [vmem:[#allocation2 + $0xc8] sm:$0xff]
      %v999 = vld [vmem:[#allocation2 + $0xd0] sm:$0xff]
      %v1000 = vld [vmem:[#allocation2 + $0xd8] sm:$0xff]
      %v1001 = vld [vmem:[#allocation2 + $0xe0] sm:$0xff]
      %v1002 = vld [vmem:[#allocation2 + $0xe8] sm:$0xff]
      %v1003 = vld [vmem:[#allocation2 + $0xf0] sm:$0xff]
      %v1004 = vld [vmem:[#allocation2 + $0xf8] sm:$0xff]
      %v1005 = vld [vmem:[%s213] sm:$0xff]
      %v1006 = vld [vmem:[%s213 + $0x8] sm:$0xff]
      %v1007 = vld [vmem:[%s213 + $0x10] sm:$0xff]
      %v1008 = vld [vmem:[%s213 + $0x18] sm:$0xff]
      %v1009 = vld [vmem:[%s213 + $0x20] sm:$0xff]
      %v1010 = vld [vmem:[%s213 + $0x28] sm:$0xff]
      %v1011 = vld [vmem:[%s213 + $0x30] sm:$0xff]
      %v1012 = vld [vmem:[%s213 + $0x38] sm:$0xff]
      %v1013 = vld [vmem:[%s213 + $0x40] sm:$0xff]
      %v1014 = vld [vmem:[%s213 + $0x48] sm:$0xff]
      %v1015 = vld [vmem:[%s213 + $0x50] sm:$0xff]
      %v1016 = vld [vmem:[%s213 + $0x58] sm:$0xff]
      %v1017 = vld [vmem:[%s213 + $0x60] sm:$0xff]
      %v1018 = vld [vmem:[%s213 + $0x68] sm:$0xff]
      %v1019 = vld [vmem:[%s213 + $0x70] sm:$0xff]
      %v1020 = vld [vmem:[%s213 + $0x78] sm:$0xff]
      %v1021 = vld [vmem:[%s213 + $0x80] sm:$0xff]
      %v1022 = vld [vmem:[%s213 + $0x88] sm:$0xff]
      %v1024 = vsel %vm283, %v974, 0
      %v1027 = vsel %vm283, %v976, 0
      %v1030 = vsel %vm283, %v978, 0
      %v1033 = vsel %vm283, %v980, 0
      %v1036 = vsel %vm283, %v982, 0
      %v1039 = vsel %vm283, %v984, 0
      %v1042 = vsel %vm283, %v986, 0
      %v1045 = vsel %vm283, %v988, 0
      %v1048 = vsel %vm283, %v990, 0
      %v1051 = vsel %vm283, %v992, 0
      %v1054 = vsel %vm283, %v994, 0
      %v1057 = vsel %vm283, %v996, 0
      %v1060 = vsel %vm283, %v998, 0
      %v1063 = vsel %vm283, %v1000, 0
      %v1066 = vsel %vm283, %v1002, 0
      %v1069 = vsel %vm283, %v1004, 0
      %1071 = vmatpush.msra.mxu0 %v1020
      %1072 = vmatpush.msra.mxu0 %v1019
      %1073 = vmatpush.msra.mxu0 %v1018
      %1074 = vmatpush.msra.mxu0 %v1017
      %1075 = vmatpush.msra.mxu0 %v1016
      %1076 = vmatpush.msra.mxu0 %v1015
      %1077 = vmatpush.msra.mxu0 %v1014
      %1078 = vmatpush.msra.mxu0 %v1013
      %1079 = vmatpush.msra.mxu0 %v1012
      %1080 = vmatpush.msra.mxu0 %v1011
      %1081 = vmatpush.msra.mxu0 %v1010
      %1082 = vmatpush.msra.mxu0 %v1009
      %1083 = vmatpush.msra.mxu0 %v1008
      %1084 = vmatpush.msra.mxu0 %v1007
      %1085 = vmatpush.msra.mxu0 %v1006
      %1086 = vmatpush.msra.mxu0 %v1005
      %1087 = vmatmul.f32.gmra.mxu0 %v973
      %v1088 = vpop.f32.mrf.mxu0
      %v1089 = vadd.f32 0.0, %v1088
      %1090 = vmatmul.f32.gmra.mxu0 %v975
      %v1091 = vpop.f32.mrf.mxu0
      %v1092 = vadd.f32 0.0, %v1091
      %1093 = vmatmul.f32.gmra.mxu0 %v977
      %v1094 = vpop.f32.mrf.mxu0
      %v1095 = vadd.f32 0.0, %v1094
      %1096 = vmatmul.f32.gmra.mxu0 %v979
      %v1097 = vpop.f32.mrf.mxu0
      %v1098 = vadd.f32 0.0, %v1097
      %1099 = vmatmul.f32.gmra.mxu0 %v981
      %v1100 = vpop.f32.mrf.mxu0
      %v1101 = vadd.f32 0.0, %v1100
      %1102 = vmatmul.f32.gmra.mxu0 %v983
      %v1103 = vpop.f32.mrf.mxu0
      %v1104 = vadd.f32 0.0, %v1103
      %1105 = vmatmul.f32.gmra.mxu0 %v985
      %v1106 = vpop.f32.mrf.mxu0
      %v1107 = vadd.f32 0.0, %v1106
      %1108 = vmatmul.f32.gmra.mxu0 %v987
      %v1109 = vpop.f32.mrf.mxu0
      %v1110 = vadd.f32 0.0, %v1109
      %1111 = vmatmul.f32.gmra.mxu0 %v989
      %v1112 = vpop.f32.mrf.mxu0
      %v1113 = vadd.f32 0.0, %v1112
      %1114 = vmatmul.f32.gmra.mxu0 %v991
      %v1115 = vpop.f32.mrf.mxu0
      %v1116 = vadd.f32 0.0, %v1115
      %1117 = vmatmul.f32.gmra.mxu0 %v993
      %v1118 = vpop.f32.mrf.mxu0
      %v1119 = vadd.f32 0.0, %v1118
      %1120 = vmatmul.f32.gmra.mxu0 %v995
      %v1121 = vpop.f32.mrf.mxu0
      %v1122 = vadd.f32 0.0, %v1121
      %1123 = vmatmul.f32.gmra.mxu0 %v997
      %v1124 = vpop.f32.mrf.mxu0
      %v1125 = vadd.f32 0.0, %v1124
      %1126 = vmatmul.f32.gmra.mxu0 %v999
      %v1127 = vpop.f32.mrf.mxu0
      %v1128 = vadd.f32 0.0, %v1127
      %1129 = vmatmul.f32.gmra.mxu0 %v1001
      %v1130 = vpop.f32.mrf.mxu0
      %v1131 = vadd.f32 0.0, %v1130
      %1132 = vmatmul.f32.gmra.mxu0 %v1003
      %v1133 = vpop.f32.mrf.mxu0
      %v1134 = vadd.f32 0.0, %v1133
      %1135 = vdwg.mxu0
      %1136 = vmatpush.msra.mxu0 0.0
      %1137 = vmatpush.msra.mxu0 0.0
      %1138 = vmatpush.msra.mxu0 0.0
      %1139 = vmatpush.msra.mxu0 0.0
      %1140 = vmatpush.msra.mxu0 0.0
      %1141 = vmatpush.msra.mxu0 0.0
      %1142 = vmatpush.msra.mxu0 0.0
      %1143 = vmatpush.msra.mxu0 0.0
      %1144 = vmatpush.msra.mxu0 0.0
      %1145 = vmatpush.msra.mxu0 0.0
      %1146 = vmatpush.msra.mxu0 0.0
      %1147 = vmatpush.msra.mxu0 0.0
      %1148 = vmatpush.msra.mxu0 0.0
      %1149 = vmatpush.msra.mxu0 0.0
      %1150 = vmatpush.msra.mxu0 %v1022
      %1151 = vmatpush.msra.mxu0 %v1021
      %1152 = vmatmul.f32.gmra.mxu0 %v1024
      %v1153 = vpop.f32.mrf.mxu0
      %v1154 = vadd.f32 %v1089, %v1153
      %1155 = vmatmul.f32.gmra.mxu0 %v1027
      %v1156 = vpop.f32.mrf.mxu0
      %v1157 = vadd.f32 %v1092, %v1156
      %1158 = vmatmul.f32.gmra.mxu0 %v1030
      %v1159 = vpop.f32.mrf.mxu0
      %v1160 = vadd.f32 %v1095, %v1159
      %1161 = vmatmul.f32.gmra.mxu0 %v1033
      %v1162 = vpop.f32.mrf.mxu0
      %v1163 = vadd.f32 %v1098, %v1162
      %1164 = vmatmul.f32.gmra.mxu0 %v1036
      %v1165 = vpop.f32.mrf.mxu0
      %v1166 = vadd.f32 %v1101, %v1165
      %1167 = vmatmul.f32.gmra.mxu0 %v1039
      %v1168 = vpop.f32.mrf.mxu0
      %v1169 = vadd.f32 %v1104, %v1168
      %1170 = vmatmul.f32.gmra.mxu0 %v1042
      %v1171 = vpop.f32.mrf.mxu0
      %v1172 = vadd.f32 %v1107, %v1171
      %1173 = vmatmul.f32.gmra.mxu0 %v1045
      %v1174 = vpop.f32.mrf.mxu0
      %v1175 = vadd.f32 %v1110, %v1174
      %1176 = vmatmul.f32.gmra.mxu0 %v1048
      %v1177 = vpop.f32.mrf.mxu0
      %v1178 = vadd.f32 %v1113, %v1177
      %1179 = vmatmul.f32.gmra.mxu0 %v1051
      %v1180 = vpop.f32.mrf.mxu0
      %v1181 = vadd.f32 %v1116, %v1180
      %1182 = vmatmul.f32.gmra.mxu0 %v1054
      %v1183 = vpop.f32.mrf.mxu0
      %v1184 = vadd.f32 %v1119, %v1183
      %1185 = vmatmul.f32.gmra.mxu0 %v1057
      %v1186 = vpop.f32.mrf.mxu0
      %v1187 = vadd.f32 %v1122, %v1186
      %1188 = vmatmul.f32.gmra.mxu0 %v1060
      %v1189 = vpop.f32.mrf.mxu0
      %v1190 = vadd.f32 %v1125, %v1189
      %1191 = vmatmul.f32.gmra.mxu0 %v1063
      %v1192 = vpop.f32.mrf.mxu0
      %v1193 = vadd.f32 %v1128, %v1192
      %1194 = vmatmul.f32.gmra.mxu0 %v1066
      %v1195 = vpop.f32.mrf.mxu0
      %v1196 = vadd.f32 %v1131, %v1195
      %1197 = vmatmul.f32.gmra.mxu0 %v1069
      %v1198 = vpop.f32.mrf.mxu0
      %v1199 = vadd.f32 %v1134, %v1198
      %1200 = vdwg.mxu0
      %v1201 = vld [vmem:[%s216] sm:$0x1]
      %vm1202 = vcmask 261120
      %v1203 = vsel %vm1202, %v1154, 0.0
      %v1204 = vsel %vm1202, %v1157, 0.0
      %v1205 = vadd.f32 %v1203, %v1204
      %v1206 = vsel %vm1202, %v1160, 0.0
      %v1207 = vadd.f32 %v1205, %v1206
      %v1208 = vsel %vm1202, %v1163, 0.0
      %v1209 = vadd.f32 %v1207, %v1208
      %v1210 = vsel %vm1202, %v1166, 0.0
      %v1211 = vadd.f32 %v1209, %v1210
      %v1212 = vsel %vm1202, %v1169, 0.0
      %v1213 = vadd.f32 %v1211, %v1212
      %v1214 = vsel %vm1202, %v1172, 0.0
      %v1215 = vadd.f32 %v1213, %v1214
      %v1216 = vsel %vm1202, %v1175, 0.0
      %v1217 = vadd.f32 %v1215, %v1216
      %v1218 = vsel %vm1202, %v1178, 0.0
      %v1219 = vadd.f32 %v1217, %v1218
      %v1220 = vsel %vm1202, %v1181, 0.0
      %v1221 = vadd.f32 %v1219, %v1220
      %v1222 = vsel %vm1202, %v1184, 0.0
      %v1223 = vadd.f32 %v1221, %v1222
      %v1224 = vsel %vm1202, %v1187, 0.0
      %v1225 = vadd.f32 %v1223, %v1224
      %v1226 = vsel %vm1202, %v1190, 0.0
      %v1227 = vadd.f32 %v1225, %v1226
      %v1228 = vsel %vm1202, %v1193, 0.0
      %v1229 = vadd.f32 %v1227, %v1228
      %v1230 = vsel %vm1202, %v1196, 0.0
      %v1231 = vadd.f32 %v1229, %v1230
      %v1232 = vsel %vm1202, %v1199, 0.0
      %v1233 = vadd.f32 %v1231, %v1232
      %v1234 = vrot.slane %v1233, 4
      %v1235 = vadd.f32 %v1233, %v1234
      %v1236 = vrot.slane %v1235, 2
      %v1237 = vadd.f32 %v1235, %v1236
      %v1238 = vrot.slane %v1237, 1
      %v1239 = vadd.f32 %v1237, %v1238
      %v1240 = vadd.f32 %v1201, %v1239
      %vm1241 = vcmask 253952
      %1242 = vst.msk [vmem:[%s216] sm:$0x1] %vm1241, %v1240
      %v1243 = vld [vmem:[%s219] sm:$0x1]
      %v1244 = vmul.f32 %v1154, %v1154
      %v1245 = vmul.f32 %v1157, %v1157
      %v1246 = vmul.f32 %v1160, %v1160
      %v1247 = vmul.f32 %v1163, %v1163
      %v1248 = vmul.f32 %v1166, %v1166
      %v1249 = vmul.f32 %v1169, %v1169
      %v1250 = vmul.f32 %v1172, %v1172
      %v1251 = vmul.f32 %v1175, %v1175
      %v1252 = vmul.f32 %v1178, %v1178
      %v1253 = vmul.f32 %v1181, %v1181
      %v1254 = vmul.f32 %v1184, %v1184
      %v1255 = vmul.f32 %v1187, %v1187
      %v1256 = vmul.f32 %v1190, %v1190
      %v1257 = vmul.f32 %v1193, %v1193
      %v1258 = vmul.f32 %v1196, %v1196
      %v1259 = vmul.f32 %v1199, %v1199
      %v1260 = vsel %vm1202, %v1244, 0.0
      %v1261 = vsel %vm1202, %v1245, 0.0
      %v1262 = vadd.f32 %v1260, %v1261
      %v1263 = vsel %vm1202, %v1246, 0.0
      %v1264 = vadd.f32 %v1262, %v1263
      %v1265 = vsel %vm1202, %v1247, 0.0
      %v1266 = vadd.f32 %v1264, %v1265
      %v1267 = vsel %vm1202, %v1248, 0.0
      %v1268 = vadd.f32 %v1266, %v1267
      %v1269 = vsel %vm1202, %v1249, 0.0
      %v1270 = vadd.f32 %v1268, %v1269
      %v1271 = vsel %vm1202, %v1250, 0.0
      %v1272 = vadd.f32 %v1270, %v1271
      %v1273 = vsel %vm1202, %v1251, 0.0
      %v1274 = vadd.f32 %v1272, %v1273
      %v1275 = vsel %vm1202, %v1252, 0.0
      %v1276 = vadd.f32 %v1274, %v1275
      %v1277 = vsel %vm1202, %v1253, 0.0
      %v1278 = vadd.f32 %v1276, %v1277
      %v1279 = vsel %vm1202, %v1254, 0.0
      %v1280 = vadd.f32 %v1278, %v1279
      %v1281 = vsel %vm1202, %v1255, 0.0
      %v1282 = vadd.f32 %v1280, %v1281
      %v1283 = vsel %vm1202, %v1256, 0.0
      %v1284 = vadd.f32 %v1282, %v1283
      %v1285 = vsel %vm1202, %v1257, 0.0
      %v1286 = vadd.f32 %v1284, %v1285
      %v1287 = vsel %vm1202, %v1258, 0.0
      %v1288 = vadd.f32 %v1286, %v1287
      %v1289 = vsel %vm1202, %v1259, 0.0
      %v1290 = vadd.f32 %v1288, %v1289
      %v1291 = vrot.slane %v1290, 4
      %v1292 = vadd.f32 %v1290, %v1291
      %v1293 = vrot.slane %v1292, 2
      %v1294 = vadd.f32 %v1292, %v1293
      %v1295 = vrot.slane %v1294, 1
      %v1296 = vadd.f32 %v1294, %v1295
      %v1297 = vadd.f32 %v1243, %v1296
      %1298 = vst.msk [vmem:[%s219] sm:$0x1] %vm1241, %v1297
      %p1299 = scmp.lt.s32.totalorder %s19, 1
      %s1300 = scalar_select %p1299, %s19, 1
      %s1301 = scalar_lea.vmem %s2, %s1300
      %p1302 = scmp.lt.s32.totalorder %s19, 1
      %s1303 = scalar_select %p1302, %s19, 1
      %s1304 = scalar_lea.vmem %s3, %s1303
      // Predicated region
      $region33: #{search_cell_forward.8} parent=27 // pred_check
        %p1305 = pneg %p99
      $region34: #{search_cell_forward.8} parent=27 // pred_check_branch
        %1307 = sbr.rel (%p1305) target = $region36
      $region35: #{search_cell_forward.8} parent=27 // pred_region
        _
      $region36: #{search_cell_forward.8} parent=27 // pred_fallthru
        _
      // Predicated region
      $region37: #{search_cell_forward.8} parent=27 // pred_check
        %p1308 = pneg %p125
      $region38: #{search_cell_forward.8} parent=27 // pred_check_branch
        %1310 = sbr.rel (%p1308) target = $region40
      $region39: #{search_cell_forward.8} parent=27 // pred_region
        _
      $region40: #{search_cell_forward.8} parent=27 // pred_fallthru
        _
    $region28: #{search_cell_forward.8} parent=5 // pred_fallthru
      _
    %p1311 = scmp.le.s32.totalorder 2, %s10
    // Predicated region
    $region41: #{search_cell_forward.8} parent=5 // pred_check
      %p1312 = pneg %p1311
    $region42: #{search_cell_forward.8} parent=5 // pred_check_branch
      %1314 = sbr.rel (%p1312) target = $region44
    $region43: #{search_cell_forward.8} parent=5 // pred_region
      %s1315 = ssub.s32 %s10, 2
      // Predicated region
      $region45: #{search_cell_forward.8} parent=43 // pred_check
        %p1316 = pneg %p105
      $region46: #{search_cell_forward.8} parent=43 // pred_check_branch
        %1318 = sbr.rel (%p1316) target = $region48
      $region47: #{search_cell_forward.8} parent=43 // pred_region
        %p1319 = scmp.lt.s32.totalorder %s21, 1
        %s1320 = scalar_select %p1319, %s21, 1
        %s1321 = scalar_lea.vmem %s2, %s1320
      $region48: #{search_cell_forward.8} parent=43 // pred_fallthru
        _
      // Predicated region
      $region49: #{search_cell_forward.8} parent=43 // pred_check
        %p1322 = pneg %p131
      $region50: #{search_cell_forward.8} parent=43 // pred_check_branch
        %1324 = sbr.rel (%p1322) target = $region52
      $region51: #{search_cell_forward.8} parent=43 // pred_region
        %p1325 = scmp.lt.s32.totalorder %s21, 1
        %s1326 = scalar_select %p1325, %s21, 1
        %s1327 = scalar_lea.vmem %s3, %s1326
      $region52: #{search_cell_forward.8} parent=43 // pred_fallthru
        _
    $region44: #{search_cell_forward.8} parent=5 // pred_fallthru
      _
  $region6: #{search_cell_forward.8} parent=0 // loop_footer
    %s14 = sadd.s32 1, %s10
  $region7: #{search_cell_forward.8} parent=0 // loop_footer_branch
    %9 = sbr.rel target = $region3
  $region8: #{search_cell_forward.8} parent=0 // loop_exit
    _

// kernel: search_cell_forward.7
$region0: #{search_cell_forward.7}
  #allocation0 [shape = 'u32[]', space=smem, size = 0x4, offset = 0x4, fixed_abs, tag = 'smem constant byte address 0x4 - core index']
  #allocation1 [shape = 'u32[72,128]{1,0:T(1,128)}', space=vmem, size = 0x9000, scoped, tag = 'internal scratch']
  #allocation2 [shape = 'f32[128,144]{1,0:T(8,128)}', space=vmem, size = 0x20000, scoped, tag = 'scratch operand']
  %s0 = inlined_call_operand.vmem [shape: f32[2,10,10,16], index: 0, kind: input, shape index: {}]
  %s1 = inlined_call_operand.vmem [shape: f32[1,144,32], index: 1, kind: input, shape index: {}]
  %s2 = inlined_call_operand.vmem [shape: f32[1,4,32], index: 2, kind: input, shape index: {}]
  %s3 = inlined_call_operand.vmem [shape: f32[2,8,8,16], index: 3, kind: output, shape index: {}]
  %s4 = sld [smem:[#allocation0]]
  $region26: #{search_cell_forward.7} parent=0
    _
  %s6 = ssub.s32 1, %s4
  %s7 = scalar_select 0, %s6, %s4
  // Predicated region
  $region2: #{search_cell_forward.7} parent=0 // pred_check
    _
  $region3: #{search_cell_forward.7} parent=0 // pred_check_branch
    %9 = sbr.rel (0) target = $region5
  $region4: #{search_cell_forward.7} parent=0 // pred_region
    %s10 = sadd.s32 0, 0
    %s11 = smul.u32 2, %s10
    %p12 = scmp.lt.s32.totalorder %s11, 1
    %s13 = scalar_select %p12, %s11, 1
    %s14 = smul.addr %s13, 20
    %s15 = smul.addr %s14, 8
    %s16 = scalar_lea.vmem %s0, %s15
    %s17 = sadd.s32 0, 0
    %s18 = smul.u32 2, %s17
  $region5: #{search_cell_forward.7} parent=0 // pred_fallthru
    _
  // Predicated region
  $region6: #{search_cell_forward.7} parent=0 // pred_check
    _
  $region7: #{search_cell_forward.7} parent=0 // pred_check_branch
    %20 = sbr.rel (0) target = $region9
  $region8: #{search_cell_forward.7} parent=0 // pred_region
    _
  $region9: #{search_cell_forward.7} parent=0 // pred_fallthru
    _
  // Predicated region
  $region10: #{search_cell_forward.7} parent=0 // pred_check
    _
  $region11: #{search_cell_forward.7} parent=0 // pred_check_branch
    %22 = sbr.rel (0) target = $region13
  $region12: #{search_cell_forward.7} parent=0 // pred_region
    _
  $region13: #{search_cell_forward.7} parent=0 // pred_fallthru
    _
  %s23 = sadd.s32 0, 0
  %s24 = smul.u32 2, %s23
  %p25 = scmp.lt.s32.totalorder %s24, 1
  %s26 = scalar_select %p25, %s24, 1
  %s27 = smul.addr %s26, 20
  %s28 = smul.addr %s27, 8
  %s29 = scalar_lea.vmem %s0, %s28
  %s30 = sadd.s32 0, 0
  %s31 = smul.u32 2, %s30
  %p32 = scmp.lt.s32.totalorder %s31, 1
  %s33 = scalar_select %p32, %s31, 1
  %s34 = smul.addr %s33, 20
  %s35 = smul.addr %s34, 8
  %s36 = scalar_lea.vmem %s0, %s35
  %s37 = sadd.s32 0, 0
  %s38 = smul.u32 2, %s37
  %v39 = vld [vmem:[%s36] sm:$0xff]
  %v40 = vld [vmem:[%s36 + $0x8] sm:$0x3]
  %v41 = vld [vmem:[%s36 + $0x10] sm:$0xff]
  %v42 = vld [vmem:[%s36 + $0x18] sm:$0x3]
  %v43 = vld [vmem:[%s36 + $0x20] sm:$0xff]
  %v44 = vld [vmem:[%s36 + $0x28] sm:$0x3]
  %v45 = vld [vmem:[%s36 + $0x30] sm:$0xff]
  %v46 = vld [vmem:[%s36 + $0x38] sm:$0x3]
  %v47 = vld [vmem:[%s36 + $0x40] sm:$0xff]
  %v48 = vld [vmem:[%s36 + $0x48] sm:$0x3]
  %v49 = vld [vmem:[%s36 + $0x50] sm:$0xff]
  %v50 = vld [vmem:[%s36 + $0x58] sm:$0x3]
  %v51 = vld [vmem:[%s36 + $0x60] sm:$0xff]
  %v52 = vld [vmem:[%s36 + $0x68] sm:$0x3]
  %v53 = vld [vmem:[%s36 + $0x70] sm:$0xff]
  %v54 = vld [vmem:[%s36 + $0x78] sm:$0x3]
  %v55 = vld [vmem:[%s36 + $0x80] sm:$0xff]
  %v56 = vld [vmem:[%s36 + $0x88] sm:$0x3]
  %v57 = vld [vmem:[%s36 + $0x90] sm:$0xff]
  %v58 = vld [vmem:[%s36 + $0x98] sm:$0x3]
  %v59 = vld [vmem:[%s36 + $0xa0] sm:$0xff]
  %v60 = vld [vmem:[%s36 + $0xa8] sm:$0x3]
  %v61 = vld [vmem:[%s36 + $0xb0] sm:$0xff]
  %v62 = vld [vmem:[%s36 + $0xb8] sm:$0x3]
  %v63 = vld [vmem:[%s36 + $0xc0] sm:$0xff]
  %v64 = vld [vmem:[%s36 + $0xc8] sm:$0x3]
  %v65 = vld [vmem:[%s36 + $0xd0] sm:$0xff]
  %v66 = vld [vmem:[%s36 + $0xd8] sm:$0x3]
  %v67 = vld [vmem:[%s36 + $0xe0] sm:$0xff]
  %v68 = vld [vmem:[%s36 + $0xe8] sm:$0x3]
  %v69 = vld [vmem:[%s36 + $0xf0] sm:$0xff]
  %v70 = vld [vmem:[%s36 + $0xf8] sm:$0x3]
  %v71 = vld [vmem:[%s36 + $0x100] sm:$0xff]
  %v72 = vld [vmem:[%s36 + $0x108] sm:$0x3]
  %v73 = vld [vmem:[%s36 + $0x110] sm:$0xff]
  %v74 = vld [vmem:[%s36 + $0x118] sm:$0x3]
  %v75 = vld [vmem:[%s36 + $0x120] sm:$0xff]
  %v76 = vld [vmem:[%s36 + $0x128] sm:$0x3]
  %v77 = vld [vmem:[%s36 + $0x130] sm:$0xff]
  %v78 = vld [vmem:[%s36 + $0x138] sm:$0x3]
  %v79 = vadd.f32 %v39, 0.0
  %v80 = vadd.f32 %v41, 0.0
  %v81 = vadd.f32 %v43, 0.0
  %v82 = vadd.f32 %v45, 0.0
  %v83 = vadd.f32 %v47, 0.0
  %v84 = vadd.f32 %v49, 0.0
  %v85 = vadd.f32 %v51, 0.0
  %v86 = vadd.f32 %v53, 0.0
  %v87 = vadd.f32 %v59, 0.0
  %v88 = vadd.f32 %v61, 0.0
  %v89 = vadd.f32 %v63, 0.0
  %v90 = vadd.f32 %v65, 0.0
  %v91 = vadd.f32 %v67, 0.0
  %v92 = vadd.f32 %v69, 0.0
  %v93 = vadd.f32 %v71, 0.0
  %v94 = vadd.f32 %v73, 0.0
  %v95 = vmax.f32 %v39, 0.0
  %v96 = vmax.f32 %v41, 0.0
  %v97 = vmax.f32 %v43, 0.0
  %v98 = vmax.f32 %v45, 0.0
  %v99 = vmax.f32 %v47, 0.0
  %v100 = vmax.f32 %v49, 0.0
  %v101 = vmax.f32 %v51, 0.0
  %v102 = vmax.f32 %v53, 0.0
  %v103 = vmax.f32 %v59, 0.0
  %v104 = vmax.f32 %v61, 0.0
  %v105 = vmax.f32 %v63, 0.0
  %v106 = vmax.f32 %v65, 0.0
  %v107 = vmax.f32 %v67, 0.0
  %v108 = vmax.f32 %v69, 0.0
  %v109 = vmax.f32 %v71, 0.0
  %v110 = vmax.f32 %v73, 0.0
  %vm111 = vcmask 130048
  %112 = vst.msk [vmem:[#allocation2] sm:$0xff] %vm111, %v95
  %113 = vst.msk [vmem:[#allocation2 + $0x10] sm:$0xff] %vm111, %v96
  %114 = vst.msk [vmem:[#allocation2 + $0x20] sm:$0xff] %vm111, %v97
  %115 = vst.msk [vmem:[#allocation2 + $0x30] sm:$0xff] %vm111, %v98
  %116 = vst.msk [vmem:[#allocation2 + $0x40] sm:$0xff] %vm111, %v99
  %117 = vst.msk [vmem:[#allocation2 + $0x50] sm:$0xff] %vm111, %v100
  %118 = vst.msk [vmem:[#allocation2 + $0x60] sm:$0xff] %vm111, %v101
  %119 = vst.msk [vmem:[#allocation2 + $0x70] sm:$0xff] %vm111, %v102
  %120 = vst.msk [vmem:[#allocation2 + $0x80] sm:$0xff] %vm111, %v103
  %121 = vst.msk [vmem:[#allocation2 + $0x90] sm:$0xff] %vm111, %v104
  %122 = vst.msk [vmem:[#allocation2 + $0xa0] sm:$0xff] %vm111, %v105
  %123 = vst.msk [vmem:[#allocation2 + $0xb0] sm:$0xff] %vm111, %v106
  %124 = vst.msk [vmem:[#allocation2 + $0xc0] sm:$0xff] %vm111, %v107
  %125 = vst.msk [vmem:[#allocation2 + $0xd0] sm:$0xff] %vm111, %v108
  %126 = vst.msk [vmem:[#allocation2 + $0xe0] sm:$0xff] %vm111, %v109
  %127 = vst.msk [vmem:[#allocation2 + $0xf0] sm:$0xff] %vm111, %v110
  %vm160 = vcmask 1046528
  %v161 = vrot.slane %v39, 1
  %v162 = vrot.slane %v40, 1
  %v163 = vsel %vm160, %v161, %v162
  %v164 = vrot.slane %v41, 1
  %v165 = vrot.slane %v42, 1
  %v166 = vsel %vm160, %v164, %v165
  %v167 = vrot.slane %v43, 1
  %v168 = vrot.slane %v44, 1
  %v169 = vsel %vm160, %v167, %v168
  %v170 = vrot.slane %v45, 1
  %v171 = vrot.slane %v46, 1
  %v172 = vsel %vm160, %v170, %v171
  %v173 = vrot.slane %v47, 1
  %v174 = vrot.slane %v48, 1
  %v175 = vsel %vm160, %v173, %v174
  %v176 = vrot.slane %v49, 1
  %v177 = vrot.slane %v50, 1
  %v178 = vsel %vm160, %v176, %v177
  %v179 = vrot.slane %v51, 1
  %v180 = vrot.slane %v52, 1
  %v181 = vsel %vm160, %v179, %v180
  %v182 = vrot.slane %v53, 1
  %v183 = vrot.slane %v54, 1
  %v184 = vsel %vm160, %v182, %v183
  %v185 = vrot.slane %v59, 1
  %v186 = vrot.slane %v60, 1
  %v187 = vsel %vm160, %v185, %v186
  %v188 = vrot.slane %v61, 1
  %v189 = vrot.slane %v62, 1
  %v190 = vsel %vm160, %v188, %v189
  %v191 = vrot.slane %v63, 1
  %v192 = vrot.slane %v64, 1
  %v193 = vsel %vm160, %v191, %v192
  %v194 = vrot.slane %v65, 1
  %v195 = vrot.slane %v66, 1
  %v196 = vsel %vm160, %v194, %v195
  %v197 = vrot.slane %v67, 1
  %v198 = vrot.slane %v68, 1
  %v199 = vsel %vm160, %v197, %v198
  %v200 = vrot.slane %v69, 1
  %v201 = vrot.slane %v70, 1
  %v202 = vsel %vm160, %v200, %v201
  %v203 = vrot.slane %v71, 1
  %v204 = vrot.slane %v72, 1
  %v205 = vsel %vm160, %v203, %v204
  %v206 = vrot.slane %v73, 1
  %v207 = vrot.slane %v74, 1
  %v208 = vsel %vm160, %v206, %v207
  %v225 = vadd.f32 %v79, %v163
  %v226 = vadd.f32 %v80, %v166
  %v227 = vadd.f32 %v81, %v169
  %v228 = vadd.f32 %v82, %v172
  %v229 = vadd.f32 %v83, %v175
  %v230 = vadd.f32 %v84, %v178
  %v231 = vadd.f32 %v85, %v181
  %v232 = vadd.f32 %v86, %v184
  %v233 = vadd.f32 %v87, %v187
  %v234 = vadd.f32 %v88, %v190
  %v235 = vadd.f32 %v89, %v193
  %v236 = vadd.f32 %v90, %v196
  %v237 = vadd.f32 %v91, %v199
  %v238 = vadd.f32 %v92, %v202
  %v239 = vadd.f32 %v93, %v205
  %v240 = vadd.f32 %v94, %v208
  %v241 = vmax.f32 %v40, 0.0
  %v242 = vmax.f32 %v42, 0.0
  %v243 = vmax.f32 %v44, 0.0
  %v244 = vmax.f32 %v46, 0.0
  %v245 = vmax.f32 %v48, 0.0
  %v246 = vmax.f32 %v50, 0.0
  %v247 = vmax.f32 %v52, 0.0
  %v248 = vmax.f32 %v54, 0.0
  %v249 = vmax.f32 %v60, 0.0
  %v250 = vmax.f32 %v62, 0.0
  %v251 = vmax.f32 %v64, 0.0
  %v252 = vmax.f32 %v66, 0.0
  %v253 = vmax.f32 %v68, 0.0
  %v254 = vmax.f32 %v70, 0.0
  %v255 = vmax.f32 %v72, 0.0
  %v256 = vmax.f32 %v74, 0.0
  %v289 = vrot.slane %v95, 1
  %v290 = vrot.slane %v241, 1
  %v291 = vsel %vm160, %v289, %v290
  %v292 = vrot.slane %v96, 1
  %v293 = vrot.slane %v242, 1
  %v294 = vsel %vm160, %v292, %v293
  %v295 = vrot.slane %v97, 1
  %v296 = vrot.slane %v243, 1
  %v297 = vsel %vm160, %v295, %v296
  %v298 = vrot.slane %v98, 1
  %v299 = vrot.slane %v244, 1
  %v300 = vsel %vm160, %v298, %v299
  %v301 = vrot.slane %v99, 1
  %v302 = vrot.slane %v245, 1
  %v303 = vsel %vm160, %v301, %v302
  %v304 = vrot.slane %v100, 1
  %v305 = vrot.slane %v246, 1
  %v306 = vsel %vm160, %v304, %v305
  %v307 = vrot.slane %v101, 1
  %v308 = vrot.slane %v247, 1
  %v309 = vsel %vm160, %v307, %v308
  %v310 = vrot.slane %v102, 1
  %v311 = vrot.slane %v248, 1
  %v312 = vsel %vm160, %v310, %v311
  %v313 = vrot.slane %v103, 1
  %v314 = vrot.slane %v249, 1
  %v315 = vsel %vm160, %v313, %v314
  %v316 = vrot.slane %v104, 1
  %v317 = vrot.slane %v250, 1
  %v318 = vsel %vm160, %v316, %v317
  %v319 = vrot.slane %v105, 1
  %v320 = vrot.slane %v251, 1
  %v321 = vsel %vm160, %v319, %v320
  %v322 = vrot.slane %v106, 1
  %v323 = vrot.slane %v252, 1
  %v324 = vsel %vm160, %v322, %v323
  %v325 = vrot.slane %v107, 1
  %v326 = vrot.slane %v253, 1
  %v327 = vsel %vm160, %v325, %v326
  %v328 = vrot.slane %v108, 1
  %v329 = vrot.slane %v254, 1
  %v330 = vsel %vm160, %v328, %v329
  %v331 = vrot.slane %v109, 1
  %v332 = vrot.slane %v255, 1
  %v333 = vsel %vm160, %v331, %v332
  %v334 = vrot.slane %v110, 1
  %v335 = vrot.slane %v256, 1
  %v336 = vsel %vm160, %v334, %v335
  %337 = vrot.lane.b32.xlu0 %v291, 16
  %v338 = vpop.permute.xlu0 %337
  %339 = vrot.lane.b32.xlu0 %v294, 16
  %v340 = vpop.permute.xlu0 %339
  %341 = vrot.lane.b32.xlu0 %v297, 16
  %v342 = vpop.permute.xlu0 %341
  %343 = vrot.lane.b32.xlu0 %v300, 16
  %v344 = vpop.permute.xlu0 %343
  %345 = vrot.lane.b32.xlu0 %v303, 16
  %v346 = vpop.permute.xlu0 %345
  %347 = vrot.lane.b32.xlu0 %v306, 16
  %v348 = vpop.permute.xlu0 %347
  %349 = vrot.lane.b32.xlu0 %v309, 16
  %v350 = vpop.permute.xlu0 %349
  %351 = vrot.lane.b32.xlu0 %v312, 16
  %v352 = vpop.permute.xlu0 %351
  %353 = vrot.lane.b32.xlu0 %v315, 16
  %v354 = vpop.permute.xlu0 %353
  %355 = vrot.lane.b32.xlu0 %v318, 16
  %v356 = vpop.permute.xlu0 %355
  %357 = vrot.lane.b32.xlu0 %v321, 16
  %v358 = vpop.permute.xlu0 %357
  %359 = vrot.lane.b32.xlu0 %v324, 16
  %v360 = vpop.permute.xlu0 %359
  %361 = vrot.lane.b32.xlu0 %v327, 16
  %v362 = vpop.permute.xlu0 %361
  %363 = vrot.lane.b32.xlu0 %v330, 16
  %v364 = vpop.permute.xlu0 %363
  %365 = vrot.lane.b32.xlu0 %v333, 16
  %v366 = vpop.permute.xlu0 %365
  %367 = vrot.lane.b32.xlu0 %v336, 16
  %v368 = vpop.permute.xlu0 %367
  %vm385 = vcmask 261248
  %386 = vst.msk [vmem:[#allocation2] sm:$0xff] %vm385, %v338
  %387 = vst.msk [vmem:[#allocation2 + $0x10] sm:$0xff] %vm385, %v340
  %388 = vst.msk [vmem:[#allocation2 + $0x20] sm:$0xff] %vm385, %v342
  %389 = vst.msk [vmem:[#allocation2 + $0x30] sm:$0xff] %vm385, %v344
  %390 = vst.msk [vmem:[#allocation2 + $0x40] sm:$0xff] %vm385, %v346
  %391 = vst.msk [vmem:[#allocation2 + $0x50] sm:$0xff] %vm385, %v348
  %392 = vst.msk [vmem:[#allocation2 + $0x60] sm:$0xff] %vm385, %v350
  %393 = vst.msk [vmem:[#allocation2 + $0x70] sm:$0xff] %vm385, %v352
  %394 = vst.msk [vmem:[#allocation2 + $0x80] sm:$0xff] %vm385, %v354
  %395 = vst.msk [vmem:[#allocation2 + $0x90] sm:$0xff] %vm385, %v356
  %396 = vst.msk [vmem:[#allocation2 + $0xa0] sm:$0xff] %vm385, %v358
  %397 = vst.msk [vmem:[#allocation2 + $0xb0] sm:$0xff] %vm385, %v360
  %398 = vst.msk [vmem:[#allocation2 + $0xc0] sm:$0xff] %vm385, %v362
  %399 = vst.msk [vmem:[#allocation2 + $0xd0] sm:$0xff] %vm385, %v364
  %400 = vst.msk [vmem:[#allocation2 + $0xe0] sm:$0xff] %vm385, %v366
  %401 = vst.msk [vmem:[#allocation2 + $0xf0] sm:$0xff] %vm385, %v368
  %vm402 = vcmask 1045504
  %v403 = vrot.slane %v39, 2
  %v404 = vrot.slane %v40, 2
  %v405 = vsel %vm402, %v403, %v404
  %v406 = vrot.slane %v41, 2
  %v407 = vrot.slane %v42, 2
  %v408 = vsel %vm402, %v406, %v407
  %v409 = vrot.slane %v43, 2
  %v410 = vrot.slane %v44, 2
  %v411 = vsel %vm402, %v409, %v410
  %v412 = vrot.slane %v45, 2
  %v413 = vrot.slane %v46, 2
  %v414 = vsel %vm402, %v412, %v413
  %v415 = vrot.slane %v47, 2
  %v416 = vrot.slane %v48, 2
  %v417 = vsel %vm402, %v415, %v416
  %v418 = vrot.slane %v49, 2
  %v419 = vrot.slane %v50, 2
  %v420 = vsel %vm402, %v418, %v419
  %v421 = vrot.slane %v51, 2
  %v422 = vrot.slane %v52, 2
  %v423 = vsel %vm402, %v421, %v422
  %v424 = vrot.slane %v53, 2
  %v425 = vrot.slane %v54, 2
  %v426 = vsel %vm402, %v424, %v425
  %v427 = vrot.slane %v59, 2
  %v428 = vrot.slane %v60, 2
  %v429 = vsel %vm402, %v427, %v428
  %v430 = vrot.slane %v61, 2
  %v431 = vrot.slane %v62, 2
  %v432 = vsel %vm402, %v430, %v431
  %v433 = vrot.slane %v63, 2
  %v434 = vrot.slane %v64, 2
  %v435 = vsel %vm402, %v433, %v434
  %v436 = vrot.slane %v65, 2
  %v437 = vrot.slane %v66, 2
  %v438 = vsel %vm402, %v436, %v437
  %v439 = vrot.slane %v67, 2
  %v440 = vrot.slane %v68, 2
  %v441 = vsel %vm402, %v439, %v440
  %v442 = vrot.slane %v69, 2
  %v443 = vrot.slane %v70, 2
  %v444 = vsel %vm402, %v442, %v443
  %v445 = vrot.slane %v71, 2
  %v446 = vrot.slane %v72, 2
  %v447 = vsel %vm402, %v445, %v446
  %v448 = vrot.slane %v73, 2
  %v449 = vrot.slane %v74, 2
  %v450 = vsel %vm402, %v448, %v449
  %v467 = vadd.f32 %v225, %v405
  %v468 = vadd.f32 %v226, %v408
  %v469 = vadd.f32 %v227, %v411
  %v470 = vadd.f32 %v228, %v414
  %v471 = vadd.f32 %v229, %v417
  %v472 = vadd.f32 %v230, %v420
  %v473 = vadd.f32 %v231, %v423
  %v474 = vadd.f32 %v232, %v426
  %v475 = vadd.f32 %v233, %v429
  %v476 = vadd.f32 %v234, %v432
  %v477 = vadd.f32 %v235, %v435
  %v478 = vadd.f32 %v236, %v438
  %v479 = vadd.f32 %v237, %v441
  %v480 = vadd.f32 %v238, %v444
  %v481 = vadd.f32 %v239, %v447
  %v482 = vadd.f32 %v240, %v450
  %v483 = vrot.slane %v95, 2
  %v484 = vrot.slane %v241, 2
  %v485 = vsel %vm402, %v483, %v484
  %v486 = vrot.slane %v96, 2
  %v487 = vrot.slane %v242, 2
  %v488 = vsel %vm402, %v486, %v487
  %v489 = vrot.slane %v97, 2
  %v490 = vrot.slane %v243, 2
  %v491 = vsel %vm402, %v489, %v490
  %v492 = vrot.slane %v98, 2
  %v493 = vrot.slane %v244, 2
  %v494 = vsel %vm402, %v492, %v493
  %v495 = vrot.slane %v99, 2
  %v496 = vrot.slane %v245, 2
  %v497 = vsel %vm402, %v495, %v496
  %v498 = vrot.slane %v100, 2
  %v499 = vrot.slane %v246, 2
  %v500 = vsel %vm402, %v498, %v499
  %v501 = vrot.slane %v101, 2
  %v502 = vrot.slane %v247, 2
  %v503 = vsel %vm402, %v501, %v502
  %v504 = vrot.slane %v102, 2
  %v505 = vrot.slane %v248, 2
  %v506 = vsel %vm402, %v504, %v505
  %v507 = vrot.slane %v103, 2
  %v508 = vrot.slane %v249, 2
  %v509 = vsel %vm402, %v507, %v508
  %v510 = vrot.slane %v104, 2
  %v511 = vrot.slane %v250, 2
  %v512 = vsel %vm402, %v510, %v511
  %v513 = vrot.slane %v105, 2
  %v514 = vrot.slane %v251, 2
  %v515 = vsel %vm402, %v513, %v514
  %v516 = vrot.slane %v106, 2
  %v517 = vrot.slane %v252, 2
  %v518 = vsel %vm402, %v516, %v517
  %v519 = vrot.slane %v107, 2
  %v520 = vrot.slane %v253, 2
  %v521 = vsel %vm402, %v519, %v520
  %v522 = vrot.slane %v108, 2
  %v523 = vrot.slane %v254, 2
  %v524 = vsel %vm402, %v522, %v523
  %v525 = vrot.slane %v109, 2
  %v526 = vrot.slane %v255, 2
  %v527 = vsel %vm402, %v525, %v526
  %v528 = vrot.slane %v110, 2
  %v529 = vrot.slane %v256, 2
  %v530 = vsel %vm402, %v528, %v529
  %531 = vrot.lane.b32.xlu0 %v485, 32
  %v532 = vpop.permute.xlu0 %531
  %533 = vrot.lane.b32.xlu0 %v488, 32
  %v534 = vpop.permute.xlu0 %533
  %535 = vrot.lane.b32.xlu0 %v491, 32
  %v536 = vpop.permute.xlu0 %535
  %537 = vrot.lane.b32.xlu0 %v494, 32
  %v538 = vpop.permute.xlu0 %537
  %539 = vrot.lane.b32.xlu0 %v497, 32
  %v540 = vpop.permute.xlu0 %539
  %541 = vrot.lane.b32.xlu0 %v500, 32
  %v542 = vpop.permute.xlu0 %541
  %543 = vrot.lane.b32.xlu0 %v503, 32
  %v544 = vpop.permute.xlu0 %543
  %545 = vrot.lane.b32.xlu0 %v506, 32
  %v546 = vpop.permute.xlu0 %545
  %547 = vrot.lane.b32.xlu0 %v509, 32
  %v548 = vpop.permute.xlu0 %547
  %549 = vrot.lane.b32.xlu0 %v512, 32
  %v550 = vpop.permute.xlu0 %549
  %551 = vrot.lane.b32.xlu0 %v515, 32
  %v552 = vpop.permute.xlu0 %551
  %553 = vrot.lane.b32.xlu0 %v518, 32
  %v554 = vpop.permute.xlu0 %553
  %555 = vrot.lane.b32.xlu0 %v521, 32
  %v556 = vpop.permute.xlu0 %555
  %557 = vrot.lane.b32.xlu0 %v524, 32
  %v558 = vpop.permute.xlu0 %557
  %559 = vrot.lane.b32.xlu0 %v527, 32
  %v560 = vpop.permute.xlu0 %559
  %561 = vrot.lane.b32.xlu0 %v530, 32
  %v562 = vpop.permute.xlu0 %561
  %vm579 = vcmask 392448
  %580 = vst.msk [vmem:[#allocation2] sm:$0xff] %vm579, %v532
  %581 = vst.msk [vmem:[#allocation2 + $0x10] sm:$0xff] %vm579, %v534
  %582 = vst.msk [vmem:[#allocation2 + $0x20] sm:$0xff] %vm579, %v536
  %583 = vst.msk [vmem:[#allocation2 + $0x30] sm:$0xff] %vm579, %v538
  %584 = vst.msk [vmem:[#allocation2 + $0x40] sm:$0xff] %vm579, %v540
  %585 = vst.msk [vmem:[#allocation2 + $0x50] sm:$0xff] %vm579, %v542
  %586 = vst.msk [vmem:[#allocation2 + $0x60] sm:$0xff] %vm579, %v544
  %587 = vst.msk [vmem:[#allocation2 + $0x70] sm:$0xff] %vm579, %v546
  %588 = vst.msk [vmem:[#allocation2 + $0x80] sm:$0xff] %vm579, %v548
  %589 = vst.msk [vmem:[#allocation2 + $0x90] sm:$0xff] %vm579, %v550
  %590 = vst.msk [vmem:[#allocation2 + $0xa0] sm:$0xff] %vm579, %v552
  %591 = vst.msk [vmem:[#allocation2 + $0xb0] sm:$0xff] %vm579, %v554
  %592 = vst.msk [vmem:[#allocation2 + $0xc0] sm:$0xff] %vm579, %v556
  %593 = vst.msk [vmem:[#allocation2 + $0xd0] sm:$0xff] %vm579, %v558
  %594 = vst.msk [vmem:[#allocation2 + $0xe0] sm:$0xff] %vm579, %v560
  %595 = vst.msk [vmem:[#allocation2 + $0xf0] sm:$0xff] %vm579, %v562
  %v596 = vadd.f32 %v467, %v41
  %v597 = vadd.f32 %v468, %v43
  %v598 = vadd.f32 %v469, %v45
  %v599 = vadd.f32 %v470, %v47
  %v600 = vadd.f32 %v471, %v49
  %v601 = vadd.f32 %v472, %v51
  %v602 = vadd.f32 %v473, %v53
  %v603 = vadd.f32 %v474, %v55
  %v604 = vadd.f32 %v475, %v61
  %v605 = vadd.f32 %v476, %v63
  %v606 = vadd.f32 %v477, %v65
  %v607 = vadd.f32 %v478, %v67
  %v608 = vadd.f32 %v479, %v69
  %v609 = vadd.f32 %v480, %v71
  %v610 = vadd.f32 %v481, %v73
  %v611 = vadd.f32 %v482, %v75
  %v612 = vmax.f32 %v55, 0.0
  %v613 = vmax.f32 %v75, 0.0
  %616 = vrot.lane.b32.xlu0 %v96, 48
  %v617 = vpop.permute.xlu0 %616
  %618 = vrot.lane.b32.xlu0 %v97, 48
  %v619 = vpop.permute.xlu0 %618
  %620 = vrot.lane.b32.xlu0 %v98, 48
  %v621 = vpop.permute.xlu0 %620
  %622 = vrot.lane.b32.xlu0 %v99, 48
  %v623 = vpop.permute.xlu0 %622
  %624 = vrot.lane.b32.xlu0 %v100, 48
  %v625 = vpop.permute.xlu0 %624
  %626 = vrot.lane.b32.xlu0 %v101, 48
  %v627 = vpop.permute.xlu0 %626
  %628 = vrot.lane.b32.xlu0 %v102, 48
  %v629 = vpop.permute.xlu0 %628
  %630 = vrot.lane.b32.xlu0 %v612, 48
  %v631 = vpop.permute.xlu0 %630
  %632 = vrot.lane.b32.xlu0 %v104, 48
  %v633 = vpop.permute.xlu0 %632
  %634 = vrot.lane.b32.xlu0 %v105, 48
  %v635 = vpop.permute.xlu0 %634
  %636 = vrot.lane.b32.xlu0 %v106, 48
  %v637 = vpop.permute.xlu0 %636
  %638 = vrot.lane.b32.xlu0 %v107, 48
  %v639 = vpop.permute.xlu0 %638
  %640 = vrot.lane.b32.xlu0 %v108, 48
  %v641 = vpop.permute.xlu0 %640
  %642 = vrot.lane.b32.xlu0 %v109, 48
  %v643 = vpop.permute.xlu0 %642
  %644 = vrot.lane.b32.xlu0 %v110, 48
  %v645 = vpop.permute.xlu0 %644
  %646 = vrot.lane.b32.xlu0 %v613, 48
  %v647 = vpop.permute.xlu0 %646
  %vm664 = vcmask 523648
  %665 = vst.msk [vmem:[#allocation2] sm:$0xff] %vm664, %v617
  %666 = vst.msk [vmem:[#allocation2 + $0x10] sm:$0xff] %vm664, %v619
  %667 = vst.msk [vmem:[#allocation2 + $0x20] sm:$0xff] %vm664, %v621
  %668 = vst.msk [vmem:[#allocation2 + $0x30] sm:$0xff] %vm664, %v623
  %669 = vst.msk [vmem:[#allocation2 + $0x40] sm:$0xff] %vm664, %v625
  %670 = vst.msk [vmem:[#allocation2 + $0x50] sm:$0xff] %vm664, %v627
  %671 = vst.msk [vmem:[#allocation2 + $0x60] sm:$0xff] %vm664, %v629
  %672 = vst.msk [vmem:[#allocation2 + $0x70] sm:$0xff] %vm664, %v631
  %673 = vst.msk [vmem:[#allocation2 + $0x80] sm:$0xff] %vm664, %v633
  %674 = vst.msk [vmem:[#allocation2 + $0x90] sm:$0xff] %vm664, %v635
  %675 = vst.msk [vmem:[#allocation2 + $0xa0] sm:$0xff] %vm664, %v637
  %676 = vst.msk [vmem:[#allocation2 + $0xb0] sm:$0xff] %vm664, %v639
  %677 = vst.msk [vmem:[#allocation2 + $0xc0] sm:$0xff] %vm664, %v641
  %678 = vst.msk [vmem:[#allocation2 + $0xd0] sm:$0xff] %vm664, %v643
  %679 = vst.msk [vmem:[#allocation2 + $0xe0] sm:$0xff] %vm664, %v645
  %680 = vst.msk [vmem:[#allocation2 + $0xf0] sm:$0xff] %vm664, %v647
  %v685 = vrot.slane %v55, 1
  %v686 = vrot.slane %v56, 1
  %v687 = vsel %vm160, %v685, %v686
  %v688 = vrot.slane %v75, 1
  %v689 = vrot.slane %v76, 1
  %v690 = vsel %vm160, %v688, %v689
  %v693 = vadd.f32 %v596, %v166
  %v694 = vadd.f32 %v597, %v169
  %v695 = vadd.f32 %v598, %v172
  %v696 = vadd.f32 %v599, %v175
  %v697 = vadd.f32 %v600, %v178
  %v698 = vadd.f32 %v601, %v181
  %v699 = vadd.f32 %v602, %v184
  %v700 = vadd.f32 %v603, %v687
  %v701 = vadd.f32 %v604, %v190
  %v702 = vadd.f32 %v605, %v193
  %v703 = vadd.f32 %v606, %v196
  %v704 = vadd.f32 %v607, %v199
  %v705 = vadd.f32 %v608, %v202
  %v706 = vadd.f32 %v609, %v205
  %v707 = vadd.f32 %v610, %v208
  %v708 = vadd.f32 %v611, %v690
  %v709 = vmax.f32 %v56, 0.0
  %v710 = vmax.f32 %v76, 0.0
  %v713 = vrot.slane %v612, 1
  %v714 = vrot.slane %v709, 1
  %v715 = vsel %vm160, %v713, %v714
  %v716 = vrot.slane %v613, 1
  %v717 = vrot.slane %v710, 1
  %v718 = vsel %vm160, %v716, %v717
  %719 = vrot.lane.b32.xlu0 %v294, 64
  %v720 = vpop.permute.xlu0 %719
  %721 = vrot.lane.b32.xlu0 %v297, 64
  %v722 = vpop.permute.xlu0 %721
  %723 = vrot.lane.b32.xlu0 %v300, 64
  %v724 = vpop.permute.xlu0 %723
  %725 = vrot.lane.b32.xlu0 %v303, 64
  %v726 = vpop.permute.xlu0 %725
  %727 = vrot.lane.b32.xlu0 %v306, 64
  %v728 = vpop.permute.xlu0 %727
  %729 = vrot.lane.b32.xlu0 %v309, 64
  %v730 = vpop.permute.xlu0 %729
  %731 = vrot.lane.b32.xlu0 %v312, 64
  %v732 = vpop.permute.xlu0 %731
  %733 = vrot.lane.b32.xlu0 %v715, 64
  %v734 = vpop.permute.xlu0 %733
  %735 = vrot.lane.b32.xlu0 %v318, 64
  %v736 = vpop.permute.xlu0 %735
  %737 = vrot.lane.b32.xlu0 %v321, 64
  %v738 = vpop.permute.xlu0 %737
  %739 = vrot.lane.b32.xlu0 %v324, 64
  %v740 = vpop.permute.xlu0 %739
  %741 = vrot.lane.b32.xlu0 %v327, 64
  %v742 = vpop.permute.xlu0 %741
  %743 = vrot.lane.b32.xlu0 %v330, 64
  %v744 = vpop.permute.xlu0 %743
  %745 = vrot.lane.b32.xlu0 %v333, 64
  %v746 = vpop.permute.xlu0 %745
  %747 = vrot.lane.b32.xlu0 %v336, 64
  %v748 = vpop.permute.xlu0 %747
  %749 = vrot.lane.b32.xlu0 %v718, 64
  %v750 = vpop.permute.xlu0 %749
  %vm767 = vcmask 654848
  %768 = vst.msk [vmem:[#allocation2] sm:$0xff] %vm767, %v720
  %769 = vst.msk [vmem:[#allocation2 + $0x10] sm:$0xff] %vm767, %v722
  %770 = vst.msk [vmem:[#allocation2 + $0x20] sm:$0xff] %vm767, %v724
  %771 = vst.msk [vmem:[#allocation2 + $0x30] sm:$0xff] %vm767, %v726
  %772 = vst.msk [vmem:[#allocation2 + $0x40] sm:$0xff] %vm767, %v728
  %773 = vst.msk [vmem:[#allocation2 + $0x50] sm:$0xff] %vm767, %v730
  %774 = vst.msk [vmem:[#allocation2 + $0x60] sm:$0xff] %vm767, %v732
  %775 = vst.msk [vmem:[#allocation2 + $0x70] sm:$0xff] %vm767, %v734
  %776 = vst.msk [vmem:[#allocation2 + $0x80] sm:$0xff] %vm767, %v736
  %777 = vst.msk [vmem:[#allocation2 + $0x90] sm:$0xff] %vm767, %v738
  %778 = vst.msk [vmem:[#allocation2 + $0xa0] sm:$0xff] %vm767, %v740
  %779 = vst.msk [vmem:[#allocation2 + $0xb0] sm:$0xff] %vm767, %v742
  %780 = vst.msk [vmem:[#allocation2 + $0xc0] sm:$0xff] %vm767, %v744
  %781 = vst.msk [vmem:[#allocation2 + $0xd0] sm:$0xff] %vm767, %v746
  %782 = vst.msk [vmem:[#allocation2 + $0xe0] sm:$0xff] %vm767, %v748
  %783 = vst.msk [vmem:[#allocation2 + $0xf0] sm:$0xff] %vm767, %v750
  %v784 = vrot.slane %v55, 2
  %v785 = vrot.slane %v56, 2
  %v786 = vsel %vm402, %v784, %v785
  %v787 = vrot.slane %v75, 2
  %v788 = vrot.slane %v76, 2
  %v789 = vsel %vm402, %v787, %v788
  %v792 = vadd.f32 %v693, %v408
  %v793 = vadd.f32 %v694, %v411
  %v794 = vadd.f32 %v695, %v414
  %v795 = vadd.f32 %v696, %v417
  %v796 = vadd.f32 %v697, %v420
  %v797 = vadd.f32 %v698, %v423
  %v798 = vadd.f32 %v699, %v426
  %v799 = vadd.f32 %v700, %v786
  %v800 = vadd.f32 %v701, %v432
  %v801 = vadd.f32 %v702, %v435
  %v802 = vadd.f32 %v703, %v438
  %v803 = vadd.f32 %v704, %v441
  %v804 = vadd.f32 %v705, %v444
  %v805 = vadd.f32 %v706, %v447
  %v806 = vadd.f32 %v707, %v450
  %v807 = vadd.f32 %v708, %v789
  %v808 = vrot.slane %v612, 2
  %v809 = vrot.slane %v709, 2
  %v810 = vsel %vm402, %v808, %v809
  %v811 = vrot.slane %v613, 2
  %v812 = vrot.slane %v710, 2
  %v813 = vsel %vm402, %v811, %v812
  %814 = vrot.lane.b32.xlu0 %v488, 80
  %v815 = vpop.permute.xlu0 %814
  %816 = vrot.lane.b32.xlu0 %v491, 80
  %v817 = vpop.permute.xlu0 %816
  %818 = vrot.lane.b32.xlu0 %v494, 80
  %v819 = vpop.permute.xlu0 %818
  %820 = vrot.lane.b32.xlu0 %v497, 80
  %v821 = vpop.permute.xlu0 %820
  %822 = vrot.lane.b32.xlu0 %v500, 80
  %v823 = vpop.permute.xlu0 %822
  %824 = vrot.lane.b32.xlu0 %v503, 80
  %v825 = vpop.permute.xlu0 %824
  %826 = vrot.lane.b32.xlu0 %v506, 80
  %v827 = vpop.permute.xlu0 %826
  %828 = vrot.lane.b32.xlu0 %v810, 80
  %v829 = vpop.permute.xlu0 %828
  %830 = vrot.lane.b32.xlu0 %v512, 80
  %v831 = vpop.permute.xlu0 %830
  %832 = vrot.lane.b32.xlu0 %v515, 80
  %v833 = vpop.permute.xlu0 %832
  %834 = vrot.lane.b32.xlu0 %v518, 80
  %v835 = vpop.permute.xlu0 %834
  %836 = vrot.lane.b32.xlu0 %v521, 80
  %v837 = vpop.permute.xlu0 %836
  %838 = vrot.lane.b32.xlu0 %v524, 80
  %v839 = vpop.permute.xlu0 %838
  %840 = vrot.lane.b32.xlu0 %v527, 80
  %v841 = vpop.permute.xlu0 %840
  %842 = vrot.lane.b32.xlu0 %v530, 80
  %v843 = vpop.permute.xlu0 %842
  %844 = vrot.lane.b32.xlu0 %v813, 80
  %v845 = vpop.permute.xlu0 %844
  %vm862 = vcmask 786048
  %863 = vst.msk [vmem:[#allocation2] sm:$0xff] %vm862, %v815
  %864 = vst.msk [vmem:[#allocation2 + $0x10] sm:$0xff] %vm862, %v817
  %865 = vst.msk [vmem:[#allocation2 + $0x20] sm:$0xff] %vm862, %v819
  %866 = vst.msk [vmem:[#allocation2 + $0x30] sm:$0xff] %vm862, %v821
  %867 = vst.msk [vmem:[#allocation2 + $0x40] sm:$0xff] %vm862, %v823
  %868 = vst.msk [vmem:[#allocation2 + $0x50] sm:$0xff] %vm862, %v825
  %869 = vst.msk [vmem:[#allocation2 + $0x60] sm:$0xff] %vm862, %v827
  %870 = vst.msk [vmem:[#allocation2 + $0x70] sm:$0xff] %vm862, %v829
  %871 = vst.msk [vmem:[#allocation2 + $0x80] sm:$0xff] %vm862, %v831
  %872 = vst.msk [vmem:[#allocation2 + $0x90] sm:$0xff] %vm862, %v833
  %873 = vst.msk [vmem:[#allocation2 + $0xa0] sm:$0xff] %vm862, %v835
  %874 = vst.msk [vmem:[#allocation2 + $0xb0] sm:$0xff] %vm862, %v837
  %875 = vst.msk [vmem:[#allocation2 + $0xc0] sm:$0xff] %vm862, %v839
  %876 = vst.msk [vmem:[#allocation2 + $0xd0] sm:$0xff] %vm862, %v841
  %877 = vst.msk [vmem:[#allocation2 + $0xe0] sm:$0xff] %vm862, %v843
  %878 = vst.msk [vmem:[#allocation2 + $0xf0] sm:$0xff] %vm862, %v845
  %v879 = vadd.f32 %v792, %v43
  %v880 = vadd.f32 %v793, %v45
  %v881 = vadd.f32 %v794, %v47
  %v882 = vadd.f32 %v795, %v49
  %v883 = vadd.f32 %v796, %v51
  %v884 = vadd.f32 %v797, %v53
  %v885 = vadd.f32 %v798, %v55
  %v886 = vadd.f32 %v799, %v57
  %v887 = vadd.f32 %v800, %v63
  %v888 = vadd.f32 %v801, %v65
  %v889 = vadd.f32 %v802, %v67
  %v890 = vadd.f32 %v803, %v69
  %v891 = vadd.f32 %v804, %v71
  %v892 = vadd.f32 %v805, %v73
  %v893 = vadd.f32 %v806, %v75
  %v894 = vadd.f32 %v807, %v77
  %v895 = vmax.f32 %v57, 0.0
  %v896 = vmax.f32 %v77, 0.0
  %899 = vrot.lane.b32.xlu0 %v97, 96
  %v900 = vpop.permute.xlu0 %899
  %901 = vrot.lane.b32.xlu0 %v98, 96
  %v902 = vpop.permute.xlu0 %901
  %903 = vrot.lane.b32.xlu0 %v99, 96
  %v904 = vpop.permute.xlu0 %903
  %905 = vrot.lane.b32.xlu0 %v100, 96
  %v906 = vpop.permute.xlu0 %905
  %907 = vrot.lane.b32.xlu0 %v101, 96
  %v908 = vpop.permute.xlu0 %907
  %909 = vrot.lane.b32.xlu0 %v102, 96
  %v910 = vpop.permute.xlu0 %909
  %911 = vrot.lane.b32.xlu0 %v612, 96
  %v912 = vpop.permute.xlu0 %911
  %913 = vrot.lane.b32.xlu0 %v895, 96
  %v914 = vpop.permute.xlu0 %913
  %915 = vrot.lane.b32.xlu0 %v105, 96
  %v916 = vpop.permute.xlu0 %915
  %917 = vrot.lane.b32.xlu0 %v106, 96
  %v918 = vpop.permute.xlu0 %917
  %919 = vrot.lane.b32.xlu0 %v107, 96
  %v920 = vpop.permute.xlu0 %919
  %921 = vrot.lane.b32.xlu0 %v108, 96
  %v922 = vpop.permute.xlu0 %921
  %923 = vrot.lane.b32.xlu0 %v109, 96
  %v924 = vpop.permute.xlu0 %923
  %925 = vrot.lane.b32.xlu0 %v110, 96
  %v926 = vpop.permute.xlu0 %925
  %927 = vrot.lane.b32.xlu0 %v613, 96
  %v928 = vpop.permute.xlu0 %927
  %929 = vrot.lane.b32.xlu0 %v896, 96
  %v930 = vpop.permute.xlu0 %929
  %vm947 = vcmask 917248
  %948 = vst.msk [vmem:[#allocation2] sm:$0xff] %vm947, %v900
  %949 = vst.msk [vmem:[#allocation2 + $0x10] sm:$0xff] %vm947, %v902
  %950 = vst.msk [vmem:[#allocation2 + $0x20] sm:$0xff] %vm947, %v904
  %951 = vst.msk [vmem:[#allocation2 + $0x30] sm:$0xff] %vm947, %v906
  %952 = vst.msk [vmem:[#allocation2 + $0x40] sm:$0xff] %vm947, %v908
  %953 = vst.msk [vmem:[#allocation2 + $0x50] sm:$0xff] %vm947, %v910
  %954 = vst.msk [vmem:[#allocation2 + $0x60] sm:$0xff] %vm947, %v912
  %955 = vst.msk [vmem:[#allocation2 + $0x70] sm:$0xff] %vm947, %v914
  %956 = vst.msk [vmem:[#allocation2 + $0x80] sm:$0xff] %vm947, %v916
  %957 = vst.msk [vmem:[#allocation2 + $0x90] sm:$0xff] %vm947, %v918
  %958 = vst.msk [vmem:[#allocation2 + $0xa0] sm:$0xff] %vm947, %v920
  %959 = vst.msk [vmem:[#allocation2 + $0xb0] sm:$0xff] %vm947, %v922
  %960 = vst.msk [vmem:[#allocation2 + $0xc0] sm:$0xff] %vm947, %v924
  %961 = vst.msk [vmem:[#allocation2 + $0xd0] sm:$0xff] %vm947, %v926
  %962 = vst.msk [vmem:[#allocation2 + $0xe0] sm:$0xff] %vm947, %v928
  %963 = vst.msk [vmem:[#allocation2 + $0xf0] sm:$0xff] %vm947, %v930
  %v968 = vrot.slane %v57, 1
  %v969 = vrot.slane %v58, 1
  %v970 = vsel %vm160, %v968, %v969
  %v971 = vrot.slane %v77, 1
  %v972 = vrot.slane %v78, 1
  %v973 = vsel %vm160, %v971, %v972
  %v976 = vadd.f32 %v879, %v169
  %v977 = vadd.f32 %v880, %v172
  %v978 = vadd.f32 %v881, %v175
  %v979 = vadd.f32 %v882, %v178
  %v980 = vadd.f32 %v883, %v181
  %v981 = vadd.f32 %v884, %v184
  %v982 = vadd.f32 %v885, %v687
  %v983 = vadd.f32 %v886, %v970
  %v984 = vadd.f32 %v887, %v193
  %v985 = vadd.f32 %v888, %v196
  %v986 = vadd.f32 %v889, %v199
  %v987 = vadd.f32 %v890, %v202
  %v988 = vadd.f32 %v891, %v205
  %v989 = vadd.f32 %v892, %v208
  %v990 = vadd.f32 %v893, %v690
  %v991 = vadd.f32 %v894, %v973
  %v992 = vmax.f32 %v58, 0.0
  %v993 = vmax.f32 %v78, 0.0
  %v996 = vrot.slane %v895, 1
  %v997 = vrot.slane %v992, 1
  %v998 = vsel %vm160, %v996, %v997
  %v999 = vrot.slane %v896, 1
  %v1000 = vrot.slane %v993, 1
  %v1001 = vsel %vm160, %v999, %v1000
  %1002 = vrot.lane.b32.xlu0 %v297, 112
  %v1003 = vpop.permute.xlu0 %1002
  %1004 = vrot.lane.b32.xlu0 %v300, 112
  %v1005 = vpop.permute.xlu0 %1004
  %1006 = vrot.lane.b32.xlu0 %v303, 112
  %v1007 = vpop.permute.xlu0 %1006
  %1008 = vrot.lane.b32.xlu0 %v306, 112
  %v1009 = vpop.permute.xlu0 %1008
  %1010 = vrot.lane.b32.xlu0 %v309, 112
  %v1011 = vpop.permute.xlu0 %1010
  %1012 = vrot.lane.b32.xlu0 %v312, 112
  %v1013 = vpop.permute.xlu0 %1012
  %1014 = vrot.lane.b32.xlu0 %v715, 112
  %v1015 = vpop.permute.xlu0 %1014
  %1016 = vrot.lane.b32.xlu0 %v998, 112
  %v1017 = vpop.permute.xlu0 %1016
  %1018 = vrot.lane.b32.xlu0 %v321, 112
  %v1019 = vpop.permute.xlu0 %1018
  %1020 = vrot.lane.b32.xlu0 %v324, 112
  %v1021 = vpop.permute.xlu0 %1020
  %1022 = vrot.lane.b32.xlu0 %v327, 112
  %v1023 = vpop.permute.xlu0 %1022
  %1024 = vrot.lane.b32.xlu0 %v330, 112
  %v1025 = vpop.permute.xlu0 %1024
  %1026 = vrot.lane.b32.xlu0 %v333, 112
  %v1027 = vpop.permute.xlu0 %1026
  %1028 = vrot.lane.b32.xlu0 %v336, 112
  %v1029 = vpop.permute.xlu0 %1028
  %1030 = vrot.lane.b32.xlu0 %v718, 112
  %v1031 = vpop.permute.xlu0 %1030
  %1032 = vrot.lane.b32.xlu0 %v1001, 112
  %v1033 = vpop.permute.xlu0 %1032
  %vm1050 = vcmask 1048448
  %1051 = vst.msk [vmem:[#allocation2] sm:$0xff] %vm1050, %v1003
  %1052 = vst.msk [vmem:[#allocation2 + $0x10] sm:$0xff] %vm1050, %v1005
  %1053 = vst.msk [vmem:[#allocation2 + $0x20] sm:$0xff] %vm1050, %v1007
  %1054 = vst.msk [vmem:[#allocation2 + $0x30] sm:$0xff] %vm1050, %v1009
  %1055 = vst.msk [vmem:[#allocation2 + $0x40] sm:$0xff] %vm1050, %v1011
  %1056 = vst.msk [vmem:[#allocation2 + $0x50] sm:$0xff] %vm1050, %v1013
  %1057 = vst.msk [vmem:[#allocation2 + $0x60] sm:$0xff] %vm1050, %v1015
  %1058 = vst.msk [vmem:[#allocation2 + $0x70] sm:$0xff] %vm1050, %v1017
  %1059 = vst.msk [vmem:[#allocation2 + $0x80] sm:$0xff] %vm1050, %v1019
  %1060 = vst.msk [vmem:[#allocation2 + $0x90] sm:$0xff] %vm1050, %v1021
  %1061 = vst.msk [vmem:[#allocation2 + $0xa0] sm:$0xff] %vm1050, %v1023
  %1062 = vst.msk [vmem:[#allocation2 + $0xb0] sm:$0xff] %vm1050, %v1025
  %1063 = vst.msk [vmem:[#allocation2 + $0xc0] sm:$0xff] %vm1050, %v1027
  %1064 = vst.msk [vmem:[#allocation2 + $0xd0] sm:$0xff] %vm1050, %v1029
  %1065 = vst.msk [vmem:[#allocation2 + $0xe0] sm:$0xff] %vm1050, %v1031
  %1066 = vst.msk [vmem:[#allocation2 + $0xf0] sm:$0xff] %vm1050, %v1033
  %v1067 = vrot.slane %v57, 2
  %v1068 = vrot.slane %v58, 2
  %v1069 = vsel %vm402, %v1067, %v1068
  %v1070 = vrot.slane %v77, 2
  %v1071 = vrot.slane %v78, 2
  %v1072 = vsel %vm402, %v1070, %v1071
  %v1075 = vadd.f32 %v976, %v411
  %v1076 = vadd.f32 %v977, %v414
  %v1077 = vadd.f32 %v978, %v417
  %v1078 = vadd.f32 %v979, %v420
  %v1079 = vadd.f32 %v980, %v423
  %v1080 = vadd.f32 %v981, %v426
  %v1081 = vadd.f32 %v982, %v786
  %v1082 = vadd.f32 %v983, %v1069
  %v1083 = vadd.f32 %v984, %v435
  %v1084 = vadd.f32 %v985, %v438
  %v1085 = vadd.f32 %v986, %v441
  %v1086 = vadd.f32 %v987, %v444
  %v1087 = vadd.f32 %v988, %v447
  %v1088 = vadd.f32 %v989, %v450
  %v1089 = vadd.f32 %v990, %v789
  %v1090 = vadd.f32 %v991, %v1072
  %v1091 = vrot.slane %v895, 2
  %v1092 = vrot.slane %v992, 2
  %v1093 = vsel %vm402, %v1091, %v1092
  %v1094 = vrot.slane %v896, 2
  %v1095 = vrot.slane %v993, 2
  %v1096 = vsel %vm402, %v1094, %v1095
  %1113 = vst.msk [vmem:[#allocation2 + $0x8] sm:$0xff] %vm111, %v491
  %1114 = vst.msk [vmem:[#allocation2 + $0x18] sm:$0xff] %vm111, %v494
  %1115 = vst.msk [vmem:[#allocation2 + $0x28] sm:$0xff] %vm111, %v497
  %1116 = vst.msk [vmem:[#allocation2 + $0x38] sm:$0xff] %vm111, %v500
  %1117 = vst.msk [vmem:[#allocation2 + $0x48] sm:$0xff] %vm111, %v503
  %1118 = vst.msk [vmem:[#allocation2 + $0x58] sm:$0xff] %vm111, %v506
  %1119 = vst.msk [vmem:[#allocation2 + $0x68] sm:$0xff] %vm111, %v810
  %1120 = vst.msk [vmem:[#allocation2 + $0x78] sm:$0xff] %vm111, %v1093
  %1121 = vst.msk [vmem:[#allocation2 + $0x88] sm:$0xff] %vm111, %v515
  %1122 = vst.msk [vmem:[#allocation2 + $0x98] sm:$0xff] %vm111, %v518
  %1123 = vst.msk [vmem:[#allocation2 + $0xa8] sm:$0xff] %vm111, %v521
  %1124 = vst.msk [vmem:[#allocation2 + $0xb8] sm:$0xff] %vm111, %v524
  %1125 = vst.msk [vmem:[#allocation2 + $0xc8] sm:$0xff] %vm111, %v527
  %1126 = vst.msk [vmem:[#allocation2 + $0xd8] sm:$0xff] %vm111, %v530
  %1127 = vst.msk [vmem:[#allocation2 + $0xe8] sm:$0xff] %vm111, %v813
  %1128 = vst.msk [vmem:[#allocation2 + $0xf8] sm:$0xff] %vm111, %v1096
  %v1129 = vld [vmem:[#allocation2] sm:$0xff]
  %v1130 = vld [vmem:[#allocation2 + $0x8] sm:$0xff]
  %v1131 = vld [vmem:[#allocation2 + $0x10] sm:$0xff]
  %v1132 = vld [vmem:[#allocation2 + $0x18] sm:$0xff]
  %v1133 = vld [vmem:[#allocation2 + $0x20] sm:$0xff]
  %v1134 = vld [vmem:[#allocation2 + $0x28] sm:$0xff]
  %v1135 = vld [vmem:[#allocation2 + $0x30] sm:$0xff]
  %v1136 = vld [vmem:[#allocation2 + $0x38] sm:$0xff]
  %v1137 = vld [vmem:[#allocation2 + $0x40] sm:$0xff]
  %v1138 = vld [vmem:[#allocation2 + $0x48] sm:$0xff]
  %v1139 = vld [vmem:[#allocation2 + $0x50] sm:$0xff]
  %v1140 = vld [vmem:[#allocation2 + $0x58] sm:$0xff]
  %v1141 = vld [vmem:[#allocation2 + $0x60] sm:$0xff]
  %v1142 = vld [vmem:[#allocation2 + $0x68] sm:$0xff]
  %v1143 = vld [vmem:[#allocation2 + $0x70] sm:$0xff]
  %v1144 = vld [vmem:[#allocation2 + $0x78] sm:$0xff]
  %v1145 = vld [vmem:[#allocation2 + $0x80] sm:$0xff]
  %v1146 = vld [vmem:[#allocation2 + $0x88] sm:$0xff]
  %v1147 = vld [vmem:[#allocation2 + $0x90] sm:$0xff]
  %v1148 = vld [vmem:[#allocation2 + $0x98] sm:$0xff]
  %v1149 = vld [vmem:[#allocation2 + $0xa0] sm:$0xff]
  %v1150 = vld [vmem:[#allocation2 + $0xa8] sm:$0xff]
  %v1151 = vld [vmem:[#allocation2 + $0xb0] sm:$0xff]
  %v1152 = vld [vmem:[#allocation2 + $0xb8] sm:$0xff]
  %v1153 = vld [vmem:[#allocation2 + $0xc0] sm:$0xff]
  %v1154 = vld [vmem:[#allocation2 + $0xc8] sm:$0xff]
  %v1155 = vld [vmem:[#allocation2 + $0xd0] sm:$0xff]
  %v1156 = vld [vmem:[#allocation2 + $0xd8] sm:$0xff]
  %v1157 = vld [vmem:[#allocation2 + $0xe0] sm:$0xff]
  %v1158 = vld [vmem:[#allocation2 + $0xe8] sm:$0xff]
  %v1159 = vld [vmem:[#allocation2 + $0xf0] sm:$0xff]
  %v1160 = vld [vmem:[#allocation2 + $0xf8] sm:$0xff]
  %v1161 = vld [vmem:[%s1] sm:$0xff]
  %v1162 = vld [vmem:[%s1 + $0x8] sm:$0xff]
  %v1163 = vld [vmem:[%s1 + $0x10] sm:$0xff]
  %v1164 = vld [vmem:[%s1 + $0x18] sm:$0xff]
  %v1165 = vld [vmem:[%s1 + $0x20] sm:$0xff]
  %v1166 = vld [vmem:[%s1 + $0x28] sm:$0xff]
  %v1167 = vld [vmem:[%s1 + $0x30] sm:$0xff]
  %v1168 = vld [vmem:[%s1 + $0x38] sm:$0xff]
  %v1169 = vld [vmem:[%s1 + $0x40] sm:$0xff]
  %v1170 = vld [vmem:[%s1 + $0x48] sm:$0xff]
  %v1171 = vld [vmem:[%s1 + $0x50] sm:$0xff]
  %v1172 = vld [vmem:[%s1 + $0x58] sm:$0xff]
  %v1173 = vld [vmem:[%s1 + $0x60] sm:$0xff]
  %v1174 = vld [vmem:[%s1 + $0x68] sm:$0xff]
  %v1175 = vld [vmem:[%s1 + $0x70] sm:$0xff]
  %v1176 = vld [vmem:[%s1 + $0x78] sm:$0xff]
  %v1177 = vld [vmem:[%s1 + $0x80] sm:$0xff]
  %v1178 = vld [vmem:[%s1 + $0x88] sm:$0xff]
  %v1180 = vsel %vm111, %v1130, 0
  %v1183 = vsel %vm111, %v1132, 0
  %v1186 = vsel %vm111, %v1134, 0
  %v1189 = vsel %vm111, %v1136, 0
  %v1192 = vsel %vm111, %v1138, 0
  %v1195 = vsel %vm111, %v1140, 0
  %v1198 = vsel %vm111, %v1142, 0
  %v1201 = vsel %vm111, %v1144, 0
  %v1204 = vsel %vm111, %v1146, 0
  %v1207 = vsel %vm111, %v1148, 0
  %v1210 = vsel %vm111, %v1150, 0
  %v1213 = vsel %vm111, %v1152, 0
  %v1216 = vsel %vm111, %v1154, 0
  %v1219 = vsel %vm111, %v1156, 0
  %v1222 = vsel %vm111, %v1158, 0
  %v1225 = vsel %vm111, %v1160, 0
  %1227 = vmatpush.msra.mxu0 %v1176
  %1228 = vmatpush.msra.mxu0 %v1175
  %1229 = vmatpush.msra.mxu0 %v1174
  %1230 = vmatpush.msra.mxu0 %v1173
  %1231 = vmatpush.msra.mxu0 %v1172
  %1232 = vmatpush.msra.mxu0 %v1171
  %1233 = vmatpush.msra.mxu0 %v1170
  %1234 = vmatpush.msra.mxu0 %v1169
  %1235 = vmatpush.msra.mxu0 %v1168
  %1236 = vmatpush.msra.mxu0 %v1167
  %1237 = vmatpush.msra.mxu0 %v1166
  %1238 = vmatpush.msra.mxu0 %v1165
  %1239 = vmatpush.msra.mxu0 %v1164
  %1240 = vmatpush.msra.mxu0 %v1163
  %1241 = vmatpush.msra.mxu0 %v1162
  %1242 = vmatpush.msra.mxu0 %v1161
  %1243 = vmatmul.f32.gmra.mxu0 %v1129
  %v1244 = vpop.f32.mrf.mxu0
  %v1245 = vadd.f32 0.0, %v1244
  %1246 = vmatmul.f32.gmra.mxu0 %v1131
  %v1247 = vpop.f32.mrf.mxu0
  %v1248 = vadd.f32 0.0, %v1247
  %1249 = vmatmul.f32.gmra.mxu0 %v1133
  %v1250 = vpop.f32.mrf.mxu0
  %v1251 = vadd.f32 0.0, %v1250
  %1252 = vmatmul.f32.gmra.mxu0 %v1135
  %v1253 = vpop.f32.mrf.mxu0
  %v1254 = vadd.f32 0.0, %v1253
  %1255 = vmatmul.f32.gmra.mxu0 %v1137
  %v1256 = vpop.f32.mrf.mxu0
  %v1257 = vadd.f32 0.0, %v1256
  %1258 = vmatmul.f32.gmra.mxu0 %v1139
  %v1259 = vpop.f32.mrf.mxu0
  %v1260 = vadd.f32 0.0, %v1259
  %1261 = vmatmul.f32.gmra.mxu0 %v1141
  %v1262 = vpop.f32.mrf.mxu0
  %v1263 = vadd.f32 0.0, %v1262
  %1264 = vmatmul.f32.gmra.mxu0 %v1143
  %v1265 = vpop.f32.mrf.mxu0
  %v1266 = vadd.f32 0.0, %v1265
  %1267 = vmatmul.f32.gmra.mxu0 %v1145
  %v1268 = vpop.f32.mrf.mxu0
  %v1269 = vadd.f32 0.0, %v1268
  %1270 = vmatmul.f32.gmra.mxu0 %v1147
  %v1271 = vpop.f32.mrf.mxu0
  %v1272 = vadd.f32 0.0, %v1271
  %1273 = vmatmul.f32.gmra.mxu0 %v1149
  %v1274 = vpop.f32.mrf.mxu0
  %v1275 = vadd.f32 0.0, %v1274
  %1276 = vmatmul.f32.gmra.mxu0 %v1151
  %v1277 = vpop.f32.mrf.mxu0
  %v1278 = vadd.f32 0.0, %v1277
  %1279 = vmatmul.f32.gmra.mxu0 %v1153
  %v1280 = vpop.f32.mrf.mxu0
  %v1281 = vadd.f32 0.0, %v1280
  %1282 = vmatmul.f32.gmra.mxu0 %v1155
  %v1283 = vpop.f32.mrf.mxu0
  %v1284 = vadd.f32 0.0, %v1283
  %1285 = vmatmul.f32.gmra.mxu0 %v1157
  %v1286 = vpop.f32.mrf.mxu0
  %v1287 = vadd.f32 0.0, %v1286
  %1288 = vmatmul.f32.gmra.mxu0 %v1159
  %v1289 = vpop.f32.mrf.mxu0
  %v1290 = vadd.f32 0.0, %v1289
  %1291 = vdwg.mxu0
  %1292 = vmatpush.msra.mxu0 0.0
  %1293 = vmatpush.msra.mxu0 0.0
  %1294 = vmatpush.msra.mxu0 0.0
  %1295 = vmatpush.msra.mxu0 0.0
  %1296 = vmatpush.msra.mxu0 0.0
  %1297 = vmatpush.msra.mxu0 0.0
  %1298 = vmatpush.msra.mxu0 0.0
  %1299 = vmatpush.msra.mxu0 0.0
  %1300 = vmatpush.msra.mxu0 0.0
  %1301 = vmatpush.msra.mxu0 0.0
  %1302 = vmatpush.msra.mxu0 0.0
  %1303 = vmatpush.msra.mxu0 0.0
  %1304 = vmatpush.msra.mxu0 0.0
  %1305 = vmatpush.msra.mxu0 0.0
  %1306 = vmatpush.msra.mxu0 %v1178
  %1307 = vmatpush.msra.mxu0 %v1177
  %1308 = vmatmul.f32.gmra.mxu0 %v1180
  %v1309 = vpop.f32.mrf.mxu0
  %v1310 = vadd.f32 %v1245, %v1309
  %1311 = vmatmul.f32.gmra.mxu0 %v1183
  %v1312 = vpop.f32.mrf.mxu0
  %v1313 = vadd.f32 %v1248, %v1312
  %1314 = vmatmul.f32.gmra.mxu0 %v1186
  %v1315 = vpop.f32.mrf.mxu0
  %v1316 = vadd.f32 %v1251, %v1315
  %1317 = vmatmul.f32.gmra.mxu0 %v1189
  %v1318 = vpop.f32.mrf.mxu0
  %v1319 = vadd.f32 %v1254, %v1318
  %1320 = vmatmul.f32.gmra.mxu0 %v1192
  %v1321 = vpop.f32.mrf.mxu0
  %v1322 = vadd.f32 %v1257, %v1321
  %1323 = vmatmul.f32.gmra.mxu0 %v1195
  %v1324 = vpop.f32.mrf.mxu0
  %v1325 = vadd.f32 %v1260, %v1324
  %1326 = vmatmul.f32.gmra.mxu0 %v1198
  %v1327 = vpop.f32.mrf.mxu0
  %v1328 = vadd.f32 %v1263, %v1327
  %1329 = vmatmul.f32.gmra.mxu0 %v1201
  %v1330 = vpop.f32.mrf.mxu0
  %v1331 = vadd.f32 %v1266, %v1330
  %1332 = vmatmul.f32.gmra.mxu0 %v1204
  %v1333 = vpop.f32.mrf.mxu0
  %v1334 = vadd.f32 %v1269, %v1333
  %1335 = vmatmul.f32.gmra.mxu0 %v1207
  %v1336 = vpop.f32.mrf.mxu0
  %v1337 = vadd.f32 %v1272, %v1336
  %1338 = vmatmul.f32.gmra.mxu0 %v1210
  %v1339 = vpop.f32.mrf.mxu0
  %v1340 = vadd.f32 %v1275, %v1339
  %1341 = vmatmul.f32.gmra.mxu0 %v1213
  %v1342 = vpop.f32.mrf.mxu0
  %v1343 = vadd.f32 %v1278, %v1342
  %1344 = vmatmul.f32.gmra.mxu0 %v1216
  %v1345 = vpop.f32.mrf.mxu0
  %v1346 = vadd.f32 %v1281, %v1345
  %1347 = vmatmul.f32.gmra.mxu0 %v1219
  %v1348 = vpop.f32.mrf.mxu0
  %v1349 = vadd.f32 %v1284, %v1348
  %1350 = vmatmul.f32.gmra.mxu0 %v1222
  %v1351 = vpop.f32.mrf.mxu0
  %v1352 = vadd.f32 %v1287, %v1351
  %1353 = vmatmul.f32.gmra.mxu0 %v1225
  %v1354 = vpop.f32.mrf.mxu0
  %v1355 = vadd.f32 %v1290, %v1354
  %1356 = vdwg.mxu0
  %v1357 = vld [vmem:[%s2] sm:$0xf]
  %v1358 = vperm.slane %v1357, 0
  %v1359 = vmul.f32 %v1310, %v1358
  %v1360 = vmul.f32 %v1313, %v1358
  %v1361 = vmul.f32 %v1316, %v1358
  %v1362 = vmul.f32 %v1319, %v1358
  %v1363 = vmul.f32 %v1322, %v1358
  %v1364 = vmul.f32 %v1325, %v1358
  %v1365 = vmul.f32 %v1328, %v1358
  %v1366 = vmul.f32 %v1331, %v1358
  %v1367 = vmul.f32 %v1334, %v1358
  %v1368 = vmul.f32 %v1337, %v1358
  %v1369 = vmul.f32 %v1340, %v1358
  %v1370 = vmul.f32 %v1343, %v1358
  %v1371 = vmul.f32 %v1346, %v1358
  %v1372 = vmul.f32 %v1349, %v1358
  %v1373 = vmul.f32 %v1352, %v1358
  %v1374 = vmul.f32 %v1355, %v1358
  %v1375 = vperm.slane %v1357, 1
  %v1376 = vadd.f32 %v1359, %v1375
  %v1377 = vadd.f32 %v1360, %v1375
  %v1378 = vadd.f32 %v1361, %v1375
  %v1379 = vadd.f32 %v1362, %v1375
  %v1380 = vadd.f32 %v1363, %v1375
  %v1381 = vadd.f32 %v1364, %v1375
  %v1382 = vadd.f32 %v1365, %v1375
  %v1383 = vadd.f32 %v1366, %v1375
  %v1384 = vadd.f32 %v1367, %v1375
  %v1385 = vadd.f32 %v1368, %v1375
  %v1386 = vadd.f32 %v1369, %v1375
  %v1387 = vadd.f32 %v1370, %v1375
  %v1388 = vadd.f32 %v1371, %v1375
  %v1389 = vadd.f32 %v1372, %v1375
  %v1390 = vadd.f32 %v1373, %v1375
  %v1391 = vadd.f32 %v1374, %v1375
  %1408 = vrot.lane.b32.xlu0 %v1376, 112
  %v1409 = vpop.permute.xlu0 %1408
  %1410 = vrot.lane.b32.xlu0 %v1377, 112
  %v1411 = vpop.permute.xlu0 %1410
  %1412 = vrot.lane.b32.xlu0 %v1378, 112
  %v1413 = vpop.permute.xlu0 %1412
  %1414 = vrot.lane.b32.xlu0 %v1379, 112
  %v1415 = vpop.permute.xlu0 %1414
  %1416 = vrot.lane.b32.xlu0 %v1380, 112
  %v1417 = vpop.permute.xlu0 %1416
  %1418 = vrot.lane.b32.xlu0 %v1381, 112
  %v1419 = vpop.permute.xlu0 %1418
  %1420 = vrot.lane.b32.xlu0 %v1382, 112
  %v1421 = vpop.permute.xlu0 %1420
  %1422 = vrot.lane.b32.xlu0 %v1383, 112
  %v1423 = vpop.permute.xlu0 %1422
  %1424 = vrot.lane.b32.xlu0 %v1384, 112
  %v1425 = vpop.permute.xlu0 %1424
  %1426 = vrot.lane.b32.xlu0 %v1385, 112
  %v1427 = vpop.permute.xlu0 %1426
  %1428 = vrot.lane.b32.xlu0 %v1386, 112
  %v1429 = vpop.permute.xlu0 %1428
  %1430 = vrot.lane.b32.xlu0 %v1387, 112
  %v1431 = vpop.permute.xlu0 %1430
  %1432 = vrot.lane.b32.xlu0 %v1388, 112
  %v1433 = vpop.permute.xlu0 %1432
  %1434 = vrot.lane.b32.xlu0 %v1389, 112
  %v1435 = vpop.permute.xlu0 %1434
  %1436 = vrot.lane.b32.xlu0 %v1390, 112
  %v1437 = vpop.permute.xlu0 %1436
  %1438 = vrot.lane.b32.xlu0 %v1391, 112
  %v1439 = vpop.permute.xlu0 %1438
  %v1456 = vadd.f32 %v1376, %v1409
  %v1457 = vadd.f32 %v1377, %v1411
  %v1458 = vadd.f32 %v1378, %v1413
  %v1459 = vadd.f32 %v1379, %v1415
  %v1460 = vadd.f32 %v1380, %v1417
  %v1461 = vadd.f32 %v1381, %v1419
  %v1462 = vadd.f32 %v1382, %v1421
  %v1463 = vadd.f32 %v1383, %v1423
  %v1464 = vadd.f32 %v1384, %v1425
  %v1465 = vadd.f32 %v1385, %v1427
  %v1466 = vadd.f32 %v1386, %v1429
  %v1467 = vadd.f32 %v1387, %v1431
  %v1468 = vadd.f32 %v1388, %v1433
  %v1469 = vadd.f32 %v1389, %v1435
  %v1470 = vadd.f32 %v1390, %v1437
  %v1471 = vadd.f32 %v1391, %v1439
  %v1472 = vlaneseq
  %v1473 = vshrl.u32 %v1472, 7
  %vm1474 = vcmp.eq.s32.totalorder %v1473, 0
  %v1475 = vsel %vm1474, 1, 0
  %v1476 = vsub.s32 3, %v1475
  %vm1477 = vcmp.eq.s32.totalorder %v1473, 7
  %v1478 = vsel %vm1477, 1, 0
  %v1479 = vsub.s32 %v1476, %v1478
  %v1480 = vmul.u32 %v1479, 2
  %v1481 = vmul.u32 %v1479, 3
  %v1482 = vcvt.s32.f32 %v1480
  %v1483 = vcvt.s32.f32 %v1481
  %v1484 = vrcp.pop %v1482
  %v1485 = vmul.f32 %v1482, %v1484
  %v1486 = vsub.f32 1.0, %v1485
  %v1487 = vmul.f32 %v1484, %v1486
  %v1488 = vadd.f32 %v1484, %v1487
  %vm1489 = vweird.f32 %v1482
  %vm1490 = vweird.f32 %v1484
  %vm1491 = vmor %vm1489, %vm1490
  %v1492 = vsel %vm1491, %v1484, %v1488
  %v1493 = vand.u32 2147483647, %v1482
  %vm1494 = vcmp.eq.f32.partialorder %v1493, 8.507059e+37
  %v1495 = vand.u32 %v1482, 2147483648
  %v1496 = vor.u32 1.1754944e-38, %v1495
  %v1497 = vsel %vm1494, %v1496, %v1492
  %v1498 = vmul.f32 1.0, %v1497
  %v1499 = vrcp.pop %v1483
  %v1500 = vmul.f32 %v1483, %v1499
  %v1501 = vsub.f32 1.0, %v1500
  %v1502 = vmul.f32 %v1499, %v1501
  %v1503 = vadd.f32 %v1499, %v1502
  %vm1504 = vweird.f32 %v1483
  %vm1505 = vweird.f32 %v1499
  %vm1506 = vmor %vm1504, %vm1505
  %v1507 = vsel %vm1506, %v1499, %v1503
  %v1508 = vand.u32 2147483647, %v1483
  %vm1509 = vcmp.eq.f32.partialorder %v1508, 8.507059e+37
  %v1510 = vand.u32 %v1483, 2147483648
  %v1511 = vor.u32 1.1754944e-38, %v1510
  %v1512 = vsel %vm1509, %v1511, %v1507
  %v1513 = vmul.f32 1.0, %v1512
  %v1514 = vperm.slane %v1357, 2
  %v1515 = vmul.f32 %v41, %v1514
  %v1516 = vmul.f32 %v42, %v1514
  %v1517 = vmul.f32 %v43, %v1514
  %v1518 = vmul.f32 %v44, %v1514
  %v1519 = vmul.f32 %v45, %v1514
  %v1520 = vmul.f32 %v46, %v1514
  %v1521 = vmul.f32 %v47, %v1514
  %v1522 = vmul.f32 %v48, %v1514
  %v1523 = vmul.f32 %v49, %v1514
  %v1524 = vmul.f32 %v50, %v1514
  %v1525 = vmul.f32 %v51, %v1514
  %v1526 = vmul.f32 %v52, %v1514
  %v1527 = vmul.f32 %v53, %v1514
  %v1528 = vmul.f32 %v54, %v1514
  %v1529 = vmul.f32 %v55, %v1514
  %v1530 = vmul.f32 %v56, %v1514
  %v1531 = vmul.f32 %v61, %v1514
  %v1532 = vmul.f32 %v62, %v1514
  %v1533 = vmul.f32 %v63, %v1514
  %v1534 = vmul.f32 %v64, %v1514
  %v1535 = vmul.f32 %v65, %v1514
  %v1536 = vmul.f32 %v66, %v1514
  %v1537 = vmul.f32 %v67, %v1514
  %v1538 = vmul.f32 %v68, %v1514
  %v1539 = vmul.f32 %v69, %v1514
  %v1540 = vmul.f32 %v70, %v1514
  %v1541 = vmul.f32 %v71, %v1514
  %v1542 = vmul.f32 %v72, %v1514
  %v1543 = vmul.f32 %v73, %v1514
  %v1544 = vmul.f32 %v74, %v1514
  %v1545 = vmul.f32 %v75, %v1514
  %v1546 = vmul.f32 %v76, %v1514
  %v1547 = vmul.f32 %v1075, %v1498
  %v1548 = vmul.f32 %v1076, %v1513
  %v1549 = vmul.f32 %v1077, %v1513
  %v1550 = vmul.f32 %v1078, %v1513
  %v1551 = vmul.f32 %v1079, %v1513
  %v1552 = vmul.f32 %v1080, %v1513
  %v1553 = vmul.f32 %v1081, %v1513
  %v1554 = vmul.f32 %v1082, %v1498
  %v1555 = vmul.f32 %v1083, %v1498
  %v1556 = vmul.f32 %v1084, %v1513
  %v1557 = vmul.f32 %v1085, %v1513
  %v1558 = vmul.f32 %v1086, %v1513
  %v1559 = vmul.f32 %v1087, %v1513
  %v1560 = vmul.f32 %v1088, %v1513
  %v1561 = vmul.f32 %v1089, %v1513
  %v1562 = vmul.f32 %v1090, %v1498
  %v1563 = vperm.slane %v1357, 3
  %v1564 = vmul.f32 %v1547, %v1563
  %v1565 = vmul.f32 %v1548, %v1563
  %v1566 = vmul.f32 %v1549, %v1563
  %v1567 = vmul.f32 %v1550, %v1563
  %v1568 = vmul.f32 %v1551, %v1563
  %v1569 = vmul.f32 %v1552, %v1563
  %v1570 = vmul.f32 %v1553, %v1563
  %v1571 = vmul.f32 %v1554, %v1563
  %v1572 = vmul.f32 %v1555, %v1563
  %v1573 = vmul.f32 %v1556, %v1563
  %v1574 = vmul.f32 %v1557, %v1563
  %v1575 = vmul.f32 %v1558, %v1563
  %v1576 = vmul.f32 %v1559, %v1563
  %v1577 = vmul.f32 %v1560, %v1563
  %v1578 = vmul.f32 %v1561, %v1563
  %v1579 = vmul.f32 %v1562, %v1563
  %p1580 = scmp.eq.s32.totalorder 0, 0
  // Predicated region
  $region14: #{search_cell_forward.7} parent=0 // pred_check
    %p1581 = pneg %p1580
  $region15: #{search_cell_forward.7} parent=0 // pred_check_branch
    %1583 = sbr.rel (%p1581) target = $region17
  $region16: #{search_cell_forward.7} parent=0 // pred_region
    %1584 = vst.msk [vmem:[%s3] sm:$0xff] %vm111, 0.0
    %1585 = vst.msk [vmem:[%s3 + $0x8] sm:$0xff] %vm111, 0.0
    %1586 = vst.msk [vmem:[%s3 + $0x10] sm:$0xff] %vm111, 0.0
    %1587 = vst.msk [vmem:[%s3 + $0x18] sm:$0xff] %vm111, 0.0
    %1588 = vst.msk [vmem:[%s3 + $0x20] sm:$0xff] %vm111, 0.0
    %1589 = vst.msk [vmem:[%s3 + $0x28] sm:$0xff] %vm111, 0.0
    %1590 = vst.msk [vmem:[%s3 + $0x30] sm:$0xff] %vm111, 0.0
    %1591 = vst.msk [vmem:[%s3 + $0x38] sm:$0xff] %vm111, 0.0
    %1592 = vst.msk [vmem:[%s3 + $0x40] sm:$0xff] %vm111, 0.0
    %1593 = vst.msk [vmem:[%s3 + $0x48] sm:$0xff] %vm111, 0.0
    %1594 = vst.msk [vmem:[%s3 + $0x50] sm:$0xff] %vm111, 0.0
    %1595 = vst.msk [vmem:[%s3 + $0x58] sm:$0xff] %vm111, 0.0
    %1596 = vst.msk [vmem:[%s3 + $0x60] sm:$0xff] %vm111, 0.0
    %1597 = vst.msk [vmem:[%s3 + $0x68] sm:$0xff] %vm111, 0.0
    %1598 = vst.msk [vmem:[%s3 + $0x70] sm:$0xff] %vm111, 0.0
    %1599 = vst.msk [vmem:[%s3 + $0x78] sm:$0xff] %vm111, 0.0
  $region17: #{search_cell_forward.7} parent=0 // pred_fallthru
    _
  %v1600 = vld [vmem:[%s3] sm:$0xff]
  %v1601 = vld [vmem:[%s3 + $0x8] sm:$0xff]
  %v1602 = vld [vmem:[%s3 + $0x10] sm:$0xff]
  %v1603 = vld [vmem:[%s3 + $0x18] sm:$0xff]
  %v1604 = vld [vmem:[%s3 + $0x20] sm:$0xff]
  %v1605 = vld [vmem:[%s3 + $0x28] sm:$0xff]
  %v1606 = vld [vmem:[%s3 + $0x30] sm:$0xff]
  %v1607 = vld [vmem:[%s3 + $0x38] sm:$0xff]
  %v1608 = vld [vmem:[%s3 + $0x40] sm:$0xff]
  %v1609 = vld [vmem:[%s3 + $0x48] sm:$0xff]
  %v1610 = vld [vmem:[%s3 + $0x50] sm:$0xff]
  %v1611 = vld [vmem:[%s3 + $0x58] sm:$0xff]
  %v1612 = vld [vmem:[%s3 + $0x60] sm:$0xff]
  %v1613 = vld [vmem:[%s3 + $0x68] sm:$0xff]
  %v1614 = vld [vmem:[%s3 + $0x70] sm:$0xff]
  %v1615 = vld [vmem:[%s3 + $0x78] sm:$0xff]
  %v1648 = vrot.slane %v1515, 1
  %v1649 = vrot.slane %v1516, 1
  %v1650 = vsel %vm160, %v1648, %v1649
  %v1651 = vrot.slane %v1517, 1
  %v1652 = vrot.slane %v1518, 1
  %v1653 = vsel %vm160, %v1651, %v1652
  %v1654 = vrot.slane %v1519, 1
  %v1655 = vrot.slane %v1520, 1
  %v1656 = vsel %vm160, %v1654, %v1655
  %v1657 = vrot.slane %v1521, 1
  %v1658 = vrot.slane %v1522, 1
  %v1659 = vsel %vm160, %v1657, %v1658
  %v1660 = vrot.slane %v1523, 1
  %v1661 = vrot.slane %v1524, 1
  %v1662 = vsel %vm160, %v1660, %v1661
  %v1663 = vrot.slane %v1525, 1
  %v1664 = vrot.slane %v1526, 1
  %v1665 = vsel %vm160, %v1663, %v1664
  %v1666 = vrot.slane %v1527, 1
  %v1667 = vrot.slane %v1528, 1
  %v1668 = vsel %vm160, %v1666, %v1667
  %v1669 = vrot.slane %v1529, 1
  %v1670 = vrot.slane %v1530, 1
  %v1671 = vsel %vm160, %v1669, %v1670
  %v1672 = vrot.slane %v1531, 1
  %v1673 = vrot.slane %v1532, 1
  %v1674 = vsel %vm160, %v1672, %v1673
  %v1675 = vrot.slane %v1533, 1
  %v1676 = vrot.slane %v1534, 1
  %v1677 = vsel %vm160, %v1675, %v1676
  %v1678 = vrot.slane %v1535, 1
  %v1679 = vrot.slane %v1536, 1
  %v1680 = vsel %vm160, %v1678, %v1679
  %v1681 = vrot.slane %v1537, 1
  %v1682 = vrot.slane %v1538, 1
  %v1683 = vsel %vm160, %v1681, %v1682
  %v1684 = vrot.slane %v1539, 1
  %v1685 = vrot.slane %v1540, 1
  %v1686 = vsel %vm160, %v1684, %v1685
  %v1687 = vrot.slane %v1541, 1
  %v1688 = vrot.slane %v1542, 1
  %v1689 = vsel %vm160, %v1687, %v1688
  %v1690 = vrot.slane %v1543, 1
  %v1691 = vrot.slane %v1544, 1
  %v1692 = vsel %vm160, %v1690, %v1691
  %v1693 = vrot.slane %v1545, 1
  %v1694 = vrot.slane %v1546, 1
  %v1695 = vsel %vm160, %v1693, %v1694
  %v1712 = vadd.f32 %v1456, %v1650
  %v1713 = vadd.f32 %v1457, %v1653
  %v1714 = vadd.f32 %v1458, %v1656
  %v1715 = vadd.f32 %v1459, %v1659
  %v1716 = vadd.f32 %v1460, %v1662
  %v1717 = vadd.f32 %v1461, %v1665
  %v1718 = vadd.f32 %v1462, %v1668
  %v1719 = vadd.f32 %v1463, %v1671
  %v1720 = vadd.f32 %v1464, %v1674
  %v1721 = vadd.f32 %v1465, %v1677
  %v1722 = vadd.f32 %v1466, %v1680
  %v1723 = vadd.f32 %v1467, %v1683
  %v1724 = vadd.f32 %v1468, %v1686
  %v1725 = vadd.f32 %v1469, %v1689
  %v1726 = vadd.f32 %v1470, %v1692
  %v1727 = vadd.f32 %v1471, %v1695
  %v1728 = vadd.f32 %v1712, %v1564
  %v1729 = vadd.f32 %v1713, %v1565
  %v1730 = vadd.f32 %v1714, %v1566
  %v1731 = vadd.f32 %v1715, %v1567
  %v1732 = vadd.f32 %v1716, %v1568
  %v1733 = vadd.f32 %v1717, %v1569
  %v1734 = vadd.f32 %v1718, %v1570
  %v1735 = vadd.f32 %v1719, %v1571
  %v1736 = vadd.f32 %v1720, %v1572
  %v1737 = vadd.f32 %v1721, %v1573
  %v1738 = vadd.f32 %v1722, %v1574
  %v1739 = vadd.f32 %v1723, %v1575
  %v1740 = vadd.f32 %v1724, %v1576
  %v1741 = vadd.f32 %v1725, %v1577
  %v1742 = vadd.f32 %v1726, %v1578
  %v1743 = vadd.f32 %v1727, %v1579
  %v1744 = vadd.f32 %v1600, %v1728
  %v1745 = vadd.f32 %v1601, %v1729
  %v1746 = vadd.f32 %v1602, %v1730
  %v1747 = vadd.f32 %v1603, %v1731
  %v1748 = vadd.f32 %v1604, %v1732
  %v1749 = vadd.f32 %v1605, %v1733
  %v1750 = vadd.f32 %v1606, %v1734
  %v1751 = vadd.f32 %v1607, %v1735
  %v1752 = vadd.f32 %v1608, %v1736
  %v1753 = vadd.f32 %v1609, %v1737
  %v1754 = vadd.f32 %v1610, %v1738
  %v1755 = vadd.f32 %v1611, %v1739
  %v1756 = vadd.f32 %v1612, %v1740
  %v1757 = vadd.f32 %v1613, %v1741
  %v1758 = vadd.f32 %v1614, %v1742
  %v1759 = vadd.f32 %v1615, %v1743
  %1760 = vst.msk [vmem:[%s3] sm:$0xff] %vm111, %v1744
  %1761 = vst.msk [vmem:[%s3 + $0x8] sm:$0xff] %vm111, %v1745
  %1762 = vst.msk [vmem:[%s3 + $0x10] sm:$0xff] %vm111, %v1746
  %1763 = vst.msk [vmem:[%s3 + $0x18] sm:$0xff] %vm111, %v1747
  %1764 = vst.msk [vmem:[%s3 + $0x20] sm:$0xff] %vm111, %v1748
  %1765 = vst.msk [vmem:[%s3 + $0x28] sm:$0xff] %vm111, %v1749
  %1766 = vst.msk [vmem:[%s3 + $0x30] sm:$0xff] %vm111, %v1750
  %1767 = vst.msk [vmem:[%s3 + $0x38] sm:$0xff] %vm111, %v1751
  %1768 = vst.msk [vmem:[%s3 + $0x40] sm:$0xff] %vm111, %v1752
  %1769 = vst.msk [vmem:[%s3 + $0x48] sm:$0xff] %vm111, %v1753
  %1770 = vst.msk [vmem:[%s3 + $0x50] sm:$0xff] %vm111, %v1754
  %1771 = vst.msk [vmem:[%s3 + $0x58] sm:$0xff] %vm111, %v1755
  %1772 = vst.msk [vmem:[%s3 + $0x60] sm:$0xff] %vm111, %v1756
  %1773 = vst.msk [vmem:[%s3 + $0x68] sm:$0xff] %vm111, %v1757
  %1774 = vst.msk [vmem:[%s3 + $0x70] sm:$0xff] %vm111, %v1758
  %1775 = vst.msk [vmem:[%s3 + $0x78] sm:$0xff] %vm111, %v1759
  // Predicated region
  $region18: #{search_cell_forward.7} parent=0 // pred_check
    _
  $region19: #{search_cell_forward.7} parent=0 // pred_check_branch
    %1777 = sbr.rel (0) target = $region21
  $region20: #{search_cell_forward.7} parent=0 // pred_region
    _
  $region21: #{search_cell_forward.7} parent=0 // pred_fallthru
    _
  // Predicated region
  $region22: #{search_cell_forward.7} parent=0 // pred_check
    _
  $region23: #{search_cell_forward.7} parent=0 // pred_check_branch
    %1779 = sbr.rel (0) target = $region25
  $region24: #{search_cell_forward.7} parent=0 // pred_region
    _
  $region25: #{search_cell_forward.7} parent=0 // pred_fallthru
    _

// kernel: search_cell_forward.9
$region0: #{search_cell_forward.9}
  #allocation0 [shape = 'u32[]', space=smem, size = 0x4, offset = 0x4, fixed_abs, tag = 'smem constant byte address 0x4 - core index']
  #allocation1 [shape = 'u32[72,128]{1,0:T(1,128)}', space=vmem, size = 0x9000, scoped, tag = 'internal scratch']
  #allocation2 [shape = 'f32[128,144]{1,0:T(8,128)}', space=vmem, size = 0x20000, scoped, tag = 'scratch operand']
  %s0 = inlined_call_operand.vmem [shape: f32[4,10,10,16], index: 0, kind: input, shape index: {}]
  %s1 = inlined_call_operand.vmem [shape: f32[2,144,32], index: 1, kind: input, shape index: {}]
  %s2 = inlined_call_operand.vmem [shape: f32[2,4,32], index: 2, kind: input, shape index: {}]
  %s3 = inlined_call_operand.vmem [shape: f32[2,8,8,16], index: 3, kind: output, shape index: {}]
  %s4 = sld [smem:[#allocation0]]
  $region49: #{search_cell_forward.9} parent=0
    _
  %s6 = ssub.s32 1, %s4
  %s7 = scalar_select 0, %s6, %s4
  loop: start=0, step=1, limit=4
  $region2: #{search_cell_forward.9} parent=0 // loop_pre_header
    _
  $region3: #{search_cell_forward.9} parent=0 // loop_header
    %s9 = sphi 0, %s13
    %p10 = scmp.ge.s32.totalorder %s9, 4
    %s16 = sphi 0, %s28
    %s17 = sphi 0, %s24
    %s18 = sphi 0, %s16
    %s19 = sphi 0, %s17
    %s20 = sphi 0, %s18
    %s21 = sphi 0, %s19
    %s33 = sphi 0, %s35
    %s36 = sphi 0, %s33
    %s37 = sphi 0, %s36
    %s53 = sphi 0, %s37
    %s59 = sphi 0, %s61
    %s62 = sphi 0, %s59
    %s63 = sphi 0, %s62
    %s79 = sphi 0, %s63
    %s85 = sphi 0, %s87
    %s88 = sphi 0, %s85
    %s89 = sphi 0, %s88
    %s105 = sphi 0, %s89
    %s111 = sphi 0, %s113
    %s114 = sphi 0, %s111
    %s115 = sphi 0, %s114
    %s131 = sphi 0, %s115
  $region4: #{search_cell_forward.9} parent=0 // loop_header_branch
    %12 = sbr.rel (%p10) target = $region8
  $region5: #{search_cell_forward.9} parent=0 // loop_body
    %s14 = ssub.s32 %s9, 1
    %s15 = ssub.s32 %s9, 2
    %s22 = sadd.s32 1, %s17
    %p23 = scmp.ge.s32.totalorder %s22, 2
    %s24 = scalar_select %p23, 0, %s22
    %s25 = sadd.s32 1, %s16
    %s26 = scalar_select %p23, %s25, %s16
    %p27 = scmp.ge.s32.totalorder %s26, 1
    %s28 = scalar_select %p27, 0, %s26
    %s29 = sadd.s32 %s17, %s16
    %s30 = sadd.s32 %s24, %s28
    %s31 = ssub.s32 %s29, %s30
    %p32 = scmp.eq.s32.totalorder %s31, 0
    %s34 = sadd.s32 %s33, 1
    %s35 = scalar_select %p32, %s33, %s34
    %p38 = pneg %p32
    %p39 = scmp.eq.s32.totalorder %s9, 1
    %p40 = por %p38, %p39
    %p41 = scmp.ne.s32.totalorder %s33, %s36
    %p42 = scmp.eq.s32.totalorder %s9, 0
    %p43 = por %p41, %p42
    %p44 = scmp.ne.s32.totalorder %s33, %s36
    %p45 = scmp.eq.s32.totalorder %s14, 1
    %p46 = por %p44, %p45
    %p47 = scmp.ne.s32.totalorder %s36, %s37
    %p48 = scmp.eq.s32.totalorder %s14, 0
    %p49 = por %p47, %p48
    %p50 = scmp.ne.s32.totalorder %s36, %s37
    %p51 = scmp.eq.s32.totalorder %s15, 1
    %p52 = por %p50, %p51
    %p54 = scmp.ne.s32.totalorder %s37, %s53
    %p55 = scmp.eq.s32.totalorder %s15, 0
    %p56 = por %p54, %p55
    %s57 = ssub.s32 %s17, %s24
    %p58 = scmp.eq.s32.totalorder %s57, 0
    %s60 = sadd.s32 %s59, 1
    %s61 = scalar_select %p58, %s59, %s60
    %p64 = pneg %p58
    %p65 = scmp.eq.s32.totalorder %s9, 1
    %p66 = por %p64, %p65
    %p67 = scmp.ne.s32.totalorder %s59, %s62
    %p68 = scmp.eq.s32.totalorder %s9, 0
    %p69 = por %p67, %p68
    %p70 = scmp.ne.s32.totalorder %s59, %s62
    %p71 = scmp.eq.s32.totalorder %s14, 1
    %p72 = por %p70, %p71
    %p73 = scmp.ne.s32.totalorder %s62, %s63
    %p74 = scmp.eq.s32.totalorder %s14, 0
    %p75 = por %p73, %p74
    %p76 = scmp.ne.s32.totalorder %s62, %s63
    %p77 = scmp.eq.s32.totalorder %s15, 1
    %p78 = por %p76, %p77
    %p80 = scmp.ne.s32.totalorder %s63, %s79
    %p81 = scmp.eq.s32.totalorder %s15, 0
    %p82 = por %p80, %p81
    %s83 = ssub.s32 %s17, %s24
    %p84 = scmp.eq.s32.totalorder %s83, 0
    %s86 = sadd.s32 %s85, 1
    %s87 = scalar_select %p84, %s85, %s86
    %p90 = pneg %p84
    %p91 = scmp.eq.s32.totalorder %s9, 1
    %p92 = por %p90, %p91
    %p93 = scmp.ne.s32.totalorder %s85, %s88
    %p94 = scmp.eq.s32.totalorder %s9, 0
    %p95 = por %p93, %p94
    %p96 = scmp.ne.s32.totalorder %s85, %s88
    %p97 = scmp.eq.s32.totalorder %s14, 1
    %p98 = por %p96, %p97
    %p99 = scmp.ne.s32.totalorder %s88, %s89
    %p100 = scmp.eq.s32.totalorder %s14, 0
    %p101 = por %p99, %p100
    %p102 = scmp.ne.s32.totalorder %s88, %s89
    %p103 = scmp.eq.s32.totalorder %s15, 1
    %p104 = por %p102, %p103
    %p106 = scmp.ne.s32.totalorder %s89, %s105
    %p107 = scmp.eq.s32.totalorder %s15, 0
    %p108 = por %p106, %p107
    %s109 = ssub.s32 %s16, %s28
    %p110 = scmp.eq.s32.totalorder %s109, 0
    %s112 = sadd.s32 %s111, 1
    %s113 = scalar_select %p110, %s111, %s112
    %p116 = pneg %p110
    %p117 = scmp.eq.s32.totalorder %s9, 1
    %p118 = por %p116, %p117
    %p119 = scmp.ne.s32.totalorder %s111, %s114
    %p120 = scmp.eq.s32.totalorder %s9, 0
    %p121 = por %p119, %p120
    %p122 = scmp.ne.s32.totalorder %s111, %s114
    %p123 = scmp.eq.s32.totalorder %s14, 1
    %p124 = por %p122, %p123
    %p125 = scmp.ne.s32.totalorder %s114, %s115
    %p126 = scmp.eq.s32.totalorder %s14, 0
    %p127 = por %p125, %p126
    %p128 = scmp.ne.s32.totalorder %s114, %s115
    %p129 = scmp.eq.s32.totalorder %s15, 1
    %p130 = por %p128, %p129
    %p132 = scmp.ne.s32.totalorder %s115, %s131
    %p133 = scmp.eq.s32.totalorder %s15, 0
    %p134 = por %p132, %p133
    %p135 = scmp.le.s32.totalorder 1, %s9
    %p136 = scmp.lt.s32.totalorder %s9, 3
    %p137 = pnand %p135, %p136
    %p138 = pneg %p137
    // Predicated region
    $region9: #{search_cell_forward.9} parent=5 // pred_check
      _
    $region10: #{search_cell_forward.9} parent=5 // pred_check_branch
      %140 = sbr.rel (%p137) target = $region12
    $region11: #{search_cell_forward.9} parent=5 // pred_region
      %s141 = ssub.s32 %s9, 1
    $region12: #{search_cell_forward.9} parent=5 // pred_fallthru
      _
    %p142 = scmp.lt.s32.totalorder %s9, 2
    // Predicated region
    $region13: #{search_cell_forward.9} parent=5 // pred_check
      %p143 = pneg %p142
    $region14: #{search_cell_forward.9} parent=5 // pred_check_branch
      %145 = sbr.rel (%p143) target = $region16
    $region15: #{search_cell_forward.9} parent=5 // pred_region
      // Predicated region
      $region17: #{search_cell_forward.9} parent=15 // pred_check
        %p146 = pneg %p43
      $region18: #{search_cell_forward.9} parent=15 // pred_check_branch
        %148 = sbr.rel (%p146) target = $region20
      $region19: #{search_cell_forward.9} parent=15 // pred_region
        %s149 = sadd.s32 %s17, %s16
        %s150 = smul.u32 2, %s149
        %p151 = scmp.lt.s32.totalorder %s150, 3
        %s152 = scalar_select %p151, %s150, 3
        %s153 = smul.addr %s152, 20
        %s154 = smul.addr %s153, 8
        %s155 = scalar_lea.vmem %s0, %s154
        %s156 = sadd.s32 %s17, %s16
        %s157 = smul.u32 2, %s156
      $region20: #{search_cell_forward.9} parent=15 // pred_fallthru
        _
      // Predicated region
      $region21: #{search_cell_forward.9} parent=15 // pred_check
        %p158 = pneg %p69
      $region22: #{search_cell_forward.9} parent=15 // pred_check_branch
        %160 = sbr.rel (%p158) target = $region24
      $region23: #{search_cell_forward.9} parent=15 // pred_region
        %p161 = scmp.lt.s32.totalorder %s17, 1
        %s162 = scalar_select %p161, %s17, 1
        %s163 = smul.addr %s162, 18
        %s164 = smul.addr %s163, 8
        %s165 = scalar_lea.vmem %s1, %s164
      $region24: #{search_cell_forward.9} parent=15 // pred_fallthru
        _
      // Predicated region
      $region25: #{search_cell_forward.9} parent=15 // pred_check
        %p166 = pneg %p95
      $region26: #{search_cell_forward.9} parent=15 // pred_check_branch
        %168 = sbr.rel (%p166) target = $region28
      $region27: #{search_cell_forward.9} parent=15 // pred_region
        %p169 = scmp.lt.s32.totalorder %s17, 1
        %s170 = scalar_select %p169, %s17, 1
        %s171 = smul.addr %s170, 4
        %s172 = scalar_lea.vmem %s2, %s171
      $region28: #{search_cell_forward.9} parent=15 // pred_fallthru
        _
    $region16: #{search_cell_forward.9} parent=5 // pred_fallthru
      _
    %p173 = scmp.le.s32.totalorder 1, %s9
    %p174 = scmp.lt.s32.totalorder %s9, 3
    %p175 = pnand %p173, %p174
    %p176 = pneg %p175
    // Predicated region
    $region29: #{search_cell_forward.9} parent=5 // pred_check
      _
    $region30: #{search_cell_forward.9} parent=5 // pred_check_branch
      %178 = sbr.rel (%p175) target = $region32
    $region31: #{search_cell_forward.9} parent=5 // pred_region
      %s179 = ssub.s32 %s9, 1
      %s180 = sadd.s32 %s19, %s18
      %s181 = smul.u32 2, %s180
      %p182 = scmp.lt.s32.totalorder %s181, 3
      %s183 = scalar_select %p182, %s181, 3
      %s184 = smul.addr %s183, 20
      %s185 = smul.addr %s184, 8
      %s186 = scalar_lea.vmem %s0, %s185
      %p187 = pneg %p49
      %p188 = pneg %p46
      %p189 = scmp.lt.s32.totalorder %s19, 1
      %s190 = scalar_select %p189, %s19, 1
      %s191 = smul.addr %s190, 18
      %s192 = smul.addr %s191, 8
      %s193 = scalar_lea.vmem %s1, %s192
      %p194 = pneg %p75
      %p195 = pneg %p72
      %p196 = scmp.lt.s32.totalorder %s19, 1
      %s197 = scalar_select %p196, %s19, 1
      %s198 = smul.addr %s197, 4
      %s199 = scalar_lea.vmem %s2, %s198
      %p200 = pneg %p101
      %p201 = pneg %p98
      %p202 = pneg %p127
      %p203 = pneg %p124
      %s204 = smul.u32 2, %s18
      %p205 = scmp.lt.s32.totalorder %s204, 1
      %s206 = scalar_select %p205, %s204, 1
      %s207 = smul.addr %s206, 8
      %s208 = smul.addr %s207, 8
      %s209 = scalar_lea.vmem %s3, %s208
      %s210 = sadd.s32 %s19, %s18
      %s211 = smul.u32 2, %s210
      %p212 = scmp.lt.s32.totalorder %s211, 3
      %s213 = scalar_select %p212, %s211, 3
      %s214 = smul.addr %s213, 20
      %s215 = smul.addr %s214, 8
      %s216 = scalar_lea.vmem %s0, %s215
      %s217 = sadd.s32 %s19, %s18
      %s218 = smul.u32 2, %s217
      %p219 = scmp.lt.s32.totalorder %s19, 1
      %s220 = scalar_select %p219, %s19, 1
      %s221 = smul.addr %s220, 18
      %s222 = smul.addr %s221, 8
      %s223 = scalar_lea.vmem %s1, %s222
      %p224 = scmp.lt.s32.totalorder %s19, 1
      %s225 = scalar_select %p224, %s19, 1
      %s226 = smul.addr %s225, 4
      %s227 = scalar_lea.vmem %s2, %s226
      %s228 = smul.u32 2, %s18
      %p229 = scmp.lt.s32.totalorder %s228, 1
      %s230 = scalar_select %p229, %s228, 1
      %s231 = smul.addr %s230, 8
      %s232 = smul.addr %s231, 8
      %s233 = scalar_lea.vmem %s3, %s232
      %s234 = smul.u32 2, %s18
      %v235 = vld [vmem:[%s216] sm:$0xff]
      %v236 = vld [vmem:[%s216 + $0x8] sm:$0x3]
      %v237 = vld [vmem:[%s216 + $0x10] sm:$0xff]
      %v238 = vld [vmem:[%s216 + $0x18] sm:$0x3]
      %v239 = vld [vmem:[%s216 + $0x20] sm:$0xff]
      %v240 = vld [vmem:[%s216 + $0x28] sm:$0x3]
      %v241 = vld [vmem:[%s216 + $0x30] sm:$0xff]
      %v242 = vld [vmem:[%s216 + $0x38] sm:$0x3]
      %v243 = vld [vmem:[%s216 + $0x40] sm:$0xff]
      %v244 = vld [vmem:[%s216 + $0x48] sm:$0x3]
      %v245 = vld [vmem:[%s216 + $0x50] sm:$0xff]
      %v246 = vld [vmem:[%s216 + $0x58] sm:$0x3]
      %v247 = vld [vmem:[%s216 + $0x60] sm:$0xff]
      %v248 = vld [vmem:[%s216 + $0x68] sm:$0x3]
      %v249 = vld [vmem:[%s216 + $0x70] sm:$0xff]
      %v250 = vld [vmem:[%s216 + $0x78] sm:$0x3]
      %v251 = vld [vmem:[%s216 + $0x80] sm:$0xff]
      %v252 = vld [vmem:[%s216 + $0x88] sm:$0x3]
      %v253 = vld [vmem:[%s216 + $0x90] sm:$0xff]
      %v254 = vld [vmem:[%s216 + $0x98] sm:$0x3]
      %v255 = vld [vmem:[%s216 + $0xa0] sm:$0xff]
      %v256 = vld [vmem:[%s216 + $0xa8] sm:$0x3]
      %v257 = vld [vmem:[%s216 + $0xb0] sm:$0xff]
      %v258 = vld [vmem:[%s216 + $0xb8] sm:$0x3]
      %v259 = vld [vmem:[%s216 + $0xc0] sm:$0xff]
      %v260 = vld [vmem:[%s216 + $0xc8] sm:$0x3]
      %v261 = vld [vmem:[%s216 + $0xd0] sm:$0xff]
      %v262 = vld [vmem:[%s216 + $0xd8] sm:$0x3]
      %v263 = vld [vmem:[%s216 + $0xe0] sm:$0xff]
      %v264 = vld [vmem:[%s216 + $0xe8] sm:$0x3]
      %v265 = vld [vmem:[%s216 + $0xf0] sm:$0xff]
      %v266 = vld [vmem:[%s216 + $0xf8] sm:$0x3]
      %v267 = vld [vmem:[%s216 + $0x100] sm:$0xff]
      %v268 = vld [vmem:[%s216 + $0x108] sm:$0x3]
      %v269 = vld [vmem:[%s216 + $0x110] sm:$0xff]
      %v270 = vld [vmem:[%s216 + $0x118] sm:$0x3]
      %v271 = vld [vmem:[%s216 + $0x120] sm:$0xff]
      %v272 = vld [vmem:[%s216 + $0x128] sm:$0x3]
      %v273 = vld [vmem:[%s216 + $0x130] sm:$0xff]
      %v274 = vld [vmem:[%s216 + $0x138] sm:$0x3]
      %v275 = vadd.f32 %v235, 0.0
      %v276 = vadd.f32 %v237, 0.0
      %v277 = vadd.f32 %v239, 0.0
      %v278 = vadd.f32 %v241, 0.0
      %v279 = vadd.f32 %v243, 0.0
      %v280 = vadd.f32 %v245, 0.0
      %v281 = vadd.f32 %v247, 0.0
      %v282 = vadd.f32 %v249, 0.0
      %v283 = vadd.f32 %v255, 0.0
      %v284 = vadd.f32 %v257, 0.0
      %v285 = vadd.f32 %v259, 0.0
      %v286 = vadd.f32 %v261, 0.0
      %v287 = vadd.f32 %v263, 0.0
      %v288 = vadd.f32 %v265, 0.0
      %v289 = vadd.f32 %v267, 0.0
      %v290 = vadd.f32 %v269, 0.0
      %v291 = vmax.f32 %v235, 0.0
      %v292 = vmax.f32 %v237, 0.0
      %v293 = vmax.f32 %v239, 0.0
      %v294 = vmax.f32 %v241, 0.0
      %v295 = vmax.f32 %v243, 0.0
      %v296 = vmax.f32 %v245, 0.0
      %v297 = vmax.f32 %v247, 0.0
      %v298 = vmax.f32 %v249, 0.0
      %v299 = vmax.f32 %v255, 0.0
      %v300 = vmax.f32 %v257, 0.0
      %v301 = vmax.f32 %v259, 0.0
      %v302 = vmax.f32 %v261, 0.0
      %v303 = vmax.f32 %v263, 0.0
      %v304 = vmax.f32 %v265, 0.0
      %v305 = vmax.f32 %v267, 0.0
      %v306 = vmax.f32 %v269, 0.0
      %vm307 = vcmask 130048
      %308 = vst.msk [vmem:[#allocation2] sm:$0xff] %vm307, %v291
      %309 = vst.msk [vmem:[#allocation2 + $0x10] sm:$0xff] %vm307, %v292
      %310 = vst.msk [vmem:[#allocation2 + $0x20] sm:$0xff] %vm307, %v293
      %311 = vst.msk [vmem:[#allocation2 + $0x30] sm:$0xff] %vm307, %v294
      %312 = vst.msk [vmem:[#allocation2 + $0x40] sm:$0xff] %vm307, %v295
      %313 = vst.msk [vmem:[#allocation2 + $0x50] sm:$0xff] %vm307, %v296
      %314 = vst.msk [vmem:[#allocation2 + $0x60] sm:$0xff] %vm307, %v297
      %315 = vst.msk [vmem:[#allocation2 + $0x70] sm:$0xff] %vm307, %v298
      %316 = vst.msk [vmem:[#allocation2 + $0x80] sm:$0xff] %vm307, %v299
      %317 = vst.msk [vmem:[#allocation2 + $0x90] sm:$0xff] %vm307, %v300
      %318 = vst.msk [vmem:[#allocation2 + $0xa0] sm:$0xff] %vm307, %v301
      %319 = vst.msk [vmem:[#allocation2 + $0xb0] sm:$0xff] %vm307, %v302
      %320 = vst.msk [vmem:[#allocation2 + $0xc0] sm:$0xff] %vm307, %v303
      %321 = vst.msk [vmem:[#allocation2 + $0xd0] sm:$0xff] %vm307, %v304
      %322 = vst.msk [vmem:[#allocation2 + $0xe0] sm:$0xff] %vm307, %v305
      %323 = vst.msk [vmem:[#allocation2 + $0xf0] sm:$0xff] %vm307, %v306
      %vm356 = vcmask 1046528
      %v357 = vrot.slane %v235, 1
      %v358 = vrot.slane %v236, 1
      %v359 = vsel %vm356, %v357, %v358
      %v360 = vrot.slane %v237, 1
      %v361 = vrot.slane %v238, 1
      %v362 = vsel %vm356, %v360, %v361
      %v363 = vrot.slane %v239, 1
      %v364 = vrot.slane %v240, 1
      %v365 = vsel %vm356, %v363, %v364
      %v366 = vrot.slane %v241, 1
      %v367 = vrot.slane %v242, 1
      %v368 = vsel %vm356, %v366, %v367
      %v369 = vrot.slane %v243, 1
      %v370 = vrot.slane %v244, 1
      %v371 = vsel %vm356, %v369, %v370
      %v372 = vrot.slane %v245, 1
      %v373 = vrot.slane %v246, 1
      %v374 = vsel %vm356, %v372, %v373
      %v375 = vrot.slane %v247, 1
      %v376 = vrot.slane %v248, 1
      %v377 = vsel %vm356, %v375, %v376
      %v378 = vrot.slane %v249, 1
      %v379 = vrot.slane %v250, 1
      %v380 = vsel %vm356, %v378, %v379
      %v381 = vrot.slane %v255, 1
      %v382 = vrot.slane %v256, 1
      %v383 = vsel %vm356, %v381, %v382
      %v384 = vrot.slane %v257, 1
      %v385 = vrot.slane %v258, 1
      %v386 = vsel %vm356, %v384, %v385
      %v387 = vrot.slane %v259, 1
      %v388 = vrot.slane %v260, 1
      %v389 = vsel %vm356, %v387, %v388
      %v390 = vrot.slane %v261, 1
      %v391 = vrot.slane %v262, 1
      %v392 = vsel %vm356, %v390, %v391
      %v393 = vrot.slane %v263, 1
      %v394 = vrot.slane %v264, 1
      %v395 = vsel %vm356, %v393, %v394
      %v396 = vrot.slane %v265, 1
      %v397 = vrot.slane %v266, 1
      %v398 = vsel %vm356, %v396, %v397
      %v399 = vrot.slane %v267, 1
      %v400 = vrot.slane %v268, 1
      %v401 = vsel %vm356, %v399, %v400
      %v402 = vrot.slane %v269, 1
      %v403 = vrot.slane %v270, 1
      %v404 = vsel %vm356, %v402, %v403
      %v421 = vadd.f32 %v275, %v359
      %v422 = vadd.f32 %v276, %v362
      %v423 = vadd.f32 %v277, %v365
      %v424 = vadd.f32 %v278, %v368
      %v425 = vadd.f32 %v279, %v371
      %v426 = vadd.f32 %v280, %v374
      %v427 = vadd.f32 %v281, %v377
      %v428 = vadd.f32 %v282, %v380
      %v429 = vadd.f32 %v283, %v383
      %v430 = vadd.f32 %v284, %v386
      %v431 = vadd.f32 %v285, %v389
      %v432 = vadd.f32 %v286, %v392
      %v433 = vadd.f32 %v287, %v395
      %v434 = vadd.f32 %v288, %v398
      %v435 = vadd.f32 %v289, %v401
      %v436 = vadd.f32 %v290, %v404
      %v437 = vmax.f32 %v236, 0.0
      %v438 = vmax.f32 %v238, 0.0
      %v439 = vmax.f32 %v240, 0.0
      %v440 = vmax.f32 %v242, 0.0
      %v441 = vmax.f32 %v244, 0.0
      %v442 = vmax.f32 %v246, 0.0
      %v443 = vmax.f32 %v248, 0.0
      %v444 = vmax.f32 %v250, 0.0
      %v445 = vmax.f32 %v256, 0.0
      %v446 = vmax.f32 %v258, 0.0
      %v447 = vmax.f32 %v260, 0.0
      %v448 = vmax.f32 %v262, 0.0
      %v449 = vmax.f32 %v264, 0.0
      %v450 = vmax.f32 %v266, 0.0
      %v451 = vmax.f32 %v268, 0.0
      %v452 = vmax.f32 %v270, 0.0
      %v485 = vrot.slane %v291, 1
      %v486 = vrot.slane %v437, 1
      %v487 = vsel %vm356, %v485, %v486
      %v488 = vrot.slane %v292, 1
      %v489 = vrot.slane %v438, 1
      %v490 = vsel %vm356, %v488, %v489
      %v491 = vrot.slane %v293, 1
      %v492 = vrot.slane %v439, 1
      %v493 = vsel %vm356, %v491, %v492
      %v494 = vrot.slane %v294, 1
      %v495 = vrot.slane %v440, 1
      %v496 = vsel %vm356, %v494, %v495
      %v497 = vrot.slane %v295, 1
      %v498 = vrot.slane %v441, 1
      %v499 = vsel %vm356, %v497, %v498
      %v500 = vrot.slane %v296, 1
      %v501 = vrot.slane %v442, 1
      %v502 = vsel %vm356, %v500, %v501
      %v503 = vrot.slane %v297, 1
      %v504 = vrot.slane %v443, 1
      %v505 = vsel %vm356, %v503, %v504
      %v506 = vrot.slane %v298, 1
      %v507 = vrot.slane %v444, 1
      %v508 = vsel %vm356, %v506, %v507
      %v509 = vrot.slane %v299, 1
      %v510 = vrot.slane %v445, 1
      %v511 = vsel %vm356, %v509, %v510
      %v512 = vrot.slane %v300, 1
      %v513 = vrot.slane %v446, 1
      %v514 = vsel %vm356, %v512, %v513
      %v515 = vrot.slane %v301, 1
      %v516 = vrot.slane %v447, 1
      %v517 = vsel %vm356, %v515, %v516
      %v518 = vrot.slane %v302, 1
      %v519 = vrot.slane %v448, 1
      %v520 = vsel %vm356, %v518, %v519
      %v521 = vrot.slane %v303, 1
      %v522 = vrot.slane %v449, 1
      %v523 = vsel %vm356, %v521, %v522
      %v524 = vrot.slane %v304, 1
      %v525 = vrot.slane %v450, 1
      %v526 = vsel %vm356, %v524, %v525
      %v527 = vrot.slane %v305, 1
      %v528 = vrot.slane %v451, 1
      %v529 = vsel %vm356, %v527, %v528
      %v530 = vrot.slane %v306, 1
      %v531 = vrot.slane %v452, 1
      %v532 = vsel %vm356, %v530, %v531
      %533 = vrot.lane.b32.xlu0 %v487, 16
      %v534 = vpop.permute.xlu0 %533
      %535 = vrot.lane.b32.xlu0 %v490, 16
      %v536 = vpop.permute.xlu0 %535
      %537 = vrot.lane.b32.xlu0 %v493, 16
      %v538 = vpop.permute.xlu0 %537
      %539 = vrot.lane.b32.xlu0 %v496, 16
      %v540 = vpop.permute.xlu0 %539
      %541 = vrot.lane.b32.xlu0 %v499, 16
      %v542 = vpop.permute.xlu0 %541
      %543 = vrot.lane.b32.xlu0 %v502, 16
      %v544 = vpop.permute.xlu0 %543
      %545 = vrot.lane.b32.xlu0 %v505, 16
      %v546 = vpop.permute.xlu0 %545
      %547 = vrot.lane.b32.xlu0 %v508, 16
      %v548 = vpop.permute.xlu0 %547
      %549 = vrot.lane.b32.xlu0 %v511, 16
      %v550 = vpop.permute.xlu0 %549
      %551 = vrot.lane.b32.xlu0 %v514, 16
      %v552 = vpop.permute.xlu0 %551
      %553 = vrot.lane.b32.xlu0 %v517, 16
      %v554 = vpop.permute.xlu0 %553
      %555 = vrot.lane.b32.xlu0 %v520, 16
      %v556 = vpop.permute.xlu0 %555
      %557 = vrot.lane.b32.xlu0 %v523, 16
      %v558 = vpop.permute.xlu0 %557
      %559 = vrot.lane.b32.xlu0 %v526, 16
      %v560 = vpop.permute.xlu0 %559
      %561 = vrot.lane.b32.xlu0 %v529, 16
      %v562 = vpop.permute.xlu0 %561
      %563 = vrot.lane.b32.xlu0 %v532, 16
      %v564 = vpop.permute.xlu0 %563
      %vm581 = vcmask 261248
      %582 = vst.msk [vmem:[#allocation2] sm:$0xff] %vm581, %v534
      %583 = vst.msk [vmem:[#allocation2 + $0x10] sm:$0xff] %vm581, %v536
      %584 = vst.msk [vmem:[#allocation2 + $0x20] sm:$0xff] %vm581, %v538
      %585 = vst.msk [vmem:[#allocation2 + $0x30] sm:$0xff] %vm581, %v540
      %586 = vst.msk [vmem:[#allocation2 + $0x40] sm:$0xff] %vm581, %v542
      %587 = vst.msk [vmem:[#allocation2 + $0x50] sm:$0xff] %vm581, %v544
      %588 = vst.msk [vmem:[#allocation2 + $0x60] sm:$0xff] %vm581, %v546
      %589 = vst.msk [vmem:[#allocation2 + $0x70] sm:$0xff] %vm581, %v548
      %590 = vst.msk [vmem:[#allocation2 + $0x80] sm:$0xff] %vm581, %v550
      %591 = vst.msk [vmem:[#allocation2 + $0x90] sm:$0xff] %vm581, %v552
      %592 = vst.msk [vmem:[#allocation2 + $0xa0] sm:$0xff] %vm581, %v554
      %593 = vst.msk [vmem:[#allocation2 + $0xb0] sm:$0xff] %vm581, %v556
      %594 = vst.msk [vmem:[#allocation2 + $0xc0] sm:$0xff] %vm581, %v558
      %595 = vst.msk [vmem:[#allocation2 + $0xd0] sm:$0xff] %vm581, %v560
      %596 = vst.msk [vmem:[#allocation2 + $0xe0] sm:$0xff] %vm581, %v562
      %597 = vst.msk [vmem:[#allocation2 + $0xf0] sm:$0xff] %vm581, %v564
      %vm598 = vcmask 1045504
      %v599 = vrot.slane %v235, 2
      %v600 = vrot.slane %v236, 2
      %v601 = vsel %vm598, %v599, %v600
      %v602 = vrot.slane %v237, 2
      %v603 = vrot.slane %v238, 2
      %v604 = vsel %vm598, %v602, %v603
      %v605 = vrot.slane %v239, 2
      %v606 = vrot.slane %v240, 2
      %v607 = vsel %vm598, %v605, %v606
      %v608 = vrot.slane %v241, 2
      %v609 = vrot.slane %v242, 2
      %v610 = vsel %vm598, %v608, %v609
      %v611 = vrot.slane %v243, 2
      %v612 = vrot.slane %v244, 2
      %v613 = vsel %vm598, %v611, %v612
      %v614 = vrot.slane %v245, 2
      %v615 = vrot.slane %v246, 2
      %v616 = vsel %vm598, %v614, %v615
      %v617 = vrot.slane %v247, 2
      %v618 = vrot.slane %v248, 2
      %v619 = vsel %vm598, %v617, %v618
      %v620 = vrot.slane %v249, 2
      %v621 = vrot.slane %v250, 2
      %v622 = vsel %vm598, %v620, %v621
      %v623 = vrot.slane %v255, 2
      %v624 = vrot.slane %v256, 2
      %v625 = vsel %vm598, %v623, %v624
      %v626 = vrot.slane %v257, 2
      %v627 = vrot.slane %v258, 2
      %v628 = vsel %vm598, %v626, %v627
      %v629 = vrot.slane %v259, 2
      %v630 = vrot.slane %v260, 2
      %v631 = vsel %vm598, %v629, %v630
      %v632 = vrot.slane %v261, 2
      %v633 = vrot.slane %v262, 2
      %v634 = vsel %vm598, %v632, %v633
      %v635 = vrot.slane %v263, 2
      %v636 = vrot.slane %v264, 2
      %v637 = vsel %vm598, %v635, %v636
      %v638 = vrot.slane %v265, 2
      %v639 = vrot.slane %v266, 2
      %v640 = vsel %vm598, %v638, %v639
      %v641 = vrot.slane %v267, 2
      %v642 = vrot.slane %v268, 2
      %v643 = vsel %vm598, %v641, %v642
      %v644 = vrot.slane %v269, 2
      %v645 = vrot.slane %v270, 2
      %v646 = vsel %vm598, %v644, %v645
      %v663 = vadd.f32 %v421, %v601
      %v664 = vadd.f32 %v422, %v604
      %v665 = vadd.f32 %v423, %v607
      %v666 = vadd.f32 %v424, %v610
      %v667 = vadd.f32 %v425, %v613
      %v668 = vadd.f32 %v426, %v616
      %v669 = vadd.f32 %v427, %v619
      %v670 = vadd.f32 %v428, %v622
      %v671 = vadd.f32 %v429, %v625
      %v672 = vadd.f32 %v430, %v628
      %v673 = vadd.f32 %v431, %v631
      %v674 = vadd.f32 %v432, %v634
      %v675 = vadd.f32 %v433, %v637
      %v676 = vadd.f32 %v434, %v640
      %v677 = vadd.f32 %v435, %v643
      %v678 = vadd.f32 %v436, %v646
      %v679 = vrot.slane %v291, 2
      %v680 = vrot.slane %v437, 2
      %v681 = vsel %vm598, %v679, %v680
      %v682 = vrot.slane %v292, 2
      %v683 = vrot.slane %v438, 2
      %v684 = vsel %vm598, %v682, %v683
      %v685 = vrot.slane %v293, 2
      %v686 = vrot.slane %v439, 2
      %v687 = vsel %vm598, %v685, %v686
      %v688 = vrot.slane %v294, 2
      %v689 = vrot.slane %v440, 2
      %v690 = vsel %vm598, %v688, %v689
      %v691 = vrot.slane %v295, 2
      %v692 = vrot.slane %v441, 2
      %v693 = vsel %vm598, %v691, %v692
      %v694 = vrot.slane %v296, 2
      %v695 = vrot.slane %v442, 2
      %v696 = vsel %vm598, %v694, %v695
      %v697 = vrot.slane %v297, 2
      %v698 = vrot.slane %v443, 2
      %v699 = vsel %vm598, %v697, %v698
      %v700 = vrot.slane %v298, 2
      %v701 = vrot.slane %v444, 2
      %v702 = vsel %vm598, %v700, %v701
      %v703 = vrot.slane %v299, 2
      %v704 = vrot.slane %v445, 2
      %v705 = vsel %vm598, %v703, %v704
      %v706 = vrot.slane %v300, 2
      %v707 = vrot.slane %v446, 2
      %v708 = vsel %vm598, %v706, %v707
      %v709 = vrot.slane %v301, 2
      %v710 = vrot.slane %v447, 2
      %v711 = vsel %vm598, %v709, %v710
      %v712 = vrot.slane %v302, 2
      %v713 = vrot.slane %v448, 2
      %v714 = vsel %vm598, %v712, %v713
      %v715 = vrot.slane %v303, 2
      %v716 = vrot.slane %v449, 2
      %v717 = vsel %vm598, %v715, %v716
      %v718 = vrot.slane %v304, 2
      %v719 = vrot.slane %v450, 2
      %v720 = vsel %vm598, %v718, %v719
      %v721 = vrot.slane %v305, 2
      %v722 = vrot.slane %v451, 2
      %v723 = vsel %vm598, %v721, %v722
      %v724 = vrot.slane %v306, 2
      %v725 = vrot.slane %v452, 2
      %v726 = vsel %vm598, %v724, %v725
      %727 = vrot.lane.b32.xlu0 %v681, 32
      %v728 = vpop.permute.xlu0 %727
      %729 = vrot.lane.b32.xlu0 %v684, 32
      %v730 = vpop.permute.xlu0 %729
      %731 = vrot.lane.b32.xlu0 %v687, 32
      %v732 = vpop.permute.xlu0 %731
      %733 = vrot.lane.b32.xlu0 %v690, 32
      %v734 = vpop.permute.xlu0 %733
      %735 = vrot.lane.b32.xlu0 %v693, 32
      %v736 = vpop.permute.xlu0 %735
      %737 = vrot.lane.b32.xlu0 %v696, 32
      %v738 = vpop.permute.xlu0 %737
      %739 = vrot.lane.b32.xlu0 %v699, 32
      %v740 = vpop.permute.xlu0 %739
      %741 = vrot.lane.b32.xlu0 %v702, 32
      %v742 = vpop.permute.xlu0 %741
      %743 = vrot.lane.b32.xlu0 %v705, 32
      %v744 = vpop.permute.xlu0 %743
      %745 = vrot.lane.b32.xlu0 %v708, 32
      %v746 = vpop.permute.xlu0 %745
      %747 = vrot.lane.b32.xlu0 %v711, 32
      %v748 = vpop.permute.xlu0 %747
      %749 = vrot.lane.b32.xlu0 %v714, 32
      %v750 = vpop.permute.xlu0 %749
      %751 = vrot.lane.b32.xlu0 %v717, 32
      %v752 = vpop.permute.xlu0 %751
      %753 = vrot.lane.b32.xlu0 %v720, 32
      %v754 = vpop.permute.xlu0 %753
      %755 = vrot.lane.b32.xlu0 %v723, 32
      %v756 = vpop.permute.xlu0 %755
      %757 = vrot.lane.b32.xlu0 %v726, 32
      %v758 = vpop.permute.xlu0 %757
      %vm775 = vcmask 392448
      %776 = vst.msk [vmem:[#allocation2] sm:$0xff] %vm775, %v728
      %777 = vst.msk [vmem:[#allocation2 + $0x10] sm:$0xff] %vm775, %v730
      %778 = vst.msk [vmem:[#allocation2 + $0x20] sm:$0xff] %vm775, %v732
      %779 = vst.msk [vmem:[#allocation2 + $0x30] sm:$0xff] %vm775, %v734
      %780 = vst.msk [vmem:[#allocation2 + $0x40] sm:$0xff] %vm775, %v736
      %781 = vst.msk [vmem:[#allocation2 + $0x50] sm:$0xff] %vm775, %v738
      %782 = vst.msk [vmem:[#allocation2 + $0x60] sm:$0xff] %vm775, %v740
      %783 = vst.msk [vmem:[#allocation2 + $0x70] sm:$0xff] %vm775, %v742
      %784 = vst.msk [vmem:[#allocation2 + $0x80] sm:$0xff] %vm775, %v744
      %785 = vst.msk [vmem:[#allocation2 + $0x90] sm:$0xff] %vm775, %v746
      %786 = vst.msk [vmem:[#allocation2 + $0xa0] sm:$0xff] %vm775, %v748
      %787 = vst.msk [vmem:[#allocation2 + $0xb0] sm:$0xff] %vm775, %v750
      %788 = vst.msk [vmem:[#allocation2 + $0xc0] sm:$0xff] %vm775, %v752
      %789 = vst.msk [vmem:[#allocation2 + $0xd0] sm:$0xff] %vm775, %v754
      %790 = vst.msk [vmem:[#allocation2 + $0xe0] sm:$0xff] %vm775, %v756
      %791 = vst.msk [vmem:[#allocation2 + $0xf0] sm:$0xff] %vm775, %v758
      %v792 = vadd.f32 %v663, %v237
      %v793 = vadd.f32 %v664, %v239
      %v794 = vadd.f32 %v665, %v241
      %v795 = vadd.f32 %v666, %v243
      %v796 = vadd.f32 %v667, %v245
      %v797 = vadd.f32 %v668, %v247
      %v798 = vadd.f32 %v669, %v249
      %v799 = vadd.f32 %v670, %v251
      %v800 = vadd.f32 %v671, %v257
      %v801 = vadd.f32 %v672, %v259
      %v802 = vadd.f32 %v673, %v261
      %v803 = vadd.f32 %v674, %v263
      %v804 = vadd.f32 %v675, %v265
      %v805 = vadd.f32 %v676, %v267
      %v806 = vadd.f32 %v677, %v269
      %v807 = vadd.f32 %v678, %v271
      %v808 = vmax.f32 %v251, 0.0
      %v809 = vmax.f32 %v271, 0.0
      %812 = vrot.lane.b32.xlu0 %v292, 48
      %v813 = vpop.permute.xlu0 %812
      %814 = vrot.lane.b32.xlu0 %v293, 48
      %v815 = vpop.permute.xlu0 %814
      %816 = vrot.lane.b32.xlu0 %v294, 48
      %v817 = vpop.permute.xlu0 %816
      %818 = vrot.lane.b32.xlu0 %v295, 48
      %v819 = vpop.permute.xlu0 %818
      %820 = vrot.lane.b32.xlu0 %v296, 48
      %v821 = vpop.permute.xlu0 %820
      %822 = vrot.lane.b32.xlu0 %v297, 48
      %v823 = vpop.permute.xlu0 %822
      %824 = vrot.lane.b32.xlu0 %v298, 48
      %v825 = vpop.permute.xlu0 %824
      %826 = vrot.lane.b32.xlu0 %v808, 48
      %v827 = vpop.permute.xlu0 %826
      %828 = vrot.lane.b32.xlu0 %v300, 48
      %v829 = vpop.permute.xlu0 %828
      %830 = vrot.lane.b32.xlu0 %v301, 48
      %v831 = vpop.permute.xlu0 %830
      %832 = vrot.lane.b32.xlu0 %v302, 48
      %v833 = vpop.permute.xlu0 %832
      %834 = vrot.lane.b32.xlu0 %v303, 48
      %v835 = vpop.permute.xlu0 %834
      %836 = vrot.lane.b32.xlu0 %v304, 48
      %v837 = vpop.permute.xlu0 %836
      %838 = vrot.lane.b32.xlu0 %v305, 48
      %v839 = vpop.permute.xlu0 %838
      %840 = vrot.lane.b32.xlu0 %v306, 48
      %v841 = vpop.permute.xlu0 %840
      %842 = vrot.lane.b32.xlu0 %v809, 48
      %v843 = vpop.permute.xlu0 %842
      %vm860 = vcmask 523648
      %861 = vst.msk [vmem:[#allocation2] sm:$0xff] %vm860, %v813
      %862 = vst.msk [vmem:[#allocation2 + $0x10] sm:$0xff] %vm860, %v815
      %863 = vst.msk [vmem:[#allocation2 + $0x20] sm:$0xff] %vm860, %v817
      %864 = vst.msk [vmem:[#allocation2 + $0x30] sm:$0xff] %vm860, %v819
      %865 = vst.msk [vmem:[#allocation2 + $0x40] sm:$0xff] %vm860, %v821
      %866 = vst.msk [vmem:[#allocation2 + $0x50] sm:$0xff] %vm860, %v823
      %867 = vst.msk [vmem:[#allocation2 + $0x60] sm:$0xff] %vm860, %v825
      %868 = vst.msk [vmem:[#allocation2 + $0x70] sm:$0xff] %vm860, %v827
      %869 = vst.msk [vmem:[#allocation2 + $0x80] sm:$0xff] %vm860, %v829
      %870 = vst.msk [vmem:[#allocation2 + $0x90] sm:$0xff] %vm860, %v831
      %871 = vst.msk [vmem:[#allocation2 + $0xa0] sm:$0xff] %vm860, %v833
      %872 = vst.msk [vmem:[#allocation2 + $0xb0] sm:$0xff] %vm860, %v835
      %873 = vst.msk [vmem:[#allocation2 + $0xc0] sm:$0xff] %vm860, %v837
      %874 = vst.msk [vmem:[#allocation2 + $0xd0] sm:$0xff] %vm860, %v839
      %875 = vst.msk [vmem:[#allocation2 + $0xe0] sm:$0xff] %vm860, %v841
      %876 = vst.msk [vmem:[#allocation2 + $0xf0] sm:$0xff] %vm860, %v843
      %v881 = vrot.slane %v251, 1
      %v882 = vrot.slane %v252, 1
      %v883 = vsel %vm356, %v881, %v882
      %v884 = vrot.slane %v271, 1
      %v885 = vrot.slane %v272, 1
      %v886 = vsel %vm356, %v884, %v885
      %v889 = vadd.f32 %v792, %v362
      %v890 = vadd.f32 %v793, %v365
      %v891 = vadd.f32 %v794, %v368
      %v892 = vadd.f32 %v795, %v371
      %v893 = vadd.f32 %v796, %v374
      %v894 = vadd.f32 %v797, %v377
      %v895 = vadd.f32 %v798, %v380
      %v896 = vadd.f32 %v799, %v883
      %v897 = vadd.f32 %v800, %v386
      %v898 = vadd.f32 %v801, %v389
      %v899 = vadd.f32 %v802, %v392
      %v900 = vadd.f32 %v803, %v395
      %v901 = vadd.f32 %v804, %v398
      %v902 = vadd.f32 %v805, %v401
      %v903 = vadd.f32 %v806, %v404
      %v904 = vadd.f32 %v807, %v886
      %v905 = vmax.f32 %v252, 0.0
      %v906 = vmax.f32 %v272, 0.0
      %v909 = vrot.slane %v808, 1
      %v910 = vrot.slane %v905, 1
      %v911 = vsel %vm356, %v909, %v910
      %v912 = vrot.slane %v809, 1
      %v913 = vrot.slane %v906, 1
      %v914 = vsel %vm356, %v912, %v913
      %915 = vrot.lane.b32.xlu0 %v490, 64
      %v916 = vpop.permute.xlu0 %915
      %917 = vrot.lane.b32.xlu0 %v493, 64
      %v918 = vpop.permute.xlu0 %917
      %919 = vrot.lane.b32.xlu0 %v496, 64
      %v920 = vpop.permute.xlu0 %919
      %921 = vrot.lane.b32.xlu0 %v499, 64
      %v922 = vpop.permute.xlu0 %921
      %923 = vrot.lane.b32.xlu0 %v502, 64
      %v924 = vpop.permute.xlu0 %923
      %925 = vrot.lane.b32.xlu0 %v505, 64
      %v926 = vpop.permute.xlu0 %925
      %927 = vrot.lane.b32.xlu0 %v508, 64
      %v928 = vpop.permute.xlu0 %927
      %929 = vrot.lane.b32.xlu0 %v911, 64
      %v930 = vpop.permute.xlu0 %929
      %931 = vrot.lane.b32.xlu0 %v514, 64
      %v932 = vpop.permute.xlu0 %931
      %933 = vrot.lane.b32.xlu0 %v517, 64
      %v934 = vpop.permute.xlu0 %933
      %935 = vrot.lane.b32.xlu0 %v520, 64
      %v936 = vpop.permute.xlu0 %935
      %937 = vrot.lane.b32.xlu0 %v523, 64
      %v938 = vpop.permute.xlu0 %937
      %939 = vrot.lane.b32.xlu0 %v526, 64
      %v940 = vpop.permute.xlu0 %939
      %941 = vrot.lane.b32.xlu0 %v529, 64
      %v942 = vpop.permute.xlu0 %941
      %943 = vrot.lane.b32.xlu0 %v532, 64
      %v944 = vpop.permute.xlu0 %943
      %945 = vrot.lane.b32.xlu0 %v914, 64
      %v946 = vpop.permute.xlu0 %945
      %vm963 = vcmask 654848
      %964 = vst.msk [vmem:[#allocation2] sm:$0xff] %vm963, %v916
      %965 = vst.msk [vmem:[#allocation2 + $0x10] sm:$0xff] %vm963, %v918
      %966 = vst.msk [vmem:[#allocation2 + $0x20] sm:$0xff] %vm963, %v920
      %967 = vst.msk [vmem:[#allocation2 + $0x30] sm:$0xff] %vm963, %v922
      %968 = vst.msk [vmem:[#allocation2 + $0x40] sm:$0xff] %vm963, %v924
      %969 = vst.msk [vmem:[#allocation2 + $0x50] sm:$0xff] %vm963, %v926
      %970 = vst.msk [vmem:[#allocation2 + $0x60] sm:$0xff] %vm963, %v928
      %971 = vst.msk [vmem:[#allocation2 + $0x70] sm:$0xff] %vm963, %v930
      %972 = vst.msk [vmem:[#allocation2 + $0x80] sm:$0xff] %vm963, %v932
      %973 = vst.msk [vmem:[#allocation2 + $0x90] sm:$0xff] %vm963, %v934
      %974 = vst.msk [vmem:[#allocation2 + $0xa0] sm:$0xff] %vm963, %v936
      %975 = vst.msk [vmem:[#allocation2 + $0xb0] sm:$0xff] %vm963, %v938
      %976 = vst.msk [vmem:[#allocation2 + $0xc0] sm:$0xff] %vm963, %v940
      %977 = vst.msk [vmem:[#allocation2 + $0xd0] sm:$0xff] %vm963, %v942
      %978 = vst.msk [vmem:[#allocation2 + $0xe0] sm:$0xff] %vm963, %v944
      %979 = vst.msk [vmem:[#allocation2 + $0xf0] sm:$0xff] %vm963, %v946
      %v980 = vrot.slane %v251, 2
      %v981 = vrot.slane %v252, 2
      %v982 = vsel %vm598, %v980, %v981
      %v983 = vrot.slane %v271, 2
      %v984 = vrot.slane %v272, 2
      %v985 = vsel %vm598, %v983, %v984
      %v988 = vadd.f32 %v889, %v604
      %v989 = vadd.f32 %v890, %v607
      %v990 = vadd.f32 %v891, %v610
      %v991 = vadd.f32 %v892, %v613
      %v992 = vadd.f32 %v893, %v616
      %v993 = vadd.f32 %v894, %v619
      %v994 = vadd.f32 %v895, %v622
      %v995 = vadd.f32 %v896, %v982
      %v996 = vadd.f32 %v897, %v628
      %v997 = vadd.f32 %v898, %v631
      %v998 = vadd.f32 %v899, %v634
      %v999 = vadd.f32 %v900, %v637
      %v1000 = vadd.f32 %v901, %v640
      %v1001 = vadd.f32 %v902, %v643
      %v1002 = vadd.f32 %v903, %v646
      %v1003 = vadd.f32 %v904, %v985
      %v1004 = vrot.slane %v808, 2
      %v1005 = vrot.slane %v905, 2
      %v1006 = vsel %vm598, %v1004, %v1005
      %v1007 = vrot.slane %v809, 2
      %v1008 = vrot.slane %v906, 2
      %v1009 = vsel %vm598, %v1007, %v1008
      %1010 = vrot.lane.b32.xlu0 %v684, 80
      %v1011 = vpop.permute.xlu0 %1010
      %1012 = vrot.lane.b32.xlu0 %v687, 80
      %v1013 = vpop.permute.xlu0 %1012
      %1014 = vrot.lane.b32.xlu0 %v690, 80
      %v1015 = vpop.permute.xlu0 %1014
      %1016 = vrot.lane.b32.xlu0 %v693, 80
      %v1017 = vpop.permute.xlu0 %1016
      %1018 = vrot.lane.b32.xlu0 %v696, 80
      %v1019 = vpop.permute.xlu0 %1018
      %1020 = vrot.lane.b32.xlu0 %v699, 80
      %v1021 = vpop.permute.xlu0 %1020
      %1022 = vrot.lane.b32.xlu0 %v702, 80
      %v1023 = vpop.permute.xlu0 %1022
      %1024 = vrot.lane.b32.xlu0 %v1006, 80
      %v1025 = vpop.permute.xlu0 %1024
      %1026 = vrot.lane.b32.xlu0 %v708, 80
      %v1027 = vpop.permute.xlu0 %1026
      %1028 = vrot.lane.b32.xlu0 %v711, 80
      %v1029 = vpop.permute.xlu0 %1028
      %1030 = vrot.lane.b32.xlu0 %v714, 80
      %v1031 = vpop.permute.xlu0 %1030
      %1032 = vrot.lane.b32.xlu0 %v717, 80
      %v1033 = vpop.permute.xlu0 %1032
      %1034 = vrot.lane.b32.xlu0 %v720, 80
      %v1035 = vpop.permute.xlu0 %1034
      %1036 = vrot.lane.b32.xlu0 %v723, 80
      %v1037 = vpop.permute.xlu0 %1036
      %1038 = vrot.lane.b32.xlu0 %v726, 80
      %v1039 = vpop.permute.xlu0 %1038
      %1040 = vrot.lane.b32.xlu0 %v1009, 80
      %v1041 = vpop.permute.xlu0 %1040
      %vm1058 = vcmask 786048
      %1059 = vst.msk [vmem:[#allocation2] sm:$0xff] %vm1058, %v1011
      %1060 = vst.msk [vmem:[#allocation2 + $0x10] sm:$0xff] %vm1058, %v1013
      %1061 = vst.msk [vmem:[#allocation2 + $0x20] sm:$0xff] %vm1058, %v1015
      %1062 = vst.msk [vmem:[#allocation2 + $0x30] sm:$0xff] %vm1058, %v1017
      %1063 = vst.msk [vmem:[#allocation2 + $0x40] sm:$0xff] %vm1058, %v1019
      %1064 = vst.msk [vmem:[#allocation2 + $0x50] sm:$0xff] %vm1058, %v1021
      %1065 = vst.msk [vmem:[#allocation2 + $0x60] sm:$0xff] %vm1058, %v1023
      %1066 = vst.msk [vmem:[#allocation2 + $0x70] sm:$0xff] %vm1058, %v1025
      %1067 = vst.msk [vmem:[#allocation2 + $0x80] sm:$0xff] %vm1058, %v1027
      %1068 = vst.msk [vmem:[#allocation2 + $0x90] sm:$0xff] %vm1058, %v1029
      %1069 = vst.msk [vmem:[#allocation2 + $0xa0] sm:$0xff] %vm1058, %v1031
      %1070 = vst.msk [vmem:[#allocation2 + $0xb0] sm:$0xff] %vm1058, %v1033
      %1071 = vst.msk [vmem:[#allocation2 + $0xc0] sm:$0xff] %vm1058, %v1035
      %1072 = vst.msk [vmem:[#allocation2 + $0xd0] sm:$0xff] %vm1058, %v1037
      %1073 = vst.msk [vmem:[#allocation2 + $0xe0] sm:$0xff] %vm1058, %v1039
      %1074 = vst.msk [vmem:[#allocation2 + $0xf0] sm:$0xff] %vm1058, %v1041
      %v1075 = vadd.f32 %v988, %v239
      %v1076 = vadd.f32 %v989, %v241
      %v1077 = vadd.f32 %v990, %v243
      %v1078 = vadd.f32 %v991, %v245
      %v1079 = vadd.f32 %v992, %v247
      %v1080 = vadd.f32 %v993, %v249
      %v1081 = vadd.f32 %v994, %v251
      %v1082 = vadd.f32 %v995, %v253
      %v1083 = vadd.f32 %v996, %v259
      %v1084 = vadd.f32 %v997, %v261
      %v1085 = vadd.f32 %v998, %v263
      %v1086 = vadd.f32 %v999, %v265
      %v1087 = vadd.f32 %v1000, %v267
      %v1088 = vadd.f32 %v1001, %v269
      %v1089 = vadd.f32 %v1002, %v271
      %v1090 = vadd.f32 %v1003, %v273
      %v1091 = vmax.f32 %v253, 0.0
      %v1092 = vmax.f32 %v273, 0.0
      %1095 = vrot.lane.b32.xlu0 %v293, 96
      %v1096 = vpop.permute.xlu0 %1095
      %1097 = vrot.lane.b32.xlu0 %v294, 96
      %v1098 = vpop.permute.xlu0 %1097
      %1099 = vrot.lane.b32.xlu0 %v295, 96
      %v1100 = vpop.permute.xlu0 %1099
      %1101 = vrot.lane.b32.xlu0 %v296, 96
      %v1102 = vpop.permute.xlu0 %1101
      %1103 = vrot.lane.b32.xlu0 %v297, 96
      %v1104 = vpop.permute.xlu0 %1103
      %1105 = vrot.lane.b32.xlu0 %v298, 96
      %v1106 = vpop.permute.xlu0 %1105
      %1107 = vrot.lane.b32.xlu0 %v808, 96
      %v1108 = vpop.permute.xlu0 %1107
      %1109 = vrot.lane.b32.xlu0 %v1091, 96
      %v1110 = vpop.permute.xlu0 %1109
      %1111 = vrot.lane.b32.xlu0 %v301, 96
      %v1112 = vpop.permute.xlu0 %1111
      %1113 = vrot.lane.b32.xlu0 %v302, 96
      %v1114 = vpop.permute.xlu0 %1113
      %1115 = vrot.lane.b32.xlu0 %v303, 96
      %v1116 = vpop.permute.xlu0 %1115
      %1117 = vrot.lane.b32.xlu0 %v304, 96
      %v1118 = vpop.permute.xlu0 %1117
      %1119 = vrot.lane.b32.xlu0 %v305, 96
      %v1120 = vpop.permute.xlu0 %1119
      %1121 = vrot.lane.b32.xlu0 %v306, 96
      %v1122 = vpop.permute.xlu0 %1121
      %1123 = vrot.lane.b32.xlu0 %v809, 96
      %v1124 = vpop.permute.xlu0 %1123
      %1125 = vrot.lane.b32.xlu0 %v1092, 96
      %v1126 = vpop.permute.xlu0 %1125
      %vm1143 = vcmask 917248
      %1144 = vst.msk [vmem:[#allocation2] sm:$0xff] %vm1143, %v1096
      %1145 = vst.msk [vmem:[#allocation2 + $0x10] sm:$0xff] %vm1143, %v1098
      %1146 = vst.msk [vmem:[#allocation2 + $0x20] sm:$0xff] %vm1143, %v1100
      %1147 = vst.msk [vmem:[#allocation2 + $0x30] sm:$0xff] %vm1143, %v1102
      %1148 = vst.msk [vmem:[#allocation2 + $0x40] sm:$0xff] %vm1143, %v1104
      %1149 = vst.msk [vmem:[#allocation2 + $0x50] sm:$0xff] %vm1143, %v1106
      %1150 = vst.msk [vmem:[#allocation2 + $0x60] sm:$0xff] %vm1143, %v1108
      %1151 = vst.msk [vmem:[#allocation2 + $0x70] sm:$0xff] %vm1143, %v1110
      %1152 = vst.msk [vmem:[#allocation2 + $0x80] sm:$0xff] %vm1143, %v1112
      %1153 = vst.msk [vmem:[#allocation2 + $0x90] sm:$0xff] %vm1143, %v1114
      %1154 = vst.msk [vmem:[#allocation2 + $0xa0] sm:$0xff] %vm1143, %v1116
      %1155 = vst.msk [vmem:[#allocation2 + $0xb0] sm:$0xff] %vm1143, %v1118
      %1156 = vst.msk [vmem:[#allocation2 + $0xc0] sm:$0xff] %vm1143, %v1120
      %1157 = vst.msk [vmem:[#allocation2 + $0xd0] sm:$0xff] %vm1143, %v1122
      %1158 = vst.msk [vmem:[#allocation2 + $0xe0] sm:$0xff] %vm1143, %v1124
      %1159 = vst.msk [vmem:[#allocation2 + $0xf0] sm:$0xff] %vm1143, %v1126
      %v1164 = vrot.slane %v253, 1
      %v1165 = vrot.slane %v254, 1
      %v1166 = vsel %vm356, %v1164, %v1165
      %v1167 = vrot.slane %v273, 1
      %v1168 = vrot.slane %v274, 1
      %v1169 = vsel %vm356, %v1167, %v1168
      %v1172 = vadd.f32 %v1075, %v365
      %v1173 = vadd.f32 %v1076, %v368
      %v1174 = vadd.f32 %v1077, %v371
      %v1175 = vadd.f32 %v1078, %v374
      %v1176 = vadd.f32 %v1079, %v377
      %v1177 = vadd.f32 %v1080, %v380
      %v1178 = vadd.f32 %v1081, %v883
      %v1179 = vadd.f32 %v1082, %v1166
      %v1180 = vadd.f32 %v1083, %v389
      %v1181 = vadd.f32 %v1084, %v392
      %v1182 = vadd.f32 %v1085, %v395
      %v1183 = vadd.f32 %v1086, %v398
      %v1184 = vadd.f32 %v1087, %v401
      %v1185 = vadd.f32 %v1088, %v404
      %v1186 = vadd.f32 %v1089, %v886
      %v1187 = vadd.f32 %v1090, %v1169
      %v1188 = vmax.f32 %v254, 0.0
      %v1189 = vmax.f32 %v274, 0.0
      %v1192 = vrot.slane %v1091, 1
      %v1193 = vrot.slane %v1188, 1
      %v1194 = vsel %vm356, %v1192, %v1193
      %v1195 = vrot.slane %v1092, 1
      %v1196 = vrot.slane %v1189, 1
      %v1197 = vsel %vm356, %v1195, %v1196
      %1198 = vrot.lane.b32.xlu0 %v493, 112
      %v1199 = vpop.permute.xlu0 %1198
      %1200 = vrot.lane.b32.xlu0 %v496, 112
      %v1201 = vpop.permute.xlu0 %1200
      %1202 = vrot.lane.b32.xlu0 %v499, 112
      %v1203 = vpop.permute.xlu0 %1202
      %1204 = vrot.lane.b32.xlu0 %v502, 112
      %v1205 = vpop.permute.xlu0 %1204
      %1206 = vrot.lane.b32.xlu0 %v505, 112
      %v1207 = vpop.permute.xlu0 %1206
      %1208 = vrot.lane.b32.xlu0 %v508, 112
      %v1209 = vpop.permute.xlu0 %1208
      %1210 = vrot.lane.b32.xlu0 %v911, 112
      %v1211 = vpop.permute.xlu0 %1210
      %1212 = vrot.lane.b32.xlu0 %v1194, 112
      %v1213 = vpop.permute.xlu0 %1212
      %1214 = vrot.lane.b32.xlu0 %v517, 112
      %v1215 = vpop.permute.xlu0 %1214
      %1216 = vrot.lane.b32.xlu0 %v520, 112
      %v1217 = vpop.permute.xlu0 %1216
      %1218 = vrot.lane.b32.xlu0 %v523, 112
      %v1219 = vpop.permute.xlu0 %1218
      %1220 = vrot.lane.b32.xlu0 %v526, 112
      %v1221 = vpop.permute.xlu0 %1220
      %1222 = vrot.lane.b32.xlu0 %v529, 112
      %v1223 = vpop.permute.xlu0 %1222
      %1224 = vrot.lane.b32.xlu0 %v532, 112
      %v1225 = vpop.permute.xlu0 %1224
      %1226 = vrot.lane.b32.xlu0 %v914, 112
      %v1227 = vpop.permute.xlu0 %1226
      %1228 = vrot.lane.b32.xlu0 %v1197, 112
      %v1229 = vpop.permute.xlu0 %1228
      %vm1246 = vcmask 1048448
      %1247 = vst.msk [vmem:[#allocation2] sm:$0xff] %vm1246, %v1199
      %1248 = vst.msk [vmem:[#allocation2 + $0x10] sm:$0xff] %vm1246, %v1201
      %1249 = vst.msk [vmem:[#allocation2 + $0x20] sm:$0xff] %vm1246, %v1203
      %1250 = vst.msk [vmem:[#allocation2 + $0x30] sm:$0xff] %vm1246, %v1205
      %1251 = vst.msk [vmem:[#allocation2 + $0x40] sm:$0xff] %vm1246, %v1207
      %1252 = vst.msk [vmem:[#allocation2 + $0x50] sm:$0xff] %vm1246, %v1209
      %1253 = vst.msk [vmem:[#allocation2 + $0x60] sm:$0xff] %vm1246, %v1211
      %1254 = vst.msk [vmem:[#allocation2 + $0x70] sm:$0xff] %vm1246, %v1213
      %1255 = vst.msk [vmem:[#allocation2 + $0x80] sm:$0xff] %vm1246, %v1215
      %1256 = vst.msk [vmem:[#allocation2 + $0x90] sm:$0xff] %vm1246, %v1217
      %1257 = vst.msk [vmem:[#allocation2 + $0xa0] sm:$0xff] %vm1246, %v1219
      %1258 = vst.msk [vmem:[#allocation2 + $0xb0] sm:$0xff] %vm1246, %v1221
      %1259 = vst.msk [vmem:[#allocation2 + $0xc0] sm:$0xff] %vm1246, %v1223
      %1260 = vst.msk [vmem:[#allocation2 + $0xd0] sm:$0xff] %vm1246, %v1225
      %1261 = vst.msk [vmem:[#allocation2 + $0xe0] sm:$0xff] %vm1246, %v1227
      %1262 = vst.msk [vmem:[#allocation2 + $0xf0] sm:$0xff] %vm1246, %v1229
      %v1263 = vrot.slane %v253, 2
      %v1264 = vrot.slane %v254, 2
      %v1265 = vsel %vm598, %v1263, %v1264
      %v1266 = vrot.slane %v273, 2
      %v1267 = vrot.slane %v274, 2
      %v1268 = vsel %vm598, %v1266, %v1267
      %v1271 = vadd.f32 %v1172, %v607
      %v1272 = vadd.f32 %v1173, %v610
      %v1273 = vadd.f32 %v1174, %v613
      %v1274 = vadd.f32 %v1175, %v616
      %v1275 = vadd.f32 %v1176, %v619
      %v1276 = vadd.f32 %v1177, %v622
      %v1277 = vadd.f32 %v1178, %v982
      %v1278 = vadd.f32 %v1179, %v1265
      %v1279 = vadd.f32 %v1180, %v631
      %v1280 = vadd.f32 %v1181, %v634
      %v1281 = vadd.f32 %v1182, %v637
      %v1282 = vadd.f32 %v1183, %v640
      %v1283 = vadd.f32 %v1184, %v643
      %v1284 = vadd.f32 %v1185, %v646
      %v1285 = vadd.f32 %v1186, %v985
      %v1286 = vadd.f32 %v1187, %v1268
      %v1287 = vrot.slane %v1091, 2
      %v1288 = vrot.slane %v1188, 2
      %v1289 = vsel %vm598, %v1287, %v1288
      %v1290 = vrot.slane %v1092, 2
      %v1291 = vrot.slane %v1189, 2
      %v1292 = vsel %vm598, %v1290, %v1291
      %1309 = vst.msk [vmem:[#allocation2 + $0x8] sm:$0xff] %vm307, %v687
      %1310 = vst.msk [vmem:[#allocation2 + $0x18] sm:$0xff] %vm307, %v690
      %1311 = vst.msk [vmem:[#allocation2 + $0x28] sm:$0xff] %vm307, %v693
      %1312 = vst.msk [vmem:[#allocation2 + $0x38] sm:$0xff] %vm307, %v696
      %1313 = vst.msk [vmem:[#allocation2 + $0x48] sm:$0xff] %vm307, %v699
      %1314 = vst.msk [vmem:[#allocation2 + $0x58] sm:$0xff] %vm307, %v702
      %1315 = vst.msk [vmem:[#allocation2 + $0x68] sm:$0xff] %vm307, %v1006
      %1316 = vst.msk [vmem:[#allocation2 + $0x78] sm:$0xff] %vm307, %v1289
      %1317 = vst.msk [vmem:[#allocation2 + $0x88] sm:$0xff] %vm307, %v711
      %1318 = vst.msk [vmem:[#allocation2 + $0x98] sm:$0xff] %vm307, %v714
      %1319 = vst.msk [vmem:[#allocation2 + $0xa8] sm:$0xff] %vm307, %v717
      %1320 = vst.msk [vmem:[#allocation2 + $0xb8] sm:$0xff] %vm307, %v720
      %1321 = vst.msk [vmem:[#allocation2 + $0xc8] sm:$0xff] %vm307, %v723
      %1322 = vst.msk [vmem:[#allocation2 + $0xd8] sm:$0xff] %vm307, %v726
      %1323 = vst.msk [vmem:[#allocation2 + $0xe8] sm:$0xff] %vm307, %v1009
      %1324 = vst.msk [vmem:[#allocation2 + $0xf8] sm:$0xff] %vm307, %v1292
      %v1325 = vld [vmem:[#allocation2] sm:$0xff]
      %v1326 = vld [vmem:[#allocation2 + $0x8] sm:$0xff]
      %v1327 = vld [vmem:[#allocation2 + $0x10] sm:$0xff]
      %v1328 = vld [vmem:[#allocation2 + $0x18] sm:$0xff]
      %v1329 = vld [vmem:[#allocation2 + $0x20] sm:$0xff]
      %v1330 = vld [vmem:[#allocation2 + $0x28] sm:$0xff]
      %v1331 = vld [vmem:[#allocation2 + $0x30] sm:$0xff]
      %v1332 = vld [vmem:[#allocation2 + $0x38] sm:$0xff]
      %v1333 = vld [vmem:[#allocation2 + $0x40] sm:$0xff]
      %v1334 = vld [vmem:[#allocation2 + $0x48] sm:$0xff]
      %v1335 = vld [vmem:[#allocation2 + $0x50] sm:$0xff]
      %v1336 = vld [vmem:[#allocation2 + $0x58] sm:$0xff]
      %v1337 = vld [vmem:[#allocation2 + $0x60] sm:$0xff]
      %v1338 = vld [vmem:[#allocation2 + $0x68] sm:$0xff]
      %v1339 = vld [vmem:[#allocation2 + $0x70] sm:$0xff]
      %v1340 = vld [vmem:[#allocation2 + $0x78] sm:$0xff]
      %v1341 = vld [vmem:[#allocation2 + $0x80] sm:$0xff]
      %v1342 = vld [vmem:[#allocation2 + $0x88] sm:$0xff]
      %v1343 = vld [vmem:[#allocation2 + $0x90] sm:$0xff]
      %v1344 = vld [vmem:[#allocation2 + $0x98] sm:$0xff]
      %v1345 = vld [vmem:[#allocation2 + $0xa0] sm:$0xff]
      %v1346 = vld [vmem:[#allocation2 + $0xa8] sm:$0xff]
      %v1347 = vld [vmem:[#allocation2 + $0xb0] sm:$0xff]
      %v1348 = vld [vmem:[#allocation2 + $0xb8] sm:$0xff]
      %v1349 = vld [vmem:[#allocation2 + $0xc0] sm:$0xff]
      %v1350 = vld [vmem:[#allocation2 + $0xc8] sm:$0xff]
      %v1351 = vld [vmem:[#allocation2 + $0xd0] sm:$0xff]
      %v1352 = vld [vmem:[#allocation2 + $0xd8] sm:$0xff]
      %v1353 = vld [vmem:[#allocation2 + $0xe0] sm:$0xff]
      %v1354 = vld [vmem:[#allocation2 + $0xe8] sm:$0xff]
      %v1355 = vld [vmem:[#allocation2 + $0xf0] sm:$0xff]
      %v1356 = vld [vmem:[#allocation2 + $0xf8] sm:$0xff]
      %v1357 = vld [vmem:[%s223] sm:$0xff]
      %v1358 = vld [vmem:[%s223 + $0x8] sm:$0xff]
      %v1359 = vld [vmem:[%s223 + $0x10] sm:$0xff]
      %v1360 = vld [vmem:[%s223 + $0x18] sm:$0xff]
      %v1361 = vld [vmem:[%s223 + $0x20] sm:$0xff]
      %v1362 = vld [vmem:[%s223 + $0x28] sm:$0xff]
      %v1363 = vld [vmem:[%s223 + $0x30] sm:$0xff]
      %v1364 = vld [vmem:[%s223 + $0x38] sm:$0xff]
      %v1365 = vld [vmem:[%s223 + $0x40] sm:$0xff]
      %v1366 = vld [vmem:[%s223 + $0x48] sm:$0xff]
      %v1367 = vld [vmem:[%s223 + $0x50] sm:$0xff]
      %v1368 = vld [vmem:[%s223 + $0x58] sm:$0xff]
      %v1369 = vld [vmem:[%s223 + $0x60] sm:$0xff]
      %v1370 = vld [vmem:[%s223 + $0x68] sm:$0xff]
      %v1371 = vld [vmem:[%s223 + $0x70] sm:$0xff]
      %v1372 = vld [vmem:[%s223 + $0x78] sm:$0xff]
      %v1373 = vld [vmem:[%s223 + $0x80] sm:$0xff]
      %v1374 = vld [vmem:[%s223 + $0x88] sm:$0xff]
      %v1376 = vsel %vm307, %v1326, 0
      %v1379 = vsel %vm307, %v1328, 0
      %v1382 = vsel %vm307, %v1330, 0
      %v1385 = vsel %vm307, %v1332, 0
      %v1388 = vsel %vm307, %v1334, 0
      %v1391 = vsel %vm307, %v1336, 0
      %v1394 = vsel %vm307, %v1338, 0
      %v1397 = vsel %vm307, %v1340, 0
      %v1400 = vsel %vm307, %v1342, 0
      %v1403 = vsel %vm307, %v1344, 0
      %v1406 = vsel %vm307, %v1346, 0
      %v1409 = vsel %vm307, %v1348, 0
      %v1412 = vsel %vm307, %v1350, 0
      %v1415 = vsel %vm307, %v1352, 0
      %v1418 = vsel %vm307, %v1354, 0
      %v1421 = vsel %vm307, %v1356, 0
      %1423 = vmatpush.msra.mxu0 %v1372
      %1424 = vmatpush.msra.mxu0 %v1371
      %1425 = vmatpush.msra.mxu0 %v1370
      %1426 = vmatpush.msra.mxu0 %v1369
      %1427 = vmatpush.msra.mxu0 %v1368
      %1428 = vmatpush.msra.mxu0 %v1367
      %1429 = vmatpush.msra.mxu0 %v1366
      %1430 = vmatpush.msra.mxu0 %v1365
      %1431 = vmatpush.msra.mxu0 %v1364
      %1432 = vmatpush.msra.mxu0 %v1363
      %1433 = vmatpush.msra.mxu0 %v1362
      %1434 = vmatpush.msra.mxu0 %v1361
      %1435 = vmatpush.msra.mxu0 %v1360
      %1436 = vmatpush.msra.mxu0 %v1359
      %1437 = vmatpush.msra.mxu0 %v1358
      %1438 = vmatpush.msra.mxu0 %v1357
      %1439 = vmatmul.f32.gmra.mxu0 %v1325
      %v1440 = vpop.f32.mrf.mxu0
      %v1441 = vadd.f32 0.0, %v1440
      %1442 = vmatmul.f32.gmra.mxu0 %v1327
      %v1443 = vpop.f32.mrf.mxu0
      %v1444 = vadd.f32 0.0, %v1443
      %1445 = vmatmul.f32.gmra.mxu0 %v1329
      %v1446 = vpop.f32.mrf.mxu0
      %v1447 = vadd.f32 0.0, %v1446
      %1448 = vmatmul.f32.gmra.mxu0 %v1331
      %v1449 = vpop.f32.mrf.mxu0
      %v1450 = vadd.f32 0.0, %v1449
      %1451 = vmatmul.f32.gmra.mxu0 %v1333
      %v1452 = vpop.f32.mrf.mxu0
      %v1453 = vadd.f32 0.0, %v1452
      %1454 = vmatmul.f32.gmra.mxu0 %v1335
      %v1455 = vpop.f32.mrf.mxu0
      %v1456 = vadd.f32 0.0, %v1455
      %1457 = vmatmul.f32.gmra.mxu0 %v1337
      %v1458 = vpop.f32.mrf.mxu0
      %v1459 = vadd.f32 0.0, %v1458
      %1460 = vmatmul.f32.gmra.mxu0 %v1339
      %v1461 = vpop.f32.mrf.mxu0
      %v1462 = vadd.f32 0.0, %v1461
      %1463 = vmatmul.f32.gmra.mxu0 %v1341
      %v1464 = vpop.f32.mrf.mxu0
      %v1465 = vadd.f32 0.0, %v1464
      %1466 = vmatmul.f32.gmra.mxu0 %v1343
      %v1467 = vpop.f32.mrf.mxu0
      %v1468 = vadd.f32 0.0, %v1467
      %1469 = vmatmul.f32.gmra.mxu0 %v1345
      %v1470 = vpop.f32.mrf.mxu0
      %v1471 = vadd.f32 0.0, %v1470
      %1472 = vmatmul.f32.gmra.mxu0 %v1347
      %v1473 = vpop.f32.mrf.mxu0
      %v1474 = vadd.f32 0.0, %v1473
      %1475 = vmatmul.f32.gmra.mxu0 %v1349
      %v1476 = vpop.f32.mrf.mxu0
      %v1477 = vadd.f32 0.0, %v1476
      %1478 = vmatmul.f32.gmra.mxu0 %v1351
      %v1479 = vpop.f32.mrf.mxu0
      %v1480 = vadd.f32 0.0, %v1479
      %1481 = vmatmul.f32.gmra.mxu0 %v1353
      %v1482 = vpop.f32.mrf.mxu0
      %v1483 = vadd.f32 0.0, %v1482
      %1484 = vmatmul.f32.gmra.mxu0 %v1355
      %v1485 = vpop.f32.mrf.mxu0
      %v1486 = vadd.f32 0.0, %v1485
      %1487 = vdwg.mxu0
      %1488 = vmatpush.msra.mxu0 0.0
      %1489 = vmatpush.msra.mxu0 0.0
      %1490 = vmatpush.msra.mxu0 0.0
      %1491 = vmatpush.msra.mxu0 0.0
      %1492 = vmatpush.msra.mxu0 0.0
      %1493 = vmatpush.msra.mxu0 0.0
      %1494 = vmatpush.msra.mxu0 0.0
      %1495 = vmatpush.msra.mxu0 0.0
      %1496 = vmatpush.msra.mxu0 0.0
      %1497 = vmatpush.msra.mxu0 0.0
      %1498 = vmatpush.msra.mxu0 0.0
      %1499 = vmatpush.msra.mxu0 0.0
      %1500 = vmatpush.msra.mxu0 0.0
      %1501 = vmatpush.msra.mxu0 0.0
      %1502 = vmatpush.msra.mxu0 %v1374
      %1503 = vmatpush.msra.mxu0 %v1373
      %1504 = vmatmul.f32.gmra.mxu0 %v1376
      %v1505 = vpop.f32.mrf.mxu0
      %v1506 = vadd.f32 %v1441, %v1505
      %1507 = vmatmul.f32.gmra.mxu0 %v1379
      %v1508 = vpop.f32.mrf.mxu0
      %v1509 = vadd.f32 %v1444, %v1508
      %1510 = vmatmul.f32.gmra.mxu0 %v1382
      %v1511 = vpop.f32.mrf.mxu0
      %v1512 = vadd.f32 %v1447, %v1511
      %1513 = vmatmul.f32.gmra.mxu0 %v1385
      %v1514 = vpop.f32.mrf.mxu0
      %v1515 = vadd.f32 %v1450, %v1514
      %1516 = vmatmul.f32.gmra.mxu0 %v1388
      %v1517 = vpop.f32.mrf.mxu0
      %v1518 = vadd.f32 %v1453, %v1517
      %1519 = vmatmul.f32.gmra.mxu0 %v1391
      %v1520 = vpop.f32.mrf.mxu0
      %v1521 = vadd.f32 %v1456, %v1520
      %1522 = vmatmul.f32.gmra.mxu0 %v1394
      %v1523 = vpop.f32.mrf.mxu0
      %v1524 = vadd.f32 %v1459, %v1523
      %1525 = vmatmul.f32.gmra.mxu0 %v1397
      %v1526 = vpop.f32.mrf.mxu0
      %v1527 = vadd.f32 %v1462, %v1526
      %1528 = vmatmul.f32.gmra.mxu0 %v1400
      %v1529 = vpop.f32.mrf.mxu0
      %v1530 = vadd.f32 %v1465, %v1529
      %1531 = vmatmul.f32.gmra.mxu0 %v1403
      %v1532 = vpop.f32.mrf.mxu0
      %v1533 = vadd.f32 %v1468, %v1532
      %1534 = vmatmul.f32.gmra.mxu0 %v1406
      %v1535 = vpop.f32.mrf.mxu0
      %v1536 = vadd.f32 %v1471, %v1535
      %1537 = vmatmul.f32.gmra.mxu0 %v1409
      %v1538 = vpop.f32.mrf.mxu0
      %v1539 = vadd.f32 %v1474, %v1538
      %1540 = vmatmul.f32.gmra.mxu0 %v1412
      %v1541 = vpop.f32.mrf.mxu0
      %v1542 = vadd.f32 %v1477, %v1541
      %1543 = vmatmul.f32.gmra.mxu0 %v1415
      %v1544 = vpop.f32.mrf.mxu0
      %v1545 = vadd.f32 %v1480, %v1544
      %1546 = vmatmul.f32.gmra.mxu0 %v1418
      %v1547 = vpop.f32.mrf.mxu0
      %v1548 = vadd.f32 %v1483, %v1547
      %1549 = vmatmul.f32.gmra.mxu0 %v1421
      %v1550 = vpop.f32.mrf.mxu0
      %v1551 = vadd.f32 %v1486, %v1550
      %1552 = vdwg.mxu0
      %v1553 = vld [vmem:[%s227] sm:$0xf]
      %v1554 = vperm.slane %v1553, 0
      %v1555 = vmul.f32 %v1506, %v1554
      %v1556 = vmul.f32 %v1509, %v1554
      %v1557 = vmul.f32 %v1512, %v1554
      %v1558 = vmul.f32 %v1515, %v1554
      %v1559 = vmul.f32 %v1518, %v1554
      %v1560 = vmul.f32 %v1521, %v1554
      %v1561 = vmul.f32 %v1524, %v1554
      %v1562 = vmul.f32 %v1527, %v1554
      %v1563 = vmul.f32 %v1530, %v1554
      %v1564 = vmul.f32 %v1533, %v1554
      %v1565 = vmul.f32 %v1536, %v1554
      %v1566 = vmul.f32 %v1539, %v1554
      %v1567 = vmul.f32 %v1542, %v1554
      %v1568 = vmul.f32 %v1545, %v1554
      %v1569 = vmul.f32 %v1548, %v1554
      %v1570 = vmul.f32 %v1551, %v1554
      %v1571 = vperm.slane %v1553, 1
      %v1572 = vadd.f32 %v1555, %v1571
      %v1573 = vadd.f32 %v1556, %v1571
      %v1574 = vadd.f32 %v1557, %v1571
      %v1575 = vadd.f32 %v1558, %v1571
      %v1576 = vadd.f32 %v1559, %v1571
      %v1577 = vadd.f32 %v1560, %v1571
      %v1578 = vadd.f32 %v1561, %v1571
      %v1579 = vadd.f32 %v1562, %v1571
      %v1580 = vadd.f32 %v1563, %v1571
      %v1581 = vadd.f32 %v1564, %v1571
      %v1582 = vadd.f32 %v1565, %v1571
      %v1583 = vadd.f32 %v1566, %v1571
      %v1584 = vadd.f32 %v1567, %v1571
      %v1585 = vadd.f32 %v1568, %v1571
      %v1586 = vadd.f32 %v1569, %v1571
      %v1587 = vadd.f32 %v1570, %v1571
      %1604 = vrot.lane.b32.xlu0 %v1572, 112
      %v1605 = vpop.permute.xlu0 %1604
      %1606 = vrot.lane.b32.xlu0 %v1573, 112
      %v1607 = vpop.permute.xlu0 %1606
      %1608 = vrot.lane.b32.xlu0 %v1574, 112
      %v1609 = vpop.permute.xlu0 %1608
      %1610 = vrot.lane.b32.xlu0 %v1575, 112
      %v1611 = vpop.permute.xlu0 %1610
      %1612 = vrot.lane.b32.xlu0 %v1576, 112
      %v1613 = vpop.permute.xlu0 %1612
      %1614 = vrot.lane.b32.xlu0 %v1577, 112
      %v1615 = vpop.permute.xlu0 %1614
      %1616 = vrot.lane.b32.xlu0 %v1578, 112
      %v1617 = vpop.permute.xlu0 %1616
      %1618 = vrot.lane.b32.xlu0 %v1579, 112
      %v1619 = vpop.permute.xlu0 %1618
      %1620 = vrot.lane.b32.xlu0 %v1580, 112
      %v1621 = vpop.permute.xlu0 %1620
      %1622 = vrot.lane.b32.xlu0 %v1581, 112
      %v1623 = vpop.permute.xlu0 %1622
      %1624 = vrot.lane.b32.xlu0 %v1582, 112
      %v1625 = vpop.permute.xlu0 %1624
      %1626 = vrot.lane.b32.xlu0 %v1583, 112
      %v1627 = vpop.permute.xlu0 %1626
      %1628 = vrot.lane.b32.xlu0 %v1584, 112
      %v1629 = vpop.permute.xlu0 %1628
      %1630 = vrot.lane.b32.xlu0 %v1585, 112
      %v1631 = vpop.permute.xlu0 %1630
      %1632 = vrot.lane.b32.xlu0 %v1586, 112
      %v1633 = vpop.permute.xlu0 %1632
      %1634 = vrot.lane.b32.xlu0 %v1587, 112
      %v1635 = vpop.permute.xlu0 %1634
      %v1652 = vadd.f32 %v1572, %v1605
      %v1653 = vadd.f32 %v1573, %v1607
      %v1654 = vadd.f32 %v1574, %v1609
      %v1655 = vadd.f32 %v1575, %v1611
      %v1656 = vadd.f32 %v1576, %v1613
      %v1657 = vadd.f32 %v1577, %v1615
      %v1658 = vadd.f32 %v1578, %v1617
      %v1659 = vadd.f32 %v1579, %v1619
      %v1660 = vadd.f32 %v1580, %v1621
      %v1661 = vadd.f32 %v1581, %v1623
      %v1662 = vadd.f32 %v1582, %v1625
      %v1663 = vadd.f32 %v1583, %v1627
      %v1664 = vadd.f32 %v1584, %v1629
      %v1665 = vadd.f32 %v1585, %v1631
      %v1666 = vadd.f32 %v1586, %v1633
      %v1667 = vadd.f32 %v1587, %v1635
      %v1668 = vlaneseq
      %v1669 = vshrl.u32 %v1668, 7
      %vm1670 = vcmp.eq.s32.totalorder %v1669, 0
      %v1671 = vsel %vm1670, 1, 0
      %v1672 = vsub.s32 3, %v1671
      %vm1673 = vcmp.eq.s32.totalorder %v1669, 7
      %v1674 = vsel %vm1673, 1, 0
      %v1675 = vsub.s32 %v1672, %v1674
      %v1676 = vmul.u32 %v1675, 2
      %v1677 = vmul.u32 %v1675, 3
      %v1678 = vcvt.s32.f32 %v1676
      %v1679 = vcvt.s32.f32 %v1677
      %v1680 = vrcp.pop %v1678
      %v1681 = vmul.f32 %v1678, %v1680
      %v1682 = vsub.f32 1.0, %v1681
      %v1683 = vmul.f32 %v1680, %v1682
      %v1684 = vadd.f32 %v1680, %v1683
      %vm1685 = vweird.f32 %v1678
      %vm1686 = vweird.f32 %v1680
      %vm1687 = vmor %vm1685, %vm1686
      %v1688 = vsel %vm1687, %v1680, %v1684
      %v1689 = vand.u32 2147483647, %v1678
      %vm1690 = vcmp.eq.f32.partialorder %v1689, 8.507059e+37
      %v1691 = vand.u32 %v1678, 2147483648
      %v1692 = vor.u32 1.1754944e-38, %v1691
      %v1693 = vsel %vm1690, %v1692, %v1688
      %v1694 = vmul.f32 1.0, %v1693
      %v1695 = vrcp.pop %v1679
      %v1696 = vmul.f32 %v1679, %v1695
      %v1697 = vsub.f32 1.0, %v1696
      %v1698 = vmul.f32 %v1695, %v1697
      %v1699 = vadd.f32 %v1695, %v1698
      %vm1700 = vweird.f32 %v1679
      %vm1701 = vweird.f32 %v1695
      %vm1702 = vmor %vm1700, %vm1701
      %v1703 = vsel %vm1702, %v1695, %v1699
      %v1704 = vand.u32 2147483647, %v1679
      %vm1705 = vcmp.eq.f32.partialorder %v1704, 8.507059e+37
      %v1706 = vand.u32 %v1679, 2147483648
      %v1707 = vor.u32 1.1754944e-38, %v1706
      %v1708 = vsel %vm1705, %v1707, %v1703
      %v1709 = vmul.f32 1.0, %v1708
      %v1710 = vperm.slane %v1553, 2
      %v1711 = vmul.f32 %v237, %v1710
      %v1712 = vmul.f32 %v238, %v1710
      %v1713 = vmul.f32 %v239, %v1710
      %v1714 = vmul.f32 %v240, %v1710
      %v1715 = vmul.f32 %v241, %v1710
      %v1716 = vmul.f32 %v242, %v1710
      %v1717 = vmul.f32 %v243, %v1710
      %v1718 = vmul.f32 %v244, %v1710
      %v1719 = vmul.f32 %v245, %v1710
      %v1720 = vmul.f32 %v246, %v1710
      %v1721 = vmul.f32 %v247, %v1710
      %v1722 = vmul.f32 %v248, %v1710
      %v1723 = vmul.f32 %v249, %v1710
      %v1724 = vmul.f32 %v250, %v1710
      %v1725 = vmul.f32 %v251, %v1710
      %v1726 = vmul.f32 %v252, %v1710
      %v1727 = vmul.f32 %v257, %v1710
      %v1728 = vmul.f32 %v258, %v1710
      %v1729 = vmul.f32 %v259, %v1710
      %v1730 = vmul.f32 %v260, %v1710
      %v1731 = vmul.f32 %v261, %v1710
      %v1732 = vmul.f32 %v262, %v1710
      %v1733 = vmul.f32 %v263, %v1710
      %v1734 = vmul.f32 %v264, %v1710
      %v1735 = vmul.f32 %v265, %v1710
      %v1736 = vmul.f32 %v266, %v1710
      %v1737 = vmul.f32 %v267, %v1710
      %v1738 = vmul.f32 %v268, %v1710
      %v1739 = vmul.f32 %v269, %v1710
      %v1740 = vmul.f32 %v270, %v1710
      %v1741 = vmul.f32 %v271, %v1710
      %v1742 = vmul.f32 %v272, %v1710
      %v1743 = vmul.f32 %v1271, %v1694
      %v1744 = vmul.f32 %v1272, %v1709
      %v1745 = vmul.f32 %v1273, %v1709
      %v1746 = vmul.f32 %v1274, %v1709
      %v1747 = vmul.f32 %v1275, %v1709
      %v1748 = vmul.f32 %v1276, %v1709
      %v1749 = vmul.f32 %v1277, %v1709
      %v1750 = vmul.f32 %v1278, %v1694
      %v1751 = vmul.f32 %v1279, %v1694
      %v1752 = vmul.f32 %v1280, %v1709
      %v1753 = vmul.f32 %v1281, %v1709
      %v1754 = vmul.f32 %v1282, %v1709
      %v1755 = vmul.f32 %v1283, %v1709
      %v1756 = vmul.f32 %v1284, %v1709
      %v1757 = vmul.f32 %v1285, %v1709
      %v1758 = vmul.f32 %v1286, %v1694
      %v1759 = vperm.slane %v1553, 3
      %v1760 = vmul.f32 %v1743, %v1759
      %v1761 = vmul.f32 %v1744, %v1759
      %v1762 = vmul.f32 %v1745, %v1759
      %v1763 = vmul.f32 %v1746, %v1759
      %v1764 = vmul.f32 %v1747, %v1759
      %v1765 = vmul.f32 %v1748, %v1759
      %v1766 = vmul.f32 %v1749, %v1759
      %v1767 = vmul.f32 %v1750, %v1759
      %v1768 = vmul.f32 %v1751, %v1759
      %v1769 = vmul.f32 %v1752, %v1759
      %v1770 = vmul.f32 %v1753, %v1759
      %v1771 = vmul.f32 %v1754, %v1759
      %v1772 = vmul.f32 %v1755, %v1759
      %v1773 = vmul.f32 %v1756, %v1759
      %v1774 = vmul.f32 %v1757, %v1759
      %v1775 = vmul.f32 %v1758, %v1759
      %p1776 = scmp.eq.s32.totalorder %s19, 0
      // Predicated region
      $region33: #{search_cell_forward.9} parent=31 // pred_check
        %p1777 = pneg %p1776
      $region34: #{search_cell_forward.9} parent=31 // pred_check_branch
        %1779 = sbr.rel (%p1777) target = $region36
      $region35: #{search_cell_forward.9} parent=31 // pred_region
        %1780 = vst.msk [vmem:[%s233] sm:$0xff] %vm307, 0.0
        %1781 = vst.msk [vmem:[%s233 + $0x8] sm:$0xff] %vm307, 0.0
        %1782 = vst.msk [vmem:[%s233 + $0x10] sm:$0xff] %vm307, 0.0
        %1783 = vst.msk [vmem:[%s233 + $0x18] sm:$0xff] %vm307, 0.0
        %1784 = vst.msk [vmem:[%s233 + $0x20] sm:$0xff] %vm307, 0.0
        %1785 = vst.msk [vmem:[%s233 + $0x28] sm:$0xff] %vm307, 0.0
        %1786 = vst.msk [vmem:[%s233 + $0x30] sm:$0xff] %vm307, 0.0
        %1787 = vst.msk [vmem:[%s233 + $0x38] sm:$0xff] %vm307, 0.0
        %1788 = vst.msk [vmem:[%s233 + $0x40] sm:$0xff] %vm307, 0.0
        %1789 = vst.msk [vmem:[%s233 + $0x48] sm:$0xff] %vm307, 0.0
        %1790 = vst.msk [vmem:[%s233 + $0x50] sm:$0xff] %vm307, 0.0
        %1791 = vst.msk [vmem:[%s233 + $0x58] sm:$0xff] %vm307, 0.0
        %1792 = vst.msk [vmem:[%s233 + $0x60] sm:$0xff] %vm307, 0.0
        %1793 = vst.msk [vmem:[%s233 + $0x68] sm:$0xff] %vm307, 0.0
        %1794 = vst.msk [vmem:[%s233 + $0x70] sm:$0xff] %vm307, 0.0
        %1795 = vst.msk [vmem:[%s233 + $0x78] sm:$0xff] %vm307, 0.0
      $region36: #{search_cell_forward.9} parent=31 // pred_fallthru
        _
      %v1796 = vld [vmem:[%s233] sm:$0xff]
      %v1797 = vld [vmem:[%s233 + $0x8] sm:$0xff]
      %v1798 = vld [vmem:[%s233 + $0x10] sm:$0xff]
      %v1799 = vld [vmem:[%s233 + $0x18] sm:$0xff]
      %v1800 = vld [vmem:[%s233 + $0x20] sm:$0xff]
      %v1801 = vld [vmem:[%s233 + $0x28] sm:$0xff]
      %v1802 = vld [vmem:[%s233 + $0x30] sm:$0xff]
      %v1803 = vld [vmem:[%s233 + $0x38] sm:$0xff]
      %v1804 = vld [vmem:[%s233 + $0x40] sm:$0xff]
      %v1805 = vld [vmem:[%s233 + $0x48] sm:$0xff]
      %v1806 = vld [vmem:[%s233 + $0x50] sm:$0xff]
      %v1807 = vld [vmem:[%s233 + $0x58] sm:$0xff]
      %v1808 = vld [vmem:[%s233 + $0x60] sm:$0xff]
      %v1809 = vld [vmem:[%s233 + $0x68] sm:$0xff]
      %v1810 = vld [vmem:[%s233 + $0x70] sm:$0xff]
      %v1811 = vld [vmem:[%s233 + $0x78] sm:$0xff]
      %v1844 = vrot.slane %v1711, 1
      %v1845 = vrot.slane %v1712, 1
      %v1846 = vsel %vm356, %v1844, %v1845
      %v1847 = vrot.slane %v1713, 1
      %v1848 = vrot.slane %v1714, 1
      %v1849 = vsel %vm356, %v1847, %v1848
      %v1850 = vrot.slane %v1715, 1
      %v1851 = vrot.slane %v1716, 1
      %v1852 = vsel %vm356, %v1850, %v1851
      %v1853 = vrot.slane %v1717, 1
      %v1854 = vrot.slane %v1718, 1
      %v1855 = vsel %vm356, %v1853, %v1854
      %v1856 = vrot.slane %v1719, 1
      %v1857 = vrot.slane %v1720, 1
      %v1858 = vsel %vm356, %v1856, %v1857
      %v1859 = vrot.slane %v1721, 1
      %v1860 = vrot.slane %v1722, 1
      %v1861 = vsel %vm356, %v1859, %v1860
      %v1862 = vrot.slane %v1723, 1
      %v1863 = vrot.slane %v1724, 1
      %v1864 = vsel %vm356, %v1862, %v1863
      %v1865 = vrot.slane %v1725, 1
      %v1866 = vrot.slane %v1726, 1
      %v1867 = vsel %vm356, %v1865, %v1866
      %v1868 = vrot.slane %v1727, 1
      %v1869 = vrot.slane %v1728, 1
      %v1870 = vsel %vm356, %v1868, %v1869
      %v1871 = vrot.slane %v1729, 1
      %v1872 = vrot.slane %v1730, 1
      %v1873 = vsel %vm356, %v1871, %v1872
      %v1874 = vrot.slane %v1731, 1
      %v1875 = vrot.slane %v1732, 1
      %v1876 = vsel %vm356, %v1874, %v1875
      %v1877 = vrot.slane %v1733, 1
      %v1878 = vrot.slane %v1734, 1
      %v1879 = vsel %vm356, %v1877, %v1878
      %v1880 = vrot.slane %v1735, 1
      %v1881 = vrot.slane %v1736, 1
      %v1882 = vsel %vm356, %v1880, %v1881
      %v1883 = vrot.slane %v1737, 1
      %v1884 = vrot.slane %v1738, 1
      %v1885 = vsel %vm356, %v1883, %v1884
      %v1886 = vrot.slane %v1739, 1
      %v1887 = vrot.slane %v1740, 1
      %v1888 = vsel %vm356, %v1886, %v1887
      %v1889 = vrot.slane %v1741, 1
      %v1890 = vrot.slane %v1742, 1
      %v1891 = vsel %vm356, %v1889, %v1890
      %v1908 = vadd.f32 %v1652, %v1846
      %v1909 = vadd.f32 %v1653, %v1849
      %v1910 = vadd.f32 %v1654, %v1852
      %v1911 = vadd.f32 %v1655, %v1855
      %v1912 = vadd.f32 %v1656, %v1858
      %v1913 = vadd.f32 %v1657, %v1861
      %v1914 = vadd.f32 %v1658, %v1864
      %v1915 = vadd.f32 %v1659, %v1867
      %v1916 = vadd.f32 %v1660, %v1870
      %v1917 = vadd.f32 %v1661, %v1873
      %v1918 = vadd.f32 %v1662, %v1876
      %v1919 = vadd.f32 %v1663, %v1879
      %v1920 = vadd.f32 %v1664, %v1882
      %v1921 = vadd.f32 %v1665, %v1885
      %v1922 = vadd.f32 %v1666, %v1888
      %v1923 = vadd.f32 %v1667, %v1891
      %v1924 = vadd.f32 %v1908, %v1760
      %v1925 = vadd.f32 %v1909, %v1761
      %v1926 = vadd.f32 %v1910, %v1762
      %v1927 = vadd.f32 %v1911, %v1763
      %v1928 = vadd.f32 %v1912, %v1764
      %v1929 = vadd.f32 %v1913, %v1765
      %v1930 = vadd.f32 %v1914, %v1766
      %v1931 = vadd.f32 %v1915, %v1767
      %v1932 = vadd.f32 %v1916, %v1768
      %v1933 = vadd.f32 %v1917, %v1769
      %v1934 = vadd.f32 %v1918, %v1770
      %v1935 = vadd.f32 %v1919, %v1771
      %v1936 = vadd.f32 %v1920, %v1772
      %v1937 = vadd.f32 %v1921, %v1773
      %v1938 = vadd.f32 %v1922, %v1774
      %v1939 = vadd.f32 %v1923, %v1775
      %v1940 = vadd.f32 %v1796, %v1924
      %v1941 = vadd.f32 %v1797, %v1925
      %v1942 = vadd.f32 %v1798, %v1926
      %v1943 = vadd.f32 %v1799, %v1927
      %v1944 = vadd.f32 %v1800, %v1928
      %v1945 = vadd.f32 %v1801, %v1929
      %v1946 = vadd.f32 %v1802, %v1930
      %v1947 = vadd.f32 %v1803, %v1931
      %v1948 = vadd.f32 %v1804, %v1932
      %v1949 = vadd.f32 %v1805, %v1933
      %v1950 = vadd.f32 %v1806, %v1934
      %v1951 = vadd.f32 %v1807, %v1935
      %v1952 = vadd.f32 %v1808, %v1936
      %v1953 = vadd.f32 %v1809, %v1937
      %v1954 = vadd.f32 %v1810, %v1938
      %v1955 = vadd.f32 %v1811, %v1939
      %1956 = vst.msk [vmem:[%s233] sm:$0xff] %vm307, %v1940
      %1957 = vst.msk [vmem:[%s233 + $0x8] sm:$0xff] %vm307, %v1941
      %1958 = vst.msk [vmem:[%s233 + $0x10] sm:$0xff] %vm307, %v1942
      %1959 = vst.msk [vmem:[%s233 + $0x18] sm:$0xff] %vm307, %v1943
      %1960 = vst.msk [vmem:[%s233 + $0x20] sm:$0xff] %vm307, %v1944
      %1961 = vst.msk [vmem:[%s233 + $0x28] sm:$0xff] %vm307, %v1945
      %1962 = vst.msk [vmem:[%s233 + $0x30] sm:$0xff] %vm307, %v1946
      %1963 = vst.msk [vmem:[%s233 + $0x38] sm:$0xff] %vm307, %v1947
      %1964 = vst.msk [vmem:[%s233 + $0x40] sm:$0xff] %vm307, %v1948
      %1965 = vst.msk [vmem:[%s233 + $0x48] sm:$0xff] %vm307, %v1949
      %1966 = vst.msk [vmem:[%s233 + $0x50] sm:$0xff] %vm307, %v1950
      %1967 = vst.msk [vmem:[%s233 + $0x58] sm:$0xff] %vm307, %v1951
      %1968 = vst.msk [vmem:[%s233 + $0x60] sm:$0xff] %vm307, %v1952
      %1969 = vst.msk [vmem:[%s233 + $0x68] sm:$0xff] %vm307, %v1953
      %1970 = vst.msk [vmem:[%s233 + $0x70] sm:$0xff] %vm307, %v1954
      %1971 = vst.msk [vmem:[%s233 + $0x78] sm:$0xff] %vm307, %v1955
      %s1972 = smul.u32 2, %s18
      %p1973 = scmp.lt.s32.totalorder %s1972, 1
      %s1974 = scalar_select %p1973, %s1972, 1
      %s1975 = smul.addr %s1974, 8
      %s1976 = smul.addr %s1975, 8
      %s1977 = scalar_lea.vmem %s3, %s1976
      // Predicated region
      $region37: #{search_cell_forward.9} parent=31 // pred_check
        %p1978 = pneg %p124
      $region38: #{search_cell_forward.9} parent=31 // pred_check_branch
        %1980 = sbr.rel (%p1978) target = $region40
      $region39: #{search_cell_forward.9} parent=31 // pred_region
        %s1981 = smul.u32 2, %s18
      $region40: #{search_cell_forward.9} parent=31 // pred_fallthru
        _
      // Predicated region
      $region41: #{search_cell_forward.9} parent=31 // pred_check
        %p1982 = pneg %p124
      $region42: #{search_cell_forward.9} parent=31 // pred_check_branch
        %1984 = sbr.rel (%p1982) target = $region44
      $region43: #{search_cell_forward.9} parent=31 // pred_region
        %s1985 = smul.u32 2, %s18
        %p1986 = scmp.lt.s32.totalorder %s1985, 1
        %s1987 = scalar_select %p1986, %s1985, 1
        %s1988 = smul.addr %s1987, 8
        %s1989 = smul.addr %s1988, 8
        %s1990 = scalar_lea.vmem %s3, %s1989
      $region44: #{search_cell_forward.9} parent=31 // pred_fallthru
        _
    $region32: #{search_cell_forward.9} parent=5 // pred_fallthru
      _
    %p1991 = scmp.le.s32.totalorder 2, %s9
    // Predicated region
    $region45: #{search_cell_forward.9} parent=5 // pred_check
      %p1992 = pneg %p1991
    $region46: #{search_cell_forward.9} parent=5 // pred_check_branch
      %1994 = sbr.rel (%p1992) target = $region48
    $region47: #{search_cell_forward.9} parent=5 // pred_region
      %s1995 = ssub.s32 %s9, 2
    $region48: #{search_cell_forward.9} parent=5 // pred_fallthru
      _
  $region6: #{search_cell_forward.9} parent=0 // loop_footer
    %s13 = sadd.s32 1, %s9
  $region7: #{search_cell_forward.9} parent=0 // loop_footer_branch
    %8 = sbr.rel target = $region3
  $region8: #{search_cell_forward.9} parent=0 // loop_exit
    _

// kernel: search_cell_forward.10
$region0: #{search_cell_forward.10}
  #allocation0 [shape = 'u32[]', space=smem, size = 0x4, offset = 0x4, fixed_abs, tag = 'smem constant byte address 0x4 - core index']
  #allocation1 [shape = 'u32[72,128]{1,0:T(1,128)}', space=vmem, size = 0x9000, scoped, tag = 'internal scratch']
  #allocation2 [shape = 'f32[128,144]{1,0:T(8,128)}', space=vmem, size = 0x20000, scoped, tag = 'scratch operand']
  %s0 = inlined_call_operand.vmem [shape: f32[6,10,10,16], index: 0, kind: input, shape index: {}]
  %s1 = inlined_call_operand.vmem [shape: f32[3,144,32], index: 1, kind: input, shape index: {}]
  %s2 = inlined_call_operand.vmem [shape: f32[3,1,32], index: 2, kind: output, shape index: {0}]
  %s3 = inlined_call_operand.vmem [shape: f32[3,1,32], index: 3, kind: output, shape index: {1}]
  %4 = xla_tuple %s2, %s3
  %s5 = sld [smem:[#allocation0]]
  $region53: #{search_cell_forward.10} parent=0
    _
  %s7 = ssub.s32 1, %s5
  %s8 = scalar_select 0, %s7, %s5
  loop: start=0, step=1, limit=5
  $region2: #{search_cell_forward.10} parent=0 // loop_pre_header
    _
  $region3: #{search_cell_forward.10} parent=0 // loop_header
    %s10 = sphi 0, %s14
    %p11 = scmp.ge.s32.totalorder %s10, 5
    %s17 = sphi 0, %s29
    %s18 = sphi 0, %s25
    %s19 = sphi 0, %s17
    %s20 = sphi 0, %s18
    %s21 = sphi 0, %s19
    %s22 = sphi 0, %s20
    %s34 = sphi 0, %s36
    %s37 = sphi 0, %s34
    %s38 = sphi 0, %s37
    %s54 = sphi 0, %s38
    %s60 = sphi 0, %s62
    %s63 = sphi 0, %s60
    %s64 = sphi 0, %s63
    %s80 = sphi 0, %s64
    %s86 = sphi 0, %s88
    %s89 = sphi 0, %s86
    %s90 = sphi 0, %s89
    %s106 = sphi 0, %s90
    %s112 = sphi 0, %s114
    %s115 = sphi 0, %s112
    %s116 = sphi 0, %s115
    %s132 = sphi 0, %s116
  $region4: #{search_cell_forward.10} parent=0 // loop_header_branch
    %13 = sbr.rel (%p11) target = $region8
  $region5: #{search_cell_forward.10} parent=0 // loop_body
    %s15 = ssub.s32 %s10, 1
    %s16 = ssub.s32 %s10, 2
    %s23 = sadd.s32 1, %s18
    %p24 = scmp.ge.s32.totalorder %s23, 1
    %s25 = scalar_select %p24, 0, %s23
    %s26 = sadd.s32 1, %s17
    %s27 = scalar_select %p24, %s26, %s17
    %p28 = scmp.ge.s32.totalorder %s27, 3
    %s29 = scalar_select %p28, 0, %s27
    %s30 = sadd.s32 %s17, %s18
    %s31 = sadd.s32 %s29, %s25
    %s32 = ssub.s32 %s30, %s31
    %p33 = scmp.eq.s32.totalorder %s32, 0
    %s35 = sadd.s32 %s34, 1
    %s36 = scalar_select %p33, %s34, %s35
    %p39 = pneg %p33
    %p40 = scmp.eq.s32.totalorder %s10, 2
    %p41 = por %p39, %p40
    %p42 = scmp.ne.s32.totalorder %s34, %s37
    %p43 = scmp.eq.s32.totalorder %s10, 0
    %p44 = por %p42, %p43
    %p45 = scmp.ne.s32.totalorder %s34, %s37
    %p46 = scmp.eq.s32.totalorder %s15, 2
    %p47 = por %p45, %p46
    %p48 = scmp.ne.s32.totalorder %s37, %s38
    %p49 = scmp.eq.s32.totalorder %s15, 0
    %p50 = por %p48, %p49
    %p51 = scmp.ne.s32.totalorder %s37, %s38
    %p52 = scmp.eq.s32.totalorder %s16, 2
    %p53 = por %p51, %p52
    %p55 = scmp.ne.s32.totalorder %s38, %s54
    %p56 = scmp.eq.s32.totalorder %s16, 0
    %p57 = por %p55, %p56
    %s58 = ssub.s32 %s17, %s29
    %p59 = scmp.eq.s32.totalorder %s58, 0
    %s61 = sadd.s32 %s60, 1
    %s62 = scalar_select %p59, %s60, %s61
    %p65 = pneg %p59
    %p66 = scmp.eq.s32.totalorder %s10, 2
    %p67 = por %p65, %p66
    %p68 = scmp.ne.s32.totalorder %s60, %s63
    %p69 = scmp.eq.s32.totalorder %s10, 0
    %p70 = por %p68, %p69
    %p71 = scmp.ne.s32.totalorder %s60, %s63
    %p72 = scmp.eq.s32.totalorder %s15, 2
    %p73 = por %p71, %p72
    %p74 = scmp.ne.s32.totalorder %s63, %s64
    %p75 = scmp.eq.s32.totalorder %s15, 0
    %p76 = por %p74, %p75
    %p77 = scmp.ne.s32.totalorder %s63, %s64
    %p78 = scmp.eq.s32.totalorder %s16, 2
    %p79 = por %p77, %p78
    %p81 = scmp.ne.s32.totalorder %s64, %s80
    %p82 = scmp.eq.s32.totalorder %s16, 0
    %p83 = por %p81, %p82
    %s84 = ssub.s32 %s17, %s29
    %p85 = scmp.eq.s32.totalorder %s84, 0
    %s87 = sadd.s32 %s86, 1
    %s88 = scalar_select %p85, %s86, %s87
    %p91 = pneg %p85
    %p92 = scmp.eq.s32.totalorder %s10, 2
    %p93 = por %p91, %p92
    %p94 = scmp.ne.s32.totalorder %s86, %s89
    %p95 = scmp.eq.s32.totalorder %s10, 0
    %p96 = por %p94, %p95
    %p97 = scmp.ne.s32.totalorder %s86, %s89
    %p98 = scmp.eq.s32.totalorder %s15, 2
    %p99 = por %p97, %p98
    %p100 = scmp.ne.s32.totalorder %s89, %s90
    %p101 = scmp.eq.s32.totalorder %s15, 0
    %p102 = por %p100, %p101
    %p103 = scmp.ne.s32.totalorder %s89, %s90
    %p104 = scmp.eq.s32.totalorder %s16, 2
    %p105 = por %p103, %p104
    %p107 = scmp.ne.s32.totalorder %s90, %s106
    %p108 = scmp.eq.s32.totalorder %s16, 0
    %p109 = por %p107, %p108
    %s110 = ssub.s32 %s17, %s29
    %p111 = scmp.eq.s32.totalorder %s110, 0
    %s113 = sadd.s32 %s112, 1
    %s114 = scalar_select %p111, %s112, %s113
    %p117 = pneg %p111
    %p118 = scmp.eq.s32.totalorder %s10, 2
    %p119 = por %p117, %p118
    %p120 = scmp.ne.s32.totalorder %s112, %s115
    %p121 = scmp.eq.s32.totalorder %s10, 0
    %p122 = por %p120, %p121
    %p123 = scmp.ne.s32.totalorder %s112, %s115
    %p124 = scmp.eq.s32.totalorder %s15, 2
    %p125 = por %p123, %p124
    %p126 = scmp.ne.s32.totalorder %s115, %s116
    %p127 = scmp.eq.s32.totalorder %s15, 0
    %p128 = por %p126, %p127
    %p129 = scmp.ne.s32.totalorder %s115, %s116
    %p130 = scmp.eq.s32.totalorder %s16, 2
    %p131 = por %p129, %p130
    %p133 = scmp.ne.s32.totalorder %s116, %s132
    %p134 = scmp.eq.s32.totalorder %s16, 0
    %p135 = por %p133, %p134
    %p136 = scmp.le.s32.totalorder 1, %s10
    %p137 = scmp.lt.s32.totalorder %s10, 4
    %p138 = pnand %p136, %p137
    %p139 = pneg %p138
    // Predicated region
    $region9: #{search_cell_forward.10} parent=5 // pred_check
      _
    $region10: #{search_cell_forward.10} parent=5 // pred_check_branch
      %141 = sbr.rel (%p138) target = $region12
    $region11: #{search_cell_forward.10} parent=5 // pred_region
      %s142 = ssub.s32 %s10, 1
    $region12: #{search_cell_forward.10} parent=5 // pred_fallthru
      _
    %p143 = scmp.lt.s32.totalorder %s10, 3
    // Predicated region
    $region13: #{search_cell_forward.10} parent=5 // pred_check
      %p144 = pneg %p143
    $region14: #{search_cell_forward.10} parent=5 // pred_check_branch
      %146 = sbr.rel (%p144) target = $region16
    $region15: #{search_cell_forward.10} parent=5 // pred_region
      // Predicated region
      $region17: #{search_cell_forward.10} parent=15 // pred_check
        %p147 = pneg %p44
      $region18: #{search_cell_forward.10} parent=15 // pred_check_branch
        %149 = sbr.rel (%p147) target = $region20
      $region19: #{search_cell_forward.10} parent=15 // pred_region
        %s150 = sadd.s32 %s17, %s18
        %s151 = smul.u32 2, %s150
        %p152 = scmp.lt.s32.totalorder %s151, 5
        %s153 = scalar_select %p152, %s151, 5
        %s154 = smul.addr %s153, 20
        %s155 = smul.addr %s154, 8
        %s156 = scalar_lea.vmem %s0, %s155
        %s157 = sadd.s32 %s17, %s18
        %s158 = smul.u32 2, %s157
      $region20: #{search_cell_forward.10} parent=15 // pred_fallthru
        _
      // Predicated region
      $region21: #{search_cell_forward.10} parent=15 // pred_check
        %p159 = pneg %p70
      $region22: #{search_cell_forward.10} parent=15 // pred_check_branch
        %161 = sbr.rel (%p159) target = $region24
      $region23: #{search_cell_forward.10} parent=15 // pred_region
        %p162 = scmp.lt.s32.totalorder %s17, 2
        %s163 = scalar_select %p162, %s17, 2
        %s164 = smul.addr %s163, 18
        %s165 = smul.addr %s164, 8
        %s166 = scalar_lea.vmem %s1, %s165
      $region24: #{search_cell_forward.10} parent=15 // pred_fallthru
        _
    $region16: #{search_cell_forward.10} parent=5 // pred_fallthru
      _
    %p167 = scmp.le.s32.totalorder 1, %s10
    %p168 = scmp.lt.s32.totalorder %s10, 4
    %p169 = pnand %p167, %p168
    %p170 = pneg %p169
    // Predicated region
    $region25: #{search_cell_forward.10} parent=5 // pred_check
      _
    $region26: #{search_cell_forward.10} parent=5 // pred_check_branch
      %172 = sbr.rel (%p169) target = $region28
    $region27: #{search_cell_forward.10} parent=5 // pred_region
      %s173 = ssub.s32 %s10, 1
      %s174 = sadd.s32 %s19, %s20
      %s175 = smul.u32 2, %s174
      %p176 = scmp.lt.s32.totalorder %s175, 5
      %s177 = scalar_select %p176, %s175, 5
      %s178 = smul.addr %s177, 20
      %s179 = smul.addr %s178, 8
      %s180 = scalar_lea.vmem %s0, %s179
      %p181 = pneg %p50
      %p182 = pneg %p47
      %p183 = scmp.lt.s32.totalorder %s19, 2
      %s184 = scalar_select %p183, %s19, 2
      %s185 = smul.addr %s184, 18
      %s186 = smul.addr %s185, 8
      %s187 = scalar_lea.vmem %s1, %s186
      %p188 = pneg %p76
      %p189 = pneg %p73
      %p190 = pneg %p102
      %p191 = pneg %p99
      %p192 = scmp.lt.s32.totalorder %s19, 2
      %s193 = scalar_select %p192, %s19, 2
      %s194 = scalar_lea.vmem %s2, %s193
      %p195 = pneg %p128
      %p196 = pneg %p125
      %p197 = scmp.lt.s32.totalorder %s19, 2
      %s198 = scalar_select %p197, %s19, 2
      %s199 = scalar_lea.vmem %s3, %s198
      %s200 = sadd.s32 %s19, %s20
      %s201 = smul.u32 2, %s200
      %p202 = scmp.lt.s32.totalorder %s201, 5
      %s203 = scalar_select %p202, %s201, 5
      %s204 = smul.addr %s203, 20
      %s205 = smul.addr %s204, 8
      %s206 = scalar_lea.vmem %s0, %s205
      %s207 = sadd.s32 %s19, %s20
      %s208 = smul.u32 2, %s207
      %p209 = scmp.lt.s32.totalorder %s19, 2
      %s210 = scalar_select %p209, %s19, 2
      %s211 = smul.addr %s210, 18
      %s212 = smul.addr %s211, 8
      %s213 = scalar_lea.vmem %s1, %s212
      %p214 = scmp.lt.s32.totalorder %s19, 2
      %s215 = scalar_select %p214, %s19, 2
      %s216 = scalar_lea.vmem %s2, %s215
      %p217 = scmp.lt.s32.totalorder %s19, 2
      %s218 = scalar_select %p217, %s19, 2
      %s219 = scalar_lea.vmem %s3, %s218
      %p220 = scmp.eq.s32.totalorder %s20, 0
      // Predicated region
      $region29: #{search_cell_forward.10} parent=27 // pred_check
        %p221 = pneg %p220
      $region30: #{search_cell_forward.10} parent=27 // pred_check_branch
        %223 = sbr.rel (%p221) target = $region32
      $region31: #{search_cell_forward.10} parent=27 // pred_region
        %vm224 = vcmask 253952
        %225 = vst.msk [vmem:[%s216] sm:$0x1] %vm224, 0.0
        %226 = vst.msk [vmem:[%s219] sm:$0x1] %vm224, 0.0
      $region32: #{search_cell_forward.10} parent=27 // pred_fallthru
        _
      %v227 = vld [vmem:[%s206] sm:$0xff]
      %v228 = vld [vmem:[%s206 + $0x8] sm:$0x3]
      %v229 = vld [vmem:[%s206 + $0x10] sm:$0xff]
      %v230 = vld [vmem:[%s206 + $0x18] sm:$0x3]
      %v231 = vld [vmem:[%s206 + $0x20] sm:$0xff]
      %v232 = vld [vmem:[%s206 + $0x28] sm:$0x3]
      %v233 = vld [vmem:[%s206 + $0x30] sm:$0xff]
      %v234 = vld [vmem:[%s206 + $0x38] sm:$0x3]
      %v235 = vld [vmem:[%s206 + $0x40] sm:$0xff]
      %v236 = vld [vmem:[%s206 + $0x48] sm:$0x3]
      %v237 = vld [vmem:[%s206 + $0x50] sm:$0xff]
      %v238 = vld [vmem:[%s206 + $0x58] sm:$0x3]
      %v239 = vld [vmem:[%s206 + $0x60] sm:$0xff]
      %v240 = vld [vmem:[%s206 + $0x68] sm:$0x3]
      %v241 = vld [vmem:[%s206 + $0x70] sm:$0xff]
      %v242 = vld [vmem:[%s206 + $0x78] sm:$0x3]
      %v243 = vld [vmem:[%s206 + $0x80] sm:$0xff]
      %v244 = vld [vmem:[%s206 + $0x88] sm:$0x3]
      %v245 = vld [vmem:[%s206 + $0x90] sm:$0xff]
      %v246 = vld [vmem:[%s206 + $0x98] sm:$0x3]
      %v247 = vld [vmem:[%s206 + $0xa0] sm:$0xff]
      %v248 = vld [vmem:[%s206 + $0xa8] sm:$0x3]
      %v249 = vld [vmem:[%s206 + $0xb0] sm:$0xff]
      %v250 = vld [vmem:[%s206 + $0xb8] sm:$0x3]
      %v251 = vld [vmem:[%s206 + $0xc0] sm:$0xff]
      %v252 = vld [vmem:[%s206 + $0xc8] sm:$0x3]
      %v253 = vld [vmem:[%s206 + $0xd0] sm:$0xff]
      %v254 = vld [vmem:[%s206 + $0xd8] sm:$0x3]
      %v255 = vld [vmem:[%s206 + $0xe0] sm:$0xff]
      %v256 = vld [vmem:[%s206 + $0xe8] sm:$0x3]
      %v257 = vld [vmem:[%s206 + $0xf0] sm:$0xff]
      %v258 = vld [vmem:[%s206 + $0xf8] sm:$0x3]
      %v259 = vld [vmem:[%s206 + $0x100] sm:$0xff]
      %v260 = vld [vmem:[%s206 + $0x108] sm:$0x3]
      %v261 = vld [vmem:[%s206 + $0x110] sm:$0xff]
      %v262 = vld [vmem:[%s206 + $0x118] sm:$0x3]
      %v263 = vld [vmem:[%s206 + $0x120] sm:$0xff]
      %v264 = vld [vmem:[%s206 + $0x128] sm:$0x3]
      %v265 = vld [vmem:[%s206 + $0x130] sm:$0xff]
      %v266 = vld [vmem:[%s206 + $0x138] sm:$0x3]
      %v267 = vmax.f32 %v227, 0.0
      %v268 = vmax.f32 %v229, 0.0
      %v269 = vmax.f32 %v231, 0.0
      %v270 = vmax.f32 %v233, 0.0
      %v271 = vmax.f32 %v235, 0.0
      %v272 = vmax.f32 %v237, 0.0
      %v273 = vmax.f32 %v239, 0.0
      %v274 = vmax.f32 %v241, 0.0
      %v275 = vmax.f32 %v247, 0.0
      %v276 = vmax.f32 %v249, 0.0
      %v277 = vmax.f32 %v251, 0.0
      %v278 = vmax.f32 %v253, 0.0
      %v279 = vmax.f32 %v255, 0.0
      %v280 = vmax.f32 %v257, 0.0
      %v281 = vmax.f32 %v259, 0.0
      %v282 = vmax.f32 %v261, 0.0
      %vm283 = vcmask 130048
      %284 = vst.msk [vmem:[#allocation2] sm:$0xff] %vm283, %v267
      %285 = vst.msk [vmem:[#allocation2 + $0x10] sm:$0xff] %vm283, %v268
      %286 = vst.msk [vmem:[#allocation2 + $0x20] sm:$0xff] %vm283, %v269
      %287 = vst.msk [vmem:[#allocation2 + $0x30] sm:$0xff] %vm283, %v270
      %288 = vst.msk [vmem:[#allocation2 + $0x40] sm:$0xff] %vm283, %v271
      %289 = vst.msk [vmem:[#allocation2 + $0x50] sm:$0xff] %vm283, %v272
      %290 = vst.msk [vmem:[#allocation2 + $0x60] sm:$0xff] %vm283, %v273
      %291 = vst.msk [vmem:[#allocation2 + $0x70] sm:$0xff] %vm283, %v274
      %292 = vst.msk [vmem:[#allocation2 + $0x80] sm:$0xff] %vm283, %v275
      %293 = vst.msk [vmem:[#allocation2 + $0x90] sm:$0xff] %vm283, %v276
      %294 = vst.msk [vmem:[#allocation2 + $0xa0] sm:$0xff] %vm283, %v277
      %295 = vst.msk [vmem:[#allocation2 + $0xb0] sm:$0xff] %vm283, %v278
      %296 = vst.msk [vmem:[#allocation2 + $0xc0] sm:$0xff] %vm283, %v279
      %297 = vst.msk [vmem:[#allocation2 + $0xd0] sm:$0xff] %vm283, %v280
      %298 = vst.msk [vmem:[#allocation2 + $0xe0] sm:$0xff] %vm283, %v281
      %299 = vst.msk [vmem:[#allocation2 + $0xf0] sm:$0xff] %vm283, %v282
      %v300 = vmax.f32 %v228, 0.0
      %v301 = vmax.f32 %v230, 0.0
      %v302 = vmax.f32 %v232, 0.0
      %v303 = vmax.f32 %v234, 0.0
      %v304 = vmax.f32 %v236, 0.0
      %v305 = vmax.f32 %v238, 0.0
      %v306 = vmax.f32 %v240, 0.0
      %v307 = vmax.f32 %v242, 0.0
      %v308 = vmax.f32 %v248, 0.0
      %v309 = vmax.f32 %v250, 0.0
      %v310 = vmax.f32 %v252, 0.0
      %v311 = vmax.f32 %v254, 0.0
      %v312 = vmax.f32 %v256, 0.0
      %v313 = vmax.f32 %v258, 0.0
      %v314 = vmax.f32 %v260, 0.0
      %v315 = vmax.f32 %v262, 0.0
      %vm348 = vcmask 1046528
      %v349 = vrot.slane %v267, 1
      %v350 = vrot.slane %v300, 1
      %v351 = vsel %vm348, %v349, %v350
      %v352 = vrot.slane %v268, 1
      %v353 = vrot.slane %v301, 1
      %v354 = vsel %vm348, %v352, %v353
      %v355 = vrot.slane %v269, 1
      %v356 = vrot.slane %v302, 1
      %v357 = vsel %vm348, %v355, %v356
      %v358 = vrot.slane %v270, 1
      %v359 = vrot.slane %v303, 1
      %v360 = vsel %vm348, %v358, %v359
      %v361 = vrot.slane %v271, 1
      %v362 = vrot.slane %v304, 1
      %v363 = vsel %vm348, %v361, %v362
      %v364 = vrot.slane %v272, 1
      %v365 = vrot.slane %v305, 1
      %v366 = vsel %vm348, %v364, %v365
      %v367 = vrot.slane %v273, 1
      %v368 = vrot.slane %v306, 1
      %v369 = vsel %vm348, %v367, %v368
      %v370 = vrot.slane %v274, 1
      %v371 = vrot.slane %v307, 1
      %v372 = vsel %vm348, %v370, %v371
      %v373 = vrot.slane %v275, 1
      %v374 = vrot.slane %v308, 1
      %v375 = vsel %vm348, %v373, %v374
      %v376 = vrot.slane %v276, 1
      %v377 = vrot.slane %v309, 1
      %v378 = vsel %vm348, %v376, %v377
      %v379 = vrot.slane %v277, 1
      %v380 = vrot.slane %v310, 1
      %v381 = vsel %vm348, %v379, %v380
      %v382 = vrot.slane %v278, 1
      %v383 = vrot.slane %v311, 1
      %v384 = vsel %vm348, %v382, %v383
      %v385 = vrot.slane %v279, 1
      %v386 = vrot.slane %v312, 1
      %v387 = vsel %vm348, %v385, %v386
      %v388 = vrot.slane %v280, 1
      %v389 = vrot.slane %v313, 1
      %v390 = vsel %vm348, %v388, %v389
      %v391 = vrot.slane %v281, 1
      %v392 = vrot.slane %v314, 1
      %v393 = vsel %vm348, %v391, %v392
      %v394 = vrot.slane %v282, 1
      %v395 = vrot.slane %v315, 1
      %v396 = vsel %vm348, %v394, %v395
      %397 = vrot.lane.b32.xlu0 %v351, 16
      %v398 = vpop.permute.xlu0 %397
      %399 = vrot.lane.b32.xlu0 %v354, 16
      %v400 = vpop.permute.xlu0 %399
      %401 = vrot.lane.b32.xlu0 %v357, 16
      %v402 = vpop.permute.xlu0 %401
      %403 = vrot.lane.b32.xlu0 %v360, 16
      %v404 = vpop.permute.xlu0 %403
      %405 = vrot.lane.b32.xlu0 %v363, 16
      %v406 = vpop.permute.xlu0 %405
      %407 = vrot.lane.b32.xlu0 %v366, 16
      %v408 = vpop.permute.xlu0 %407
      %409 = vrot.lane.b32.xlu0 %v369, 16
      %v410 = vpop.permute.xlu0 %409
      %411 = vrot.lane.b32.xlu0 %v372, 16
      %v412 = vpop.permute.xlu0 %411
      %413 = vrot.lane.b32.xlu0 %v375, 16
      %v414 = vpop.permute.xlu0 %413
      %415 = vrot.lane.b32.xlu0 %v378, 16
      %v416 = vpop.permute.xlu0 %415
      %417 = vrot.lane.b32.xlu0 %v381, 16
      %v418 = vpop.permute.xlu0 %417
      %419 = vrot.lane.b32.xlu0 %v384, 16
      %v420 = vpop.permute.xlu0 %419
      %421 = vrot.lane.b32.xlu0 %v387, 16
      %v422 = vpop.permute.xlu0 %421
      %423 = vrot.lane.b32.xlu0 %v390, 16
      %v424 = vpop.permute.xlu0 %423
      %425 = vrot.lane.b32.xlu0 %v393, 16
      %v426 = vpop.permute.xlu0 %425
      %427 = vrot.lane.b32.xlu0 %v396, 16
      %v428 = vpop.permute.xlu0 %427
      %vm445 = vcmask 261248
      %446 = vst.msk [vmem:[#allocation2] sm:$0xff] %vm445, %v398
      %447 = vst.msk [vmem:[#allocation2 + $0x10] sm:$0xff] %vm445, %v400
      %448 = vst.msk [vmem:[#allocation2 + $0x20] sm:$0xff] %vm445, %v402
      %449 = vst.msk [vmem:[#allocation2 + $0x30] sm:$0xff] %vm445, %v404
      %450 = vst.msk [vmem:[#allocation2 + $0x40] sm:$0xff] %vm445, %v406
      %451 = vst.msk [vmem:[#allocation2 + $0x50] sm:$0xff] %vm445, %v408
      %452 = vst.msk [vmem:[#allocation2 + $0x60] sm:$0xff] %vm445, %v410
      %453 = vst.msk [vmem:[#allocation2 + $0x70] sm:$0xff] %vm445, %v412
      %454 = vst.msk [vmem:[#allocation2 + $0x80] sm:$0xff] %vm445, %v414
      %455 = vst.msk [vmem:[#allocation2 + $0x90] sm:$0xff] %vm445, %v416
      %456 = vst.msk [vmem:[#allocation2 + $0xa0] sm:$0xff] %vm445, %v418
      %457 = vst.msk [vmem:[#allocation2 + $0xb0] sm:$0xff] %vm445, %v420
      %458 = vst.msk [vmem:[#allocation2 + $0xc0] sm:$0xff] %vm445, %v422
      %459 = vst.msk [vmem:[#allocation2 + $0xd0] sm:$0xff] %vm445, %v424
      %460 = vst.msk [vmem:[#allocation2 + $0xe0] sm:$0xff] %vm445, %v426
      %461 = vst.msk [vmem:[#allocation2 + $0xf0] sm:$0xff] %vm445, %v428
      %vm462 = vcmask 1045504
      %v463 = vrot.slane %v267, 2
      %v464 = vrot.slane %v300, 2
      %v465 = vsel %vm462, %v463, %v464
      %v466 = vrot.slane %v268, 2
      %v467 = vrot.slane %v301, 2
      %v468 = vsel %vm462, %v466, %v467
      %v469 = vrot.slane %v269, 2
      %v470 = vrot.slane %v302, 2
      %v471 = vsel %vm462, %v469, %v470
      %v472 = vrot.slane %v270, 2
      %v473 = vrot.slane %v303, 2
      %v474 = vsel %vm462, %v472, %v473
      %v475 = vrot.slane %v271, 2
      %v476 = vrot.slane %v304, 2
      %v477 = vsel %vm462, %v475, %v476
      %v478 = vrot.slane %v272, 2
      %v479 = vrot.slane %v305, 2
      %v480 = vsel %vm462, %v478, %v479
      %v481 = vrot.slane %v273, 2
      %v482 = vrot.slane %v306, 2
      %v483 = vsel %vm462, %v481, %v482
      %v484 = vrot.slane %v274, 2
      %v485 = vrot.slane %v307, 2
      %v486 = vsel %vm462, %v484, %v485
      %v487 = vrot.slane %v275, 2
      %v488 = vrot.slane %v308, 2
      %v489 = vsel %vm462, %v487, %v488
      %v490 = vrot.slane %v276, 2
      %v491 = vrot.slane %v309, 2
      %v492 = vsel %vm462, %v490, %v491
      %v493 = vrot.slane %v277, 2
      %v494 = vrot.slane %v310, 2
      %v495 = vsel %vm462, %v493, %v494
      %v496 = vrot.slane %v278, 2
      %v497 = vrot.slane %v311, 2
      %v498 = vsel %vm462, %v496, %v497
      %v499 = vrot.slane %v279, 2
      %v500 = vrot.slane %v312, 2
      %v501 = vsel %vm462, %v499, %v500
      %v502 = vrot.slane %v280, 2
      %v503 = vrot.slane %v313, 2
      %v504 = vsel %vm462, %v502, %v503
      %v505 = vrot.slane %v281, 2
      %v506 = vrot.slane %v314, 2
      %v507 = vsel %vm462, %v505, %v506
      %v508 = vrot.slane %v282, 2
      %v509 = vrot.slane %v315, 2
      %v510 = vsel %vm462, %v508, %v509
      %511 = vrot.lane.b32.xlu0 %v465, 32
      %v512 = vpop.permute.xlu0 %511
      %513 = vrot.lane.b32.xlu0 %v468, 32
      %v514 = vpop.permute.xlu0 %513
      %515 = vrot.lane.b32.xlu0 %v471, 32
      %v516 = vpop.permute.xlu0 %515
      %517 = vrot.lane.b32.xlu0 %v474, 32
      %v518 = vpop.permute.xlu0 %517
      %519 = vrot.lane.b32.xlu0 %v477, 32
      %v520 = vpop.permute.xlu0 %519
      %521 = vrot.lane.b32.xlu0 %v480, 32
      %v522 = vpop.permute.xlu0 %521
      %523 = vrot.lane.b32.xlu0 %v483, 32
      %v524 = vpop.permute.xlu0 %523
      %525 = vrot.lane.b32.xlu0 %v486, 32
      %v526 = vpop.permute.xlu0 %525
      %527 = vrot.lane.b32.xlu0 %v489, 32
      %v528 = vpop.permute.xlu0 %527
      %529 = vrot.lane.b32.xlu0 %v492, 32
      %v530 = vpop.permute.xlu0 %529
      %531 = vrot.lane.b32.xlu0 %v495, 32
      %v532 = vpop.permute.xlu0 %531
      %533 = vrot.lane.b32.xlu0 %v498, 32
      %v534 = vpop.permute.xlu0 %533
      %535 = vrot.lane.b32.xlu0 %v501, 32
      %v536 = vpop.permute.xlu0 %535
      %537 = vrot.lane.b32.xlu0 %v504, 32
      %v538 = vpop.permute.xlu0 %537
      %539 = vrot.lane.b32.xlu0 %v507, 32
      %v540 = vpop.permute.xlu0 %539
      %541 = vrot.lane.b32.xlu0 %v510, 32
      %v542 = vpop.permute.xlu0 %541
      %vm559 = vcmask 392448
      %560 = vst.msk [vmem:[#allocation2] sm:$0xff] %vm559, %v512
      %561 = vst.msk [vmem:[#allocation2 + $0x10] sm:$0xff] %vm559, %v514
      %562 = vst.msk [vmem:[#allocation2 + $0x20] sm:$0xff] %vm559, %v516
      %563 = vst.msk [vmem:[#allocation2 + $0x30] sm:$0xff] %vm559, %v518
      %564 = vst.msk [vmem:[#allocation2 + $0x40] sm:$0xff] %vm559, %v520
      %565 = vst.msk [vmem:[#allocation2 + $0x50] sm:$0xff] %vm559, %v522
      %566 = vst.msk [vmem:[#allocation2 + $0x60] sm:$0xff] %vm559, %v524
      %567 = vst.msk [vmem:[#allocation2 + $0x70] sm:$0xff] %vm559, %v526
      %568 = vst.msk [vmem:[#allocation2 + $0x80] sm:$0xff] %vm559, %v528
      %569 = vst.msk [vmem:[#allocation2 + $0x90] sm:$0xff] %vm559, %v530
      %570 = vst.msk [vmem:[#allocation2 + $0xa0] sm:$0xff] %vm559, %v532
      %571 = vst.msk [vmem:[#allocation2 + $0xb0] sm:$0xff] %vm559, %v534
      %572 = vst.msk [vmem:[#allocation2 + $0xc0] sm:$0xff] %vm559, %v536
      %573 = vst.msk [vmem:[#allocation2 + $0xd0] sm:$0xff] %vm559, %v538
      %574 = vst.msk [vmem:[#allocation2 + $0xe0] sm:$0xff] %vm559, %v540
      %575 = vst.msk [vmem:[#allocation2 + $0xf0] sm:$0xff] %vm559, %v542
      %v576 = vmax.f32 %v243, 0.0
      %v577 = vmax.f32 %v263, 0.0
      %580 = vrot.lane.b32.xlu0 %v268, 48
      %v581 = vpop.permute.xlu0 %580
      %582 = vrot.lane.b32.xlu0 %v269, 48
      %v583 = vpop.permute.xlu0 %582
      %584 = vrot.lane.b32.xlu0 %v270, 48
      %v585 = vpop.permute.xlu0 %584
      %586 = vrot.lane.b32.xlu0 %v271, 48
      %v587 = vpop.permute.xlu0 %586
      %588 = vrot.lane.b32.xlu0 %v272, 48
      %v589 = vpop.permute.xlu0 %588
      %590 = vrot.lane.b32.xlu0 %v273, 48
      %v591 = vpop.permute.xlu0 %590
      %592 = vrot.lane.b32.xlu0 %v274, 48
      %v593 = vpop.permute.xlu0 %592
      %594 = vrot.lane.b32.xlu0 %v576, 48
      %v595 = vpop.permute.xlu0 %594
      %596 = vrot.lane.b32.xlu0 %v276, 48
      %v597 = vpop.permute.xlu0 %596
      %598 = vrot.lane.b32.xlu0 %v277, 48
      %v599 = vpop.permute.xlu0 %598
      %600 = vrot.lane.b32.xlu0 %v278, 48
      %v601 = vpop.permute.xlu0 %600
      %602 = vrot.lane.b32.xlu0 %v279, 48
      %v603 = vpop.permute.xlu0 %602
      %604 = vrot.lane.b32.xlu0 %v280, 48
      %v605 = vpop.permute.xlu0 %604
      %606 = vrot.lane.b32.xlu0 %v281, 48
      %v607 = vpop.permute.xlu0 %606
      %608 = vrot.lane.b32.xlu0 %v282, 48
      %v609 = vpop.permute.xlu0 %608
      %610 = vrot.lane.b32.xlu0 %v577, 48
      %v611 = vpop.permute.xlu0 %610
      %vm628 = vcmask 523648
      %629 = vst.msk [vmem:[#allocation2] sm:$0xff] %vm628, %v581
      %630 = vst.msk [vmem:[#allocation2 + $0x10] sm:$0xff] %vm628, %v583
      %631 = vst.msk [vmem:[#allocation2 + $0x20] sm:$0xff] %vm628, %v585
      %632 = vst.msk [vmem:[#allocation2 + $0x30] sm:$0xff] %vm628, %v587
      %633 = vst.msk [vmem:[#allocation2 + $0x40] sm:$0xff] %vm628, %v589
      %634 = vst.msk [vmem:[#allocation2 + $0x50] sm:$0xff] %vm628, %v591
      %635 = vst.msk [vmem:[#allocation2 + $0x60] sm:$0xff] %vm628, %v593
      %636 = vst.msk [vmem:[#allocation2 + $0x70] sm:$0xff] %vm628, %v595
      %637 = vst.msk [vmem:[#allocation2 + $0x80] sm:$0xff] %vm628, %v597
      %638 = vst.msk [vmem:[#allocation2 + $0x90] sm:$0xff] %vm628, %v599
      %639 = vst.msk [vmem:[#allocation2 + $0xa0] sm:$0xff] %vm628, %v601
      %640 = vst.msk [vmem:[#allocation2 + $0xb0] sm:$0xff] %vm628, %v603
      %641 = vst.msk [vmem:[#allocation2 + $0xc0] sm:$0xff] %vm628, %v605
      %642 = vst.msk [vmem:[#allocation2 + $0xd0] sm:$0xff] %vm628, %v607
      %643 = vst.msk [vmem:[#allocation2 + $0xe0] sm:$0xff] %vm628, %v609
      %644 = vst.msk [vmem:[#allocation2 + $0xf0] sm:$0xff] %vm628, %v611
      %v645 = vmax.f32 %v244, 0.0
      %v646 = vmax.f32 %v264, 0.0
      %v649 = vrot.slane %v576, 1
      %v650 = vrot.slane %v645, 1
      %v651 = vsel %vm348, %v649, %v650
      %v652 = vrot.slane %v577, 1
      %v653 = vrot.slane %v646, 1
      %v654 = vsel %vm348, %v652, %v653
      %655 = vrot.lane.b32.xlu0 %v354, 64
      %v656 = vpop.permute.xlu0 %655
      %657 = vrot.lane.b32.xlu0 %v357, 64
      %v658 = vpop.permute.xlu0 %657
      %659 = vrot.lane.b32.xlu0 %v360, 64
      %v660 = vpop.permute.xlu0 %659
      %661 = vrot.lane.b32.xlu0 %v363, 64
      %v662 = vpop.permute.xlu0 %661
      %663 = vrot.lane.b32.xlu0 %v366, 64
      %v664 = vpop.permute.xlu0 %663
      %665 = vrot.lane.b32.xlu0 %v369, 64
      %v666 = vpop.permute.xlu0 %665
      %667 = vrot.lane.b32.xlu0 %v372, 64
      %v668 = vpop.permute.xlu0 %667
      %669 = vrot.lane.b32.xlu0 %v651, 64
      %v670 = vpop.permute.xlu0 %669
      %671 = vrot.lane.b32.xlu0 %v378, 64
      %v672 = vpop.permute.xlu0 %671
      %673 = vrot.lane.b32.xlu0 %v381, 64
      %v674 = vpop.permute.xlu0 %673
      %675 = vrot.lane.b32.xlu0 %v384, 64
      %v676 = vpop.permute.xlu0 %675
      %677 = vrot.lane.b32.xlu0 %v387, 64
      %v678 = vpop.permute.xlu0 %677
      %679 = vrot.lane.b32.xlu0 %v390, 64
      %v680 = vpop.permute.xlu0 %679
      %681 = vrot.lane.b32.xlu0 %v393, 64
      %v682 = vpop.permute.xlu0 %681
      %683 = vrot.lane.b32.xlu0 %v396, 64
      %v684 = vpop.permute.xlu0 %683
      %685 = vrot.lane.b32.xlu0 %v654, 64
      %v686 = vpop.permute.xlu0 %685
      %vm703 = vcmask 654848
      %704 = vst.msk [vmem:[#allocation2] sm:$0xff] %vm703, %v656
      %705 = vst.msk [vmem:[#allocation2 + $0x10] sm:$0xff] %vm703, %v658
      %706 = vst.msk [vmem:[#allocation2 + $0x20] sm:$0xff] %vm703, %v660
      %707 = vst.msk [vmem:[#allocation2 + $0x30] sm:$0xff] %vm703, %v662
      %708 = vst.msk [vmem:[#allocation2 + $0x40] sm:$0xff] %vm703, %v664
      %709 = vst.msk [vmem:[#allocation2 + $0x50] sm:$0xff] %vm703, %v666
      %710 = vst.msk [vmem:[#allocation2 + $0x60] sm:$0xff] %vm703, %v668
      %711 = vst.msk [vmem:[#allocation2 + $0x70] sm:$0xff] %vm703, %v670
      %712 = vst.msk [vmem:[#allocation2 + $0x80] sm:$0xff] %vm703, %v672
      %713 = vst.msk [vmem:[#allocation2 + $0x90] sm:$0xff] %vm703, %v674
      %714 = vst.msk [vmem:[#allocation2 + $0xa0] sm:$0xff] %vm703, %v676
      %715 = vst.msk [vmem:[#allocation2 + $0xb0] sm:$0xff] %vm703, %v678
      %716 = vst.msk [vmem:[#allocation2 + $0xc0] sm:$0xff] %vm703, %v680
      %717 = vst.msk [vmem:[#allocation2 + $0xd0] sm:$0xff] %vm703, %v682
      %718 = vst.msk [vmem:[#allocation2 + $0xe0] sm:$0xff] %vm703, %v684
      %719 = vst.msk [vmem:[#allocation2 + $0xf0] sm:$0xff] %vm703, %v686
      %v720 = vrot.slane %v576, 2
      %v721 = vrot.slane %v645, 2
      %v722 = vsel %vm462, %v720, %v721
      %v723 = vrot.slane %v577, 2
      %v724 = vrot.slane %v646, 2
      %v725 = vsel %vm462, %v723, %v724
      %726 = vrot.lane.b32.xlu0 %v468, 80
      %v727 = vpop.permute.xlu0 %726
      %728 = vrot.lane.b32.xlu0 %v471, 80
      %v729 = vpop.permute.xlu0 %728
      %730 = vrot.lane.b32.xlu0 %v474, 80
      %v731 = vpop.permute.xlu0 %730
      %732 = vrot.lane.b32.xlu0 %v477, 80
      %v733 = vpop.permute.xlu0 %732
      %734 = vrot.lane.b32.xlu0 %v480, 80
      %v735 = vpop.permute.xlu0 %734
      %736 = vrot.lane.b32.xlu0 %v483, 80
      %v737 = vpop.permute.xlu0 %736
      %738 = vrot.lane.b32.xlu0 %v486, 80
      %v739 = vpop.permute.xlu0 %738
      %740 = vrot.lane.b32.xlu0 %v722, 80
      %v741 = vpop.permute.xlu0 %740
      %742 = vrot.lane.b32.xlu0 %v492, 80
      %v743 = vpop.permute.xlu0 %742
      %744 = vrot.lane.b32.xlu0 %v495, 80
      %v745 = vpop.permute.xlu0 %744
      %746 = vrot.lane.b32.xlu0 %v498, 80
      %v747 = vpop.permute.xlu0 %746
      %748 = vrot.lane.b32.xlu0 %v501, 80
      %v749 = vpop.permute.xlu0 %748
      %750 = vrot.lane.b32.xlu0 %v504, 80
      %v751 = vpop.permute.xlu0 %750
      %752 = vrot.lane.b32.xlu0 %v507, 80
      %v753 = vpop.permute.xlu0 %752
      %754 = vrot.lane.b32.xlu0 %v510, 80
      %v755 = vpop.permute.xlu0 %754
      %756 = vrot.lane.b32.xlu0 %v725, 80
      %v757 = vpop.permute.xlu0 %756
      %vm774 = vcmask 786048
      %775 = vst.msk [vmem:[#allocation2] sm:$0xff] %vm774, %v727
      %776 = vst.msk [vmem:[#allocation2 + $0x10] sm:$0xff] %vm774, %v729
      %777 = vst.msk [vmem:[#allocation2 + $0x20] sm:$0xff] %vm774, %v731
      %778 = vst.msk [vmem:[#allocation2 + $0x30] sm:$0xff] %vm774, %v733
      %779 = vst.msk [vmem:[#allocation2 + $0x40] sm:$0xff] %vm774, %v735
      %780 = vst.msk [vmem:[#allocation2 + $0x50] sm:$0xff] %vm774, %v737
      %781 = vst.msk [vmem:[#allocation2 + $0x60] sm:$0xff] %vm774, %v739
      %782 = vst.msk [vmem:[#allocation2 + $0x70] sm:$0xff] %vm774, %v741
      %783 = vst.msk [vmem:[#allocation2 + $0x80] sm:$0xff] %vm774, %v743
      %784 = vst.msk [vmem:[#allocation2 + $0x90] sm:$0xff] %vm774, %v745
      %785 = vst.msk [vmem:[#allocation2 + $0xa0] sm:$0xff] %vm774, %v747
      %786 = vst.msk [vmem:[#allocation2 + $0xb0] sm:$0xff] %vm774, %v749
      %787 = vst.msk [vmem:[#allocation2 + $0xc0] sm:$0xff] %vm774, %v751
      %788 = vst.msk [vmem:[#allocation2 + $0xd0] sm:$0xff] %vm774, %v753
      %789 = vst.msk [vmem:[#allocation2 + $0xe0] sm:$0xff] %vm774, %v755
      %790 = vst.msk [vmem:[#allocation2 + $0xf0] sm:$0xff] %vm774, %v757
      %v791 = vmax.f32 %v245, 0.0
      %v792 = vmax.f32 %v265, 0.0
      %795 = vrot.lane.b32.xlu0 %v269, 96
      %v796 = vpop.permute.xlu0 %795
      %797 = vrot.lane.b32.xlu0 %v270, 96
      %v798 = vpop.permute.xlu0 %797
      %799 = vrot.lane.b32.xlu0 %v271, 96
      %v800 = vpop.permute.xlu0 %799
      %801 = vrot.lane.b32.xlu0 %v272, 96
      %v802 = vpop.permute.xlu0 %801
      %803 = vrot.lane.b32.xlu0 %v273, 96
      %v804 = vpop.permute.xlu0 %803
      %805 = vrot.lane.b32.xlu0 %v274, 96
      %v806 = vpop.permute.xlu0 %805
      %807 = vrot.lane.b32.xlu0 %v576, 96
      %v808 = vpop.permute.xlu0 %807
      %809 = vrot.lane.b32.xlu0 %v791, 96
      %v810 = vpop.permute.xlu0 %809
      %811 = vrot.lane.b32.xlu0 %v277, 96
      %v812 = vpop.permute.xlu0 %811
      %813 = vrot.lane.b32.xlu0 %v278, 96
      %v814 = vpop.permute.xlu0 %813
      %815 = vrot.lane.b32.xlu0 %v279, 96
      %v816 = vpop.permute.xlu0 %815
      %817 = vrot.lane.b32.xlu0 %v280, 96
      %v818 = vpop.permute.xlu0 %817
      %819 = vrot.lane.b32.xlu0 %v281, 96
      %v820 = vpop.permute.xlu0 %819
      %821 = vrot.lane.b32.xlu0 %v282, 96
      %v822 = vpop.permute.xlu0 %821
      %823 = vrot.lane.b32.xlu0 %v577, 96
      %v824 = vpop.permute.xlu0 %823
      %825 = vrot.lane.b32.xlu0 %v792, 96
      %v826 = vpop.permute.xlu0 %825
      %vm843 = vcmask 917248
      %844 = vst.msk [vmem:[#allocation2] sm:$0xff] %vm843, %v796
      %845 = vst.msk [vmem:[#allocation2 + $0x10] sm:$0xff] %vm843, %v798
      %846 = vst.msk [vmem:[#allocation2 + $0x20] sm:$0xff] %vm843, %v800
      %847 = vst.msk [vmem:[#allocation2 + $0x30] sm:$0xff] %vm843, %v802
      %848 = vst.msk [vmem:[#allocation2 + $0x40] sm:$0xff] %vm843, %v804
      %849 = vst.msk [vmem:[#allocation2 + $0x50] sm:$0xff] %vm843, %v806
      %850 = vst.msk [vmem:[#allocation2 + $0x60] sm:$0xff] %vm843, %v808
      %851 = vst.msk [vmem:[#allocation2 + $0x70] sm:$0xff] %vm843, %v810
      %852 = vst.msk [vmem:[#allocation2 + $0x80] sm:$0xff] %vm843, %v812
      %853 = vst.msk [vmem:[#allocation2 + $0x90] sm:$0xff] %vm843, %v814
      %854 = vst.msk [vmem:[#allocation2 + $0xa0] sm:$0xff] %vm843, %v816
      %855 = vst.msk [vmem:[#allocation2 + $0xb0] sm:$0xff] %vm843, %v818
      %856 = vst.msk [vmem:[#allocation2 + $0xc0] sm:$0xff] %vm843, %v820
      %857 = vst.msk [vmem:[#allocation2 + $0xd0] sm:$0xff] %vm843, %v822
      %858 = vst.msk [vmem:[#allocation2 + $0xe0] sm:$0xff] %vm843, %v824
      %859 = vst.msk [vmem:[#allocation2 + $0xf0] sm:$0xff] %vm843, %v826
      %v860 = vmax.f32 %v246, 0.0
      %v861 = vmax.f32 %v266, 0.0
      %v864 = vrot.slane %v791, 1
      %v865 = vrot.slane %v860, 1
      %v866 = vsel %vm348, %v864, %v865
      %v867 = vrot.slane %v792, 1
      %v868 = vrot.slane %v861, 1
      %v869 = vsel %vm348, %v867, %v868
      %870 = vrot.lane.b32.xlu0 %v357, 112
      %v871 = vpop.permute.xlu0 %870
      %872 = vrot.lane.b32.xlu0 %v360, 112
      %v873 = vpop.permute.xlu0 %872
      %874 = vrot.lane.b32.xlu0 %v363, 112
      %v875 = vpop.permute.xlu0 %874
      %876 = vrot.lane.b32.xlu0 %v366, 112
      %v877 = vpop.permute.xlu0 %876
      %878 = vrot.lane.b32.xlu0 %v369, 112
      %v879 = vpop.permute.xlu0 %878
      %880 = vrot.lane.b32.xlu0 %v372, 112
      %v881 = vpop.permute.xlu0 %880
      %882 = vrot.lane.b32.xlu0 %v651, 112
      %v883 = vpop.permute.xlu0 %882
      %884 = vrot.lane.b32.xlu0 %v866, 112
      %v885 = vpop.permute.xlu0 %884
      %886 = vrot.lane.b32.xlu0 %v381, 112
      %v887 = vpop.permute.xlu0 %886
      %888 = vrot.lane.b32.xlu0 %v384, 112
      %v889 = vpop.permute.xlu0 %888
      %890 = vrot.lane.b32.xlu0 %v387, 112
      %v891 = vpop.permute.xlu0 %890
      %892 = vrot.lane.b32.xlu0 %v390, 112
      %v893 = vpop.permute.xlu0 %892
      %894 = vrot.lane.b32.xlu0 %v393, 112
      %v895 = vpop.permute.xlu0 %894
      %896 = vrot.lane.b32.xlu0 %v396, 112
      %v897 = vpop.permute.xlu0 %896
      %898 = vrot.lane.b32.xlu0 %v654, 112
      %v899 = vpop.permute.xlu0 %898
      %900 = vrot.lane.b32.xlu0 %v869, 112
      %v901 = vpop.permute.xlu0 %900
      %vm918 = vcmask 1048448
      %919 = vst.msk [vmem:[#allocation2] sm:$0xff] %vm918, %v871
      %920 = vst.msk [vmem:[#allocation2 + $0x10] sm:$0xff] %vm918, %v873
      %921 = vst.msk [vmem:[#allocation2 + $0x20] sm:$0xff] %vm918, %v875
      %922 = vst.msk [vmem:[#allocation2 + $0x30] sm:$0xff] %vm918, %v877
      %923 = vst.msk [vmem:[#allocation2 + $0x40] sm:$0xff] %vm918, %v879
      %924 = vst.msk [vmem:[#allocation2 + $0x50] sm:$0xff] %vm918, %v881
      %925 = vst.msk [vmem:[#allocation2 + $0x60] sm:$0xff] %vm918, %v883
      %926 = vst.msk [vmem:[#allocation2 + $0x70] sm:$0xff] %vm918, %v885
      %927 = vst.msk [vmem:[#allocation2 + $0x80] sm:$0xff] %vm918, %v887
      %928 = vst.msk [vmem:[#allocation2 + $0x90] sm:$0xff] %vm918, %v889
      %929 = vst.msk [vmem:[#allocation2 + $0xa0] sm:$0xff] %vm918, %v891
      %930 = vst.msk [vmem:[#allocation2 + $0xb0] sm:$0xff] %vm918, %v893
      %931 = vst.msk [vmem:[#allocation2 + $0xc0] sm:$0xff] %vm918, %v895
      %932 = vst.msk [vmem:[#allocation2 + $0xd0] sm:$0xff] %vm918, %v897
      %933 = vst.msk [vmem:[#allocation2 + $0xe0] sm:$0xff] %vm918, %v899
      %934 = vst.msk [vmem:[#allocation2 + $0xf0] sm:$0xff] %vm918, %v901
      %v935 = vrot.slane %v791, 2
      %v936 = vrot.slane %v860, 2
      %v937 = vsel %vm462, %v935, %v936
      %v938 = vrot.slane %v792, 2
      %v939 = vrot.slane %v861, 2
      %v940 = vsel %vm462, %v938, %v939
      %957 = vst.msk [vmem:[#allocation2 + $0x8] sm:$0xff] %vm283, %v471
      %958 = vst.msk [vmem:[#allocation2 + $0x18] sm:$0xff] %vm283, %v474
      %959 = vst.msk [vmem:[#allocation2 + $0x28] sm:$0xff] %vm283, %v477
      %960 = vst.msk [vmem:[#allocation2 + $0x38] sm:$0xff] %vm283, %v480
      %961 = vst.msk [vmem:[#allocation2 + $0x48] sm:$0xff] %vm283, %v483
      %962 = vst.msk [vmem:[#allocation2 + $0x58] sm:$0xff] %vm283, %v486
      %963 = vst.msk [vmem:[#allocation2 + $0x68] sm:$0xff] %vm283, %v722
      %964 = vst.msk [vmem:[#allocation2 + $0x78] sm:$0xff] %vm283, %v937
      %965 = vst.msk [vmem:[#allocation2 + $0x88] sm:$0xff] %vm283, %v495
      %966 = vst.msk [vmem:[#allocation2 + $0x98] sm:$0xff] %vm283, %v498
      %967 = vst.msk [vmem:[#allocation2 + $0xa8] sm:$0xff] %vm283, %v501
      %968 = vst.msk [vmem:[#allocation2 + $0xb8] sm:$0xff] %vm283, %v504
      %969 = vst.msk [vmem:[#allocation2 + $0xc8] sm:$0xff] %vm283, %v507
      %970 = vst.msk [vmem:[#allocation2 + $0xd8] sm:$0xff] %vm283, %v510
      %971 = vst.msk [vmem:[#allocation2 + $0xe8] sm:$0xff] %vm283, %v725
      %972 = vst.msk [vmem:[#allocation2 + $0xf8] sm:$0xff] %vm283, %v940
      %v973 = vld [vmem:[#allocation2] sm:$0xff]
      %v974 = vld [vmem:[#allocation2 + $0x8] sm:$0xff]
      %v975 = vld [vmem:[#allocation2 + $0x10] sm:$0xff]
      %v976 = vld [vmem:[#allocation2 + $0x18] sm:$0xff]
      %v977 = vld [vmem:[#allocation2 + $0x20] sm:$0xff]
      %v978 = vld [vmem:[#allocation2 + $0x28] sm:$0xff]
      %v979 = vld [vmem:[#allocation2 + $0x30] sm:$0xff]
      %v980 = vld [vmem:[#allocation2 + $0x38] sm:$0xff]
      %v981 = vld [vmem:[#allocation2 + $0x40] sm:$0xff]
      %v982 = vld [vmem:[#allocation2 + $0x48] sm:$0xff]
      %v983 = vld [vmem:[#allocation2 + $0x50] sm:$0xff]
      %v984 = vld [vmem:[#allocation2 + $0x58] sm:$0xff]
      %v985 = vld [vmem:[#allocation2 + $0x60] sm:$0xff]
      %v986 = vld [vmem:[#allocation2 + $0x68] sm:$0xff]
      %v987 = vld [vmem:[#allocation2 + $0x70] sm:$0xff]
      %v988 = vld [vmem:[#allocation2 + $0x78] sm:$0xff]
      %v989 = vld [vmem:[#allocation2 + $0x80] sm:$0xff]
      %v990 = vld [vmem:[#allocation2 + $0x88] sm:$0xff]
      %v991 = vld [vmem:[#allocation2 + $0x90] sm:$0xff]
      %v992 = vld [vmem:[#allocation2 + $0x98] sm:$0xff]
      %v993 = vld [vmem:[#allocation2 + $0xa0] sm:$0xff]
      %v994 = vld [vmem:[#allocation2 + $0xa8] sm:$0xff]
      %v995 = vld [vmem:[#allocation2 + $0xb0] sm:$0xff]
      %v996 = vld [vmem:[#allocation2 + $0xb8] sm:$0xff]
      %v997 = vld [vmem:[#allocation2 + $0xc0] sm:$0xff]
      %v998 = vld [vmem:[#allocation2 + $0xc8] sm:$0xff]
      %v999 = vld [vmem:[#allocation2 + $0xd0] sm:$0xff]
      %v1000 = vld [vmem:[#allocation2 + $0xd8] sm:$0xff]
      %v1001 = vld [vmem:[#allocation2 + $0xe0] sm:$0xff]
      %v1002 = vld [vmem:[#allocation2 + $0xe8] sm:$0xff]
      %v1003 = vld [vmem:[#allocation2 + $0xf0] sm:$0xff]
      %v1004 = vld [vmem:[#allocation2 + $0xf8] sm:$0xff]
      %v1005 = vld [vmem:[%s213] sm:$0xff]
      %v1006 = vld [vmem:[%s213 + $0x8] sm:$0xff]
      %v1007 = vld [vmem:[%s213 + $0x10] sm:$0xff]
      %v1008 = vld [vmem:[%s213 + $0x18] sm:$0xff]
      %v1009 = vld [vmem:[%s213 + $0x20] sm:$0xff]
      %v1010 = vld [vmem:[%s213 + $0x28] sm:$0xff]
      %v1011 = vld [vmem:[%s213 + $0x30] sm:$0xff]
      %v1012 = vld [vmem:[%s213 + $0x38] sm:$0xff]
      %v1013 = vld [vmem:[%s213 + $0x40] sm:$0xff]
      %v1014 = vld [vmem:[%s213 + $0x48] sm:$0xff]
      %v1015 = vld [vmem:[%s213 + $0x50] sm:$0xff]
      %v1016 = vld [vmem:[%s213 + $0x58] sm:$0xff]
      %v1017 = vld [vmem:[%s213 + $0x60] sm:$0xff]
      %v1018 = vld [vmem:[%s213 + $0x68] sm:$0xff]
      %v1019 = vld [vmem:[%s213 + $0x70] sm:$0xff]
      %v1020 = vld [vmem:[%s213 + $0x78] sm:$0xff]
      %v1021 = vld [vmem:[%s213 + $0x80] sm:$0xff]
      %v1022 = vld [vmem:[%s213 + $0x88] sm:$0xff]
      %v1024 = vsel %vm283, %v974, 0
      %v1027 = vsel %vm283, %v976, 0
      %v1030 = vsel %vm283, %v978, 0
      %v1033 = vsel %vm283, %v980, 0
      %v1036 = vsel %vm283, %v982, 0
      %v1039 = vsel %vm283, %v984, 0
      %v1042 = vsel %vm283, %v986, 0
      %v1045 = vsel %vm283, %v988, 0
      %v1048 = vsel %vm283, %v990, 0
      %v1051 = vsel %vm283, %v992, 0
      %v1054 = vsel %vm283, %v994, 0
      %v1057 = vsel %vm283, %v996, 0
      %v1060 = vsel %vm283, %v998, 0
      %v1063 = vsel %vm283, %v1000, 0
      %v1066 = vsel %vm283, %v1002, 0
      %v1069 = vsel %vm283, %v1004, 0
      %1071 = vmatpush.msra.mxu0 %v1020
      %1072 = vmatpush.msra.mxu0 %v1019
      %1073 = vmatpush.msra.mxu0 %v1018
      %1074 = vmatpush.msra.mxu0 %v1017
      %1075 = vmatpush.msra.mxu0 %v1016
      %1076 = vmatpush.msra.mxu0 %v1015
      %1077 = vmatpush.msra.mxu0 %v1014
      %1078 = vmatpush.msra.mxu0 %v1013
      %1079 = vmatpush.msra.mxu0 %v1012
      %1080 = vmatpush.msra.mxu0 %v1011
      %1081 = vmatpush.msra.mxu0 %v1010
      %1082 = vmatpush.msra.mxu0 %v1009
      %1083 = vmatpush.msra.mxu0 %v1008
      %1084 = vmatpush.msra.mxu0 %v1007
      %1085 = vmatpush.msra.mxu0 %v1006
      %1086 = vmatpush.msra.mxu0 %v1005
      %1087 = vmatmul.f32.gmra.mxu0 %v973
      %v1088 = vpop.f32.mrf.mxu0
      %v1089 = vadd.f32 0.0, %v1088
      %1090 = vmatmul.f32.gmra.mxu0 %v975
      %v1091 = vpop.f32.mrf.mxu0
      %v1092 = vadd.f32 0.0, %v1091
      %1093 = vmatmul.f32.gmra.mxu0 %v977
      %v1094 = vpop.f32.mrf.mxu0
      %v1095 = vadd.f32 0.0, %v1094
      %1096 = vmatmul.f32.gmra.mxu0 %v979
      %v1097 = vpop.f32.mrf.mxu0
      %v1098 = vadd.f32 0.0, %v1097
      %1099 = vmatmul.f32.gmra.mxu0 %v981
      %v1100 = vpop.f32.mrf.mxu0
      %v1101 = vadd.f32 0.0, %v1100
      %1102 = vmatmul.f32.gmra.mxu0 %v983
      %v1103 = vpop.f32.mrf.mxu0
      %v1104 = vadd.f32 0.0, %v1103
      %1105 = vmatmul.f32.gmra.mxu0 %v985
      %v1106 = vpop.f32.mrf.mxu0
      %v1107 = vadd.f32 0.0, %v1106
      %1108 = vmatmul.f32.gmra.mxu0 %v987
      %v1109 = vpop.f32.mrf.mxu0
      %v1110 = vadd.f32 0.0, %v1109
      %1111 = vmatmul.f32.gmra.mxu0 %v989
      %v1112 = vpop.f32.mrf.mxu0
      %v1113 = vadd.f32 0.0, %v1112
      %1114 = vmatmul.f32.gmra.mxu0 %v991
      %v1115 = vpop.f32.mrf.mxu0
      %v1116 = vadd.f32 0.0, %v1115
      %1117 = vmatmul.f32.gmra.mxu0 %v993
      %v1118 = vpop.f32.mrf.mxu0
      %v1119 = vadd.f32 0.0, %v1118
      %1120 = vmatmul.f32.gmra.mxu0 %v995
      %v1121 = vpop.f32.mrf.mxu0
      %v1122 = vadd.f32 0.0, %v1121
      %1123 = vmatmul.f32.gmra.mxu0 %v997
      %v1124 = vpop.f32.mrf.mxu0
      %v1125 = vadd.f32 0.0, %v1124
      %1126 = vmatmul.f32.gmra.mxu0 %v999
      %v1127 = vpop.f32.mrf.mxu0
      %v1128 = vadd.f32 0.0, %v1127
      %1129 = vmatmul.f32.gmra.mxu0 %v1001
      %v1130 = vpop.f32.mrf.mxu0
      %v1131 = vadd.f32 0.0, %v1130
      %1132 = vmatmul.f32.gmra.mxu0 %v1003
      %v1133 = vpop.f32.mrf.mxu0
      %v1134 = vadd.f32 0.0, %v1133
      %1135 = vdwg.mxu0
      %1136 = vmatpush.msra.mxu0 0.0
      %1137 = vmatpush.msra.mxu0 0.0
      %1138 = vmatpush.msra.mxu0 0.0
      %1139 = vmatpush.msra.mxu0 0.0
      %1140 = vmatpush.msra.mxu0 0.0
      %1141 = vmatpush.msra.mxu0 0.0
      %1142 = vmatpush.msra.mxu0 0.0
      %1143 = vmatpush.msra.mxu0 0.0
      %1144 = vmatpush.msra.mxu0 0.0
      %1145 = vmatpush.msra.mxu0 0.0
      %1146 = vmatpush.msra.mxu0 0.0
      %1147 = vmatpush.msra.mxu0 0.0
      %1148 = vmatpush.msra.mxu0 0.0
      %1149 = vmatpush.msra.mxu0 0.0
      %1150 = vmatpush.msra.mxu0 %v1022
      %1151 = vmatpush.msra.mxu0 %v1021
      %1152 = vmatmul.f32.gmra.mxu0 %v1024
      %v1153 = vpop.f32.mrf.mxu0
      %v1154 = vadd.f32 %v1089, %v1153
      %1155 = vmatmul.f32.gmra.mxu0 %v1027
      %v1156 = vpop.f32.mrf.mxu0
      %v1157 = vadd.f32 %v1092, %v1156
      %1158 = vmatmul.f32.gmra.mxu0 %v1030
      %v1159 = vpop.f32.mrf.mxu0
      %v1160 = vadd.f32 %v1095, %v1159
      %1161 = vmatmul.f32.gmra.mxu0 %v1033
      %v1162 = vpop.f32.mrf.mxu0
      %v1163 = vadd.f32 %v1098, %v1162
      %1164 = vmatmul.f32.gmra.mxu0 %v1036
      %v1165 = vpop.f32.mrf.mxu0
      %v1166 = vadd.f32 %v1101, %v1165
      %1167 = vmatmul.f32.gmra.mxu0 %v1039
      %v1168 = vpop.f32.mrf.mxu0
      %v1169 = vadd.f32 %v1104, %v1168
      %1170 = vmatmul.f32.gmra.mxu0 %v1042
      %v1171 = vpop.f32.mrf.mxu0
      %v1172 = vadd.f32 %v1107, %v1171
      %1173 = vmatmul.f32.gmra.mxu0 %v1045
      %v1174 = vpop.f32.mrf.mxu0
      %v1175 = vadd.f32 %v1110, %v1174
      %1176 = vmatmul.f32.gmra.mxu0 %v1048
      %v1177 = vpop.f32.mrf.mxu0
      %v1178 = vadd.f32 %v1113, %v1177
      %1179 = vmatmul.f32.gmra.mxu0 %v1051
      %v1180 = vpop.f32.mrf.mxu0
      %v1181 = vadd.f32 %v1116, %v1180
      %1182 = vmatmul.f32.gmra.mxu0 %v1054
      %v1183 = vpop.f32.mrf.mxu0
      %v1184 = vadd.f32 %v1119, %v1183
      %1185 = vmatmul.f32.gmra.mxu0 %v1057
      %v1186 = vpop.f32.mrf.mxu0
      %v1187 = vadd.f32 %v1122, %v1186
      %1188 = vmatmul.f32.gmra.mxu0 %v1060
      %v1189 = vpop.f32.mrf.mxu0
      %v1190 = vadd.f32 %v1125, %v1189
      %1191 = vmatmul.f32.gmra.mxu0 %v1063
      %v1192 = vpop.f32.mrf.mxu0
      %v1193 = vadd.f32 %v1128, %v1192
      %1194 = vmatmul.f32.gmra.mxu0 %v1066
      %v1195 = vpop.f32.mrf.mxu0
      %v1196 = vadd.f32 %v1131, %v1195
      %1197 = vmatmul.f32.gmra.mxu0 %v1069
      %v1198 = vpop.f32.mrf.mxu0
      %v1199 = vadd.f32 %v1134, %v1198
      %1200 = vdwg.mxu0
      %v1201 = vld [vmem:[%s216] sm:$0x1]
      %vm1202 = vcmask 261120
      %v1203 = vsel %vm1202, %v1154, 0.0
      %v1204 = vsel %vm1202, %v1157, 0.0
      %v1205 = vadd.f32 %v1203, %v1204
      %v1206 = vsel %vm1202, %v1160, 0.0
      %v1207 = vadd.f32 %v1205, %v1206
      %v1208 = vsel %vm1202, %v1163, 0.0
      %v1209 = vadd.f32 %v1207, %v1208
      %v1210 = vsel %vm1202, %v1166, 0.0
      %v1211 = vadd.f32 %v1209, %v1210
      %v1212 = vsel %vm1202, %v1169, 0.0
      %v1213 = vadd.f32 %v1211, %v1212
      %v1214 = vsel %vm1202, %v1172, 0.0
      %v1215 = vadd.f32 %v1213, %v1214
      %v1216 = vsel %vm1202, %v1175, 0.0
      %v1217 = vadd.f32 %v1215, %v1216
      %v1218 = vsel %vm1202, %v1178, 0.0
      %v1219 = vadd.f32 %v1217, %v1218
      %v1220 = vsel %vm1202, %v1181, 0.0
      %v1221 = vadd.f32 %v1219, %v1220
      %v1222 = vsel %vm1202, %v1184, 0.0
      %v1223 = vadd.f32 %v1221, %v1222
      %v1224 = vsel %vm1202, %v1187, 0.0
      %v1225 = vadd.f32 %v1223, %v1224
      %v1226 = vsel %vm1202, %v1190, 0.0
      %v1227 = vadd.f32 %v1225, %v1226
      %v1228 = vsel %vm1202, %v1193, 0.0
      %v1229 = vadd.f32 %v1227, %v1228
      %v1230 = vsel %vm1202, %v1196, 0.0
      %v1231 = vadd.f32 %v1229, %v1230
      %v1232 = vsel %vm1202, %v1199, 0.0
      %v1233 = vadd.f32 %v1231, %v1232
      %v1234 = vrot.slane %v1233, 4
      %v1235 = vadd.f32 %v1233, %v1234
      %v1236 = vrot.slane %v1235, 2
      %v1237 = vadd.f32 %v1235, %v1236
      %v1238 = vrot.slane %v1237, 1
      %v1239 = vadd.f32 %v1237, %v1238
      %v1240 = vadd.f32 %v1201, %v1239
      %vm1241 = vcmask 253952
      %1242 = vst.msk [vmem:[%s216] sm:$0x1] %vm1241, %v1240
      %v1243 = vld [vmem:[%s219] sm:$0x1]
      %v1244 = vmul.f32 %v1154, %v1154
      %v1245 = vmul.f32 %v1157, %v1157
      %v1246 = vmul.f32 %v1160, %v1160
      %v1247 = vmul.f32 %v1163, %v1163
      %v1248 = vmul.f32 %v1166, %v1166
      %v1249 = vmul.f32 %v1169, %v1169
      %v1250 = vmul.f32 %v1172, %v1172
      %v1251 = vmul.f32 %v1175, %v1175
      %v1252 = vmul.f32 %v1178, %v1178
      %v1253 = vmul.f32 %v1181, %v1181
      %v1254 = vmul.f32 %v1184, %v1184
      %v1255 = vmul.f32 %v1187, %v1187
      %v1256 = vmul.f32 %v1190, %v1190
      %v1257 = vmul.f32 %v1193, %v1193
      %v1258 = vmul.f32 %v1196, %v1196
      %v1259 = vmul.f32 %v1199, %v1199
      %v1260 = vsel %vm1202, %v1244, 0.0
      %v1261 = vsel %vm1202, %v1245, 0.0
      %v1262 = vadd.f32 %v1260, %v1261
      %v1263 = vsel %vm1202, %v1246, 0.0
      %v1264 = vadd.f32 %v1262, %v1263
      %v1265 = vsel %vm1202, %v1247, 0.0
      %v1266 = vadd.f32 %v1264, %v1265
      %v1267 = vsel %vm1202, %v1248, 0.0
      %v1268 = vadd.f32 %v1266, %v1267
      %v1269 = vsel %vm1202, %v1249, 0.0
      %v1270 = vadd.f32 %v1268, %v1269
      %v1271 = vsel %vm1202, %v1250, 0.0
      %v1272 = vadd.f32 %v1270, %v1271
      %v1273 = vsel %vm1202, %v1251, 0.0
      %v1274 = vadd.f32 %v1272, %v1273
      %v1275 = vsel %vm1202, %v1252, 0.0
      %v1276 = vadd.f32 %v1274, %v1275
      %v1277 = vsel %vm1202, %v1253, 0.0
      %v1278 = vadd.f32 %v1276, %v1277
      %v1279 = vsel %vm1202, %v1254, 0.0
      %v1280 = vadd.f32 %v1278, %v1279
      %v1281 = vsel %vm1202, %v1255, 0.0
      %v1282 = vadd.f32 %v1280, %v1281
      %v1283 = vsel %vm1202, %v1256, 0.0
      %v1284 = vadd.f32 %v1282, %v1283
      %v1285 = vsel %vm1202, %v1257, 0.0
      %v1286 = vadd.f32 %v1284, %v1285
      %v1287 = vsel %vm1202, %v1258, 0.0
      %v1288 = vadd.f32 %v1286, %v1287
      %v1289 = vsel %vm1202, %v1259, 0.0
      %v1290 = vadd.f32 %v1288, %v1289
      %v1291 = vrot.slane %v1290, 4
      %v1292 = vadd.f32 %v1290, %v1291
      %v1293 = vrot.slane %v1292, 2
      %v1294 = vadd.f32 %v1292, %v1293
      %v1295 = vrot.slane %v1294, 1
      %v1296 = vadd.f32 %v1294, %v1295
      %v1297 = vadd.f32 %v1243, %v1296
      %1298 = vst.msk [vmem:[%s219] sm:$0x1] %vm1241, %v1297
      %p1299 = scmp.lt.s32.totalorder %s19, 2
      %s1300 = scalar_select %p1299, %s19, 2
      %s1301 = scalar_lea.vmem %s2, %s1300
      %p1302 = scmp.lt.s32.totalorder %s19, 2
      %s1303 = scalar_select %p1302, %s19, 2
      %s1304 = scalar_lea.vmem %s3, %s1303
      // Predicated region
      $region33: #{search_cell_forward.10} parent=27 // pred_check
        %p1305 = pneg %p99
      $region34: #{search_cell_forward.10} parent=27 // pred_check_branch
        %1307 = sbr.rel (%p1305) target = $region36
      $region35: #{search_cell_forward.10} parent=27 // pred_region
        _
      $region36: #{search_cell_forward.10} parent=27 // pred_fallthru
        _
      // Predicated region
      $region37: #{search_cell_forward.10} parent=27 // pred_check
        %p1308 = pneg %p125
      $region38: #{search_cell_forward.10} parent=27 // pred_check_branch
        %1310 = sbr.rel (%p1308) target = $region40
      $region39: #{search_cell_forward.10} parent=27 // pred_region
        _
      $region40: #{search_cell_forward.10} parent=27 // pred_fallthru
        _
    $region28: #{search_cell_forward.10} parent=5 // pred_fallthru
      _
    %p1311 = scmp.le.s32.totalorder 2, %s10
    // Predicated region
    $region41: #{search_cell_forward.10} parent=5 // pred_check
      %p1312 = pneg %p1311
    $region42: #{search_cell_forward.10} parent=5 // pred_check_branch
      %1314 = sbr.rel (%p1312) target = $region44
    $region43: #{search_cell_forward.10} parent=5 // pred_region
      %s1315 = ssub.s32 %s10, 2
      // Predicated region
      $region45: #{search_cell_forward.10} parent=43 // pred_check
        %p1316 = pneg %p105
      $region46: #{search_cell_forward.10} parent=43 // pred_check_branch
        %1318 = sbr.rel (%p1316) target = $region48
      $region47: #{search_cell_forward.10} parent=43 // pred_region
        %p1319 = scmp.lt.s32.totalorder %s21, 2
        %s1320 = scalar_select %p1319, %s21, 2
        %s1321 = scalar_lea.vmem %s2, %s1320
      $region48: #{search_cell_forward.10} parent=43 // pred_fallthru
        _
      // Predicated region
      $region49: #{search_cell_forward.10} parent=43 // pred_check
        %p1322 = pneg %p131
      $region50: #{search_cell_forward.10} parent=43 // pred_check_branch
        %1324 = sbr.rel (%p1322) target = $region52
      $region51: #{search_cell_forward.10} parent=43 // pred_region
        %p1325 = scmp.lt.s32.totalorder %s21, 2
        %s1326 = scalar_select %p1325, %s21, 2
        %s1327 = scalar_lea.vmem %s3, %s1326
      $region52: #{search_cell_forward.10} parent=43 // pred_fallthru
        _
    $region44: #{search_cell_forward.10} parent=5 // pred_fallthru
      _
  $region6: #{search_cell_forward.10} parent=0 // loop_footer
    %s14 = sadd.s32 1, %s10
  $region7: #{search_cell_forward.10} parent=0 // loop_footer_branch
    %9 = sbr.rel target = $region3
  $region8: #{search_cell_forward.10} parent=0 // loop_exit
    _

// kernel: search_cell_forward.11
$region0: #{search_cell_forward.11}
  #allocation0 [shape = 'u32[]', space=smem, size = 0x4, offset = 0x4, fixed_abs, tag = 'smem constant byte address 0x4 - core index']
  #allocation1 [shape = 'u32[72,128]{1,0:T(1,128)}', space=vmem, size = 0x9000, scoped, tag = 'internal scratch']
  #allocation2 [shape = 'f32[128,144]{1,0:T(8,128)}', space=vmem, size = 0x20000, scoped, tag = 'scratch operand']
  %s0 = inlined_call_operand.vmem [shape: f32[6,10,10,16], index: 0, kind: input, shape index: {}]
  %s1 = inlined_call_operand.vmem [shape: f32[3,144,32], index: 1, kind: input, shape index: {}]
  %s2 = inlined_call_operand.vmem [shape: f32[3,4,32], index: 2, kind: input, shape index: {}]
  %s3 = inlined_call_operand.hbm [shape: f32[2,8,8,16], index: 3, kind: output, shape index: {}]
  %s4 = sld [smem:[#allocation0]]
  $region49: #{search_cell_forward.11} parent=0
    _
  %s6 = ssub.s32 1, %s4
  %s7 = scalar_select 0, %s6, %s4
  $region1: #{search_cell_forward.11} parent=0
    #allocation3 [shape = 'u8[65536]{0}', space=vmem, size = 0x10000, scoped, tag = 'output window, operand 0, single buffered']
    #allocation4 [shape = 's32[2]{0}', space=sflag, size = 0x8, scoped, tag = 'scoped memory for search_cell_forward.11']
    %8 = vsyncpa [#allocation4], 0
    loop: start=0, step=1, limit=5
    $region2: #{search_cell_forward.11} parent=1 // loop_pre_header
      _
    $region3: #{search_cell_forward.11} parent=1 // loop_header
      %s10 = sphi 0, %s14
      %p11 = scmp.ge.s32.totalorder %s10, 5
      %s17 = sphi 0, %s29
      %s18 = sphi 0, %s25
      %s19 = sphi 0, %s17
      %s20 = sphi 0, %s18
      %s21 = sphi 0, %s19
      %s22 = sphi 0, %s20
      %s34 = sphi 0, %s36
      %s37 = sphi 0, %s34
      %s38 = sphi 0, %s37
      %s54 = sphi 0, %s38
      %s60 = sphi 0, %s62
      %s63 = sphi 0, %s60
      %s64 = sphi 0, %s63
      %s80 = sphi 0, %s64
      %s86 = sphi 0, %s88
      %s89 = sphi 0, %s86
      %s90 = sphi 0, %s89
      %s106 = sphi 0, %s90
      %s112 = sphi 0, %s114
      %s115 = sphi 0, %s112
      %s116 = sphi 0, %s115
      %s132 = sphi 0, %s116
    $region4: #{search_cell_forward.11} parent=1 // loop_header_branch
      %13 = sbr.rel (%p11) target = $region8
    $region5: #{search_cell_forward.11} parent=1 // loop_body
      %s15 = ssub.s32 %s10, 1
      %s16 = ssub.s32 %s10, 2
      %s23 = sadd.s32 1, %s18
      %p24 = scmp.ge.s32.totalorder %s23, 3
      %s25 = scalar_select %p24, 0, %s23
      %s26 = sadd.s32 1, %s17
      %s27 = scalar_select %p24, %s26, %s17
      %p28 = scmp.ge.s32.totalorder %s27, 1
      %s29 = scalar_select %p28, 0, %s27
      %s30 = sadd.s32 %s18, %s17
      %s31 = sadd.s32 %s25, %s29
      %s32 = ssub.s32 %s30, %s31
      %p33 = scmp.eq.s32.totalorder %s32, 0
      %s35 = sadd.s32 %s34, 1
      %s36 = scalar_select %p33, %s34, %s35
      %p39 = pneg %p33
      %p40 = scmp.eq.s32.totalorder %s10, 2
      %p41 = por %p39, %p40
      %p42 = scmp.ne.s32.totalorder %s34, %s37
      %p43 = scmp.eq.s32.totalorder %s10, 0
      %p44 = por %p42, %p43
      %p45 = scmp.ne.s32.totalorder %s34, %s37
      %p46 = scmp.eq.s32.totalorder %s15, 2
      %p47 = por %p45, %p46
      %p48 = scmp.ne.s32.totalorder %s37, %s38
      %p49 = scmp.eq.s32.totalorder %s15, 0
      %p50 = por %p48, %p49
      %p51 = scmp.ne.s32.totalorder %s37, %s38
      %p52 = scmp.eq.s32.totalorder %s16, 2
      %p53 = por %p51, %p52
      %p55 = scmp.ne.s32.totalorder %s38, %s54
      %p56 = scmp.eq.s32.totalorder %s16, 0
      %p57 = por %p55, %p56
      %s58 = ssub.s32 %s18, %s25
      %p59 = scmp.eq.s32.totalorder %s58, 0
      %s61 = sadd.s32 %s60, 1
      %s62 = scalar_select %p59, %s60, %s61
      %p65 = pneg %p59
      %p66 = scmp.eq.s32.totalorder %s10, 2
      %p67 = por %p65, %p66
      %p68 = scmp.ne.s32.totalorder %s60, %s63
      %p69 = scmp.eq.s32.totalorder %s10, 0
      %p70 = por %p68, %p69
      %p71 = scmp.ne.s32.totalorder %s60, %s63
      %p72 = scmp.eq.s32.totalorder %s15, 2
      %p73 = por %p71, %p72
      %p74 = scmp.ne.s32.totalorder %s63, %s64
      %p75 = scmp.eq.s32.totalorder %s15, 0
      %p76 = por %p74, %p75
      %p77 = scmp.ne.s32.totalorder %s63, %s64
      %p78 = scmp.eq.s32.totalorder %s16, 2
      %p79 = por %p77, %p78
      %p81 = scmp.ne.s32.totalorder %s64, %s80
      %p82 = scmp.eq.s32.totalorder %s16, 0
      %p83 = por %p81, %p82
      %s84 = ssub.s32 %s18, %s25
      %p85 = scmp.eq.s32.totalorder %s84, 0
      %s87 = sadd.s32 %s86, 1
      %s88 = scalar_select %p85, %s86, %s87
      %p91 = pneg %p85
      %p92 = scmp.eq.s32.totalorder %s10, 2
      %p93 = por %p91, %p92
      %p94 = scmp.ne.s32.totalorder %s86, %s89
      %p95 = scmp.eq.s32.totalorder %s10, 0
      %p96 = por %p94, %p95
      %p97 = scmp.ne.s32.totalorder %s86, %s89
      %p98 = scmp.eq.s32.totalorder %s15, 2
      %p99 = por %p97, %p98
      %p100 = scmp.ne.s32.totalorder %s89, %s90
      %p101 = scmp.eq.s32.totalorder %s15, 0
      %p102 = por %p100, %p101
      %p103 = scmp.ne.s32.totalorder %s89, %s90
      %p104 = scmp.eq.s32.totalorder %s16, 2
      %p105 = por %p103, %p104
      %p107 = scmp.ne.s32.totalorder %s90, %s106
      %p108 = scmp.eq.s32.totalorder %s16, 0
      %p109 = por %p107, %p108
      %s110 = ssub.s32 %s17, %s29
      %p111 = scmp.eq.s32.totalorder %s110, 0
      %s113 = sadd.s32 %s112, 1
      %s114 = scalar_select %p111, %s112, %s113
      %p117 = pneg %p111
      %p118 = scmp.eq.s32.totalorder %s10, 2
      %p119 = por %p117, %p118
      %p120 = scmp.ne.s32.totalorder %s112, %s115
      %p121 = scmp.eq.s32.totalorder %s10, 0
      %p122 = por %p120, %p121
      %p123 = scmp.ne.s32.totalorder %s112, %s115
      %p124 = scmp.eq.s32.totalorder %s15, 2
      %p125 = por %p123, %p124
      %p126 = scmp.ne.s32.totalorder %s115, %s116
      %p127 = scmp.eq.s32.totalorder %s15, 0
      %p128 = por %p126, %p127
      %p129 = scmp.ne.s32.totalorder %s115, %s116
      %p130 = scmp.eq.s32.totalorder %s16, 2
      %p131 = por %p129, %p130
      %p133 = scmp.ne.s32.totalorder %s116, %s132
      %p134 = scmp.eq.s32.totalorder %s16, 0
      %p135 = por %p133, %p134
      %p136 = scmp.le.s32.totalorder 1, %s10
      %p137 = scmp.lt.s32.totalorder %s10, 4
      %p138 = pnand %p136, %p137
      %p139 = pneg %p138
      // Predicated region
      $region9: #{search_cell_forward.11} parent=5 // pred_check
        _
      $region10: #{search_cell_forward.11} parent=5 // pred_check_branch
        %141 = sbr.rel (%p138) target = $region12
      $region11: #{search_cell_forward.11} parent=5 // pred_region
        %s142 = ssub.s32 %s10, 1
      $region12: #{search_cell_forward.11} parent=5 // pred_fallthru
        _
      %p143 = scmp.lt.s32.totalorder %s10, 3
      // Predicated region
      $region13: #{search_cell_forward.11} parent=5 // pred_check
        %p144 = pneg %p143
      $region14: #{search_cell_forward.11} parent=5 // pred_check_branch
        %146 = sbr.rel (%p144) target = $region16
      $region15: #{search_cell_forward.11} parent=5 // pred_region
        // Predicated region
        $region17: #{search_cell_forward.11} parent=15 // pred_check
          %p147 = pneg %p44
        $region18: #{search_cell_forward.11} parent=15 // pred_check_branch
          %149 = sbr.rel (%p147) target = $region20
        $region19: #{search_cell_forward.11} parent=15 // pred_region
          %s150 = sadd.s32 %s18, %s17
          %s151 = smul.u32 2, %s150
          %p152 = scmp.lt.s32.totalorder %s151, 5
          %s153 = scalar_select %p152, %s151, 5
          %s154 = smul.addr %s153, 20
          %s155 = smul.addr %s154, 8
          %s156 = scalar_lea.vmem %s0, %s155
          %s157 = sadd.s32 %s18, %s17
          %s158 = smul.u32 2, %s157
        $region20: #{search_cell_forward.11} parent=15 // pred_fallthru
          _
        // Predicated region
        $region21: #{search_cell_forward.11} parent=15 // pred_check
          %p159 = pneg %p70
        $region22: #{search_cell_forward.11} parent=15 // pred_check_branch
          %161 = sbr.rel (%p159) target = $region24
        $region23: #{search_cell_forward.11} parent=15 // pred_region
          %p162 = scmp.lt.s32.totalorder %s18, 2
          %s163 = scalar_select %p162, %s18, 2
          %s164 = smul.addr %s163, 18
          %s165 = smul.addr %s164, 8
          %s166 = scalar_lea.vmem %s1, %s165
        $region24: #{search_cell_forward.11} parent=15 // pred_fallthru
          _
        // Predicated region
        $region25: #{search_cell_forward.11} parent=15 // pred_check
          %p167 = pneg %p96
        $region26: #{search_cell_forward.11} parent=15 // pred_check_branch
          %169 = sbr.rel (%p167) target = $region28
        $region27: #{search_cell_forward.11} parent=15 // pred_region
          %p170 = scmp.lt.s32.totalorder %s18, 2
          %s171 = scalar_select %p170, %s18, 2
          %s172 = smul.addr %s171, 4
          %s173 = scalar_lea.vmem %s2, %s172
        $region28: #{search_cell_forward.11} parent=15 // pred_fallthru
          _
      $region16: #{search_cell_forward.11} parent=5 // pred_fallthru
        _
      %p174 = scmp.le.s32.totalorder 1, %s10
      %p175 = scmp.lt.s32.totalorder %s10, 4
      %p176 = pnand %p174, %p175
      %p177 = pneg %p176
      // Predicated region
      $region29: #{search_cell_forward.11} parent=5 // pred_check
        _
      $region30: #{search_cell_forward.11} parent=5 // pred_check_branch
        %179 = sbr.rel (%p176) target = $region32
      $region31: #{search_cell_forward.11} parent=5 // pred_region
        %s180 = ssub.s32 %s10, 1
        %s181 = sadd.s32 %s20, %s19
        %s182 = smul.u32 2, %s181
        %p183 = scmp.lt.s32.totalorder %s182, 5
        %s184 = scalar_select %p183, %s182, 5
        %s185 = smul.addr %s184, 20
        %s186 = smul.addr %s185, 8
        %s187 = scalar_lea.vmem %s0, %s186
        %p188 = pneg %p50
        %p189 = pneg %p47
        %p190 = scmp.lt.s32.totalorder %s20, 2
        %s191 = scalar_select %p190, %s20, 2
        %s192 = smul.addr %s191, 18
        %s193 = smul.addr %s192, 8
        %s194 = scalar_lea.vmem %s1, %s193
        %p195 = pneg %p76
        %p196 = pneg %p73
        %p197 = scmp.lt.s32.totalorder %s20, 2
        %s198 = scalar_select %p197, %s20, 2
        %s199 = smul.addr %s198, 4
        %s200 = scalar_lea.vmem %s2, %s199
        %p201 = pneg %p102
        %p202 = pneg %p99
        %p203 = pneg %p128
        %p204 = pneg %p125
        %s205 = sadd.s32 %s20, %s19
        %s206 = smul.u32 2, %s205
        %p207 = scmp.lt.s32.totalorder %s206, 5
        %s208 = scalar_select %p207, %s206, 5
        %s209 = smul.addr %s208, 20
        %s210 = smul.addr %s209, 8
        %s211 = scalar_lea.vmem %s0, %s210
        %s212 = sadd.s32 %s20, %s19
        %s213 = smul.u32 2, %s212
        %p214 = scmp.lt.s32.totalorder %s20, 2
        %s215 = scalar_select %p214, %s20, 2
        %s216 = smul.addr %s215, 18
        %s217 = smul.addr %s216, 8
        %s218 = scalar_lea.vmem %s1, %s217
        %p219 = scmp.lt.s32.totalorder %s20, 2
        %s220 = scalar_select %p219, %s20, 2
        %s221 = smul.addr %s220, 4
        %s222 = scalar_lea.vmem %s2, %s221
        %s223 = smul.u32 2, %s19
        %v224 = vld [vmem:[%s211] sm:$0xff]
        %v225 = vld [vmem:[%s211 + $0x8] sm:$0x3]
        %v226 = vld [vmem:[%s211 + $0x10] sm:$0xff]
        %v227 = vld [vmem:[%s211 + $0x18] sm:$0x3]
        %v228 = vld [vmem:[%s211 + $0x20] sm:$0xff]
        %v229 = vld [vmem:[%s211 + $0x28] sm:$0x3]
        %v230 = vld [vmem:[%s211 + $0x30] sm:$0xff]
        %v231 = vld [vmem:[%s211 + $0x38] sm:$0x3]
        %v232 = vld [vmem:[%s211 + $0x40] sm:$0xff]
        %v233 = vld [vmem:[%s211 + $0x48] sm:$0x3]
        %v234 = vld [vmem:[%s211 + $0x50] sm:$0xff]
        %v235 = vld [vmem:[%s211 + $0x58] sm:$0x3]
        %v236 = vld [vmem:[%s211 + $0x60] sm:$0xff]
        %v237 = vld [vmem:[%s211 + $0x68] sm:$0x3]
        %v238 = vld [vmem:[%s211 + $0x70] sm:$0xff]
        %v239 = vld [vmem:[%s211 + $0x78] sm:$0x3]
        %v240 = vld [vmem:[%s211 + $0x80] sm:$0xff]
        %v241 = vld [vmem:[%s211 + $0x88] sm:$0x3]
        %v242 = vld [vmem:[%s211 + $0x90] sm:$0xff]
        %v243 = vld [vmem:[%s211 + $0x98] sm:$0x3]
        %v244 = vld [vmem:[%s211 + $0xa0] sm:$0xff]
        %v245 = vld [vmem:[%s211 + $0xa8] sm:$0x3]
        %v246 = vld [vmem:[%s211 + $0xb0] sm:$0xff]
        %v247 = vld [vmem:[%s211 + $0xb8] sm:$0x3]
        %v248 = vld [vmem:[%s211 + $0xc0] sm:$0xff]
        %v249 = vld [vmem:[%s211 + $0xc8] sm:$0x3]
        %v250 = vld [vmem:[%s211 + $0xd0] sm:$0xff]
        %v251 = vld [vmem:[%s211 + $0xd8] sm:$0x3]
        %v252 = vld [vmem:[%s211 + $0xe0] sm:$0xff]
        %v253 = vld [vmem:[%s211 + $0xe8] sm:$0x3]
        %v254 = vld [vmem:[%s211 + $0xf0] sm:$0xff]
        %v255 = vld [vmem:[%s211 + $0xf8] sm:$0x3]
        %v256 = vld [vmem:[%s211 + $0x100] sm:$0xff]
        %v257 = vld [vmem:[%s211 + $0x108] sm:$0x3]
        %v258 = vld [vmem:[%s211 + $0x110] sm:$0xff]
        %v259 = vld [vmem:[%s211 + $0x118] sm:$0x3]
        %v260 = vld [vmem:[%s211 + $0x120] sm:$0xff]
        %v261 = vld [vmem:[%s211 + $0x128] sm:$0x3]
        %v262 = vld [vmem:[%s211 + $0x130] sm:$0xff]
        %v263 = vld [vmem:[%s211 + $0x138] sm:$0x3]
        %v264 = vadd.f32 %v224, 0.0
        %v265 = vadd.f32 %v226, 0.0
        %v266 = vadd.f32 %v228, 0.0
        %v267 = vadd.f32 %v230, 0.0
        %v268 = vadd.f32 %v232, 0.0
        %v269 = vadd.f32 %v234, 0.0
        %v270 = vadd.f32 %v236, 0.0
        %v271 = vadd.f32 %v238, 0.0
        %v272 = vadd.f32 %v244, 0.0
        %v273 = vadd.f32 %v246, 0.0
        %v274 = vadd.f32 %v248, 0.0
        %v275 = vadd.f32 %v250, 0.0
        %v276 = vadd.f32 %v252, 0.0
        %v277 = vadd.f32 %v254, 0.0
        %v278 = vadd.f32 %v256, 0.0
        %v279 = vadd.f32 %v258, 0.0
        %v280 = vmax.f32 %v224, 0.0
        %v281 = vmax.f32 %v226, 0.0
        %v282 = vmax.f32 %v228, 0.0
        %v283 = vmax.f32 %v230, 0.0
        %v284 = vmax.f32 %v232, 0.0
        %v285 = vmax.f32 %v234, 0.0
        %v286 = vmax.f32 %v236, 0.0
        %v287 = vmax.f32 %v238, 0.0
        %v288 = vmax.f32 %v244, 0.0
        %v289 = vmax.f32 %v246, 0.0
        %v290 = vmax.f32 %v248, 0.0
        %v291 = vmax.f32 %v250, 0.0
        %v292 = vmax.f32 %v252, 0.0
        %v293 = vmax.f32 %v254, 0.0
        %v294 = vmax.f32 %v256, 0.0
        %v295 = vmax.f32 %v258, 0.0
        %vm296 = vcmask 130048
        %297 = vst.msk [vmem:[#allocation2] sm:$0xff] %vm296, %v280
        %298 = vst.msk [vmem:[#allocation2 + $0x10] sm:$0xff] %vm296, %v281
        %299 = vst.msk [vmem:[#allocation2 + $0x20] sm:$0xff] %vm296, %v282
        %300 = vst.msk [vmem:[#allocation2 + $0x30] sm:$0xff] %vm296, %v283
        %301 = vst.msk [vmem:[#allocation2 + $0x40] sm:$0xff] %vm296, %v284
        %302 = vst.msk [vmem:[#allocation2 + $0x50] sm:$0xff] %vm296, %v285
        %303 = vst.msk [vmem:[#allocation2 + $0x60] sm:$0xff] %vm296, %v286
        %304 = vst.msk [vmem:[#allocation2 + $0x70] sm:$0xff] %vm296, %v287
        %305 = vst.msk [vmem:[#allocation2 + $0x80] sm:$0xff] %vm296, %v288
        %306 = vst.msk [vmem:[#allocation2 + $0x90] sm:$0xff] %vm296, %v289
        %307 = vst.msk [vmem:[#allocation2 + $0xa0] sm:$0xff] %vm296, %v290
        %308 = vst.msk [vmem:[#allocation2 + $0xb0] sm:$0xff] %vm296, %v291
        %309 = vst.msk [vmem:[#allocation2 + $0xc0] sm:$0xff] %vm296, %v292
        %310 = vst.msk [vmem:[#allocation2 + $0xd0] sm:$0xff] %vm296, %v293
        %311 = vst.msk [vmem:[#allocation2 + $0xe0] sm:$0xff] %vm296, %v294
        %312 = vst.msk [vmem:[#allocation2 + $0xf0] sm:$0xff] %vm296, %v295
        %vm345 = vcmask 1046528
        %v346 = vrot.slane %v224, 1
        %v347 = vrot.slane %v225, 1
        %v348 = vsel %vm345, %v346, %v347
        %v349 = vrot.slane %v226, 1
        %v350 = vrot.slane %v227, 1
        %v351 = vsel %vm345, %v349, %v350
        %v352 = vrot.slane %v228, 1
        %v353 = vrot.slane %v229, 1
        %v354 = vsel %vm345, %v352, %v353
        %v355 = vrot.slane %v230, 1
        %v356 = vrot.slane %v231, 1
        %v357 = vsel %vm345, %v355, %v356
        %v358 = vrot.slane %v232, 1
        %v359 = vrot.slane %v233, 1
        %v360 = vsel %vm345, %v358, %v359
        %v361 = vrot.slane %v234, 1
        %v362 = vrot.slane %v235, 1
        %v363 = vsel %vm345, %v361, %v362
        %v364 = vrot.slane %v236, 1
        %v365 = vrot.slane %v237, 1
        %v366 = vsel %vm345, %v364, %v365
        %v367 = vrot.slane %v238, 1
        %v368 = vrot.slane %v239, 1
        %v369 = vsel %vm345, %v367, %v368
        %v370 = vrot.slane %v244, 1
        %v371 = vrot.slane %v245, 1
        %v372 = vsel %vm345, %v370, %v371
        %v373 = vrot.slane %v246, 1
        %v374 = vrot.slane %v247, 1
        %v375 = vsel %vm345, %v373, %v374
        %v376 = vrot.slane %v248, 1
        %v377 = vrot.slane %v249, 1
        %v378 = vsel %vm345, %v376, %v377
        %v379 = vrot.slane %v250, 1
        %v380 = vrot.slane %v251, 1
        %v381 = vsel %vm345, %v379, %v380
        %v382 = vrot.slane %v252, 1
        %v383 = vrot.slane %v253, 1
        %v384 = vsel %vm345, %v382, %v383
        %v385 = vrot.slane %v254, 1
        %v386 = vrot.slane %v255, 1
        %v387 = vsel %vm345, %v385, %v386
        %v388 = vrot.slane %v256, 1
        %v389 = vrot.slane %v257, 1
        %v390 = vsel %vm345, %v388, %v389
        %v391 = vrot.slane %v258, 1
        %v392 = vrot.slane %v259, 1
        %v393 = vsel %vm345, %v391, %v392
        %v410 = vadd.f32 %v264, %v348
        %v411 = vadd.f32 %v265, %v351
        %v412 = vadd.f32 %v266, %v354
        %v413 = vadd.f32 %v267, %v357
        %v414 = vadd.f32 %v268, %v360
        %v415 = vadd.f32 %v269, %v363
        %v416 = vadd.f32 %v270, %v366
        %v417 = vadd.f32 %v271, %v369
        %v418 = vadd.f32 %v272, %v372
        %v419 = vadd.f32 %v273, %v375
        %v420 = vadd.f32 %v274, %v378
        %v421 = vadd.f32 %v275, %v381
        %v422 = vadd.f32 %v276, %v384
        %v423 = vadd.f32 %v277, %v387
        %v424 = vadd.f32 %v278, %v390
        %v425 = vadd.f32 %v279, %v393
        %v426 = vmax.f32 %v225, 0.0
        %v427 = vmax.f32 %v227, 0.0
        %v428 = vmax.f32 %v229, 0.0
        %v429 = vmax.f32 %v231, 0.0
        %v430 = vmax.f32 %v233, 0.0
        %v431 = vmax.f32 %v235, 0.0
        %v432 = vmax.f32 %v237, 0.0
        %v433 = vmax.f32 %v239, 0.0
        %v434 = vmax.f32 %v245, 0.0
        %v435 = vmax.f32 %v247, 0.0
        %v436 = vmax.f32 %v249, 0.0
        %v437 = vmax.f32 %v251, 0.0
        %v438 = vmax.f32 %v253, 0.0
        %v439 = vmax.f32 %v255, 0.0
        %v440 = vmax.f32 %v257, 0.0
        %v441 = vmax.f32 %v259, 0.0
        %v474 = vrot.slane %v280, 1
        %v475 = vrot.slane %v426, 1
        %v476 = vsel %vm345, %v474, %v475
        %v477 = vrot.slane %v281, 1
        %v478 = vrot.slane %v427, 1
        %v479 = vsel %vm345, %v477, %v478
        %v480 = vrot.slane %v282, 1
        %v481 = vrot.slane %v428, 1
        %v482 = vsel %vm345, %v480, %v481
        %v483 = vrot.slane %v283, 1
        %v484 = vrot.slane %v429, 1
        %v485 = vsel %vm345, %v483, %v484
        %v486 = vrot.slane %v284, 1
        %v487 = vrot.slane %v430, 1
        %v488 = vsel %vm345, %v486, %v487
        %v489 = vrot.slane %v285, 1
        %v490 = vrot.slane %v431, 1
        %v491 = vsel %vm345, %v489, %v490
        %v492 = vrot.slane %v286, 1
        %v493 = vrot.slane %v432, 1
        %v494 = vsel %vm345, %v492, %v493
        %v495 = vrot.slane %v287, 1
        %v496 = vrot.slane %v433, 1
        %v497 = vsel %vm345, %v495, %v496
        %v498 = vrot.slane %v288, 1
        %v499 = vrot.slane %v434, 1
        %v500 = vsel %vm345, %v498, %v499
        %v501 = vrot.slane %v289, 1
        %v502 = vrot.slane %v435, 1
        %v503 = vsel %vm345, %v501, %v502
        %v504 = vrot.slane %v290, 1
        %v505 = vrot.slane %v436, 1
        %v506 = vsel %vm345, %v504, %v505
        %v507 = vrot.slane %v291, 1
        %v508 = vrot.slane %v437, 1
        %v509 = vsel %vm345, %v507, %v508
        %v510 = vrot.slane %v292, 1
        %v511 = vrot.slane %v438, 1
        %v512 = vsel %vm345, %v510, %v511
        %v513 = vrot.slane %v293, 1
        %v514 = vrot.slane %v439, 1
        %v515 = vsel %vm345, %v513, %v514
        %v516 = vrot.slane %v294, 1
        %v517 = vrot.slane %v440, 1
        %v518 = vsel %vm345, %v516, %v517
        %v519 = vrot.slane %v295, 1
        %v520 = vrot.slane %v441, 1
        %v521 = vsel %vm345, %v519, %v520
        %522 = vrot.lane.b32.xlu0 %v476, 16
        %v523 = vpop.permute.xlu0 %522
        %524 = vrot.lane.b32.xlu0 %v479, 16
        %v525 = vpop.permute.xlu0 %524
        %526 = vrot.lane.b32.xlu0 %v482, 16
        %v527 = vpop.permute.xlu0 %526
        %528 = vrot.lane.b32.xlu0 %v485, 16
        %v529 = vpop.permute.xlu0 %528
        %530 = vrot.lane.b32.xlu0 %v488, 16
        %v531 = vpop.permute.xlu0 %530
        %532 = vrot.lane.b32.xlu0 %v491, 16
        %v533 = vpop.permute.xlu0 %532
        %534 = vrot.lane.b32.xlu0 %v494, 16
        %v535 = vpop.permute.xlu0 %534
        %536 = vrot.lane.b32.xlu0 %v497, 16
        %v537 = vpop.permute.xlu0 %536
        %538 = vrot.lane.b32.xlu0 %v500, 16
        %v539 = vpop.permute.xlu0 %538
        %540 = vrot.lane.b32.xlu0 %v503, 16
        %v541 = vpop.permute.xlu0 %540
        %542 = vrot.lane.b32.xlu0 %v506, 16
        %v543 = vpop.permute.xlu0 %542
        %544 = vrot.lane.b32.xlu0 %v509, 16
        %v545 = vpop.permute.xlu0 %544
        %546 = vrot.lane.b32.xlu0 %v512, 16
        %v547 = vpop.permute.xlu0 %546
        %548 = vrot.lane.b32.xlu0 %v515, 16
        %v549 = vpop.permute.xlu0 %548
        %550 = vrot.lane.b32.xlu0 %v518, 16
        %v551 = vpop.permute.xlu0 %550
        %552 = vrot.lane.b32.xlu0 %v521, 16
        %v553 = vpop.permute.xlu0 %552
        %vm570 = vcmask 261248
        %571 = vst.msk [vmem:[#allocation2] sm:$0xff] %vm570, %v523
        %572 = vst.msk [vmem:[#allocation2 + $0x10] sm:$0xff] %vm570, %v525
        %573 = vst.msk [vmem:[#allocation2 + $0x20] sm:$0xff] %vm570, %v527
        %574 = vst.msk [vmem:[#allocation2 + $0x30] sm:$0xff] %vm570, %v529
        %575 = vst.msk [vmem:[#allocation2 + $0x40] sm:$0xff] %vm570, %v531
        %576 = vst.msk [vmem:[#allocation2 + $0x50] sm:$0xff] %vm570, %v533
        %577 = vst.msk [vmem:[#allocation2 + $0x60] sm:$0xff] %vm570, %v535
        %578 = vst.msk [vmem:[#allocation2 + $0x70] sm:$0xff] %vm570, %v537
        %579 = vst.msk [vmem:[#allocation2 + $0x80] sm:$0xff] %vm570, %v539
        %580 = vst.msk [vmem:[#allocation2 + $0x90] sm:$0xff] %vm570, %v541
        %581 = vst.msk [vmem:[#allocation2 + $0xa0] sm:$0xff] %vm570, %v543
        %582 = vst.msk [vmem:[#allocation2 + $0xb0] sm:$0xff] %vm570, %v545
        %583 = vst.msk [vmem:[#allocation2 + $0xc0] sm:$0xff] %vm570, %v547
        %584 = vst.msk [vmem:[#allocation2 + $0xd0] sm:$0xff] %vm570, %v549
        %585 = vst.msk [vmem:[#allocation2 + $0xe0] sm:$0xff] %vm570, %v551
        %586 = vst.msk [vmem:[#allocation2 + $0xf0] sm:$0xff] %vm570, %v553
        %vm587 = vcmask 1045504
        %v588 = vrot.slane %v224, 2
        %v589 = vrot.slane %v225, 2
        %v590 = vsel %vm587, %v588, %v589
        %v591 = vrot.slane %v226, 2
        %v592 = vrot.slane %v227, 2
        %v593 = vsel %vm587, %v591, %v592
        %v594 = vrot.slane %v228, 2
        %v595 = vrot.slane %v229, 2
        %v596 = vsel %vm587, %v594, %v595
        %v597 = vrot.slane %v230, 2
        %v598 = vrot.slane %v231, 2
        %v599 = vsel %vm587, %v597, %v598
        %v600 = vrot.slane %v232, 2
        %v601 = vrot.slane %v233, 2
        %v602 = vsel %vm587, %v600, %v601
        %v603 = vrot.slane %v234, 2
        %v604 = vrot.slane %v235, 2
        %v605 = vsel %vm587, %v603, %v604
        %v606 = vrot.slane %v236, 2
        %v607 = vrot.slane %v237, 2
        %v608 = vsel %vm587, %v606, %v607
        %v609 = vrot.slane %v238, 2
        %v610 = vrot.slane %v239, 2
        %v611 = vsel %vm587, %v609, %v610
        %v612 = vrot.slane %v244, 2
        %v613 = vrot.slane %v245, 2
        %v614 = vsel %vm587, %v612, %v613
        %v615 = vrot.slane %v246, 2
        %v616 = vrot.slane %v247, 2
        %v617 = vsel %vm587, %v615, %v616
        %v618 = vrot.slane %v248, 2
        %v619 = vrot.slane %v249, 2
        %v620 = vsel %vm587, %v618, %v619
        %v621 = vrot.slane %v250, 2
        %v622 = vrot.slane %v251, 2
        %v623 = vsel %vm587, %v621, %v622
        %v624 = vrot.slane %v252, 2
        %v625 = vrot.slane %v253, 2
        %v626 = vsel %vm587, %v624, %v625
        %v627 = vrot.slane %v254, 2
        %v628 = vrot.slane %v255, 2
        %v629 = vsel %vm587, %v627, %v628
        %v630 = vrot.slane %v256, 2
        %v631 = vrot.slane %v257, 2
        %v632 = vsel %vm587, %v630, %v631
        %v633 = vrot.slane %v258, 2
        %v634 = vrot.slane %v259, 2
        %v635 = vsel %vm587, %v633, %v634
        %v652 = vadd.f32 %v410, %v590
        %v653 = vadd.f32 %v411, %v593
        %v654 = vadd.f32 %v412, %v596
        %v655 = vadd.f32 %v413, %v599
        %v656 = vadd.f32 %v414, %v602
        %v657 = vadd.f32 %v415, %v605
        %v658 = vadd.f32 %v416, %v608
        %v659 = vadd.f32 %v417, %v611
        %v660 = vadd.f32 %v418, %v614
        %v661 = vadd.f32 %v419, %v617
        %v662 = vadd.f32 %v420, %v620
        %v663 = vadd.f32 %v421, %v623
        %v664 = vadd.f32 %v422, %v626
        %v665 = vadd.f32 %v423, %v629
        %v666 = vadd.f32 %v424, %v632
        %v667 = vadd.f32 %v425, %v635
        %v668 = vrot.slane %v280, 2
        %v669 = vrot.slane %v426, 2
        %v670 = vsel %vm587, %v668, %v669
        %v671 = vrot.slane %v281, 2
        %v672 = vrot.slane %v427, 2
        %v673 = vsel %vm587, %v671, %v672
        %v674 = vrot.slane %v282, 2
        %v675 = vrot.slane %v428, 2
        %v676 = vsel %vm587, %v674, %v675
        %v677 = vrot.slane %v283, 2
        %v678 = vrot.slane %v429, 2
        %v679 = vsel %vm587, %v677, %v678
        %v680 = vrot.slane %v284, 2
        %v681 = vrot.slane %v430, 2
        %v682 = vsel %vm587, %v680, %v681
        %v683 = vrot.slane %v285, 2
        %v684 = vrot.slane %v431, 2
        %v685 = vsel %vm587, %v683, %v684
        %v686 = vrot.slane %v286, 2
        %v687 = vrot.slane %v432, 2
        %v688 = vsel %vm587, %v686, %v687
        %v689 = vrot.slane %v287, 2
        %v690 = vrot.slane %v433, 2
        %v691 = vsel %vm587, %v689, %v690
        %v692 = vrot.slane %v288, 2
        %v693 = vrot.slane %v434, 2
        %v694 = vsel %vm587, %v692, %v693
        %v695 = vrot.slane %v289, 2
        %v696 = vrot.slane %v435, 2
        %v697 = vsel %vm587, %v695, %v696
        %v698 = vrot.slane %v290, 2
        %v699 = vrot.slane %v436, 2
        %v700 = vsel %vm587, %v698, %v699
        %v701 = vrot.slane %v291, 2
        %v702 = vrot.slane %v437, 2
        %v703 = vsel %vm587, %v701, %v702
        %v704 = vrot.slane %v292, 2
        %v705 = vrot.slane %v438, 2
        %v706 = vsel %vm587, %v704, %v705
        %v707 = vrot.slane %v293, 2
        %v708 = vrot.slane %v439, 2
        %v709 = vsel %vm587, %v707, %v708
        %v710 = vrot.slane %v294, 2
        %v711 = vrot.slane %v440, 2
        %v712 = vsel %vm587, %v710, %v711
        %v713 = vrot.slane %v295, 2
        %v714 = vrot.slane %v441, 2
        %v715 = vsel %vm587, %v713, %v714
        %716 = vrot.lane.b32.xlu0 %v670, 32
        %v717 = vpop.permute.xlu0 %716
        %718 = vrot.lane.b32.xlu0 %v673, 32
        %v719 = vpop.permute.xlu0 %718
        %720 = vrot.lane.b32.xlu0 %v676, 32
        %v721 = vpop.permute.xlu0 %720
        %722 = vrot.lane.b32.xlu0 %v679, 32
        %v723 = vpop.permute.xlu0 %722
        %724 = vrot.lane.b32.xlu0 %v682, 32
        %v725 = vpop.permute.xlu0 %724
        %726 = vrot.lane.b32.xlu0 %v685, 32
        %v727 = vpop.permute.xlu0 %726
        %728 = vrot.lane.b32.xlu0 %v688, 32
        %v729 = vpop.permute.xlu0 %728
        %730 = vrot.lane.b32.xlu0 %v691, 32
        %v731 = vpop.permute.xlu0 %730
        %732 = vrot.lane.b32.xlu0 %v694, 32
        %v733 = vpop.permute.xlu0 %732
        %734 = vrot.lane.b32.xlu0 %v697, 32
        %v735 = vpop.permute.xlu0 %734
        %736 = vrot.lane.b32.xlu0 %v700, 32
        %v737 = vpop.permute.xlu0 %736
        %738 = vrot.lane.b32.xlu0 %v703, 32
        %v739 = vpop.permute.xlu0 %738
        %740 = vrot.lane.b32.xlu0 %v706, 32
        %v741 = vpop.permute.xlu0 %740
        %742 = vrot.lane.b32.xlu0 %v709, 32
        %v743 = vpop.permute.xlu0 %742
        %744 = vrot.lane.b32.xlu0 %v712, 32
        %v745 = vpop.permute.xlu0 %744
        %746 = vrot.lane.b32.xlu0 %v715, 32
        %v747 = vpop.permute.xlu0 %746
        %vm764 = vcmask 392448
        %765 = vst.msk [vmem:[#allocation2] sm:$0xff] %vm764, %v717
        %766 = vst.msk [vmem:[#allocation2 + $0x10] sm:$0xff] %vm764, %v719
        %767 = vst.msk [vmem:[#allocation2 + $0x20] sm:$0xff] %vm764, %v721
        %768 = vst.msk [vmem:[#allocation2 + $0x30] sm:$0xff] %vm764, %v723
        %769 = vst.msk [vmem:[#allocation2 + $0x40] sm:$0xff] %vm764, %v725
        %770 = vst.msk [vmem:[#allocation2 + $0x50] sm:$0xff] %vm764, %v727
        %771 = vst.msk [vmem:[#allocation2 + $0x60] sm:$0xff] %vm764, %v729
        %772 = vst.msk [vmem:[#allocation2 + $0x70] sm:$0xff] %vm764, %v731
        %773 = vst.msk [vmem:[#allocation2 + $0x80] sm:$0xff] %vm764, %v733
        %774 = vst.msk [vmem:[#allocation2 + $0x90] sm:$0xff] %vm764, %v735
        %775 = vst.msk [vmem:[#allocation2 + $0xa0] sm:$0xff] %vm764, %v737
        %776 = vst.msk [vmem:[#allocation2 + $0xb0] sm:$0xff] %vm764, %v739
        %777 = vst.msk [vmem:[#allocation2 + $0xc0] sm:$0xff] %vm764, %v741
        %778 = vst.msk [vmem:[#allocation2 + $0xd0] sm:$0xff] %vm764, %v743
        %779 = vst.msk [vmem:[#allocation2 + $0xe0] sm:$0xff] %vm764, %v745
        %780 = vst.msk [vmem:[#allocation2 + $0xf0] sm:$0xff] %vm764, %v747
        %v781 = vadd.f32 %v652, %v226
        %v782 = vadd.f32 %v653, %v228
        %v783 = vadd.f32 %v654, %v230
        %v784 = vadd.f32 %v655, %v232
        %v785 = vadd.f32 %v656, %v234
        %v786 = vadd.f32 %v657, %v236
        %v787 = vadd.f32 %v658, %v238
        %v788 = vadd.f32 %v659, %v240
        %v789 = vadd.f32 %v660, %v246
        %v790 = vadd.f32 %v661, %v248
        %v791 = vadd.f32 %v662, %v250
        %v792 = vadd.f32 %v663, %v252
        %v793 = vadd.f32 %v664, %v254
        %v794 = vadd.f32 %v665, %v256
        %v795 = vadd.f32 %v666, %v258
        %v796 = vadd.f32 %v667, %v260
        %v797 = vmax.f32 %v240, 0.0
        %v798 = vmax.f32 %v260, 0.0
        %801 = vrot.lane.b32.xlu0 %v281, 48
        %v802 = vpop.permute.xlu0 %801
        %803 = vrot.lane.b32.xlu0 %v282, 48
        %v804 = vpop.permute.xlu0 %803
        %805 = vrot.lane.b32.xlu0 %v283, 48
        %v806 = vpop.permute.xlu0 %805
        %807 = vrot.lane.b32.xlu0 %v284, 48
        %v808 = vpop.permute.xlu0 %807
        %809 = vrot.lane.b32.xlu0 %v285, 48
        %v810 = vpop.permute.xlu0 %809
        %811 = vrot.lane.b32.xlu0 %v286, 48
        %v812 = vpop.permute.xlu0 %811
        %813 = vrot.lane.b32.xlu0 %v287, 48
        %v814 = vpop.permute.xlu0 %813
        %815 = vrot.lane.b32.xlu0 %v797, 48
        %v816 = vpop.permute.xlu0 %815
        %817 = vrot.lane.b32.xlu0 %v289, 48
        %v818 = vpop.permute.xlu0 %817
        %819 = vrot.lane.b32.xlu0 %v290, 48
        %v820 = vpop.permute.xlu0 %819
        %821 = vrot.lane.b32.xlu0 %v291, 48
        %v822 = vpop.permute.xlu0 %821
        %823 = vrot.lane.b32.xlu0 %v292, 48
        %v824 = vpop.permute.xlu0 %823
        %825 = vrot.lane.b32.xlu0 %v293, 48
        %v826 = vpop.permute.xlu0 %825
        %827 = vrot.lane.b32.xlu0 %v294, 48
        %v828 = vpop.permute.xlu0 %827
        %829 = vrot.lane.b32.xlu0 %v295, 48
        %v830 = vpop.permute.xlu0 %829
        %831 = vrot.lane.b32.xlu0 %v798, 48
        %v832 = vpop.permute.xlu0 %831
        %vm849 = vcmask 523648
        %850 = vst.msk [vmem:[#allocation2] sm:$0xff] %vm849, %v802
        %851 = vst.msk [vmem:[#allocation2 + $0x10] sm:$0xff] %vm849, %v804
        %852 = vst.msk [vmem:[#allocation2 + $0x20] sm:$0xff] %vm849, %v806
        %853 = vst.msk [vmem:[#allocation2 + $0x30] sm:$0xff] %vm849, %v808
        %854 = vst.msk [vmem:[#allocation2 + $0x40] sm:$0xff] %vm849, %v810
        %855 = vst.msk [vmem:[#allocation2 + $0x50] sm:$0xff] %vm849, %v812
        %856 = vst.msk [vmem:[#allocation2 + $0x60] sm:$0xff] %vm849, %v814
        %857 = vst.msk [vmem:[#allocation2 + $0x70] sm:$0xff] %vm849, %v816
        %858 = vst.msk [vmem:[#allocation2 + $0x80] sm:$0xff] %vm849, %v818
        %859 = vst.msk [vmem:[#allocation2 + $0x90] sm:$0xff] %vm849, %v820
        %860 = vst.msk [vmem:[#allocation2 + $0xa0] sm:$0xff] %vm849, %v822
        %861 = vst.msk [vmem:[#allocation2 + $0xb0] sm:$0xff] %vm849, %v824
        %862 = vst.msk [vmem:[#allocation2 + $0xc0] sm:$0xff] %vm849, %v826
        %863 = vst.msk [vmem:[#allocation2 + $0xd0] sm:$0xff] %vm849, %v828
        %864 = vst.msk [vmem:[#allocation2 + $0xe0] sm:$0xff] %vm849, %v830
        %865 = vst.msk [vmem:[#allocation2 + $0xf0] sm:$0xff] %vm849, %v832
        %v870 = vrot.slane %v240, 1
        %v871 = vrot.slane %v241, 1
        %v872 = vsel %vm345, %v870, %v871
        %v873 = vrot.slane %v260, 1
        %v874 = vrot.slane %v261, 1
        %v875 = vsel %vm345, %v873, %v874
        %v878 = vadd.f32 %v781, %v351
        %v879 = vadd.f32 %v782, %v354
        %v880 = vadd.f32 %v783, %v357
        %v881 = vadd.f32 %v784, %v360
        %v882 = vadd.f32 %v785, %v363
        %v883 = vadd.f32 %v786, %v366
        %v884 = vadd.f32 %v787, %v369
        %v885 = vadd.f32 %v788, %v872
        %v886 = vadd.f32 %v789, %v375
        %v887 = vadd.f32 %v790, %v378
        %v888 = vadd.f32 %v791, %v381
        %v889 = vadd.f32 %v792, %v384
        %v890 = vadd.f32 %v793, %v387
        %v891 = vadd.f32 %v794, %v390
        %v892 = vadd.f32 %v795, %v393
        %v893 = vadd.f32 %v796, %v875
        %v894 = vmax.f32 %v241, 0.0
        %v895 = vmax.f32 %v261, 0.0
        %v898 = vrot.slane %v797, 1
        %v899 = vrot.slane %v894, 1
        %v900 = vsel %vm345, %v898, %v899
        %v901 = vrot.slane %v798, 1
        %v902 = vrot.slane %v895, 1
        %v903 = vsel %vm345, %v901, %v902
        %904 = vrot.lane.b32.xlu0 %v479, 64
        %v905 = vpop.permute.xlu0 %904
        %906 = vrot.lane.b32.xlu0 %v482, 64
        %v907 = vpop.permute.xlu0 %906
        %908 = vrot.lane.b32.xlu0 %v485, 64
        %v909 = vpop.permute.xlu0 %908
        %910 = vrot.lane.b32.xlu0 %v488, 64
        %v911 = vpop.permute.xlu0 %910
        %912 = vrot.lane.b32.xlu0 %v491, 64
        %v913 = vpop.permute.xlu0 %912
        %914 = vrot.lane.b32.xlu0 %v494, 64
        %v915 = vpop.permute.xlu0 %914
        %916 = vrot.lane.b32.xlu0 %v497, 64
        %v917 = vpop.permute.xlu0 %916
        %918 = vrot.lane.b32.xlu0 %v900, 64
        %v919 = vpop.permute.xlu0 %918
        %920 = vrot.lane.b32.xlu0 %v503, 64
        %v921 = vpop.permute.xlu0 %920
        %922 = vrot.lane.b32.xlu0 %v506, 64
        %v923 = vpop.permute.xlu0 %922
        %924 = vrot.lane.b32.xlu0 %v509, 64
        %v925 = vpop.permute.xlu0 %924
        %926 = vrot.lane.b32.xlu0 %v512, 64
        %v927 = vpop.permute.xlu0 %926
        %928 = vrot.lane.b32.xlu0 %v515, 64
        %v929 = vpop.permute.xlu0 %928
        %930 = vrot.lane.b32.xlu0 %v518, 64
        %v931 = vpop.permute.xlu0 %930
        %932 = vrot.lane.b32.xlu0 %v521, 64
        %v933 = vpop.permute.xlu0 %932
        %934 = vrot.lane.b32.xlu0 %v903, 64
        %v935 = vpop.permute.xlu0 %934
        %vm952 = vcmask 654848
        %953 = vst.msk [vmem:[#allocation2] sm:$0xff] %vm952, %v905
        %954 = vst.msk [vmem:[#allocation2 + $0x10] sm:$0xff] %vm952, %v907
        %955 = vst.msk [vmem:[#allocation2 + $0x20] sm:$0xff] %vm952, %v909
        %956 = vst.msk [vmem:[#allocation2 + $0x30] sm:$0xff] %vm952, %v911
        %957 = vst.msk [vmem:[#allocation2 + $0x40] sm:$0xff] %vm952, %v913
        %958 = vst.msk [vmem:[#allocation2 + $0x50] sm:$0xff] %vm952, %v915
        %959 = vst.msk [vmem:[#allocation2 + $0x60] sm:$0xff] %vm952, %v917
        %960 = vst.msk [vmem:[#allocation2 + $0x70] sm:$0xff] %vm952, %v919
        %961 = vst.msk [vmem:[#allocation2 + $0x80] sm:$0xff] %vm952, %v921
        %962 = vst.msk [vmem:[#allocation2 + $0x90] sm:$0xff] %vm952, %v923
        %963 = vst.msk [vmem:[#allocation2 + $0xa0] sm:$0xff] %vm952, %v925
        %964 = vst.msk [vmem:[#allocation2 + $0xb0] sm:$0xff] %vm952, %v927
        %965 = vst.msk [vmem:[#allocation2 + $0xc0] sm:$0xff] %vm952, %v929
        %966 = vst.msk [vmem:[#allocation2 + $0xd0] sm:$0xff] %vm952, %v931
        %967 = vst.msk [vmem:[#allocation2 + $0xe0] sm:$0xff] %vm952, %v933
        %968 = vst.msk [vmem:[#allocation2 + $0xf0] sm:$0xff] %vm952, %v935
        %v969 = vrot.slane %v240, 2
        %v970 = vrot.slane %v241, 2
        %v971 = vsel %vm587, %v969, %v970
        %v972 = vrot.slane %v260, 2
        %v973 = vrot.slane %v261, 2
        %v974 = vsel %vm587, %v972, %v973
        %v977 = vadd.f32 %v878, %v593
        %v978 = vadd.f32 %v879, %v596
        %v979 = vadd.f32 %v880, %v599
        %v980 = vadd.f32 %v881, %v602
        %v981 = vadd.f32 %v882, %v605
        %v982 = vadd.f32 %v883, %v608
        %v983 = vadd.f32 %v884, %v611
        %v984 = vadd.f32 %v885, %v971
        %v985 = vadd.f32 %v886, %v617
        %v986 = vadd.f32 %v887, %v620
        %v987 = vadd.f32 %v888, %v623
        %v988 = vadd.f32 %v889, %v626
        %v989 = vadd.f32 %v890, %v629
        %v990 = vadd.f32 %v891, %v632
        %v991 = vadd.f32 %v892, %v635
        %v992 = vadd.f32 %v893, %v974
        %v993 = vrot.slane %v797, 2
        %v994 = vrot.slane %v894, 2
        %v995 = vsel %vm587, %v993, %v994
        %v996 = vrot.slane %v798, 2
        %v997 = vrot.slane %v895, 2
        %v998 = vsel %vm587, %v996, %v997
        %999 = vrot.lane.b32.xlu0 %v673, 80
        %v1000 = vpop.permute.xlu0 %999
        %1001 = vrot.lane.b32.xlu0 %v676, 80
        %v1002 = vpop.permute.xlu0 %1001
        %1003 = vrot.lane.b32.xlu0 %v679, 80
        %v1004 = vpop.permute.xlu0 %1003
        %1005 = vrot.lane.b32.xlu0 %v682, 80
        %v1006 = vpop.permute.xlu0 %1005
        %1007 = vrot.lane.b32.xlu0 %v685, 80
        %v1008 = vpop.permute.xlu0 %1007
        %1009 = vrot.lane.b32.xlu0 %v688, 80
        %v1010 = vpop.permute.xlu0 %1009
        %1011 = vrot.lane.b32.xlu0 %v691, 80
        %v1012 = vpop.permute.xlu0 %1011
        %1013 = vrot.lane.b32.xlu0 %v995, 80
        %v1014 = vpop.permute.xlu0 %1013
        %1015 = vrot.lane.b32.xlu0 %v697, 80
        %v1016 = vpop.permute.xlu0 %1015
        %1017 = vrot.lane.b32.xlu0 %v700, 80
        %v1018 = vpop.permute.xlu0 %1017
        %1019 = vrot.lane.b32.xlu0 %v703, 80
        %v1020 = vpop.permute.xlu0 %1019
        %1021 = vrot.lane.b32.xlu0 %v706, 80
        %v1022 = vpop.permute.xlu0 %1021
        %1023 = vrot.lane.b32.xlu0 %v709, 80
        %v1024 = vpop.permute.xlu0 %1023
        %1025 = vrot.lane.b32.xlu0 %v712, 80
        %v1026 = vpop.permute.xlu0 %1025
        %1027 = vrot.lane.b32.xlu0 %v715, 80
        %v1028 = vpop.permute.xlu0 %1027
        %1029 = vrot.lane.b32.xlu0 %v998, 80
        %v1030 = vpop.permute.xlu0 %1029
        %vm1047 = vcmask 786048
        %1048 = vst.msk [vmem:[#allocation2] sm:$0xff] %vm1047, %v1000
        %1049 = vst.msk [vmem:[#allocation2 + $0x10] sm:$0xff] %vm1047, %v1002
        %1050 = vst.msk [vmem:[#allocation2 + $0x20] sm:$0xff] %vm1047, %v1004
        %1051 = vst.msk [vmem:[#allocation2 + $0x30] sm:$0xff] %vm1047, %v1006
        %1052 = vst.msk [vmem:[#allocation2 + $0x40] sm:$0xff] %vm1047, %v1008
        %1053 = vst.msk [vmem:[#allocation2 + $0x50] sm:$0xff] %vm1047, %v1010
        %1054 = vst.msk [vmem:[#allocation2 + $0x60] sm:$0xff] %vm1047, %v1012
        %1055 = vst.msk [vmem:[#allocation2 + $0x70] sm:$0xff] %vm1047, %v1014
        %1056 = vst.msk [vmem:[#allocation2 + $0x80] sm:$0xff] %vm1047, %v1016
        %1057 = vst.msk [vmem:[#allocation2 + $0x90] sm:$0xff] %vm1047, %v1018
        %1058 = vst.msk [vmem:[#allocation2 + $0xa0] sm:$0xff] %vm1047, %v1020
        %1059 = vst.msk [vmem:[#allocation2 + $0xb0] sm:$0xff] %vm1047, %v1022
        %1060 = vst.msk [vmem:[#allocation2 + $0xc0] sm:$0xff] %vm1047, %v1024
        %1061 = vst.msk [vmem:[#allocation2 + $0xd0] sm:$0xff] %vm1047, %v1026
        %1062 = vst.msk [vmem:[#allocation2 + $0xe0] sm:$0xff] %vm1047, %v1028
        %1063 = vst.msk [vmem:[#allocation2 + $0xf0] sm:$0xff] %vm1047, %v1030
        %v1064 = vadd.f32 %v977, %v228
        %v1065 = vadd.f32 %v978, %v230
        %v1066 = vadd.f32 %v979, %v232
        %v1067 = vadd.f32 %v980, %v234
        %v1068 = vadd.f32 %v981, %v236
        %v1069 = vadd.f32 %v982, %v238
        %v1070 = vadd.f32 %v983, %v240
        %v1071 = vadd.f32 %v984, %v242
        %v1072 = vadd.f32 %v985, %v248
        %v1073 = vadd.f32 %v986, %v250
        %v1074 = vadd.f32 %v987, %v252
        %v1075 = vadd.f32 %v988, %v254
        %v1076 = vadd.f32 %v989, %v256
        %v1077 = vadd.f32 %v990, %v258
        %v1078 = vadd.f32 %v991, %v260
        %v1079 = vadd.f32 %v992, %v262
        %v1080 = vmax.f32 %v242, 0.0
        %v1081 = vmax.f32 %v262, 0.0
        %1084 = vrot.lane.b32.xlu0 %v282, 96
        %v1085 = vpop.permute.xlu0 %1084
        %1086 = vrot.lane.b32.xlu0 %v283, 96
        %v1087 = vpop.permute.xlu0 %1086
        %1088 = vrot.lane.b32.xlu0 %v284, 96
        %v1089 = vpop.permute.xlu0 %1088
        %1090 = vrot.lane.b32.xlu0 %v285, 96
        %v1091 = vpop.permute.xlu0 %1090
        %1092 = vrot.lane.b32.xlu0 %v286, 96
        %v1093 = vpop.permute.xlu0 %1092
        %1094 = vrot.lane.b32.xlu0 %v287, 96
        %v1095 = vpop.permute.xlu0 %1094
        %1096 = vrot.lane.b32.xlu0 %v797, 96
        %v1097 = vpop.permute.xlu0 %1096
        %1098 = vrot.lane.b32.xlu0 %v1080, 96
        %v1099 = vpop.permute.xlu0 %1098
        %1100 = vrot.lane.b32.xlu0 %v290, 96
        %v1101 = vpop.permute.xlu0 %1100
        %1102 = vrot.lane.b32.xlu0 %v291, 96
        %v1103 = vpop.permute.xlu0 %1102
        %1104 = vrot.lane.b32.xlu0 %v292, 96
        %v1105 = vpop.permute.xlu0 %1104
        %1106 = vrot.lane.b32.xlu0 %v293, 96
        %v1107 = vpop.permute.xlu0 %1106
        %1108 = vrot.lane.b32.xlu0 %v294, 96
        %v1109 = vpop.permute.xlu0 %1108
        %1110 = vrot.lane.b32.xlu0 %v295, 96
        %v1111 = vpop.permute.xlu0 %1110
        %1112 = vrot.lane.b32.xlu0 %v798, 96
        %v1113 = vpop.permute.xlu0 %1112
        %1114 = vrot.lane.b32.xlu0 %v1081, 96
        %v1115 = vpop.permute.xlu0 %1114
        %vm1132 = vcmask 917248
        %1133 = vst.msk [vmem:[#allocation2] sm:$0xff] %vm1132, %v1085
        %1134 = vst.msk [vmem:[#allocation2 + $0x10] sm:$0xff] %vm1132, %v1087
        %1135 = vst.msk [vmem:[#allocation2 + $0x20] sm:$0xff] %vm1132, %v1089
        %1136 = vst.msk [vmem:[#allocation2 + $0x30] sm:$0xff] %vm1132, %v1091
        %1137 = vst.msk [vmem:[#allocation2 + $0x40] sm:$0xff] %vm1132, %v1093
        %1138 = vst.msk [vmem:[#allocation2 + $0x50] sm:$0xff] %vm1132, %v1095
        %1139 = vst.msk [vmem:[#allocation2 + $0x60] sm:$0xff] %vm1132, %v1097
        %1140 = vst.msk [vmem:[#allocation2 + $0x70] sm:$0xff] %vm1132, %v1099
        %1141 = vst.msk [vmem:[#allocation2 + $0x80] sm:$0xff] %vm1132, %v1101
        %1142 = vst.msk [vmem:[#allocation2 + $0x90] sm:$0xff] %vm1132, %v1103
        %1143 = vst.msk [vmem:[#allocation2 + $0xa0] sm:$0xff] %vm1132, %v1105
        %1144 = vst.msk [vmem:[#allocation2 + $0xb0] sm:$0xff] %vm1132, %v1107
        %1145 = vst.msk [vmem:[#allocation2 + $0xc0] sm:$0xff] %vm1132, %v1109
        %1146 = vst.msk [vmem:[#allocation2 + $0xd0] sm:$0xff] %vm1132, %v1111
        %1147 = vst.msk [vmem:[#allocation2 + $0xe0] sm:$0xff] %vm1132, %v1113
        %1148 = vst.msk [vmem:[#allocation2 + $0xf0] sm:$0xff] %vm1132, %v1115
        %v1153 = vrot.slane %v242, 1
        %v1154 = vrot.slane %v243, 1
        %v1155 = vsel %vm345, %v1153, %v1154
        %v1156 = vrot.slane %v262, 1
        %v1157 = vrot.slane %v263, 1
        %v1158 = vsel %vm345, %v1156, %v1157
        %v1161 = vadd.f32 %v1064, %v354
        %v1162 = vadd.f32 %v1065, %v357
        %v1163 = vadd.f32 %v1066, %v360
        %v1164 = vadd.f32 %v1067, %v363
        %v1165 = vadd.f32 %v1068, %v366
        %v1166 = vadd.f32 %v1069, %v369
        %v1167 = vadd.f32 %v1070, %v872
        %v1168 = vadd.f32 %v1071, %v1155
        %v1169 = vadd.f32 %v1072, %v378
        %v1170 = vadd.f32 %v1073, %v381
        %v1171 = vadd.f32 %v1074, %v384
        %v1172 = vadd.f32 %v1075, %v387
        %v1173 = vadd.f32 %v1076, %v390
        %v1174 = vadd.f32 %v1077, %v393
        %v1175 = vadd.f32 %v1078, %v875
        %v1176 = vadd.f32 %v1079, %v1158
        %v1177 = vmax.f32 %v243, 0.0
        %v1178 = vmax.f32 %v263, 0.0
        %v1181 = vrot.slane %v1080, 1
        %v1182 = vrot.slane %v1177, 1
        %v1183 = vsel %vm345, %v1181, %v1182
        %v1184 = vrot.slane %v1081, 1
        %v1185 = vrot.slane %v1178, 1
        %v1186 = vsel %vm345, %v1184, %v1185
        %1187 = vrot.lane.b32.xlu0 %v482, 112
        %v1188 = vpop.permute.xlu0 %1187
        %1189 = vrot.lane.b32.xlu0 %v485, 112
        %v1190 = vpop.permute.xlu0 %1189
        %1191 = vrot.lane.b32.xlu0 %v488, 112
        %v1192 = vpop.permute.xlu0 %1191
        %1193 = vrot.lane.b32.xlu0 %v491, 112
        %v1194 = vpop.permute.xlu0 %1193
        %1195 = vrot.lane.b32.xlu0 %v494, 112
        %v1196 = vpop.permute.xlu0 %1195
        %1197 = vrot.lane.b32.xlu0 %v497, 112
        %v1198 = vpop.permute.xlu0 %1197
        %1199 = vrot.lane.b32.xlu0 %v900, 112
        %v1200 = vpop.permute.xlu0 %1199
        %1201 = vrot.lane.b32.xlu0 %v1183, 112
        %v1202 = vpop.permute.xlu0 %1201
        %1203 = vrot.lane.b32.xlu0 %v506, 112
        %v1204 = vpop.permute.xlu0 %1203
        %1205 = vrot.lane.b32.xlu0 %v509, 112
        %v1206 = vpop.permute.xlu0 %1205
        %1207 = vrot.lane.b32.xlu0 %v512, 112
        %v1208 = vpop.permute.xlu0 %1207
        %1209 = vrot.lane.b32.xlu0 %v515, 112
        %v1210 = vpop.permute.xlu0 %1209
        %1211 = vrot.lane.b32.xlu0 %v518, 112
        %v1212 = vpop.permute.xlu0 %1211
        %1213 = vrot.lane.b32.xlu0 %v521, 112
        %v1214 = vpop.permute.xlu0 %1213
        %1215 = vrot.lane.b32.xlu0 %v903, 112
        %v1216 = vpop.permute.xlu0 %1215
        %1217 = vrot.lane.b32.xlu0 %v1186, 112
        %v1218 = vpop.permute.xlu0 %1217
        %vm1235 = vcmask 1048448
        %1236 = vst.msk [vmem:[#allocation2] sm:$0xff] %vm1235, %v1188
        %1237 = vst.msk [vmem:[#allocation2 + $0x10] sm:$0xff] %vm1235, %v1190
        %1238 = vst.msk [vmem:[#allocation2 + $0x20] sm:$0xff] %vm1235, %v1192
        %1239 = vst.msk [vmem:[#allocation2 + $0x30] sm:$0xff] %vm1235, %v1194
        %1240 = vst.msk [vmem:[#allocation2 + $0x40] sm:$0xff] %vm1235, %v1196
        %1241 = vst.msk [vmem:[#allocation2 + $0x50] sm:$0xff] %vm1235, %v1198
        %1242 = vst.msk [vmem:[#allocation2 + $0x60] sm:$0xff] %vm1235, %v1200
        %1243 = vst.msk [vmem:[#allocation2 + $0x70] sm:$0xff] %vm1235, %v1202
        %1244 = vst.msk [vmem:[#allocation2 + $0x80] sm:$0xff] %vm1235, %v1204
        %1245 = vst.msk [vmem:[#allocation2 + $0x90] sm:$0xff] %vm1235, %v1206
        %1246 = vst.msk [vmem:[#allocation2 + $0xa0] sm:$0xff] %vm1235, %v1208
        %1247 = vst.msk [vmem:[#allocation2 + $0xb0] sm:$0xff] %vm1235, %v1210
        %1248 = vst.msk [vmem:[#allocation2 + $0xc0] sm:$0xff] %vm1235, %v1212
        %1249 = vst.msk [vmem:[#allocation2 + $0xd0] sm:$0xff] %vm1235, %v1214
        %1250 = vst.msk [vmem:[#allocation2 + $0xe0] sm:$0xff] %vm1235, %v1216
        %1251 = vst.msk [vmem:[#allocation2 + $0xf0] sm:$0xff] %vm1235, %v1218
        %v1252 = vrot.slane %v242, 2
        %v1253 = vrot.slane %v243, 2
        %v1254 = vsel %vm587, %v1252, %v1253
        %v1255 = vrot.slane %v262, 2
        %v1256 = vrot.slane %v263, 2
        %v1257 = vsel %vm587, %v1255, %v1256
        %v1260 = vadd.f32 %v1161, %v596
        %v1261 = vadd.f32 %v1162, %v599
        %v1262 = vadd.f32 %v1163, %v602
        %v1263 = vadd.f32 %v1164, %v605
        %v1264 = vadd.f32 %v1165, %v608
        %v1265 = vadd.f32 %v1166, %v611
        %v1266 = vadd.f32 %v1167, %v971
        %v1267 = vadd.f32 %v1168, %v1254
        %v1268 = vadd.f32 %v1169, %v620
        %v1269 = vadd.f32 %v1170, %v623
        %v1270 = vadd.f32 %v1171, %v626
        %v1271 = vadd.f32 %v1172, %v629
        %v1272 = vadd.f32 %v1173, %v632
        %v1273 = vadd.f32 %v1174, %v635
        %v1274 = vadd.f32 %v1175, %v974
        %v1275 = vadd.f32 %v1176, %v1257
        %v1276 = vrot.slane %v1080, 2
        %v1277 = vrot.slane %v1177, 2
        %v1278 = vsel %vm587, %v1276, %v1277
        %v1279 = vrot.slane %v1081, 2
        %v1280 = vrot.slane %v1178, 2
        %v1281 = vsel %vm587, %v1279, %v1280
        %1298 = vst.msk [vmem:[#allocation2 + $0x8] sm:$0xff] %vm296, %v676
        %1299 = vst.msk [vmem:[#allocation2 + $0x18] sm:$0xff] %vm296, %v679
        %1300 = vst.msk [vmem:[#allocation2 + $0x28] sm:$0xff] %vm296, %v682
        %1301 = vst.msk [vmem:[#allocation2 + $0x38] sm:$0xff] %vm296, %v685
        %1302 = vst.msk [vmem:[#allocation2 + $0x48] sm:$0xff] %vm296, %v688
        %1303 = vst.msk [vmem:[#allocation2 + $0x58] sm:$0xff] %vm296, %v691
        %1304 = vst.msk [vmem:[#allocation2 + $0x68] sm:$0xff] %vm296, %v995
        %1305 = vst.msk [vmem:[#allocation2 + $0x78] sm:$0xff] %vm296, %v1278
        %1306 = vst.msk [vmem:[#allocation2 + $0x88] sm:$0xff] %vm296, %v700
        %1307 = vst.msk [vmem:[#allocation2 + $0x98] sm:$0xff] %vm296, %v703
        %1308 = vst.msk [vmem:[#allocation2 + $0xa8] sm:$0xff] %vm296, %v706
        %1309 = vst.msk [vmem:[#allocation2 + $0xb8] sm:$0xff] %vm296, %v709
        %1310 = vst.msk [vmem:[#allocation2 + $0xc8] sm:$0xff] %vm296, %v712
        %1311 = vst.msk [vmem:[#allocation2 + $0xd8] sm:$0xff] %vm296, %v715
        %1312 = vst.msk [vmem:[#allocation2 + $0xe8] sm:$0xff] %vm296, %v998
        %1313 = vst.msk [vmem:[#allocation2 + $0xf8] sm:$0xff] %vm296, %v1281
        %v1314 = vld [vmem:[#allocation2] sm:$0xff]
        %v1315 = vld [vmem:[#allocation2 + $0x8] sm:$0xff]
        %v1316 = vld [vmem:[#allocation2 + $0x10] sm:$0xff]
        %v1317 = vld [vmem:[#allocation2 + $0x18] sm:$0xff]
        %v1318 = vld [vmem:[#allocation2 + $0x20] sm:$0xff]
        %v1319 = vld [vmem:[#allocation2 + $0x28] sm:$0xff]
        %v1320 = vld [vmem:[#allocation2 + $0x30] sm:$0xff]
        %v1321 = vld [vmem:[#allocation2 + $0x38] sm:$0xff]
        %v1322 = vld [vmem:[#allocation2 + $0x40] sm:$0xff]
        %v1323 = vld [vmem:[#allocation2 + $0x48] sm:$0xff]
        %v1324 = vld [vmem:[#allocation2 + $0x50] sm:$0xff]
        %v1325 = vld [vmem:[#allocation2 + $0x58] sm:$0xff]
        %v1326 = vld [vmem:[#allocation2 + $0x60] sm:$0xff]
        %v1327 = vld [vmem:[#allocation2 + $0x68] sm:$0xff]
        %v1328 = vld [vmem:[#allocation2 + $0x70] sm:$0xff]
        %v1329 = vld [vmem:[#allocation2 + $0x78] sm:$0xff]
        %v1330 = vld [vmem:[#allocation2 + $0x80] sm:$0xff]
        %v1331 = vld [vmem:[#allocation2 + $0x88] sm:$0xff]
        %v1332 = vld [vmem:[#allocation2 + $0x90] sm:$0xff]
        %v1333 = vld [vmem:[#allocation2 + $0x98] sm:$0xff]
        %v1334 = vld [vmem:[#allocation2 + $0xa0] sm:$0xff]
        %v1335 = vld [vmem:[#allocation2 + $0xa8] sm:$0xff]
        %v1336 = vld [vmem:[#allocation2 + $0xb0] sm:$0xff]
        %v1337 = vld [vmem:[#allocation2 + $0xb8] sm:$0xff]
        %v1338 = vld [vmem:[#allocation2 + $0xc0] sm:$0xff]
        %v1339 = vld [vmem:[#allocation2 + $0xc8] sm:$0xff]
        %v1340 = vld [vmem:[#allocation2 + $0xd0] sm:$0xff]
        %v1341 = vld [vmem:[#allocation2 + $0xd8] sm:$0xff]
        %v1342 = vld [vmem:[#allocation2 + $0xe0] sm:$0xff]
        %v1343 = vld [vmem:[#allocation2 + $0xe8] sm:$0xff]
        %v1344 = vld [vmem:[#allocation2 + $0xf0] sm:$0xff]
        %v1345 = vld [vmem:[#allocation2 + $0xf8] sm:$0xff]
        %v1346 = vld [vmem:[%s218] sm:$0xff]
        %v1347 = vld [vmem:[%s218 + $0x8] sm:$0xff]
        %v1348 = vld [vmem:[%s218 + $0x10] sm:$0xff]
        %v1349 = vld [vmem:[%s218 + $0x18] sm:$0xff]
        %v1350 = vld [vmem:[%s218 + $0x20] sm:$0xff]
        %v1351 = vld [vmem:[%s218 + $0x28] sm:$0xff]
        %v1352 = vld [vmem:[%s218 + $0x30] sm:$0xff]
        %v1353 = vld [vmem:[%s218 + $0x38] sm:$0xff]
        %v1354 = vld [vmem:[%s218 + $0x40] sm:$0xff]
        %v1355 = vld [vmem:[%s218 + $0x48] sm:$0xff]
        %v1356 = vld [vmem:[%s218 + $0x50] sm:$0xff]
        %v1357 = vld [vmem:[%s218 + $0x58] sm:$0xff]
        %v1358 = vld [vmem:[%s218 + $0x60] sm:$0xff]
        %v1359 = vld [vmem:[%s218 + $0x68] sm:$0xff]
        %v1360 = vld [vmem:[%s218 + $0x70] sm:$0xff]
        %v1361 = vld [vmem:[%s218 + $0x78] sm:$0xff]
        %v1362 = vld [vmem:[%s218 + $0x80] sm:$0xff]
        %v1363 = vld [vmem:[%s218 + $0x88] sm:$0xff]
        %v1365 = vsel %vm296, %v1315, 0
        %v1368 = vsel %vm296, %v1317, 0
        %v1371 = vsel %vm296, %v1319, 0
        %v1374 = vsel %vm296, %v1321, 0
        %v1377 = vsel %vm296, %v1323, 0
        %v1380 = vsel %vm296, %v1325, 0
        %v1383 = vsel %vm296, %v1327, 0
        %v1386 = vsel %vm296, %v1329, 0
        %v1389 = vsel %vm296, %v1331, 0
        %v1392 = vsel %vm296, %v1333, 0
        %v1395 = vsel %vm296, %v1335, 0
        %v1398 = vsel %vm296, %v1337, 0
        %v1401 = vsel %vm296, %v1339, 0
        %v1404 = vsel %vm296, %v1341, 0
        %v1407 = vsel %vm296, %v1343, 0
        %v1410 = vsel %vm296, %v1345, 0
        %1412 = vmatpush.msra.mxu0 %v1361
        %1413 = vmatpush.msra.mxu0 %v1360
        %1414 = vmatpush.msra.mxu0 %v1359
        %1415 = vmatpush.msra.mxu0 %v1358
        %1416 = vmatpush.msra.mxu0 %v1357
        %1417 = vmatpush.msra.mxu0 %v1356
        %1418 = vmatpush.msra.mxu0 %v1355
        %1419 = vmatpush.msra.mxu0 %v1354
        %1420 = vmatpush.msra.mxu0 %v1353
        %1421 = vmatpush.msra.mxu0 %v1352
        %1422 = vmatpush.msra.mxu0 %v1351
        %1423 = vmatpush.msra.mxu0 %v1350
        %1424 = vmatpush.msra.mxu0 %v1349
        %1425 = vmatpush.msra.mxu0 %v1348
        %1426 = vmatpush.msra.mxu0 %v1347
        %1427 = vmatpush.msra.mxu0 %v1346
        %1428 = vmatmul.f32.gmra.mxu0 %v1314
        %v1429 = vpop.f32.mrf.mxu0
        %v1430 = vadd.f32 0.0, %v1429
        %1431 = vmatmul.f32.gmra.mxu0 %v1316
        %v1432 = vpop.f32.mrf.mxu0
        %v1433 = vadd.f32 0.0, %v1432
        %1434 = vmatmul.f32.gmra.mxu0 %v1318
        %v1435 = vpop.f32.mrf.mxu0
        %v1436 = vadd.f32 0.0, %v1435
        %1437 = vmatmul.f32.gmra.mxu0 %v1320
        %v1438 = vpop.f32.mrf.mxu0
        %v1439 = vadd.f32 0.0, %v1438
        %1440 = vmatmul.f32.gmra.mxu0 %v1322
        %v1441 = vpop.f32.mrf.mxu0
        %v1442 = vadd.f32 0.0, %v1441
        %1443 = vmatmul.f32.gmra.mxu0 %v1324
        %v1444 = vpop.f32.mrf.mxu0
        %v1445 = vadd.f32 0.0, %v1444
        %1446 = vmatmul.f32.gmra.mxu0 %v1326
        %v1447 = vpop.f32.mrf.mxu0
        %v1448 = vadd.f32 0.0, %v1447
        %1449 = vmatmul.f32.gmra.mxu0 %v1328
        %v1450 = vpop.f32.mrf.mxu0
        %v1451 = vadd.f32 0.0, %v1450
        %1452 = vmatmul.f32.gmra.mxu0 %v1330
        %v1453 = vpop.f32.mrf.mxu0
        %v1454 = vadd.f32 0.0, %v1453
        %1455 = vmatmul.f32.gmra.mxu0 %v1332
        %v1456 = vpop.f32.mrf.mxu0
        %v1457 = vadd.f32 0.0, %v1456
        %1458 = vmatmul.f32.gmra.mxu0 %v1334
        %v1459 = vpop.f32.mrf.mxu0
        %v1460 = vadd.f32 0.0, %v1459
        %1461 = vmatmul.f32.gmra.mxu0 %v1336
        %v1462 = vpop.f32.mrf.mxu0
        %v1463 = vadd.f32 0.0, %v1462
        %1464 = vmatmul.f32.gmra.mxu0 %v1338
        %v1465 = vpop.f32.mrf.mxu0
        %v1466 = vadd.f32 0.0, %v1465
        %1467 = vmatmul.f32.gmra.mxu0 %v1340
        %v1468 = vpop.f32.mrf.mxu0
        %v1469 = vadd.f32 0.0, %v1468
        %1470 = vmatmul.f32.gmra.mxu0 %v1342
        %v1471 = vpop.f32.mrf.mxu0
        %v1472 = vadd.f32 0.0, %v1471
        %1473 = vmatmul.f32.gmra.mxu0 %v1344
        %v1474 = vpop.f32.mrf.mxu0
        %v1475 = vadd.f32 0.0, %v1474
        %1476 = vdwg.mxu0
        %1477 = vmatpush.msra.mxu0 0.0
        %1478 = vmatpush.msra.mxu0 0.0
        %1479 = vmatpush.msra.mxu0 0.0
        %1480 = vmatpush.msra.mxu0 0.0
        %1481 = vmatpush.msra.mxu0 0.0
        %1482 = vmatpush.msra.mxu0 0.0
        %1483 = vmatpush.msra.mxu0 0.0
        %1484 = vmatpush.msra.mxu0 0.0
        %1485 = vmatpush.msra.mxu0 0.0
        %1486 = vmatpush.msra.mxu0 0.0
        %1487 = vmatpush.msra.mxu0 0.0
        %1488 = vmatpush.msra.mxu0 0.0
        %1489 = vmatpush.msra.mxu0 0.0
        %1490 = vmatpush.msra.mxu0 0.0
        %1491 = vmatpush.msra.mxu0 %v1363
        %1492 = vmatpush.msra.mxu0 %v1362
        %1493 = vmatmul.f32.gmra.mxu0 %v1365
        %v1494 = vpop.f32.mrf.mxu0
        %v1495 = vadd.f32 %v1430, %v1494
        %1496 = vmatmul.f32.gmra.mxu0 %v1368
        %v1497 = vpop.f32.mrf.mxu0
        %v1498 = vadd.f32 %v1433, %v1497
        %1499 = vmatmul.f32.gmra.mxu0 %v1371
        %v1500 = vpop.f32.mrf.mxu0
        %v1501 = vadd.f32 %v1436, %v1500
        %1502 = vmatmul.f32.gmra.mxu0 %v1374
        %v1503 = vpop.f32.mrf.mxu0
        %v1504 = vadd.f32 %v1439, %v1503
        %1505 = vmatmul.f32.gmra.mxu0 %v1377
        %v1506 = vpop.f32.mrf.mxu0
        %v1507 = vadd.f32 %v1442, %v1506
        %1508 = vmatmul.f32.gmra.mxu0 %v1380
        %v1509 = vpop.f32.mrf.mxu0
        %v1510 = vadd.f32 %v1445, %v1509
        %1511 = vmatmul.f32.gmra.mxu0 %v1383
        %v1512 = vpop.f32.mrf.mxu0
        %v1513 = vadd.f32 %v1448, %v1512
        %1514 = vmatmul.f32.gmra.mxu0 %v1386
        %v1515 = vpop.f32.mrf.mxu0
        %v1516 = vadd.f32 %v1451, %v1515
        %1517 = vmatmul.f32.gmra.mxu0 %v1389
        %v1518 = vpop.f32.mrf.mxu0
        %v1519 = vadd.f32 %v1454, %v1518
        %1520 = vmatmul.f32.gmra.mxu0 %v1392
        %v1521 = vpop.f32.mrf.mxu0
        %v1522 = vadd.f32 %v1457, %v1521
        %1523 = vmatmul.f32.gmra.mxu0 %v1395
        %v1524 = vpop.f32.mrf.mxu0
        %v1525 = vadd.f32 %v1460, %v1524
        %1526 = vmatmul.f32.gmra.mxu0 %v1398
        %v1527 = vpop.f32.mrf.mxu0
        %v1528 = vadd.f32 %v1463, %v1527
        %1529 = vmatmul.f32.gmra.mxu0 %v1401
        %v1530 = vpop.f32.mrf.mxu0
        %v1531 = vadd.f32 %v1466, %v1530
        %1532 = vmatmul.f32.gmra.mxu0 %v1404
        %v1533 = vpop.f32.mrf.mxu0
        %v1534 = vadd.f32 %v1469, %v1533
        %1535 = vmatmul.f32.gmra.mxu0 %v1407
        %v1536 = vpop.f32.mrf.mxu0
        %v1537 = vadd.f32 %v1472, %v1536
        %1538 = vmatmul.f32.gmra.mxu0 %v1410
        %v1539 = vpop.f32.mrf.mxu0
        %v1540 = vadd.f32 %v1475, %v1539
        %1541 = vdwg.mxu0
        %v1542 = vld [vmem:[%s222] sm:$0xf]
        %v1543 = vperm.slane %v1542, 0
        %v1544 = vmul.f32 %v1495, %v1543
        %v1545 = vmul.f32 %v1498, %v1543
        %v1546 = vmul.f32 %v1501, %v1543
        %v1547 = vmul.f32 %v1504, %v1543
        %v1548 = vmul.f32 %v1507, %v1543
        %v1549 = vmul.f32 %v1510, %v1543
        %v1550 = vmul.f32 %v1513, %v1543
        %v1551 = vmul.f32 %v1516, %v1543
        %v1552 = vmul.f32 %v1519, %v1543
        %v1553 = vmul.f32 %v1522, %v1543
        %v1554 = vmul.f32 %v1525, %v1543
        %v1555 = vmul.f32 %v1528, %v1543
        %v1556 = vmul.f32 %v1531, %v1543
        %v1557 = vmul.f32 %v1534, %v1543
        %v1558 = vmul.f32 %v1537, %v1543
        %v1559 = vmul.f32 %v1540, %v1543
        %v1560 = vperm.slane %v1542, 1
        %v1561 = vadd.f32 %v1544, %v1560
        %v1562 = vadd.f32 %v1545, %v1560
        %v1563 = vadd.f32 %v1546, %v1560
        %v1564 = vadd.f32 %v1547, %v1560
        %v1565 = vadd.f32 %v1548, %v1560
        %v1566 = vadd.f32 %v1549, %v1560
        %v1567 = vadd.f32 %v1550, %v1560
        %v1568 = vadd.f32 %v1551, %v1560
        %v1569 = vadd.f32 %v1552, %v1560
        %v1570 = vadd.f32 %v1553, %v1560
        %v1571 = vadd.f32 %v1554, %v1560
        %v1572 = vadd.f32 %v1555, %v1560
        %v1573 = vadd.f32 %v1556, %v1560
        %v1574 = vadd.f32 %v1557, %v1560
        %v1575 = vadd.f32 %v1558, %v1560
        %v1576 = vadd.f32 %v1559, %v1560
        %1593 = vrot.lane.b32.xlu0 %v1561, 112
        %v1594 = vpop.permute.xlu0 %1593
        %1595 = vrot.lane.b32.xlu0 %v1562, 112
        %v1596 = vpop.permute.xlu0 %1595
        %1597 = vrot.lane.b32.xlu0 %v1563, 112
        %v1598 = vpop.permute.xlu0 %1597
        %1599 = vrot.lane.b32.xlu0 %v1564, 112
        %v1600 = vpop.permute.xlu0 %1599
        %1601 = vrot.lane.b32.xlu0 %v1565, 112
        %v1602 = vpop.permute.xlu0 %1601
        %1603 = vrot.lane.b32.xlu0 %v1566, 112
        %v1604 = vpop.permute.xlu0 %1603
        %1605 = vrot.lane.b32.xlu0 %v1567, 112
        %v1606 = vpop.permute.xlu0 %1605
        %1607 = vrot.lane.b32.xlu0 %v1568, 112
        %v1608 = vpop.permute.xlu0 %1607
        %1609 = vrot.lane.b32.xlu0 %v1569, 112
        %v1610 = vpop.permute.xlu0 %1609
        %1611 = vrot.lane.b32.xlu0 %v1570, 112
        %v1612 = vpop.permute.xlu0 %1611
        %1613 = vrot.lane.b32.xlu0 %v1571, 112
        %v1614 = vpop.permute.xlu0 %1613
        %1615 = vrot.lane.b32.xlu0 %v1572, 112
        %v1616 = vpop.permute.xlu0 %1615
        %1617 = vrot.lane.b32.xlu0 %v1573, 112
        %v1618 = vpop.permute.xlu0 %1617
        %1619 = vrot.lane.b32.xlu0 %v1574, 112
        %v1620 = vpop.permute.xlu0 %1619
        %1621 = vrot.lane.b32.xlu0 %v1575, 112
        %v1622 = vpop.permute.xlu0 %1621
        %1623 = vrot.lane.b32.xlu0 %v1576, 112
        %v1624 = vpop.permute.xlu0 %1623
        %v1641 = vadd.f32 %v1561, %v1594
        %v1642 = vadd.f32 %v1562, %v1596
        %v1643 = vadd.f32 %v1563, %v1598
        %v1644 = vadd.f32 %v1564, %v1600
        %v1645 = vadd.f32 %v1565, %v1602
        %v1646 = vadd.f32 %v1566, %v1604
        %v1647 = vadd.f32 %v1567, %v1606
        %v1648 = vadd.f32 %v1568, %v1608
        %v1649 = vadd.f32 %v1569, %v1610
        %v1650 = vadd.f32 %v1570, %v1612
        %v1651 = vadd.f32 %v1571, %v1614
        %v1652 = vadd.f32 %v1572, %v1616
        %v1653 = vadd.f32 %v1573, %v1618
        %v1654 = vadd.f32 %v1574, %v1620
        %v1655 = vadd.f32 %v1575, %v1622
        %v1656 = vadd.f32 %v1576, %v1624
        %v1657 = vlaneseq
        %v1658 = vshrl.u32 %v1657, 7
        %vm1659 = vcmp.eq.s32.totalorder %v1658, 0
        %v1660 = vsel %vm1659, 1, 0
        %v1661 = vsub.s32 3, %v1660
        %vm1662 = vcmp.eq.s32.totalorder %v1658, 7
        %v1663 = vsel %vm1662, 1, 0
        %v1664 = vsub.s32 %v1661, %v1663
        %v1665 = vmul.u32 %v1664, 2
        %v1666 = vmul.u32 %v1664, 3
        %v1667 = vcvt.s32.f32 %v1665
        %v1668 = vcvt.s32.f32 %v1666
        %v1669 = vrcp.pop %v1667
        %v1670 = vmul.f32 %v1667, %v1669
        %v1671 = vsub.f32 1.0, %v1670
        %v1672 = vmul.f32 %v1669, %v1671
        %v1673 = vadd.f32 %v1669, %v1672
        %vm1674 = vweird.f32 %v1667
        %vm1675 = vweird.f32 %v1669
        %vm1676 = vmor %vm1674, %vm1675
        %v1677 = vsel %vm1676, %v1669, %v1673
        %v1678 = vand.u32 2147483647, %v1667
        %vm1679 = vcmp.eq.f32.partialorder %v1678, 8.507059e+37
        %v1680 = vand.u32 %v1667, 2147483648
        %v1681 = vor.u32 1.1754944e-38, %v1680
        %v1682 = vsel %vm1679, %v1681, %v1677
        %v1683 = vmul.f32 1.0, %v1682
        %v1684 = vrcp.pop %v1668
        %v1685 = vmul.f32 %v1668, %v1684
        %v1686 = vsub.f32 1.0, %v1685
        %v1687 = vmul.f32 %v1684, %v1686
        %v1688 = vadd.f32 %v1684, %v1687
        %vm1689 = vweird.f32 %v1668
        %vm1690 = vweird.f32 %v1684
        %vm1691 = vmor %vm1689, %vm1690
        %v1692 = vsel %vm1691, %v1684, %v1688
        %v1693 = vand.u32 2147483647, %v1668
        %vm1694 = vcmp.eq.f32.partialorder %v1693, 8.507059e+37
        %v1695 = vand.u32 %v1668, 2147483648
        %v1696 = vor.u32 1.1754944e-38, %v1695
        %v1697 = vsel %vm1694, %v1696, %v1692
        %v1698 = vmul.f32 1.0, %v1697
        %v1699 = vperm.slane %v1542, 2
        %v1700 = vmul.f32 %v226, %v1699
        %v1701 = vmul.f32 %v227, %v1699
        %v1702 = vmul.f32 %v228, %v1699
        %v1703 = vmul.f32 %v229, %v1699
        %v1704 = vmul.f32 %v230, %v1699
        %v1705 = vmul.f32 %v231, %v1699
        %v1706 = vmul.f32 %v232, %v1699
        %v1707 = vmul.f32 %v233, %v1699
        %v1708 = vmul.f32 %v234, %v1699
        %v1709 = vmul.f32 %v235, %v1699
        %v1710 = vmul.f32 %v236, %v1699
        %v1711 = vmul.f32 %v237, %v1699
        %v1712 = vmul.f32 %v238, %v1699
        %v1713 = vmul.f32 %v239, %v1699
        %v1714 = vmul.f32 %v240, %v1699
        %v1715 = vmul.f32 %v241, %v1699
        %v1716 = vmul.f32 %v246, %v1699
        %v1717 = vmul.f32 %v247, %v1699
        %v1718 = vmul.f32 %v248, %v1699
        %v1719 = vmul.f32 %v249, %v1699
        %v1720 = vmul.f32 %v250, %v1699
        %v1721 = vmul.f32 %v251, %v1699
        %v1722 = vmul.f32 %v252, %v1699
        %v1723 = vmul.f32 %v253, %v1699
        %v1724 = vmul.f32 %v254, %v1699
        %v1725 = vmul.f32 %v255, %v1699
        %v1726 = vmul.f32 %v256, %v1699
        %v1727 = vmul.f32 %v257, %v1699
        %v1728 = vmul.f32 %v258, %v1699
        %v1729 = vmul.f32 %v259, %v1699
        %v1730 = vmul.f32 %v260, %v1699
        %v1731 = vmul.f32 %v261, %v1699
        %v1732 = vmul.f32 %v1260, %v1683
        %v1733 = vmul.f32 %v1261, %v1698
        %v1734 = vmul.f32 %v1262, %v1698
        %v1735 = vmul.f32 %v1263, %v1698
        %v1736 = vmul.f32 %v1264, %v1698
        %v1737 = vmul.f32 %v1265, %v1698
        %v1738 = vmul.f32 %v1266, %v1698
        %v1739 = vmul.f32 %v1267, %v1683
        %v1740 = vmul.f32 %v1268, %v1683
        %v1741 = vmul.f32 %v1269, %v1698
        %v1742 = vmul.f32 %v1270, %v1698
        %v1743 = vmul.f32 %v1271, %v1698
        %v1744 = vmul.f32 %v1272, %v1698
        %v1745 = vmul.f32 %v1273, %v1698
        %v1746 = vmul.f32 %v1274, %v1698
        %v1747 = vmul.f32 %v1275, %v1683
        %v1748 = vperm.slane %v1542, 3
        %v1749 = vmul.f32 %v1732, %v1748
        %v1750 = vmul.f32 %v1733, %v1748
        %v1751 = vmul.f32 %v1734, %v1748
        %v1752 = vmul.f32 %v1735, %v1748
        %v1753 = vmul.f32 %v1736, %v1748
        %v1754 = vmul.f32 %v1737, %v1748
        %v1755 = vmul.f32 %v1738, %v1748
        %v1756 = vmul.f32 %v1739, %v1748
        %v1757 = vmul.f32 %v1740, %v1748
        %v1758 = vmul.f32 %v1741, %v1748
        %v1759 = vmul.f32 %v1742, %v1748
        %v1760 = vmul.f32 %v1743, %v1748
        %v1761 = vmul.f32 %v1744, %v1748
        %v1762 = vmul.f32 %v1745, %v1748
        %v1763 = vmul.f32 %v1746, %v1748
        %v1764 = vmul.f32 %v1747, %v1748
        %p1765 = scmp.eq.s32.totalorder %s20, 0
        // Predicated region
        $region33: #{search_cell_forward.11} parent=31 // pred_check
          %p1766 = pneg %p1765
        $region34: #{search_cell_forward.11} parent=31 // pred_check_branch
          %1768 = sbr.rel (%p1766) target = $region36
        $region35: #{search_cell_forward.11} parent=31 // pred_region
          %1769 = vst.msk [vmem:[#allocation3] sm:$0xff] %vm296, 0.0
          %1770 = vst.msk [vmem:[#allocation3 + $0x8] sm:$0xff] %vm296, 0.0
          %1771 = vst.msk [vmem:[#allocation3 + $0x10] sm:$0xff] %vm296, 0.0
          %1772 = vst.msk [vmem:[#allocation3 + $0x18] sm:$0xff] %vm296, 0.0
          %1773 = vst.msk [vmem:[#allocation3 + $0x20] sm:$0xff] %vm296, 0.0
          %1774 = vst.msk [vmem:[#allocation3 + $0x28] sm:$0xff] %vm296, 0.0
          %1775 = vst.msk [vmem:[#allocation3 + $0x30] sm:$0xff] %vm296, 0.0
          %1776 = vst.msk [vmem:[#allocation3 + $0x38] sm:$0xff] %vm296, 0.0
          %1777 = vst.msk [vmem:[#allocation3 + $0x40] sm:$0xff] %vm296, 0.0
          %1778 = vst.msk [vmem:[#allocation3 + $0x48] sm:$0xff] %vm296, 0.0
          %1779 = vst.msk [vmem:[#allocation3 + $0x50] sm:$0xff] %vm296, 0.0
          %1780 = vst.msk [vmem:[#allocation3 + $0x58] sm:$0xff] %vm296, 0.0
          %1781 = vst.msk [vmem:[#allocation3 + $0x60] sm:$0xff] %vm296, 0.0
          %1782 = vst.msk [vmem:[#allocation3 + $0x68] sm:$0xff] %vm296, 0.0
          %1783 = vst.msk [vmem:[#allocation3 + $0x70] sm:$0xff] %vm296, 0.0
          %1784 = vst.msk [vmem:[#allocation3 + $0x78] sm:$0xff] %vm296, 0.0
        $region36: #{search_cell_forward.11} parent=31 // pred_fallthru
          _
        %v1785 = vld [vmem:[#allocation3] sm:$0xff]
        %v1786 = vld [vmem:[#allocation3 + $0x8] sm:$0xff]
        %v1787 = vld [vmem:[#allocation3 + $0x10] sm:$0xff]
        %v1788 = vld [vmem:[#allocation3 + $0x18] sm:$0xff]
        %v1789 = vld [vmem:[#allocation3 + $0x20] sm:$0xff]
        %v1790 = vld [vmem:[#allocation3 + $0x28] sm:$0xff]
        %v1791 = vld [vmem:[#allocation3 + $0x30] sm:$0xff]
        %v1792 = vld [vmem:[#allocation3 + $0x38] sm:$0xff]
        %v1793 = vld [vmem:[#allocation3 + $0x40] sm:$0xff]
        %v1794 = vld [vmem:[#allocation3 + $0x48] sm:$0xff]
        %v1795 = vld [vmem:[#allocation3 + $0x50] sm:$0xff]
        %v1796 = vld [vmem:[#allocation3 + $0x58] sm:$0xff]
        %v1797 = vld [vmem:[#allocation3 + $0x60] sm:$0xff]
        %v1798 = vld [vmem:[#allocation3 + $0x68] sm:$0xff]
        %v1799 = vld [vmem:[#allocation3 + $0x70] sm:$0xff]
        %v1800 = vld [vmem:[#allocation3 + $0x78] sm:$0xff]
        %v1833 = vrot.slane %v1700, 1
        %v1834 = vrot.slane %v1701, 1
        %v1835 = vsel %vm345, %v1833, %v1834
        %v1836 = vrot.slane %v1702, 1
        %v1837 = vrot.slane %v1703, 1
        %v1838 = vsel %vm345, %v1836, %v1837
        %v1839 = vrot.slane %v1704, 1
        %v1840 = vrot.slane %v1705, 1
        %v1841 = vsel %vm345, %v1839, %v1840
        %v1842 = vrot.slane %v1706, 1
        %v1843 = vrot.slane %v1707, 1
        %v1844 = vsel %vm345, %v1842, %v1843
        %v1845 = vrot.slane %v1708, 1
        %v1846 = vrot.slane %v1709, 1
        %v1847 = vsel %vm345, %v1845, %v1846
        %v1848 = vrot.slane %v1710, 1
        %v1849 = vrot.slane %v1711, 1
        %v1850 = vsel %vm345, %v1848, %v1849
        %v1851 = vrot.slane %v1712, 1
        %v1852 = vrot.slane %v1713, 1
        %v1853 = vsel %vm345, %v1851, %v1852
        %v1854 = vrot.slane %v1714, 1
        %v1855 = vrot.slane %v1715, 1
        %v1856 = vsel %vm345, %v1854, %v1855
        %v1857 = vrot.slane %v1716, 1
        %v1858 = vrot.slane %v1717, 1
        %v1859 = vsel %vm345, %v1857, %v1858
        %v1860 = vrot.slane %v1718, 1
        %v1861 = vrot.slane %v1719, 1
        %v1862 = vsel %vm345, %v1860, %v1861
        %v1863 = vrot.slane %v1720, 1
        %v1864 = vrot.slane %v1721, 1
        %v1865 = vsel %vm345, %v1863, %v1864
        %v1866 = vrot.slane %v1722, 1
        %v1867 = vrot.slane %v1723, 1
        %v1868 = vsel %vm345, %v1866, %v1867
        %v1869 = vrot.slane %v1724, 1
        %v1870 = vrot.slane %v1725, 1
        %v1871 = vsel %vm345, %v1869, %v1870
        %v1872 = vrot.slane %v1726, 1
        %v1873 = vrot.slane %v1727, 1
        %v1874 = vsel %vm345, %v1872, %v1873
        %v1875 = vrot.slane %v1728, 1
        %v1876 = vrot.slane %v1729, 1
        %v1877 = vsel %vm345, %v1875, %v1876
        %v1878 = vrot.slane %v1730, 1
        %v1879 = vrot.slane %v1731, 1
        %v1880 = vsel %vm345, %v1878, %v1879
        %v1897 = vadd.f32 %v1641, %v1835
        %v1898 = vadd.f32 %v1642, %v1838
        %v1899 = vadd.f32 %v1643, %v1841
        %v1900 = vadd.f32 %v1644, %v1844
        %v1901 = vadd.f32 %v1645, %v1847
        %v1902 = vadd.f32 %v1646, %v1850
        %v1903 = vadd.f32 %v1647, %v1853
        %v1904 = vadd.f32 %v1648, %v1856
        %v1905 = vadd.f32 %v1649, %v1859
        %v1906 = vadd.f32 %v1650, %v1862
        %v1907 = vadd.f32 %v1651, %v1865
        %v1908 = vadd.f32 %v1652, %v1868
        %v1909 = vadd.f32 %v1653, %v1871
        %v1910 = vadd.f32 %v1654, %v1874
        %v1911 = vadd.f32 %v1655, %v1877
        %v1912 = vadd.f32 %v1656, %v1880
        %v1913 = vadd.f32 %v1897, %v1749
        %v1914 = vadd.f32 %v1898, %v1750
        %v1915 = vadd.f32 %v1899, %v1751
        %v1916 = vadd.f32 %v1900, %v1752
        %v1917 = vadd.f32 %v1901, %v1753
        %v1918 = vadd.f32 %v1902, %v1754
        %v1919 = vadd.f32 %v1903, %v1755
        %v1920 = vadd.f32 %v1904, %v1756
        %v1921 = vadd.f32 %v1905, %v1757
        %v1922 = vadd.f32 %v1906, %v1758
        %v1923 = vadd.f32 %v1907, %v1759
        %v1924 = vadd.f32 %v1908, %v1760
        %v1925 = vadd.f32 %v1909, %v1761
        %v1926 = vadd.f32 %v1910, %v1762
        %v1927 = vadd.f32 %v1911, %v1763
        %v1928 = vadd.f32 %v1912, %v1764
        %v1929 = vadd.f32 %v1785, %v1913
        %v1930 = vadd.f32 %v1786, %v1914
        %v1931 = vadd.f32 %v1787, %v1915
        %v1932 = vadd.f32 %v1788, %v1916
        %v1933 = vadd.f32 %v1789, %v1917
        %v1934 = vadd.f32 %v1790, %v1918
        %v1935 = vadd.f32 %v1791, %v1919
        %v1936 = vadd.f32 %v1792, %v1920
        %v1937 = vadd.f32 %v1793, %v1921
        %v1938 = vadd.f32 %v1794, %v1922
        %v1939 = vadd.f32 %v1795, %v1923
        %v1940 = vadd.f32 %v1796, %v1924
        %v1941 = vadd.f32 %v1797, %v1925
        %v1942 = vadd.f32 %v1798, %v1926
        %v1943 = vadd.f32 %v1799, %v1927
        %v1944 = vadd.f32 %v1800, %v1928
        %1945 = vst.msk [vmem:[#allocation3] sm:$0xff] %vm296, %v1929
        %1946 = vst.msk [vmem:[#allocation3 + $0x8] sm:$0xff] %vm296, %v1930
        %1947 = vst.msk [vmem:[#allocation3 + $0x10] sm:$0xff] %vm296, %v1931
        %1948 = vst.msk [vmem:[#allocation3 + $0x18] sm:$0xff] %vm296, %v1932
        %1949 = vst.msk [vmem:[#allocation3 + $0x20] sm:$0xff] %vm296, %v1933
        %1950 = vst.msk [vmem:[#allocation3 + $0x28] sm:$0xff] %vm296, %v1934
        %1951 = vst.msk [vmem:[#allocation3 + $0x30] sm:$0xff] %vm296, %v1935
        %1952 = vst.msk [vmem:[#allocation3 + $0x38] sm:$0xff] %vm296, %v1936
        %1953 = vst.msk [vmem:[#allocation3 + $0x40] sm:$0xff] %vm296, %v1937
        %1954 = vst.msk [vmem:[#allocation3 + $0x48] sm:$0xff] %vm296, %v1938
        %1955 = vst.msk [vmem:[#allocation3 + $0x50] sm:$0xff] %vm296, %v1939
        %1956 = vst.msk [vmem:[#allocation3 + $0x58] sm:$0xff] %vm296, %v1940
        %1957 = vst.msk [vmem:[#allocation3 + $0x60] sm:$0xff] %vm296, %v1941
        %1958 = vst.msk [vmem:[#allocation3 + $0x68] sm:$0xff] %vm296, %v1942
        %1959 = vst.msk [vmem:[#allocation3 + $0x70] sm:$0xff] %vm296, %v1943
        %1960 = vst.msk [vmem:[#allocation3 + $0x78] sm:$0xff] %vm296, %v1944
        // Predicated region
        $region37: #{search_cell_forward.11} parent=31 // pred_check
          %p1961 = pneg %p125
        $region38: #{search_cell_forward.11} parent=31 // pred_check_branch
          %1963 = sbr.rel (%p1961) target = $region40
        $region39: #{search_cell_forward.11} parent=31 // pred_region
          %s1964 = smul.u32 2, %s19
          %1966 = vsyncadd [#allocation4], 0
          %s1967 = smul.addr %s1964, 8
          %s1968 = smul.addr %s1967, 8
          %s1969 = scalar_lea.hbm %s3, %s1968
          %s1970 = sshll.u32 [#allocation3], 4
          %s1971 = int_to_ptr.vmem [resolvable:$true] %s1970
          %s1972 = sshll.u32 %s1969, 4
          %s1973 = int_to_ptr.hbm [resolvable:$true] %s1972
          %1978 = dma.vmem_to_hbm [thread:$0]  %s1971, 2048, %s1973, [#allocation4], 128, 128, 8
        $region40: #{search_cell_forward.11} parent=31 // pred_fallthru
          _
        // Predicated region
        $region41: #{search_cell_forward.11} parent=31 // pred_check
          %p1979 = pneg %p125
        $region42: #{search_cell_forward.11} parent=31 // pred_check_branch
          %1981 = sbr.rel (%p1979) target = $region44
        $region43: #{search_cell_forward.11} parent=31 // pred_region
          %1983 = dma.done [#allocation4], 2048
        $region44: #{search_cell_forward.11} parent=31 // pred_fallthru
          _
      $region32: #{search_cell_forward.11} parent=5 // pred_fallthru
        _
      %p1984 = scmp.le.s32.totalorder 2, %s10
      // Predicated region
      $region45: #{search_cell_forward.11} parent=5 // pred_check
        %p1985 = pneg %p1984
      $region46: #{search_cell_forward.11} parent=5 // pred_check_branch
        %1987 = sbr.rel (%p1985) target = $region48
      $region47: #{search_cell_forward.11} parent=5 // pred_region
        %s1988 = ssub.s32 %s10, 2
      $region48: #{search_cell_forward.11} parent=5 // pred_fallthru
        _
    $region6: #{search_cell_forward.11} parent=1 // loop_footer
      %s14 = sadd.s32 1, %s10
    $region7: #{search_cell_forward.11} parent=1 // loop_footer_branch
      %9 = sbr.rel target = $region3
    $region8: #{search_cell_forward.11} parent=1 // loop_exit
      _
    %1989 = vsyncpa [#allocation4], 1
    %s1990 = scalar_lea.sflag [#allocation4], 1
    %1991 = vsyncpa %s1990, 1

</llo_original>
